<compile_context>
chip_gen: v7x
topology: tpu7x:2x2x1
jax: 0.10.0
libtpu: 0.0.40
codegen_flags: <defaults>
</compile_context>

<pallas_src>
import functools

import jax
import jax.numpy as jnp
from jax import lax
from jax.experimental import pallas as pl
from jax.experimental.pallas import tpu as pltpu

_LANE = 128     # vreg lane width: each gate block is padded to a multiple of this
_SUBLANE = 8    # f32 sublane width: batch padded to a multiple of this


def _round_up(n, m):
    return ((n + m - 1) // m) * m


def _make_wavefront_lstm_kernel(num_layers, T, Bp, E, Hp):
    """Fused multi-layer LSTM, whole sequence resident in VMEM.

    Ref layout (all VMEM):
      refs[0]            : x (T, Bp, E) bf16
      refs[1+3l .. 3+3l] : W_ih^T (Din_p, 4Hp) bf16, W_hh^T (Hp, 4Hp) bf16,
                           bias (1, 4Hp) f32 (= b_ih + b_hh); gate order [i,f,o,g]
      refs[1+3L]         : outputs (T, Bp, Hp) f32   (last-layer h_t)
      refs[2+3L]         : hidden  (L, Bp, Hp) f32   (final h per layer)
      refs[3+3L]         : xg scratch (T, Bp, 4Hp) f32 (hoisted layer-0 X@W_ih + b)
    """
    L = num_layers
    G = 4 * Hp

    def kernel(*refs):
        x_ref = refs[0]
        w_refs = refs[1:1 + 3 * L]
        out_ref = refs[1 + 3 * L]
        hid_ref = refs[2 + 3 * L]
        xg_ref = refs[3 + 3 * L]

        # ---- Hoisted layer-0 input projection (+ folded bias): one big MXU matmul.
        x2d = x_ref[...].reshape(T * Bp, E)
        xg = jnp.dot(x2d, w_refs[0][...], preferred_element_type=jnp.float32)
        xg_ref[...] = (xg + w_refs[2][...]).reshape(T, Bp, G)

        def cell(l, s, h_below, h, c):
            """One LSTM cell update for layer l at its own time index (s - l)."""
            # W_hh streamed from VMEM inside the step (not hoisted -> no spills
            # on the serial chain for large H).
            rec = jnp.dot(h.astype(jnp.bfloat16), w_refs[3 * l + 1][...],
                          preferred_element_type=jnp.float32)
            if l == 0:
                g = xg_ref[s] + rec
            else:
                g = (jnp.dot(h_below.astype(jnp.bfloat16), w_refs[3 * l + 0][...],
                             preferred_element_type=jnp.float32)
                     + rec + w_refs[3 * l + 2][...])
            # Gate order [i, f, o, g]: ONE sigmoid over 3*Hp lanes + ONE tanh;
            # every slice below is 128-lane aligned (Hp % 128 == 0).
            act = jax.nn.sigmoid(g[:, :3 * Hp])
            g_in = jnp.tanh(g[:, 3 * Hp:])
            i_g = act[:, :Hp]
            f_g = act[:, Hp:2 * Hp]
            o_g = act[:, 2 * Hp:3 * Hp]
            c_new = f_g * c + i_g * g_in
            h_new = o_g * jnp.tanh(c_new)
            return h_new, c_new

        def wave_step(s, hs, cs, active):
            # Layers processed top-down so layer l reads layer l-1's hidden state
            # from the PREVIOUS global step (lag-l software pipeline).
            for l in reversed(range(L)):
                if not active[l]:
                    continue
                h_new, c_new = cell(l, s, hs[l - 1] if l else None, hs[l], cs[l])
                hs[l], cs[l] = h_new, c_new
                if l == L - 1:
                    out_ref[s - (L - 1)] = h_new
            return hs, cs

        zero = jnp.zeros((Bp, Hp), jnp.float32)
        hs = [zero] * L
        cs = [zero] * L

        # Pipeline prologue: layers fill in one per global step.
        for s in range(L - 1):
            hs, cs = wave_step(s, hs, cs, tuple(l <= s for l in range(L)))

        # Steady state: every layer advances one step per iteration; the L
        # independent dependence chains interleave inside one loop body.
        steady = T - (L - 1)

        def body(s, carry):
            hs, cs = list(carry[:L]), list(carry[L:])
            hs, cs = wave_step(s, hs, cs, (True,) * L)
            return tuple(hs) + tuple(cs)

        carry = lax.fori_loop(L - 1, T, body, tuple(hs) + tuple(cs),
                              unroll=True if steady <= 16 else 4)
        hs, cs = list(carry[:L]), list(carry[L:])

        # Pipeline epilogue: drain the upper layers.
        for s in range(T, T + L - 1):
            hs, cs = wave_step(s, hs, cs,
                               tuple(0 <= s - l < T for l in range(L)))

        for l in range(L):
            hid_ref[l] = hs[l]

    return kernel


def _lstm_wavefront(x, layer_args, num_layers, Hp):
    """x: (T, Bp, E) bf16; layer_args: flat [w_ih_t, w_hh_t, bias] * L.

    Returns (outputs (T, Bp, Hp) f32, hidden (L, Bp, Hp) f32)."""
    T, Bp, E = x.shape
    G = 4 * Hp

    # Scoped-VMEM limit sized from the actual footprint (with headroom).
    footprint = x.size * x.dtype.itemsize
    for a in layer_args:
        footprint += a.size * a.dtype.itemsize
    footprint += (T + num_layers) * Bp * Hp * 4      # output slabs
    footprint += T * Bp * G * 4                      # hoisted-gate scratch
    vmem_limit = int(min(max(32 << 20, 2 * footprint), 64 << 20))

    def vmem():
        return pl.BlockSpec(memory_space=pltpu.MemorySpace.VMEM)

    outputs, hidden = pl.pallas_call(
        _make_wavefront_lstm_kernel(num_layers, T, Bp, E, Hp),
        out_shape=(
            jax.ShapeDtypeStruct((T, Bp, Hp), jnp.float32),
            jax.ShapeDtypeStruct((num_layers, Bp, Hp), jnp.float32),
        ),
        in_specs=[vmem() for _ in range(1 + len(layer_args))],
        out_specs=(vmem(), vmem()),
        scratch_shapes=[pltpu.VMEM((T, Bp, G), jnp.float32)],
        compiler_params=pltpu.CompilerParams(vmem_limit_bytes=vmem_limit),
    )(x, *layer_args)
    return outputs, hidden


def init_encoder_params(key, input_size, emb_size, hidden_size, num_layers=2):
    """PyTorch-layout parameters matching the nn.Module's shapes."""
    params = {}
    k_emb, key = jax.random.split(key)
    params["embedding"] = jax.random.normal(
        k_emb, (input_size, emb_size), jnp.float32)   # nn.Embedding default ~ N(0,1)

    bound = 1.0 / jnp.sqrt(hidden_size)
    layers = []
    for layer in range(num_layers):
        din = emb_size if layer == 0 else hidden_size
        ks = jax.random.split(key, 5)
        key = ks[4]
        layers.append(dict(
            w_ih=jax.random.uniform(ks[0], (4 * hidden_size, din),
                                    jnp.float32, -bound, bound),
            w_hh=jax.random.uniform(ks[1], (4 * hidden_size, hidden_size),
                                    jnp.float32, -bound, bound),
            b_ih=jax.random.uniform(ks[2], (4 * hidden_size,),
                                    jnp.float32, -bound, bound),
            b_hh=jax.random.uniform(ks[3], (4 * hidden_size,),
                                    jnp.float32, -bound, bound),
        ))
    params["lstm"] = layers
    # self.out Linear is unused in forward when is_bidirectional=False; init it
    # anyway to mirror the module's parameter set.
    k_w, k_b = jax.random.split(key)
    bound_o = 1.0 / jnp.sqrt(hidden_size)
    params["out_w"] = jax.random.uniform(k_w, (hidden_size, hidden_size),
                                         jnp.float32, -bound_o, bound_o)
    params["out_b"] = jax.random.uniform(k_b, (hidden_size,),
                                         jnp.float32, -bound_o, bound_o)
    return params


def pack_encoder_params(params, hidden_size):
    """ONE-TIME conversion from PyTorch layout to kernel layout:
       transpose -> (Din,4H)/(H,4H), fold b_ih+b_hh, reorder gate blocks
       [i,f,g,o] -> [i,f,o,g], zero-pad gate/hidden axes to a multiple of 128
       lanes, cast MXU operands to bf16 (biases stay f32)."""
    H = hidden_size
    Hp = _round_up(H, _LANE)
    perm = jnp.array([0, 1, 3, 2], dtype=jnp.int32)   # [i,f,g,o] -> [i,f,o,g]

    def pack_cols(w):                                  # w: (4H, Din) torch layout
        din = w.shape[1]
        wt = jnp.transpose(w).reshape(din, 4, H)
        wt = jnp.take(wt, perm, axis=1)
        wt = jnp.pad(wt, ((0, 0), (0, 0), (0, Hp - H)))
        return wt.reshape(din, 4 * Hp)

    layers = []
    for i, lp in enumerate(params["lstm"]):
        w_ih = pack_cols(lp["w_ih"])                   # (Din, 4Hp)
        if i > 0:                                      # pad input rows H -> Hp
            w_ih = jnp.pad(w_ih, ((0, Hp - H), (0, 0)))
        w_hh = pack_cols(lp["w_hh"])                   # (H, 4Hp)
        w_hh = jnp.pad(w_hh, ((0, Hp - H), (0, 0)))    # (Hp, 4Hp)
        b = (lp["b_ih"] + lp["b_hh"]).reshape(4, H)
        b = jnp.take(b, perm, axis=0)
        b = jnp.pad(b, ((0, 0), (0, Hp - H))).reshape(1, 4 * Hp)
        layers.append(dict(
            w_ih_t=w_ih.astype(jnp.bfloat16),
            w_hh_t=w_hh.astype(jnp.bfloat16),
            bias=b.astype(jnp.float32),
        ))
    return dict(embedding=params["embedding"].astype(jnp.float32),
                lstm=tuple(layers))


@functools.partial(jax.jit, static_argnames=("hidden_size",))
def encoder_forward(packed_params, src, *, hidden_size):
    """src: (T, B) int32  ->  (hidden (num_layers, B, H), outputs (T, B, H))."""
    T, B = src.shape
    layers = packed_params["lstm"]
    num_layers = len(layers)
    assert T >= num_layers, "sequence must be at least num_layers long"
    H = hidden_size
    Hp = layers[0]["w_hh_t"].shape[0]                  # padded hidden dim

    # Embedding lookup (glue): (T, B) -> (T, B, E).
    x = jnp.take(packed_params["embedding"], src, axis=0)
    # Dropout: identity in eval mode.
    # Pad batch to the sublane width; larger batches are nearly free on the MXU.
    Bp = _round_up(B, _SUBLANE)
    if Bp != B:
        x = jnp.pad(x, ((0, 0), (0, Bp - B), (0, 0)))
    x = x.astype(jnp.bfloat16)                         # MXU operand dtype

    flat_args = []
    for lp in layers:
        flat_args += [lp["w_ih_t"], lp["w_hh_t"], lp["bias"]]

    outputs_p, hidden_p = _lstm_wavefront(x, flat_args, num_layers, Hp)

    hidden = hidden_p[:, :B, :H]     # (num_layers, B, H)
    outputs = outputs_p[:, :B, :H]   # (T, B, H)
    return hidden, outputs


if __name__ == "__main__":
    INPUT_SIZE = 50     # vocab size
    EMB_SIZE = 16
    HIDDEN_SIZE = 32
    NUM_LAYERS = 2
    SRC_LEN = 8
    BATCH = 2

    key = jax.random.PRNGKey(0)
    k_params, k_src = jax.random.split(key)
    params = init_encoder_params(k_params, INPUT_SIZE, EMB_SIZE, HIDDEN_SIZE,
                                 num_layers=NUM_LAYERS)
    packed = pack_encoder_params(params, HIDDEN_SIZE)
    src = jax.random.randint(k_src, (SRC_LEN, BATCH), 0, INPUT_SIZE,
                             dtype=jnp.int32)

    hidden, outputs = encoder_forward(packed, src, hidden_size=HIDDEN_SIZE)
    jax.block_until_ready((hidden, outputs))

    assert hidden.shape == (NUM_LAYERS, BATCH, HIDDEN_SIZE)
    assert outputs.shape == (SRC_LEN, BATCH, HIDDEN_SIZE)
    assert bool(jnp.all(jnp.isfinite(hidden))) and bool(jnp.all(jnp.isfinite(outputs)))
    print("KERNEL_OK")
</pallas_src>

<mosaic_0001>
module attributes {stable_mosaic.version = 11 : i64} {
  func.func @kernel(%arg0: memref<8x8x16xbf16, #tpu.memory_space<vmem>>, %arg1: memref<16x512xbf16, #tpu.memory_space<vmem>>, %arg2: memref<128x512xbf16, #tpu.memory_space<vmem>>, %arg3: memref<1x512xf32, #tpu.memory_space<vmem>>, %arg4: memref<128x512xbf16, #tpu.memory_space<vmem>>, %arg5: memref<128x512xbf16, #tpu.memory_space<vmem>>, %arg6: memref<1x512xf32, #tpu.memory_space<vmem>>, %arg7: memref<8x8x128xf32, #tpu.memory_space<vmem>>, %arg8: memref<2x8x128xf32, #tpu.memory_space<vmem>>, %arg9: memref<8x8x512xf32, #tpu.memory_space<vmem>>) attributes {dimension_semantics = [], scalar_prefetch = 0 : i64, scratch_operands = 1 : i64, tpu.core_type = #tpu.core_type<tc>} {
    %c0 = arith.constant 0 : index
    %c0_0 = arith.constant 0 : index
    %c0_1 = arith.constant 0 : index
    %0 = vector.load %arg0[%c0, %c0_0, %c0_1] : memref<8x8x16xbf16, #tpu.memory_space<vmem>>, vector<8x8x16xbf16>
    %1 = vector.shape_cast %0 : vector<8x8x16xbf16> to vector<64x16xbf16>
    %c0_2 = arith.constant 0 : index
    %c0_3 = arith.constant 0 : index
    %2 = vector.load %arg1[%c0_2, %c0_3] : memref<16x512xbf16, #tpu.memory_space<vmem>>, vector<16x512xbf16>
    %cst = arith.constant dense<0.000000e+00> : vector<64x512xf32>
    %3 = tpu.matmul %1, %2, %cst {dimension_numbers = #tpu.dot_dimension_numbers<[1], [0], [0], [1], [0, 0, 1, 1], [], []>} : vector<64x16xbf16>, vector<16x512xbf16>, vector<64x512xf32> -> vector<64x512xf32>
    %c0_4 = arith.constant 0 : index
    %c0_5 = arith.constant 0 : index
    %4 = vector.load %arg3[%c0_4, %c0_5] : memref<1x512xf32, #tpu.memory_space<vmem>>, vector<1x512xf32>
    %5 = vector.broadcast %4 : vector<1x512xf32> to vector<64x512xf32>
    %6 = arith.addf %3, %5 : vector<64x512xf32>
    %7 = vector.shape_cast %6 : vector<64x512xf32> to vector<8x8x512xf32>
    %c0_6 = arith.constant 0 : index
    %c0_7 = arith.constant 0 : index
    %c0_8 = arith.constant 0 : index
    %8 = vector.load %arg9[%c0_6, %c0_7, %c0_8] : memref<8x8x512xf32, #tpu.memory_space<vmem>>, vector<8x8x512xf32>
    tpu.vector_store %arg9[%c0_6, %c0_7, %c0_8], %7 {strides = array<i32>} : memref<8x8x512xf32, #tpu.memory_space<vmem>>, vector<8x8x512xf32>,
    %cst_9 = arith.constant 0.000000e+00 : f32
    %9 = vector.broadcast %cst_9 : f32 to vector<8x128xf32>
    %10 = arith.truncf %9 : vector<8x128xf32> to vector<8x128xbf16>
    %c0_10 = arith.constant 0 : index
    %c0_11 = arith.constant 0 : index
    %11 = vector.load %arg2[%c0_10, %c0_11] : memref<128x512xbf16, #tpu.memory_space<vmem>>, vector<128x512xbf16>
    %cst_12 = arith.constant dense<0.000000e+00> : vector<8x512xf32>
    %12 = tpu.matmul %10, %11, %cst_12 {dimension_numbers = #tpu.dot_dimension_numbers<[1], [0], [0], [1], [0, 0, 1, 1], [], []>} : vector<8x128xbf16>, vector<128x512xbf16>, vector<8x512xf32> -> vector<8x512xf32>
    %c0_13 = arith.constant 0 : index
    %c0_14 = arith.constant 0 : index
    %c0_15 = arith.constant 0 : index
    %13 = vector.load %arg9[%c0_13, %c0_14, %c0_15] : memref<8x8x512xf32, #tpu.memory_space<vmem>>, vector<1x8x512xf32>
    %14 = vector.shape_cast %13 : vector<1x8x512xf32> to vector<8x512xf32>
    %15 = arith.addf %14, %12 : vector<8x512xf32>
    %16 = vector.extract_strided_slice %15 {offsets = [0, 0], sizes = [8, 384], strides = [1, 1]} : vector<8x512xf32> to vector<8x384xf32>
    %17 = arith.negf %16 : vector<8x384xf32>
    %18 = math.exp %17 : vector<8x384xf32>
    %cst_16 = arith.constant 1.000000e+00 : f32
    %19 = vector.broadcast %cst_16 : f32 to vector<8x384xf32>
    %20 = arith.addf %19, %18 : vector<8x384xf32>
    %21 = arith.divf %19, %20 : vector<8x384xf32>
    %22 = vector.extract_strided_slice %15 {offsets = [0, 384], sizes = [8, 128], strides = [1, 1]} : vector<8x512xf32> to vector<8x128xf32>
    %23 = math.tanh %22 : vector<8x128xf32>
    %24 = vector.extract_strided_slice %21 {offsets = [0, 0], sizes = [8, 128], strides = [1, 1]} : vector<8x384xf32> to vector<8x128xf32>
    %25 = vector.extract_strided_slice %21 {offsets = [0, 128], sizes = [8, 128], strides = [1, 1]} : vector<8x384xf32> to vector<8x128xf32>
    %26 = vector.extract_strided_slice %21 {offsets = [0, 256], sizes = [8, 128], strides = [1, 1]} : vector<8x384xf32> to vector<8x128xf32>
    %27 = arith.mulf %25, %9 : vector<8x128xf32>
    %28 = arith.mulf %24, %23 : vector<8x128xf32>
    %29 = arith.addf %27, %28 : vector<8x128xf32>
    %30 = math.tanh %29 : vector<8x128xf32>
    %31 = arith.mulf %26, %30 : vector<8x128xf32>
    %c1_i32 = arith.constant 1 : i32
    %32 = arith.truncf %9 : vector<8x128xf32> to vector<8x128xbf16>
    %c0_17 = arith.constant 0 : index
    %c0_18 = arith.constant 0 : index
    %33 = vector.load %arg5[%c0_17, %c0_18] : memref<128x512xbf16, #tpu.memory_space<vmem>>, vector<128x512xbf16>
    %cst_19 = arith.constant dense<0.000000e+00> : vector<8x512xf32>
    %34 = tpu.matmul %32, %33, %cst_19 {dimension_numbers = #tpu.dot_dimension_numbers<[1], [0], [0], [1], [0, 0, 1, 1], [], []>} : vector<8x128xbf16>, vector<128x512xbf16>, vector<8x512xf32> -> vector<8x512xf32>
    %35 = arith.truncf %31 : vector<8x128xf32> to vector<8x128xbf16>
    %c0_20 = arith.constant 0 : index
    %c0_21 = arith.constant 0 : index
    %36 = vector.load %arg4[%c0_20, %c0_21] : memref<128x512xbf16, #tpu.memory_space<vmem>>, vector<128x512xbf16>
    %cst_22 = arith.constant dense<0.000000e+00> : vector<8x512xf32>
    %37 = tpu.matmul %35, %36, %cst_22 {dimension_numbers = #tpu.dot_dimension_numbers<[1], [0], [0], [1], [0, 0, 1, 1], [], []>} : vector<8x128xbf16>, vector<128x512xbf16>, vector<8x512xf32> -> vector<8x512xf32>
    %38 = arith.addf %37, %34 : vector<8x512xf32>
    %c0_23 = arith.constant 0 : index
    %c0_24 = arith.constant 0 : index
    %39 = vector.load %arg6[%c0_23, %c0_24] : memref<1x512xf32, #tpu.memory_space<vmem>>, vector<1x512xf32>
    %40 = vector.broadcast %39 : vector<1x512xf32> to vector<8x512xf32>
    %41 = arith.addf %38, %40 : vector<8x512xf32>
    %42 = vector.extract_strided_slice %41 {offsets = [0, 0], sizes = [8, 384], strides = [1, 1]} : vector<8x512xf32> to vector<8x384xf32>
    %43 = arith.negf %42 : vector<8x384xf32>
    %44 = math.exp %43 : vector<8x384xf32>
    %cst_25 = arith.constant 1.000000e+00 : f32
    %45 = vector.broadcast %cst_25 : f32 to vector<8x384xf32>
    %46 = arith.addf %45, %44 : vector<8x384xf32>
    %47 = arith.divf %45, %46 : vector<8x384xf32>
    %48 = vector.extract_strided_slice %41 {offsets = [0, 384], sizes = [8, 128], strides = [1, 1]} : vector<8x512xf32> to vector<8x128xf32>
    %49 = math.tanh %48 : vector<8x128xf32>
    %50 = vector.extract_strided_slice %47 {offsets = [0, 0], sizes = [8, 128], strides = [1, 1]} : vector<8x384xf32> to vector<8x128xf32>
    %51 = vector.extract_strided_slice %47 {offsets = [0, 128], sizes = [8, 128], strides = [1, 1]} : vector<8x384xf32> to vector<8x128xf32>
    %52 = vector.extract_strided_slice %47 {offsets = [0, 256], sizes = [8, 128], strides = [1, 1]} : vector<8x384xf32> to vector<8x128xf32>
    %53 = arith.mulf %51, %9 : vector<8x128xf32>
    %54 = arith.mulf %50, %49 : vector<8x128xf32>
    %55 = arith.addf %53, %54 : vector<8x128xf32>
    %56 = math.tanh %55 : vector<8x128xf32>
    %57 = arith.mulf %52, %56 : vector<8x128xf32>
    %c1_i32_26 = arith.constant 1 : i32
    %58 = arith.subi %c1_i32, %c1_i32_26 : i32
    %59 = arith.index_cast %58 : i32 to index
    %c0_27 = arith.constant 0 : index
    %c0_28 = arith.constant 0 : index
    %60 = vector.load %arg7[%59, %c0_27, %c0_28] : memref<8x8x128xf32, #tpu.memory_space<vmem>>, vector<1x8x128xf32>
    %61 = vector.shape_cast %60 : vector<1x8x128xf32> to vector<8x128xf32>
    %62 = vector.shape_cast %57 : vector<8x128xf32> to vector<1x8x128xf32>
    tpu.vector_store %arg7[%59, %c0_27, %c0_28], %62 {strides = array<i32>} : memref<8x8x128xf32, #tpu.memory_space<vmem>>, vector<1x8x128xf32>,
    %63 = arith.truncf %31 : vector<8x128xf32> to vector<8x128xbf16>
    %c0_29 = arith.constant 0 : index
    %c0_30 = arith.constant 0 : index
    %64 = vector.load %arg2[%c0_29, %c0_30] : memref<128x512xbf16, #tpu.memory_space<vmem>>, vector<128x512xbf16>
    %cst_31 = arith.constant dense<0.000000e+00> : vector<8x512xf32>
    %65 = tpu.matmul %63, %64, %cst_31 {dimension_numbers = #tpu.dot_dimension_numbers<[1], [0], [0], [1], [0, 0, 1, 1], [], []>} : vector<8x128xbf16>, vector<128x512xbf16>, vector<8x512xf32> -> vector<8x512xf32>
    %66 = arith.index_cast %c1_i32 : i32 to index
    %c0_32 = arith.constant 0 : index
    %c0_33 = arith.constant 0 : index
    %67 = vector.load %arg9[%66, %c0_32, %c0_33] : memref<8x8x512xf32, #tpu.memory_space<vmem>>, vector<1x8x512xf32>
    %68 = vector.shape_cast %67 : vector<1x8x512xf32> to vector<8x512xf32>
    %69 = arith.addf %68, %65 : vector<8x512xf32>
    %70 = vector.extract_strided_slice %69 {offsets = [0, 0], sizes = [8, 384], strides = [1, 1]} : vector<8x512xf32> to vector<8x384xf32>
    %71 = arith.negf %70 : vector<8x384xf32>
    %72 = math.exp %71 : vector<8x384xf32>
    %cst_34 = arith.constant 1.000000e+00 : f32
    %73 = vector.broadcast %cst_34 : f32 to vector<8x384xf32>
    %74 = arith.addf %73, %72 : vector<8x384xf32>
    %75 = arith.divf %73, %74 : vector<8x384xf32>
    %76 = vector.extract_strided_slice %69 {offsets = [0, 384], sizes = [8, 128], strides = [1, 1]} : vector<8x512xf32> to vector<8x128xf32>
    %77 = math.tanh %76 : vector<8x128xf32>
    %78 = vector.extract_strided_slice %75 {offsets = [0, 0], sizes = [8, 128], strides = [1, 1]} : vector<8x384xf32> to vector<8x128xf32>
    %79 = vector.extract_strided_slice %75 {offsets = [0, 128], sizes = [8, 128], strides = [1, 1]} : vector<8x384xf32> to vector<8x128xf32>
    %80 = vector.extract_strided_slice %75 {offsets = [0, 256], sizes = [8, 128], strides = [1, 1]} : vector<8x384xf32> to vector<8x128xf32>
    %81 = arith.mulf %79, %29 : vector<8x128xf32>
    %82 = arith.mulf %78, %77 : vector<8x128xf32>
    %83 = arith.addf %81, %82 : vector<8x128xf32>
    %84 = math.tanh %83 : vector<8x128xf32>
    %85 = arith.mulf %80, %84 : vector<8x128xf32>
    %c2_i32 = arith.constant 2 : i32
    %86 = arith.truncf %57 : vector<8x128xf32> to vector<8x128xbf16>
    %c0_35 = arith.constant 0 : index
    %c0_36 = arith.constant 0 : index
    %87 = vector.load %arg5[%c0_35, %c0_36] : memref<128x512xbf16, #tpu.memory_space<vmem>>, vector<128x512xbf16>
    %cst_37 = arith.constant dense<0.000000e+00> : vector<8x512xf32>
    %88 = tpu.matmul %86, %87, %cst_37 {dimension_numbers = #tpu.dot_dimension_numbers<[1], [0], [0], [1], [0, 0, 1, 1], [], []>} : vector<8x128xbf16>, vector<128x512xbf16>, vector<8x512xf32> -> vector<8x512xf32>
    %89 = arith.truncf %85 : vector<8x128xf32> to vector<8x128xbf16>
    %c0_38 = arith.constant 0 : index
    %c0_39 = arith.constant 0 : index
    %90 = vector.load %arg4[%c0_38, %c0_39] : memref<128x512xbf16, #tpu.memory_space<vmem>>, vector<128x512xbf16>
    %cst_40 = arith.constant dense<0.000000e+00> : vector<8x512xf32>
    %91 = tpu.matmul %89, %90, %cst_40 {dimension_numbers = #tpu.dot_dimension_numbers<[1], [0], [0], [1], [0, 0, 1, 1], [], []>} : vector<8x128xbf16>, vector<128x512xbf16>, vector<8x512xf32> -> vector<8x512xf32>
    %92 = arith.addf %91, %88 : vector<8x512xf32>
    %c0_41 = arith.constant 0 : index
    %c0_42 = arith.constant 0 : index
    %93 = vector.load %arg6[%c0_41, %c0_42] : memref<1x512xf32, #tpu.memory_space<vmem>>, vector<1x512xf32>
    %94 = vector.broadcast %93 : vector<1x512xf32> to vector<8x512xf32>
    %95 = arith.addf %92, %94 : vector<8x512xf32>
    %96 = vector.extract_strided_slice %95 {offsets = [0, 0], sizes = [8, 384], strides = [1, 1]} : vector<8x512xf32> to vector<8x384xf32>
    %97 = arith.negf %96 : vector<8x384xf32>
    %98 = math.exp %97 : vector<8x384xf32>
    %cst_43 = arith.constant 1.000000e+00 : f32
    %99 = vector.broadcast %cst_43 : f32 to vector<8x384xf32>
    %100 = arith.addf %99, %98 : vector<8x384xf32>
    %101 = arith.divf %99, %100 : vector<8x384xf32>
    %102 = vector.extract_strided_slice %95 {offsets = [0, 384], sizes = [8, 128], strides = [1, 1]} : vector<8x512xf32> to vector<8x128xf32>
    %103 = math.tanh %102 : vector<8x128xf32>
    %104 = vector.extract_strided_slice %101 {offsets = [0, 0], sizes = [8, 128], strides = [1, 1]} : vector<8x384xf32> to vector<8x128xf32>
    %105 = vector.extract_strided_slice %101 {offsets = [0, 128], sizes = [8, 128], strides = [1, 1]} : vector<8x384xf32> to vector<8x128xf32>
    %106 = vector.extract_strided_slice %101 {offsets = [0, 256], sizes = [8, 128], strides = [1, 1]} : vector<8x384xf32> to vector<8x128xf32>
    %107 = arith.mulf %105, %55 : vector<8x128xf32>
    %108 = arith.mulf %104, %103 : vector<8x128xf32>
    %109 = arith.addf %107, %108 : vector<8x128xf32>
    %110 = math.tanh %109 : vector<8x128xf32>
    %111 = arith.mulf %106, %110 : vector<8x128xf32>
    %c1_i32_44 = arith.constant 1 : i32
    %112 = arith.subi %c2_i32, %c1_i32_44 : i32
    %113 = arith.index_cast %112 : i32 to index
    %c0_45 = arith.constant 0 : index
    %c0_46 = arith.constant 0 : index
    %114 = vector.load %arg7[%113, %c0_45, %c0_46] : memref<8x8x128xf32, #tpu.memory_space<vmem>>, vector<1x8x128xf32>
    %115 = vector.shape_cast %114 : vector<1x8x128xf32> to vector<8x128xf32>
    %116 = vector.shape_cast %111 : vector<8x128xf32> to vector<1x8x128xf32>
    tpu.vector_store %arg7[%113, %c0_45, %c0_46], %116 {strides = array<i32>} : memref<8x8x128xf32, #tpu.memory_space<vmem>>, vector<1x8x128xf32>,
    %117 = arith.truncf %85 : vector<8x128xf32> to vector<8x128xbf16>
    %c0_47 = arith.constant 0 : index
    %c0_48 = arith.constant 0 : index
    %118 = vector.load %arg2[%c0_47, %c0_48] : memref<128x512xbf16, #tpu.memory_space<vmem>>, vector<128x512xbf16>
    %cst_49 = arith.constant dense<0.000000e+00> : vector<8x512xf32>
    %119 = tpu.matmul %117, %118, %cst_49 {dimension_numbers = #tpu.dot_dimension_numbers<[1], [0], [0], [1], [0, 0, 1, 1], [], []>} : vector<8x128xbf16>, vector<128x512xbf16>, vector<8x512xf32> -> vector<8x512xf32>
    %120 = arith.index_cast %c2_i32 : i32 to index
    %c0_50 = arith.constant 0 : index
    %c0_51 = arith.constant 0 : index
    %121 = vector.load %arg9[%120, %c0_50, %c0_51] : memref<8x8x512xf32, #tpu.memory_space<vmem>>, vector<1x8x512xf32>
    %122 = vector.shape_cast %121 : vector<1x8x512xf32> to vector<8x512xf32>
    %123 = arith.addf %122, %119 : vector<8x512xf32>
    %124 = vector.extract_strided_slice %123 {offsets = [0, 0], sizes = [8, 384], strides = [1, 1]} : vector<8x512xf32> to vector<8x384xf32>
    %125 = arith.negf %124 : vector<8x384xf32>
    %126 = math.exp %125 : vector<8x384xf32>
    %cst_52 = arith.constant 1.000000e+00 : f32
    %127 = vector.broadcast %cst_52 : f32 to vector<8x384xf32>
    %128 = arith.addf %127, %126 : vector<8x384xf32>
    %129 = arith.divf %127, %128 : vector<8x384xf32>
    %130 = vector.extract_strided_slice %123 {offsets = [0, 384], sizes = [8, 128], strides = [1, 1]} : vector<8x512xf32> to vector<8x128xf32>
    %131 = math.tanh %130 : vector<8x128xf32>
    %132 = vector.extract_strided_slice %129 {offsets = [0, 0], sizes = [8, 128], strides = [1, 1]} : vector<8x384xf32> to vector<8x128xf32>
    %133 = vector.extract_strided_slice %129 {offsets = [0, 128], sizes = [8, 128], strides = [1, 1]} : vector<8x384xf32> to vector<8x128xf32>
    %134 = vector.extract_strided_slice %129 {offsets = [0, 256], sizes = [8, 128], strides = [1, 1]} : vector<8x384xf32> to vector<8x128xf32>
    %135 = arith.mulf %133, %83 : vector<8x128xf32>
    %136 = arith.mulf %132, %131 : vector<8x128xf32>
    %137 = arith.addf %135, %136 : vector<8x128xf32>
    %138 = math.tanh %137 : vector<8x128xf32>
    %139 = arith.mulf %134, %138 : vector<8x128xf32>
    %c3_i32 = arith.constant 3 : i32
    %140 = arith.truncf %111 : vector<8x128xf32> to vector<8x128xbf16>
    %c0_53 = arith.constant 0 : index
    %c0_54 = arith.constant 0 : index
    %141 = vector.load %arg5[%c0_53, %c0_54] : memref<128x512xbf16, #tpu.memory_space<vmem>>, vector<128x512xbf16>
    %cst_55 = arith.constant dense<0.000000e+00> : vector<8x512xf32>
    %142 = tpu.matmul %140, %141, %cst_55 {dimension_numbers = #tpu.dot_dimension_numbers<[1], [0], [0], [1], [0, 0, 1, 1], [], []>} : vector<8x128xbf16>, vector<128x512xbf16>, vector<8x512xf32> -> vector<8x512xf32>
    %143 = arith.truncf %139 : vector<8x128xf32> to vector<8x128xbf16>
    %c0_56 = arith.constant 0 : index
    %c0_57 = arith.constant 0 : index
    %144 = vector.load %arg4[%c0_56, %c0_57] : memref<128x512xbf16, #tpu.memory_space<vmem>>, vector<128x512xbf16>
    %cst_58 = arith.constant dense<0.000000e+00> : vector<8x512xf32>
    %145 = tpu.matmul %143, %144, %cst_58 {dimension_numbers = #tpu.dot_dimension_numbers<[1], [0], [0], [1], [0, 0, 1, 1], [], []>} : vector<8x128xbf16>, vector<128x512xbf16>, vector<8x512xf32> -> vector<8x512xf32>
    %146 = arith.addf %145, %142 : vector<8x512xf32>
    %c0_59 = arith.constant 0 : index
    %c0_60 = arith.constant 0 : index
    %147 = vector.load %arg6[%c0_59, %c0_60] : memref<1x512xf32, #tpu.memory_space<vmem>>, vector<1x512xf32>
    %148 = vector.broadcast %147 : vector<1x512xf32> to vector<8x512xf32>
    %149 = arith.addf %146, %148 : vector<8x512xf32>
    %150 = vector.extract_strided_slice %149 {offsets = [0, 0], sizes = [8, 384], strides = [1, 1]} : vector<8x512xf32> to vector<8x384xf32>
    %151 = arith.negf %150 : vector<8x384xf32>
    %152 = math.exp %151 : vector<8x384xf32>
    %cst_61 = arith.constant 1.000000e+00 : f32
    %153 = vector.broadcast %cst_61 : f32 to vector<8x384xf32>
    %154 = arith.addf %153, %152 : vector<8x384xf32>
    %155 = arith.divf %153, %154 : vector<8x384xf32>
    %156 = vector.extract_strided_slice %149 {offsets = [0, 384], sizes = [8, 128], strides = [1, 1]} : vector<8x512xf32> to vector<8x128xf32>
    %157 = math.tanh %156 : vector<8x128xf32>
    %158 = vector.extract_strided_slice %155 {offsets = [0, 0], sizes = [8, 128], strides = [1, 1]} : vector<8x384xf32> to vector<8x128xf32>
    %159 = vector.extract_strided_slice %155 {offsets = [0, 128], sizes = [8, 128], strides = [1, 1]} : vector<8x384xf32> to vector<8x128xf32>
    %160 = vector.extract_strided_slice %155 {offsets = [0, 256], sizes = [8, 128], strides = [1, 1]} : vector<8x384xf32> to vector<8x128xf32>
    %161 = arith.mulf %159, %109 : vector<8x128xf32>
    %162 = arith.mulf %158, %157 : vector<8x128xf32>
    %163 = arith.addf %161, %162 : vector<8x128xf32>
    %164 = math.tanh %163 : vector<8x128xf32>
    %165 = arith.mulf %160, %164 : vector<8x128xf32>
    %c1_i32_62 = arith.constant 1 : i32
    %166 = arith.subi %c3_i32, %c1_i32_62 : i32
    %167 = arith.index_cast %166 : i32 to index
    %c0_63 = arith.constant 0 : index
    %c0_64 = arith.constant 0 : index
    %168 = vector.load %arg7[%167, %c0_63, %c0_64] : memref<8x8x128xf32, #tpu.memory_space<vmem>>, vector<1x8x128xf32>
    %169 = vector.shape_cast %168 : vector<1x8x128xf32> to vector<8x128xf32>
    %170 = vector.shape_cast %165 : vector<8x128xf32> to vector<1x8x128xf32>
    tpu.vector_store %arg7[%167, %c0_63, %c0_64], %170 {strides = array<i32>} : memref<8x8x128xf32, #tpu.memory_space<vmem>>, vector<1x8x128xf32>,
    %171 = arith.truncf %139 : vector<8x128xf32> to vector<8x128xbf16>
    %c0_65 = arith.constant 0 : index
    %c0_66 = arith.constant 0 : index
    %172 = vector.load %arg2[%c0_65, %c0_66] : memref<128x512xbf16, #tpu.memory_space<vmem>>, vector<128x512xbf16>
    %cst_67 = arith.constant dense<0.000000e+00> : vector<8x512xf32>
    %173 = tpu.matmul %171, %172, %cst_67 {dimension_numbers = #tpu.dot_dimension_numbers<[1], [0], [0], [1], [0, 0, 1, 1], [], []>} : vector<8x128xbf16>, vector<128x512xbf16>, vector<8x512xf32> -> vector<8x512xf32>
    %174 = arith.index_cast %c3_i32 : i32 to index
    %c0_68 = arith.constant 0 : index
    %c0_69 = arith.constant 0 : index
    %175 = vector.load %arg9[%174, %c0_68, %c0_69] : memref<8x8x512xf32, #tpu.memory_space<vmem>>, vector<1x8x512xf32>
    %176 = vector.shape_cast %175 : vector<1x8x512xf32> to vector<8x512xf32>
    %177 = arith.addf %176, %173 : vector<8x512xf32>
    %178 = vector.extract_strided_slice %177 {offsets = [0, 0], sizes = [8, 384], strides = [1, 1]} : vector<8x512xf32> to vector<8x384xf32>
    %179 = arith.negf %178 : vector<8x384xf32>
    %180 = math.exp %179 : vector<8x384xf32>
    %cst_70 = arith.constant 1.000000e+00 : f32
    %181 = vector.broadcast %cst_70 : f32 to vector<8x384xf32>
    %182 = arith.addf %181, %180 : vector<8x384xf32>
    %183 = arith.divf %181, %182 : vector<8x384xf32>
    %184 = vector.extract_strided_slice %177 {offsets = [0, 384], sizes = [8, 128], strides = [1, 1]} : vector<8x512xf32> to vector<8x128xf32>
    %185 = math.tanh %184 : vector<8x128xf32>
    %186 = vector.extract_strided_slice %183 {offsets = [0, 0], sizes = [8, 128], strides = [1, 1]} : vector<8x384xf32> to vector<8x128xf32>
    %187 = vector.extract_strided_slice %183 {offsets = [0, 128], sizes = [8, 128], strides = [1, 1]} : vector<8x384xf32> to vector<8x128xf32>
    %188 = vector.extract_strided_slice %183 {offsets = [0, 256], sizes = [8, 128], strides = [1, 1]} : vector<8x384xf32> to vector<8x128xf32>
    %189 = arith.mulf %187, %137 : vector<8x128xf32>
    %190 = arith.mulf %186, %185 : vector<8x128xf32>
    %191 = arith.addf %189, %190 : vector<8x128xf32>
    %192 = math.tanh %191 : vector<8x128xf32>
    %193 = arith.mulf %188, %192 : vector<8x128xf32>
    %c4_i32 = arith.constant 4 : i32
    %194 = arith.truncf %165 : vector<8x128xf32> to vector<8x128xbf16>
    %c0_71 = arith.constant 0 : index
    %c0_72 = arith.constant 0 : index
    %195 = vector.load %arg5[%c0_71, %c0_72] : memref<128x512xbf16, #tpu.memory_space<vmem>>, vector<128x512xbf16>
    %cst_73 = arith.constant dense<0.000000e+00> : vector<8x512xf32>
    %196 = tpu.matmul %194, %195, %cst_73 {dimension_numbers = #tpu.dot_dimension_numbers<[1], [0], [0], [1], [0, 0, 1, 1], [], []>} : vector<8x128xbf16>, vector<128x512xbf16>, vector<8x512xf32> -> vector<8x512xf32>
    %197 = arith.truncf %193 : vector<8x128xf32> to vector<8x128xbf16>
    %c0_74 = arith.constant 0 : index
    %c0_75 = arith.constant 0 : index
    %198 = vector.load %arg4[%c0_74, %c0_75] : memref<128x512xbf16, #tpu.memory_space<vmem>>, vector<128x512xbf16>
    %cst_76 = arith.constant dense<0.000000e+00> : vector<8x512xf32>
    %199 = tpu.matmul %197, %198, %cst_76 {dimension_numbers = #tpu.dot_dimension_numbers<[1], [0], [0], [1], [0, 0, 1, 1], [], []>} : vector<8x128xbf16>, vector<128x512xbf16>, vector<8x512xf32> -> vector<8x512xf32>
    %200 = arith.addf %199, %196 : vector<8x512xf32>
    %c0_77 = arith.constant 0 : index
    %c0_78 = arith.constant 0 : index
    %201 = vector.load %arg6[%c0_77, %c0_78] : memref<1x512xf32, #tpu.memory_space<vmem>>, vector<1x512xf32>
    %202 = vector.broadcast %201 : vector<1x512xf32> to vector<8x512xf32>
    %203 = arith.addf %200, %202 : vector<8x512xf32>
    %204 = vector.extract_strided_slice %203 {offsets = [0, 0], sizes = [8, 384], strides = [1, 1]} : vector<8x512xf32> to vector<8x384xf32>
    %205 = arith.negf %204 : vector<8x384xf32>
    %206 = math.exp %205 : vector<8x384xf32>
    %cst_79 = arith.constant 1.000000e+00 : f32
    %207 = vector.broadcast %cst_79 : f32 to vector<8x384xf32>
    %208 = arith.addf %207, %206 : vector<8x384xf32>
    %209 = arith.divf %207, %208 : vector<8x384xf32>
    %210 = vector.extract_strided_slice %203 {offsets = [0, 384], sizes = [8, 128], strides = [1, 1]} : vector<8x512xf32> to vector<8x128xf32>
    %211 = math.tanh %210 : vector<8x128xf32>
    %212 = vector.extract_strided_slice %209 {offsets = [0, 0], sizes = [8, 128], strides = [1, 1]} : vector<8x384xf32> to vector<8x128xf32>
    %213 = vector.extract_strided_slice %209 {offsets = [0, 128], sizes = [8, 128], strides = [1, 1]} : vector<8x384xf32> to vector<8x128xf32>
    %214 = vector.extract_strided_slice %209 {offsets = [0, 256], sizes = [8, 128], strides = [1, 1]} : vector<8x384xf32> to vector<8x128xf32>
    %215 = arith.mulf %213, %163 : vector<8x128xf32>
    %216 = arith.mulf %212, %211 : vector<8x128xf32>
    %217 = arith.addf %215, %216 : vector<8x128xf32>
    %218 = math.tanh %217 : vector<8x128xf32>
    %219 = arith.mulf %214, %218 : vector<8x128xf32>
    %c1_i32_80 = arith.constant 1 : i32
    %220 = arith.subi %c4_i32, %c1_i32_80 : i32
    %221 = arith.index_cast %220 : i32 to index
    %c0_81 = arith.constant 0 : index
    %c0_82 = arith.constant 0 : index
    %222 = vector.load %arg7[%221, %c0_81, %c0_82] : memref<8x8x128xf32, #tpu.memory_space<vmem>>, vector<1x8x128xf32>
    %223 = vector.shape_cast %222 : vector<1x8x128xf32> to vector<8x128xf32>
    %224 = vector.shape_cast %219 : vector<8x128xf32> to vector<1x8x128xf32>
    tpu.vector_store %arg7[%221, %c0_81, %c0_82], %224 {strides = array<i32>} : memref<8x8x128xf32, #tpu.memory_space<vmem>>, vector<1x8x128xf32>,
    %225 = arith.truncf %193 : vector<8x128xf32> to vector<8x128xbf16>
    %c0_83 = arith.constant 0 : index
    %c0_84 = arith.constant 0 : index
    %226 = vector.load %arg2[%c0_83, %c0_84] : memref<128x512xbf16, #tpu.memory_space<vmem>>, vector<128x512xbf16>
    %cst_85 = arith.constant dense<0.000000e+00> : vector<8x512xf32>
    %227 = tpu.matmul %225, %226, %cst_85 {dimension_numbers = #tpu.dot_dimension_numbers<[1], [0], [0], [1], [0, 0, 1, 1], [], []>} : vector<8x128xbf16>, vector<128x512xbf16>, vector<8x512xf32> -> vector<8x512xf32>
    %228 = arith.index_cast %c4_i32 : i32 to index
    %c0_86 = arith.constant 0 : index
    %c0_87 = arith.constant 0 : index
    %229 = vector.load %arg9[%228, %c0_86, %c0_87] : memref<8x8x512xf32, #tpu.memory_space<vmem>>, vector<1x8x512xf32>
    %230 = vector.shape_cast %229 : vector<1x8x512xf32> to vector<8x512xf32>
    %231 = arith.addf %230, %227 : vector<8x512xf32>
    %232 = vector.extract_strided_slice %231 {offsets = [0, 0], sizes = [8, 384], strides = [1, 1]} : vector<8x512xf32> to vector<8x384xf32>
    %233 = arith.negf %232 : vector<8x384xf32>
    %234 = math.exp %233 : vector<8x384xf32>
    %cst_88 = arith.constant 1.000000e+00 : f32
    %235 = vector.broadcast %cst_88 : f32 to vector<8x384xf32>
    %236 = arith.addf %235, %234 : vector<8x384xf32>
    %237 = arith.divf %235, %236 : vector<8x384xf32>
    %238 = vector.extract_strided_slice %231 {offsets = [0, 384], sizes = [8, 128], strides = [1, 1]} : vector<8x512xf32> to vector<8x128xf32>
    %239 = math.tanh %238 : vector<8x128xf32>
    %240 = vector.extract_strided_slice %237 {offsets = [0, 0], sizes = [8, 128], strides = [1, 1]} : vector<8x384xf32> to vector<8x128xf32>
    %241 = vector.extract_strided_slice %237 {offsets = [0, 128], sizes = [8, 128], strides = [1, 1]} : vector<8x384xf32> to vector<8x128xf32>
    %242 = vector.extract_strided_slice %237 {offsets = [0, 256], sizes = [8, 128], strides = [1, 1]} : vector<8x384xf32> to vector<8x128xf32>
    %243 = arith.mulf %241, %191 : vector<8x128xf32>
    %244 = arith.mulf %240, %239 : vector<8x128xf32>
    %245 = arith.addf %243, %244 : vector<8x128xf32>
    %246 = math.tanh %245 : vector<8x128xf32>
    %247 = arith.mulf %242, %246 : vector<8x128xf32>
    %c5_i32 = arith.constant 5 : i32
    %248 = arith.truncf %219 : vector<8x128xf32> to vector<8x128xbf16>
    %c0_89 = arith.constant 0 : index
    %c0_90 = arith.constant 0 : index
    %249 = vector.load %arg5[%c0_89, %c0_90] : memref<128x512xbf16, #tpu.memory_space<vmem>>, vector<128x512xbf16>
    %cst_91 = arith.constant dense<0.000000e+00> : vector<8x512xf32>
    %250 = tpu.matmul %248, %249, %cst_91 {dimension_numbers = #tpu.dot_dimension_numbers<[1], [0], [0], [1], [0, 0, 1, 1], [], []>} : vector<8x128xbf16>, vector<128x512xbf16>, vector<8x512xf32> -> vector<8x512xf32>
    %251 = arith.truncf %247 : vector<8x128xf32> to vector<8x128xbf16>
    %c0_92 = arith.constant 0 : index
    %c0_93 = arith.constant 0 : index
    %252 = vector.load %arg4[%c0_92, %c0_93] : memref<128x512xbf16, #tpu.memory_space<vmem>>, vector<128x512xbf16>
    %cst_94 = arith.constant dense<0.000000e+00> : vector<8x512xf32>
    %253 = tpu.matmul %251, %252, %cst_94 {dimension_numbers = #tpu.dot_dimension_numbers<[1], [0], [0], [1], [0, 0, 1, 1], [], []>} : vector<8x128xbf16>, vector<128x512xbf16>, vector<8x512xf32> -> vector<8x512xf32>
    %254 = arith.addf %253, %250 : vector<8x512xf32>
    %c0_95 = arith.constant 0 : index
    %c0_96 = arith.constant 0 : index
    %255 = vector.load %arg6[%c0_95, %c0_96] : memref<1x512xf32, #tpu.memory_space<vmem>>, vector<1x512xf32>
    %256 = vector.broadcast %255 : vector<1x512xf32> to vector<8x512xf32>
    %257 = arith.addf %254, %256 : vector<8x512xf32>
    %258 = vector.extract_strided_slice %257 {offsets = [0, 0], sizes = [8, 384], strides = [1, 1]} : vector<8x512xf32> to vector<8x384xf32>
    %259 = arith.negf %258 : vector<8x384xf32>
    %260 = math.exp %259 : vector<8x384xf32>
    %cst_97 = arith.constant 1.000000e+00 : f32
    %261 = vector.broadcast %cst_97 : f32 to vector<8x384xf32>
    %262 = arith.addf %261, %260 : vector<8x384xf32>
    %263 = arith.divf %261, %262 : vector<8x384xf32>
    %264 = vector.extract_strided_slice %257 {offsets = [0, 384], sizes = [8, 128], strides = [1, 1]} : vector<8x512xf32> to vector<8x128xf32>
    %265 = math.tanh %264 : vector<8x128xf32>
    %266 = vector.extract_strided_slice %263 {offsets = [0, 0], sizes = [8, 128], strides = [1, 1]} : vector<8x384xf32> to vector<8x128xf32>
    %267 = vector.extract_strided_slice %263 {offsets = [0, 128], sizes = [8, 128], strides = [1, 1]} : vector<8x384xf32> to vector<8x128xf32>
    %268 = vector.extract_strided_slice %263 {offsets = [0, 256], sizes = [8, 128], strides = [1, 1]} : vector<8x384xf32> to vector<8x128xf32>
    %269 = arith.mulf %267, %217 : vector<8x128xf32>
    %270 = arith.mulf %266, %265 : vector<8x128xf32>
    %271 = arith.addf %269, %270 : vector<8x128xf32>
    %272 = math.tanh %271 : vector<8x128xf32>
    %273 = arith.mulf %268, %272 : vector<8x128xf32>
    %c1_i32_98 = arith.constant 1 : i32
    %274 = arith.subi %c5_i32, %c1_i32_98 : i32
    %275 = arith.index_cast %274 : i32 to index
    %c0_99 = arith.constant 0 : index
    %c0_100 = arith.constant 0 : index
    %276 = vector.load %arg7[%275, %c0_99, %c0_100] : memref<8x8x128xf32, #tpu.memory_space<vmem>>, vector<1x8x128xf32>
    %277 = vector.shape_cast %276 : vector<1x8x128xf32> to vector<8x128xf32>
    %278 = vector.shape_cast %273 : vector<8x128xf32> to vector<1x8x128xf32>
    tpu.vector_store %arg7[%275, %c0_99, %c0_100], %278 {strides = array<i32>} : memref<8x8x128xf32, #tpu.memory_space<vmem>>, vector<1x8x128xf32>,
    %279 = arith.truncf %247 : vector<8x128xf32> to vector<8x128xbf16>
    %c0_101 = arith.constant 0 : index
    %c0_102 = arith.constant 0 : index
    %280 = vector.load %arg2[%c0_101, %c0_102] : memref<128x512xbf16, #tpu.memory_space<vmem>>, vector<128x512xbf16>
    %cst_103 = arith.constant dense<0.000000e+00> : vector<8x512xf32>
    %281 = tpu.matmul %279, %280, %cst_103 {dimension_numbers = #tpu.dot_dimension_numbers<[1], [0], [0], [1], [0, 0, 1, 1], [], []>} : vector<8x128xbf16>, vector<128x512xbf16>, vector<8x512xf32> -> vector<8x512xf32>
    %282 = arith.index_cast %c5_i32 : i32 to index
    %c0_104 = arith.constant 0 : index
    %c0_105 = arith.constant 0 : index
    %283 = vector.load %arg9[%282, %c0_104, %c0_105] : memref<8x8x512xf32, #tpu.memory_space<vmem>>, vector<1x8x512xf32>
    %284 = vector.shape_cast %283 : vector<1x8x512xf32> to vector<8x512xf32>
    %285 = arith.addf %284, %281 : vector<8x512xf32>
    %286 = vector.extract_strided_slice %285 {offsets = [0, 0], sizes = [8, 384], strides = [1, 1]} : vector<8x512xf32> to vector<8x384xf32>
    %287 = arith.negf %286 : vector<8x384xf32>
    %288 = math.exp %287 : vector<8x384xf32>
    %cst_106 = arith.constant 1.000000e+00 : f32
    %289 = vector.broadcast %cst_106 : f32 to vector<8x384xf32>
    %290 = arith.addf %289, %288 : vector<8x384xf32>
    %291 = arith.divf %289, %290 : vector<8x384xf32>
    %292 = vector.extract_strided_slice %285 {offsets = [0, 384], sizes = [8, 128], strides = [1, 1]} : vector<8x512xf32> to vector<8x128xf32>
    %293 = math.tanh %292 : vector<8x128xf32>
    %294 = vector.extract_strided_slice %291 {offsets = [0, 0], sizes = [8, 128], strides = [1, 1]} : vector<8x384xf32> to vector<8x128xf32>
    %295 = vector.extract_strided_slice %291 {offsets = [0, 128], sizes = [8, 128], strides = [1, 1]} : vector<8x384xf32> to vector<8x128xf32>
    %296 = vector.extract_strided_slice %291 {offsets = [0, 256], sizes = [8, 128], strides = [1, 1]} : vector<8x384xf32> to vector<8x128xf32>
    %297 = arith.mulf %295, %245 : vector<8x128xf32>
    %298 = arith.mulf %294, %293 : vector<8x128xf32>
    %299 = arith.addf %297, %298 : vector<8x128xf32>
    %300 = math.tanh %299 : vector<8x128xf32>
    %301 = arith.mulf %296, %300 : vector<8x128xf32>
    %c6_i32 = arith.constant 6 : i32
    %302 = arith.truncf %273 : vector<8x128xf32> to vector<8x128xbf16>
    %c0_107 = arith.constant 0 : index
    %c0_108 = arith.constant 0 : index
    %303 = vector.load %arg5[%c0_107, %c0_108] : memref<128x512xbf16, #tpu.memory_space<vmem>>, vector<128x512xbf16>
    %cst_109 = arith.constant dense<0.000000e+00> : vector<8x512xf32>
    %304 = tpu.matmul %302, %303, %cst_109 {dimension_numbers = #tpu.dot_dimension_numbers<[1], [0], [0], [1], [0, 0, 1, 1], [], []>} : vector<8x128xbf16>, vector<128x512xbf16>, vector<8x512xf32> -> vector<8x512xf32>
    %305 = arith.truncf %301 : vector<8x128xf32> to vector<8x128xbf16>
    %c0_110 = arith.constant 0 : index
    %c0_111 = arith.constant 0 : index
    %306 = vector.load %arg4[%c0_110, %c0_111] : memref<128x512xbf16, #tpu.memory_space<vmem>>, vector<128x512xbf16>
    %cst_112 = arith.constant dense<0.000000e+00> : vector<8x512xf32>
    %307 = tpu.matmul %305, %306, %cst_112 {dimension_numbers = #tpu.dot_dimension_numbers<[1], [0], [0], [1], [0, 0, 1, 1], [], []>} : vector<8x128xbf16>, vector<128x512xbf16>, vector<8x512xf32> -> vector<8x512xf32>
    %308 = arith.addf %307, %304 : vector<8x512xf32>
    %c0_113 = arith.constant 0 : index
    %c0_114 = arith.constant 0 : index
    %309 = vector.load %arg6[%c0_113, %c0_114] : memref<1x512xf32, #tpu.memory_space<vmem>>, vector<1x512xf32>
    %310 = vector.broadcast %309 : vector<1x512xf32> to vector<8x512xf32>
    %311 = arith.addf %308, %310 : vector<8x512xf32>
    %312 = vector.extract_strided_slice %311 {offsets = [0, 0], sizes = [8, 384], strides = [1, 1]} : vector<8x512xf32> to vector<8x384xf32>
    %313 = arith.negf %312 : vector<8x384xf32>
    %314 = math.exp %313 : vector<8x384xf32>
    %cst_115 = arith.constant 1.000000e+00 : f32
    %315 = vector.broadcast %cst_115 : f32 to vector<8x384xf32>
    %316 = arith.addf %315, %314 : vector<8x384xf32>
    %317 = arith.divf %315, %316 : vector<8x384xf32>
    %318 = vector.extract_strided_slice %311 {offsets = [0, 384], sizes = [8, 128], strides = [1, 1]} : vector<8x512xf32> to vector<8x128xf32>
    %319 = math.tanh %318 : vector<8x128xf32>
    %320 = vector.extract_strided_slice %317 {offsets = [0, 0], sizes = [8, 128], strides = [1, 1]} : vector<8x384xf32> to vector<8x128xf32>
    %321 = vector.extract_strided_slice %317 {offsets = [0, 128], sizes = [8, 128], strides = [1, 1]} : vector<8x384xf32> to vector<8x128xf32>
    %322 = vector.extract_strided_slice %317 {offsets = [0, 256], sizes = [8, 128], strides = [1, 1]} : vector<8x384xf32> to vector<8x128xf32>
    %323 = arith.mulf %321, %271 : vector<8x128xf32>
    %324 = arith.mulf %320, %319 : vector<8x128xf32>
    %325 = arith.addf %323, %324 : vector<8x128xf32>
    %326 = math.tanh %325 : vector<8x128xf32>
    %327 = arith.mulf %322, %326 : vector<8x128xf32>
    %c1_i32_116 = arith.constant 1 : i32
    %328 = arith.subi %c6_i32, %c1_i32_116 : i32
    %329 = arith.index_cast %328 : i32 to index
    %c0_117 = arith.constant 0 : index
    %c0_118 = arith.constant 0 : index
    %330 = vector.load %arg7[%329, %c0_117, %c0_118] : memref<8x8x128xf32, #tpu.memory_space<vmem>>, vector<1x8x128xf32>
    %331 = vector.shape_cast %330 : vector<1x8x128xf32> to vector<8x128xf32>
    %332 = vector.shape_cast %327 : vector<8x128xf32> to vector<1x8x128xf32>
    tpu.vector_store %arg7[%329, %c0_117, %c0_118], %332 {strides = array<i32>} : memref<8x8x128xf32, #tpu.memory_space<vmem>>, vector<1x8x128xf32>,
    %333 = arith.truncf %301 : vector<8x128xf32> to vector<8x128xbf16>
    %c0_119 = arith.constant 0 : index
    %c0_120 = arith.constant 0 : index
    %334 = vector.load %arg2[%c0_119, %c0_120] : memref<128x512xbf16, #tpu.memory_space<vmem>>, vector<128x512xbf16>
    %cst_121 = arith.constant dense<0.000000e+00> : vector<8x512xf32>
    %335 = tpu.matmul %333, %334, %cst_121 {dimension_numbers = #tpu.dot_dimension_numbers<[1], [0], [0], [1], [0, 0, 1, 1], [], []>} : vector<8x128xbf16>, vector<128x512xbf16>, vector<8x512xf32> -> vector<8x512xf32>
    %336 = arith.index_cast %c6_i32 : i32 to index
    %c0_122 = arith.constant 0 : index
    %c0_123 = arith.constant 0 : index
    %337 = vector.load %arg9[%336, %c0_122, %c0_123] : memref<8x8x512xf32, #tpu.memory_space<vmem>>, vector<1x8x512xf32>
    %338 = vector.shape_cast %337 : vector<1x8x512xf32> to vector<8x512xf32>
    %339 = arith.addf %338, %335 : vector<8x512xf32>
    %340 = vector.extract_strided_slice %339 {offsets = [0, 0], sizes = [8, 384], strides = [1, 1]} : vector<8x512xf32> to vector<8x384xf32>
    %341 = arith.negf %340 : vector<8x384xf32>
    %342 = math.exp %341 : vector<8x384xf32>
    %cst_124 = arith.constant 1.000000e+00 : f32
    %343 = vector.broadcast %cst_124 : f32 to vector<8x384xf32>
    %344 = arith.addf %343, %342 : vector<8x384xf32>
    %345 = arith.divf %343, %344 : vector<8x384xf32>
    %346 = vector.extract_strided_slice %339 {offsets = [0, 384], sizes = [8, 128], strides = [1, 1]} : vector<8x512xf32> to vector<8x128xf32>
    %347 = math.tanh %346 : vector<8x128xf32>
    %348 = vector.extract_strided_slice %345 {offsets = [0, 0], sizes = [8, 128], strides = [1, 1]} : vector<8x384xf32> to vector<8x128xf32>
    %349 = vector.extract_strided_slice %345 {offsets = [0, 128], sizes = [8, 128], strides = [1, 1]} : vector<8x384xf32> to vector<8x128xf32>
    %350 = vector.extract_strided_slice %345 {offsets = [0, 256], sizes = [8, 128], strides = [1, 1]} : vector<8x384xf32> to vector<8x128xf32>
    %351 = arith.mulf %349, %299 : vector<8x128xf32>
    %352 = arith.mulf %348, %347 : vector<8x128xf32>
    %353 = arith.addf %351, %352 : vector<8x128xf32>
    %354 = math.tanh %353 : vector<8x128xf32>
    %355 = arith.mulf %350, %354 : vector<8x128xf32>
    %c7_i32 = arith.constant 7 : i32
    %356 = arith.truncf %327 : vector<8x128xf32> to vector<8x128xbf16>
    %c0_125 = arith.constant 0 : index
    %c0_126 = arith.constant 0 : index
    %357 = vector.load %arg5[%c0_125, %c0_126] : memref<128x512xbf16, #tpu.memory_space<vmem>>, vector<128x512xbf16>
    %cst_127 = arith.constant dense<0.000000e+00> : vector<8x512xf32>
    %358 = tpu.matmul %356, %357, %cst_127 {dimension_numbers = #tpu.dot_dimension_numbers<[1], [0], [0], [1], [0, 0, 1, 1], [], []>} : vector<8x128xbf16>, vector<128x512xbf16>, vector<8x512xf32> -> vector<8x512xf32>
    %359 = arith.truncf %355 : vector<8x128xf32> to vector<8x128xbf16>
    %c0_128 = arith.constant 0 : index
    %c0_129 = arith.constant 0 : index
    %360 = vector.load %arg4[%c0_128, %c0_129] : memref<128x512xbf16, #tpu.memory_space<vmem>>, vector<128x512xbf16>
    %cst_130 = arith.constant dense<0.000000e+00> : vector<8x512xf32>
    %361 = tpu.matmul %359, %360, %cst_130 {dimension_numbers = #tpu.dot_dimension_numbers<[1], [0], [0], [1], [0, 0, 1, 1], [], []>} : vector<8x128xbf16>, vector<128x512xbf16>, vector<8x512xf32> -> vector<8x512xf32>
    %362 = arith.addf %361, %358 : vector<8x512xf32>
    %c0_131 = arith.constant 0 : index
    %c0_132 = arith.constant 0 : index
    %363 = vector.load %arg6[%c0_131, %c0_132] : memref<1x512xf32, #tpu.memory_space<vmem>>, vector<1x512xf32>
    %364 = vector.broadcast %363 : vector<1x512xf32> to vector<8x512xf32>
    %365 = arith.addf %362, %364 : vector<8x512xf32>
    %366 = vector.extract_strided_slice %365 {offsets = [0, 0], sizes = [8, 384], strides = [1, 1]} : vector<8x512xf32> to vector<8x384xf32>
    %367 = arith.negf %366 : vector<8x384xf32>
    %368 = math.exp %367 : vector<8x384xf32>
    %cst_133 = arith.constant 1.000000e+00 : f32
    %369 = vector.broadcast %cst_133 : f32 to vector<8x384xf32>
    %370 = arith.addf %369, %368 : vector<8x384xf32>
    %371 = arith.divf %369, %370 : vector<8x384xf32>
    %372 = vector.extract_strided_slice %365 {offsets = [0, 384], sizes = [8, 128], strides = [1, 1]} : vector<8x512xf32> to vector<8x128xf32>
    %373 = math.tanh %372 : vector<8x128xf32>
    %374 = vector.extract_strided_slice %371 {offsets = [0, 0], sizes = [8, 128], strides = [1, 1]} : vector<8x384xf32> to vector<8x128xf32>
    %375 = vector.extract_strided_slice %371 {offsets = [0, 128], sizes = [8, 128], strides = [1, 1]} : vector<8x384xf32> to vector<8x128xf32>
    %376 = vector.extract_strided_slice %371 {offsets = [0, 256], sizes = [8, 128], strides = [1, 1]} : vector<8x384xf32> to vector<8x128xf32>
    %377 = arith.mulf %375, %325 : vector<8x128xf32>
    %378 = arith.mulf %374, %373 : vector<8x128xf32>
    %379 = arith.addf %377, %378 : vector<8x128xf32>
    %380 = math.tanh %379 : vector<8x128xf32>
    %381 = arith.mulf %376, %380 : vector<8x128xf32>
    %c1_i32_134 = arith.constant 1 : i32
    %382 = arith.subi %c7_i32, %c1_i32_134 : i32
    %383 = arith.index_cast %382 : i32 to index
    %c0_135 = arith.constant 0 : index
    %c0_136 = arith.constant 0 : index
    %384 = vector.load %arg7[%383, %c0_135, %c0_136] : memref<8x8x128xf32, #tpu.memory_space<vmem>>, vector<1x8x128xf32>
    %385 = vector.shape_cast %384 : vector<1x8x128xf32> to vector<8x128xf32>
    %386 = vector.shape_cast %381 : vector<8x128xf32> to vector<1x8x128xf32>
    tpu.vector_store %arg7[%383, %c0_135, %c0_136], %386 {strides = array<i32>} : memref<8x8x128xf32, #tpu.memory_space<vmem>>, vector<1x8x128xf32>,
    %387 = arith.truncf %355 : vector<8x128xf32> to vector<8x128xbf16>
    %c0_137 = arith.constant 0 : index
    %c0_138 = arith.constant 0 : index
    %388 = vector.load %arg2[%c0_137, %c0_138] : memref<128x512xbf16, #tpu.memory_space<vmem>>, vector<128x512xbf16>
    %cst_139 = arith.constant dense<0.000000e+00> : vector<8x512xf32>
    %389 = tpu.matmul %387, %388, %cst_139 {dimension_numbers = #tpu.dot_dimension_numbers<[1], [0], [0], [1], [0, 0, 1, 1], [], []>} : vector<8x128xbf16>, vector<128x512xbf16>, vector<8x512xf32> -> vector<8x512xf32>
    %390 = arith.index_cast %c7_i32 : i32 to index
    %c0_140 = arith.constant 0 : index
    %c0_141 = arith.constant 0 : index
    %391 = vector.load %arg9[%390, %c0_140, %c0_141] : memref<8x8x512xf32, #tpu.memory_space<vmem>>, vector<1x8x512xf32>
    %392 = vector.shape_cast %391 : vector<1x8x512xf32> to vector<8x512xf32>
    %393 = arith.addf %392, %389 : vector<8x512xf32>
    %394 = vector.extract_strided_slice %393 {offsets = [0, 0], sizes = [8, 384], strides = [1, 1]} : vector<8x512xf32> to vector<8x384xf32>
    %395 = arith.negf %394 : vector<8x384xf32>
    %396 = math.exp %395 : vector<8x384xf32>
    %cst_142 = arith.constant 1.000000e+00 : f32
    %397 = vector.broadcast %cst_142 : f32 to vector<8x384xf32>
    %398 = arith.addf %397, %396 : vector<8x384xf32>
    %399 = arith.divf %397, %398 : vector<8x384xf32>
    %400 = vector.extract_strided_slice %393 {offsets = [0, 384], sizes = [8, 128], strides = [1, 1]} : vector<8x512xf32> to vector<8x128xf32>
    %401 = math.tanh %400 : vector<8x128xf32>
    %402 = vector.extract_strided_slice %399 {offsets = [0, 0], sizes = [8, 128], strides = [1, 1]} : vector<8x384xf32> to vector<8x128xf32>
    %403 = vector.extract_strided_slice %399 {offsets = [0, 128], sizes = [8, 128], strides = [1, 1]} : vector<8x384xf32> to vector<8x128xf32>
    %404 = vector.extract_strided_slice %399 {offsets = [0, 256], sizes = [8, 128], strides = [1, 1]} : vector<8x384xf32> to vector<8x128xf32>
    %405 = arith.mulf %403, %353 : vector<8x128xf32>
    %406 = arith.mulf %402, %401 : vector<8x128xf32>
    %407 = arith.addf %405, %406 : vector<8x128xf32>
    %408 = math.tanh %407 : vector<8x128xf32>
    %409 = arith.mulf %404, %408 : vector<8x128xf32>
    %c7_i32_143 = arith.constant 7 : i32
    %410 = arith.truncf %381 : vector<8x128xf32> to vector<8x128xbf16>
    %c0_144 = arith.constant 0 : index
    %c0_145 = arith.constant 0 : index
    %411 = vector.load %arg5[%c0_144, %c0_145] : memref<128x512xbf16, #tpu.memory_space<vmem>>, vector<128x512xbf16>
    %cst_146 = arith.constant dense<0.000000e+00> : vector<8x512xf32>
    %412 = tpu.matmul %410, %411, %cst_146 {dimension_numbers = #tpu.dot_dimension_numbers<[1], [0], [0], [1], [0, 0, 1, 1], [], []>} : vector<8x128xbf16>, vector<128x512xbf16>, vector<8x512xf32> -> vector<8x512xf32>
    %413 = arith.truncf %409 : vector<8x128xf32> to vector<8x128xbf16>
    %c0_147 = arith.constant 0 : index
    %c0_148 = arith.constant 0 : index
    %414 = vector.load %arg4[%c0_147, %c0_148] : memref<128x512xbf16, #tpu.memory_space<vmem>>, vector<128x512xbf16>
    %cst_149 = arith.constant dense<0.000000e+00> : vector<8x512xf32>
    %415 = tpu.matmul %413, %414, %cst_149 {dimension_numbers = #tpu.dot_dimension_numbers<[1], [0], [0], [1], [0, 0, 1, 1], [], []>} : vector<8x128xbf16>, vector<128x512xbf16>, vector<8x512xf32> -> vector<8x512xf32>
    %416 = arith.addf %415, %412 : vector<8x512xf32>
    %c0_150 = arith.constant 0 : index
    %c0_151 = arith.constant 0 : index
    %417 = vector.load %arg6[%c0_150, %c0_151] : memref<1x512xf32, #tpu.memory_space<vmem>>, vector<1x512xf32>
    %418 = vector.broadcast %417 : vector<1x512xf32> to vector<8x512xf32>
    %419 = arith.addf %416, %418 : vector<8x512xf32>
    %420 = vector.extract_strided_slice %419 {offsets = [0, 0], sizes = [8, 384], strides = [1, 1]} : vector<8x512xf32> to vector<8x384xf32>
    %421 = arith.negf %420 : vector<8x384xf32>
    %422 = math.exp %421 : vector<8x384xf32>
    %cst_152 = arith.constant 1.000000e+00 : f32
    %423 = vector.broadcast %cst_152 : f32 to vector<8x384xf32>
    %424 = arith.addf %423, %422 : vector<8x384xf32>
    %425 = arith.divf %423, %424 : vector<8x384xf32>
    %426 = vector.extract_strided_slice %419 {offsets = [0, 384], sizes = [8, 128], strides = [1, 1]} : vector<8x512xf32> to vector<8x128xf32>
    %427 = math.tanh %426 : vector<8x128xf32>
    %428 = vector.extract_strided_slice %425 {offsets = [0, 0], sizes = [8, 128], strides = [1, 1]} : vector<8x384xf32> to vector<8x128xf32>
    %429 = vector.extract_strided_slice %425 {offsets = [0, 128], sizes = [8, 128], strides = [1, 1]} : vector<8x384xf32> to vector<8x128xf32>
    %430 = vector.extract_strided_slice %425 {offsets = [0, 256], sizes = [8, 128], strides = [1, 1]} : vector<8x384xf32> to vector<8x128xf32>
    %431 = arith.mulf %429, %379 : vector<8x128xf32>
    %432 = arith.mulf %428, %427 : vector<8x128xf32>
    %433 = arith.addf %431, %432 : vector<8x128xf32>
    %434 = math.tanh %433 : vector<8x128xf32>
    %435 = arith.mulf %430, %434 : vector<8x128xf32>
    %c7 = arith.constant 7 : index
    %c0_153 = arith.constant 0 : index
    %c0_154 = arith.constant 0 : index
    %436 = vector.load %arg7[%c7, %c0_153, %c0_154] : memref<8x8x128xf32, #tpu.memory_space<vmem>>, vector<1x8x128xf32>
    %437 = vector.shape_cast %436 : vector<1x8x128xf32> to vector<8x128xf32>
    %438 = vector.shape_cast %435 : vector<8x128xf32> to vector<1x8x128xf32>
    tpu.vector_store %arg7[%c7, %c0_153, %c0_154], %438 {strides = array<i32>} : memref<8x8x128xf32, #tpu.memory_space<vmem>>, vector<1x8x128xf32>,
    %c0_155 = arith.constant 0 : index
    %c0_156 = arith.constant 0 : index
    %c0_157 = arith.constant 0 : index
    %439 = vector.load %arg8[%c0_155, %c0_156, %c0_157] : memref<2x8x128xf32, #tpu.memory_space<vmem>>, vector<1x8x128xf32>
    %440 = vector.shape_cast %439 : vector<1x8x128xf32> to vector<8x128xf32>
    %441 = vector.shape_cast %409 : vector<8x128xf32> to vector<1x8x128xf32>
    tpu.vector_store %arg8[%c0_155, %c0_156, %c0_157], %441 {strides = array<i32>} : memref<2x8x128xf32, #tpu.memory_space<vmem>>, vector<1x8x128xf32>,
    %c1 = arith.constant 1 : index
    %c0_158 = arith.constant 0 : index
    %c0_159 = arith.constant 0 : index
    %442 = vector.load %arg8[%c1, %c0_158, %c0_159] : memref<2x8x128xf32, #tpu.memory_space<vmem>>, vector<1x8x128xf32>
    %443 = vector.shape_cast %442 : vector<1x8x128xf32> to vector<8x128xf32>
    %444 = vector.shape_cast %435 : vector<8x128xf32> to vector<1x8x128xf32>
    tpu.vector_store %arg8[%c1, %c0_158, %c0_159], %444 {strides = array<i32>} : memref<2x8x128xf32, #tpu.memory_space<vmem>>, vector<1x8x128xf32>,
    return
  }
}

</mosaic_0001>

<llo_original>
// kernel: encoder_forward.1
$region0: #{encoder_forward.1}
  #allocation0 [shape = 'u32[]', space=smem, size = 0x4, offset = 0x4, fixed_abs, tag = 'smem constant byte address 0x4 - core index']
  #allocation1 [shape = 'u32[144,128]{1,0:T(1,128)}', space=vmem, size = 0x12000, scoped, tag = 'internal scratch']
  #allocation2 [shape = 'f32[8,8,512]{2,1,0:T(8,128)}', space=vmem, size = 0x20000, scoped, tag = 'scratch operand']
  %s0 = inlined_call_operand.vmem [shape: bf16[8,8,16], index: 0, kind: input, shape index: {}]
  %s1 = inlined_call_operand.vmem [shape: bf16[16,512], index: 1, kind: input, shape index: {}]
  %s2 = inlined_call_operand.hbm [shape: bf16[128,512], index: 2, kind: input, shape index: {}]
  %s3 = inlined_call_operand.vmem [shape: f32[1,512], index: 3, kind: input, shape index: {}]
  %s4 = inlined_call_operand.hbm [shape: bf16[128,512], index: 4, kind: input, shape index: {}]
  %s5 = inlined_call_operand.hbm [shape: bf16[128,512], index: 5, kind: input, shape index: {}]
  %s6 = inlined_call_operand.vmem [shape: f32[1,512], index: 6, kind: input, shape index: {}]
  %s7 = inlined_call_operand.vmem [shape: f32[8,8,128], index: 7, kind: output, shape index: {0}]
  %s8 = inlined_call_operand.vmem [shape: f32[2,8,128], index: 8, kind: output, shape index: {1}]
  %9 = xla_tuple %s7, %s8
  %s10 = sld [smem:[#allocation0]]
  $region58: #{encoder_forward.1} parent=0
    _
  %s12 = ssub.s32 1, %s10
  %s13 = scalar_select 0, %s12, %s10
  $region1: #{encoder_forward.1} parent=0
    #allocation3 [shape = 'u8[131072]{0}', space=vmem, size = 0x20000, scoped, tag = 'input window, operand 2, single buffered']
    #allocation4 [shape = 's32[1]{0}', space=sflag, size = 0x4, scoped, tag = 'scoped memory for encoder_forward.1']
    #allocation5 [shape = 'u8[131072]{0}', space=vmem, size = 0x20000, scoped, tag = 'input window, operand 4, single buffered']
    #allocation6 [shape = 's32[1]{0}', space=sflag, size = 0x4, scoped, tag = 'scoped memory for encoder_forward.1']
    #allocation7 [shape = 'u8[131072]{0}', space=vmem, size = 0x20000, scoped, tag = 'input window, operand 5, single buffered']
    %14 = vsyncpa [#allocation4], 0
    %15 = vsyncpa [#allocation6], 0
    // Predicated region
    $region2: #{encoder_forward.1} parent=1 // pred_check
      _
    $region3: #{encoder_forward.1} parent=1 // pred_check_branch
      %17 = sbr.rel (0) target = $region5
    $region4: #{encoder_forward.1} parent=1 // pred_region
      _
    $region5: #{encoder_forward.1} parent=1 // pred_fallthru
      _
    // Predicated region
    $region6: #{encoder_forward.1} parent=1 // pred_check
      _
    $region7: #{encoder_forward.1} parent=1 // pred_check_branch
      %19 = sbr.rel (0) target = $region9
    $region8: #{encoder_forward.1} parent=1 // pred_region
      _
    $region9: #{encoder_forward.1} parent=1 // pred_fallthru
      _
    // Predicated region
    $region10: #{encoder_forward.1} parent=1 // pred_check
      _
    $region11: #{encoder_forward.1} parent=1 // pred_check_branch
      %21 = sbr.rel (0) target = $region13
    $region12: #{encoder_forward.1} parent=1 // pred_region
      %s23 = ssub.s32 4096, 4096
      %24 = vsyncadd [#allocation4], %s23
      %s25 = sshll.u32 [#allocation3], 4
      %s26 = int_to_ptr.vmem [resolvable:$true] %s25
      %31 = dma.hbm_to_vmem [thread:$0]  %s2, 4096, %s26, [#allocation4], 256, 256, 16
    $region13: #{encoder_forward.1} parent=1 // pred_fallthru
      _
    // Predicated region
    $region14: #{encoder_forward.1} parent=1 // pred_check
      _
    $region15: #{encoder_forward.1} parent=1 // pred_check_branch
      %33 = sbr.rel (0) target = $region17
    $region16: #{encoder_forward.1} parent=1 // pred_region
      _
    $region17: #{encoder_forward.1} parent=1 // pred_fallthru
      _
    // Predicated region
    $region18: #{encoder_forward.1} parent=1 // pred_check
      _
    $region19: #{encoder_forward.1} parent=1 // pred_check_branch
      %35 = sbr.rel (0) target = $region21
    $region20: #{encoder_forward.1} parent=1 // pred_region
      %s37 = ssub.s32 4096, 4096
      %38 = vsyncadd [#allocation6], %s37
      %s39 = sshll.u32 [#allocation5], 4
      %s40 = int_to_ptr.vmem [resolvable:$true] %s39
      %45 = dma.hbm_to_vmem [thread:$0]  %s4, 4096, %s40, [#allocation6], 256, 256, 16
    $region21: #{encoder_forward.1} parent=1 // pred_fallthru
      _
    // Predicated region
    $region22: #{encoder_forward.1} parent=1 // pred_check
      _
    $region23: #{encoder_forward.1} parent=1 // pred_check_branch
      %47 = sbr.rel (0) target = $region25
    $region24: #{encoder_forward.1} parent=1 // pred_region
      %s49 = ssub.s32 4096, 4096
      %50 = vsyncadd [#allocation6], %s49
      %s51 = sshll.u32 [#allocation7], 4
      %s52 = int_to_ptr.vmem [resolvable:$true] %s51
      %57 = dma.hbm_to_vmem [thread:$0]  %s5, 4096, %s52, [#allocation6], 256, 256, 16
    $region25: #{encoder_forward.1} parent=1 // pred_fallthru
      _
    // Predicated region
    $region26: #{encoder_forward.1} parent=1 // pred_check
      _
    $region27: #{encoder_forward.1} parent=1 // pred_check_branch
      %59 = sbr.rel (0) target = $region29
    $region28: #{encoder_forward.1} parent=1 // pred_region
      _
    $region29: #{encoder_forward.1} parent=1 // pred_fallthru
      _
    // Predicated region
    $region30: #{encoder_forward.1} parent=1 // pred_check
      _
    $region31: #{encoder_forward.1} parent=1 // pred_check_branch
      %61 = sbr.rel (0) target = $region33
    $region32: #{encoder_forward.1} parent=1 // pred_region
      %62 = dma.done [#allocation4], 4096
    $region33: #{encoder_forward.1} parent=1 // pred_fallthru
      _
    // Predicated region
    $region34: #{encoder_forward.1} parent=1 // pred_check
      _
    $region35: #{encoder_forward.1} parent=1 // pred_check_branch
      %64 = sbr.rel (0) target = $region37
    $region36: #{encoder_forward.1} parent=1 // pred_region
      %65 = dma.done [#allocation6], 4096
    $region37: #{encoder_forward.1} parent=1 // pred_fallthru
      _
    // Predicated region
    $region38: #{encoder_forward.1} parent=1 // pred_check
      _
    $region39: #{encoder_forward.1} parent=1 // pred_check_branch
      %67 = sbr.rel (0) target = $region41
    $region40: #{encoder_forward.1} parent=1 // pred_region
      %68 = dma.done [#allocation6], 4096
    $region41: #{encoder_forward.1} parent=1 // pred_fallthru
      _
    %v70 = vld [vmem:[%s0] sm:$0xf]
    %v71 = vld [vmem:[%s0 + $0x4] sm:$0xf]
    %v72 = vld [vmem:[%s0 + $0x8] sm:$0xf]
    %v73 = vld [vmem:[%s0 + $0xc] sm:$0xf]
    %v74 = vld [vmem:[%s0 + $0x10] sm:$0xf]
    %v75 = vld [vmem:[%s0 + $0x14] sm:$0xf]
    %v76 = vld [vmem:[%s0 + $0x18] sm:$0xf]
    %v77 = vld [vmem:[%s0 + $0x1c] sm:$0xf]
    %v78 = vld [vmem:[%s1] sm:$0xff]
    %v79 = vld [vmem:[%s1 + $0x8] sm:$0xff]
    %v80 = vld [vmem:[%s1 + $0x10] sm:$0xff]
    %v81 = vld [vmem:[%s1 + $0x18] sm:$0xff]
    %v82 = vld [vmem:[%s3] sm:$0xf]
    %v84 = vlaneseq
    %v85 = vshrl.u32 %v84, 7
    %v86 = vsub.s32 0, %v85
    %v87 = vrot.slane %v82, %v86
    %v88 = vlaneseq
    %v89 = vshrl.u32 %v88, 7
    %v90 = vsub.s32 1, %v89
    %v91 = vrot.slane %v82, %v90
    %v92 = vlaneseq
    %v93 = vshrl.u32 %v92, 7
    %v94 = vsub.s32 2, %v93
    %v95 = vrot.slane %v82, %v94
    %v96 = vlaneseq
    %v97 = vshrl.u32 %v96, 7
    %v98 = vsub.s32 3, %v97
    %v99 = vrot.slane %v82, %v98
    %v112 = vunpack.c.l.b16 %v70
    %v113 = vunpack.c.l.b16 %v71
    %v114 = vunpack.c.l.b16 %v72
    %v115 = vunpack.c.l.b16 %v73
    %v116 = vunpack.c.l.b16 %v74
    %v117 = vunpack.c.l.b16 %v75
    %v118 = vunpack.c.l.b16 %v76
    %v119 = vunpack.c.l.b16 %v77
    %v120 = vpack.c.b16 %v113, %v112
    %v121 = vpack.c.b16 %v115, %v114
    %v122 = vpack.c.b16 %v117, %v116
    %v123 = vpack.c.b16 %v119, %v118
    %v128 = vunpack.c.l.b16 %v78
    %v129 = vunpack.c.h.b16 %v78
    %v130 = vunpack.c.l.b16 %v79
    %v131 = vunpack.c.h.b16 %v79
    %v132 = vunpack.c.l.b16 %v80
    %v133 = vunpack.c.h.b16 %v80
    %v134 = vunpack.c.l.b16 %v81
    %v135 = vunpack.c.h.b16 %v81
    %v136 = vpack.c.b16 %v132, %v128
    %v137 = vpack.c.b16 %v133, %v129
    %v138 = vpack.c.b16 %v134, %v130
    %v139 = vpack.c.b16 %v135, %v131
    %vm144 = vcmask 130048
    %v146 = vsel %vm144, %v120, 0
    %v149 = vsel %vm144, %v121, 0
    %v152 = vsel %vm144, %v122, 0
    %v155 = vsel %vm144, %v123, 0
    %157 = vmatprep.subr.bf16.mxu0 %v137
    %158 = vmatpush1.bf16.msra.mxu0 %v136
    %159 = vmatprep.subr.bf16.mxu0 0
    %160 = vmatpush1.bf16.msra.mxu0 0
    %161 = vmatprep.subr.bf16.mxu0 0
    %162 = vmatpush1.bf16.msra.mxu0 0
    %163 = vmatprep.subr.bf16.mxu0 0
    %164 = vmatpush1.bf16.msra.mxu0 0
    %165 = vmatprep.subr.bf16.mxu0 0
    %166 = vmatpush1.bf16.msra.mxu0 0
    %167 = vmatprep.subr.bf16.mxu0 0
    %168 = vmatpush1.bf16.msra.mxu0 0
    %169 = vmatprep.subr.bf16.mxu0 0
    %170 = vmatpush1.bf16.msra.mxu0 0
    %171 = vmatprep.subr.bf16.mxu0 0
    %172 = vmatpush1.bf16.msra.mxu0 0
    %173 = vmatprep.subr.bf16.mxu0 0
    %174 = vmatpush1.bf16.msra.mxu0 0
    %175 = vmatprep.subr.bf16.mxu0 0
    %176 = vmatpush1.bf16.msra.mxu0 0
    %177 = vmatprep.subr.bf16.mxu0 0
    %178 = vmatpush1.bf16.msra.mxu0 0
    %179 = vmatprep.subr.bf16.mxu0 0
    %180 = vmatpush1.bf16.msra.mxu0 0
    %181 = vmatprep.subr.bf16.mxu0 0
    %182 = vmatpush1.bf16.msra.mxu0 0
    %183 = vmatprep.subr.bf16.mxu0 0
    %184 = vmatpush1.bf16.msra.mxu0 0
    %185 = vmatprep.subr.bf16.mxu0 0
    %186 = vmatpush1.bf16.msra.mxu0 0
    %187 = vmatprep.subr.bf16.mxu0 0
    %188 = vmatpush1.bf16.msra.mxu0 0
    %189 = vmatprep.mubr.bf16.mxu0 0
    %190 = vmatmul.mubr.bf16.gmra.mrb[0].mxu0 %v146
    %v191 = vpop.f32.mrb[0].mxu0
    %v192 = vadd.f32 %v87, %v191
    %v193 = vpop.f32.mrb[0].mxu0
    %v194 = vadd.f32 %v91, %v193
    %v195 = vpop.f32.mrb[0].mxu0
    %v196 = vadd.f32 %v87, %v195
    %v197 = vpop.f32.mrb[0].mxu0
    %v198 = vadd.f32 %v91, %v197
    %199 = vmatprep.mubr.bf16.mxu0 0
    %200 = vmatmul.mubr.bf16.gmra.mrb[0].mxu0 %v149
    %v201 = vpop.f32.mrb[0].mxu0
    %v202 = vadd.f32 %v87, %v201
    %v203 = vpop.f32.mrb[0].mxu0
    %v204 = vadd.f32 %v91, %v203
    %v205 = vpop.f32.mrb[0].mxu0
    %v206 = vadd.f32 %v87, %v205
    %v207 = vpop.f32.mrb[0].mxu0
    %v208 = vadd.f32 %v91, %v207
    %209 = vmatprep.mubr.bf16.mxu0 0
    %210 = vmatmul.mubr.bf16.gmra.mrb[0].mxu0 %v152
    %v211 = vpop.f32.mrb[0].mxu0
    %v212 = vadd.f32 %v87, %v211
    %v213 = vpop.f32.mrb[0].mxu0
    %v214 = vadd.f32 %v91, %v213
    %v215 = vpop.f32.mrb[0].mxu0
    %v216 = vadd.f32 %v87, %v215
    %v217 = vpop.f32.mrb[0].mxu0
    %v218 = vadd.f32 %v91, %v217
    %219 = vmatprep.mubr.bf16.mxu0 0
    %220 = vmatmul.mubr.bf16.gmra.mrb[0].mxu0 %v155
    %v221 = vpop.f32.mrb[0].mxu0
    %v222 = vadd.f32 %v87, %v221
    %v223 = vpop.f32.mrb[0].mxu0
    %v224 = vadd.f32 %v91, %v223
    %v225 = vpop.f32.mrb[0].mxu0
    %v226 = vadd.f32 %v87, %v225
    %v227 = vpop.f32.mrb[0].mxu0
    %v228 = vadd.f32 %v91, %v227
    %229 = vdwg.mxu0
    %230 = vmatprep.subr.bf16.mxu0 %v139
    %231 = vmatpush1.bf16.msra.mxu0 %v138
    %232 = vmatprep.subr.bf16.mxu0 0
    %233 = vmatpush1.bf16.msra.mxu0 0
    %234 = vmatprep.subr.bf16.mxu0 0
    %235 = vmatpush1.bf16.msra.mxu0 0
    %236 = vmatprep.subr.bf16.mxu0 0
    %237 = vmatpush1.bf16.msra.mxu0 0
    %238 = vmatprep.subr.bf16.mxu0 0
    %239 = vmatpush1.bf16.msra.mxu0 0
    %240 = vmatprep.subr.bf16.mxu0 0
    %241 = vmatpush1.bf16.msra.mxu0 0
    %242 = vmatprep.subr.bf16.mxu0 0
    %243 = vmatpush1.bf16.msra.mxu0 0
    %244 = vmatprep.subr.bf16.mxu0 0
    %245 = vmatpush1.bf16.msra.mxu0 0
    %246 = vmatprep.subr.bf16.mxu0 0
    %247 = vmatpush1.bf16.msra.mxu0 0
    %248 = vmatprep.subr.bf16.mxu0 0
    %249 = vmatpush1.bf16.msra.mxu0 0
    %250 = vmatprep.subr.bf16.mxu0 0
    %251 = vmatpush1.bf16.msra.mxu0 0
    %252 = vmatprep.subr.bf16.mxu0 0
    %253 = vmatpush1.bf16.msra.mxu0 0
    %254 = vmatprep.subr.bf16.mxu0 0
    %255 = vmatpush1.bf16.msra.mxu0 0
    %256 = vmatprep.subr.bf16.mxu0 0
    %257 = vmatpush1.bf16.msra.mxu0 0
    %258 = vmatprep.subr.bf16.mxu0 0
    %259 = vmatpush1.bf16.msra.mxu0 0
    %260 = vmatprep.subr.bf16.mxu0 0
    %261 = vmatpush1.bf16.msra.mxu0 0
    %262 = vmatprep.mubr.bf16.mxu0 0
    %263 = vmatmul.mubr.bf16.gmra.mrb[0].mxu0 %v146
    %v264 = vpop.f32.mrb[0].mxu0
    %v265 = vadd.f32 %v95, %v264
    %v266 = vpop.f32.mrb[0].mxu0
    %v267 = vadd.f32 %v99, %v266
    %v268 = vpop.f32.mrb[0].mxu0
    %v269 = vadd.f32 %v95, %v268
    %v270 = vpop.f32.mrb[0].mxu0
    %v271 = vadd.f32 %v99, %v270
    %272 = vmatprep.mubr.bf16.mxu0 0
    %273 = vmatmul.mubr.bf16.gmra.mrb[0].mxu0 %v149
    %v274 = vpop.f32.mrb[0].mxu0
    %v275 = vadd.f32 %v95, %v274
    %v276 = vpop.f32.mrb[0].mxu0
    %v277 = vadd.f32 %v99, %v276
    %v278 = vpop.f32.mrb[0].mxu0
    %v279 = vadd.f32 %v95, %v278
    %v280 = vpop.f32.mrb[0].mxu0
    %v281 = vadd.f32 %v99, %v280
    %282 = vmatprep.mubr.bf16.mxu0 0
    %283 = vmatmul.mubr.bf16.gmra.mrb[0].mxu0 %v152
    %v284 = vpop.f32.mrb[0].mxu0
    %v285 = vadd.f32 %v95, %v284
    %v286 = vpop.f32.mrb[0].mxu0
    %v287 = vadd.f32 %v99, %v286
    %v288 = vpop.f32.mrb[0].mxu0
    %v289 = vadd.f32 %v95, %v288
    %v290 = vpop.f32.mrb[0].mxu0
    %v291 = vadd.f32 %v99, %v290
    %292 = vmatprep.mubr.bf16.mxu0 0
    %293 = vmatmul.mubr.bf16.gmra.mrb[0].mxu0 %v155
    %v294 = vpop.f32.mrb[0].mxu0
    %v295 = vadd.f32 %v95, %v294
    %v296 = vpop.f32.mrb[0].mxu0
    %v297 = vadd.f32 %v99, %v296
    %v298 = vpop.f32.mrb[0].mxu0
    %v299 = vadd.f32 %v95, %v298
    %v300 = vpop.f32.mrb[0].mxu0
    %v301 = vadd.f32 %v99, %v300
    %302 = vdwg.mxu0
    %303 = vst [vmem:[#allocation2] sm:$0xff] %v192
    %304 = vst [vmem:[#allocation2 + $0x8] sm:$0xff] %v194
    %305 = vst [vmem:[#allocation2 + $0x10] sm:$0xff] %v265
    %306 = vst [vmem:[#allocation2 + $0x18] sm:$0xff] %v267
    %307 = vst [vmem:[#allocation2 + $0x20] sm:$0xff] %v196
    %308 = vst [vmem:[#allocation2 + $0x28] sm:$0xff] %v198
    %309 = vst [vmem:[#allocation2 + $0x30] sm:$0xff] %v269
    %310 = vst [vmem:[#allocation2 + $0x38] sm:$0xff] %v271
    %311 = vst [vmem:[#allocation2 + $0x40] sm:$0xff] %v202
    %312 = vst [vmem:[#allocation2 + $0x48] sm:$0xff] %v204
    %313 = vst [vmem:[#allocation2 + $0x50] sm:$0xff] %v275
    %314 = vst [vmem:[#allocation2 + $0x58] sm:$0xff] %v277
    %315 = vst [vmem:[#allocation2 + $0x60] sm:$0xff] %v206
    %316 = vst [vmem:[#allocation2 + $0x68] sm:$0xff] %v208
    %317 = vst [vmem:[#allocation2 + $0x70] sm:$0xff] %v279
    %318 = vst [vmem:[#allocation2 + $0x78] sm:$0xff] %v281
    %319 = vst [vmem:[#allocation2 + $0x80] sm:$0xff] %v212
    %320 = vst [vmem:[#allocation2 + $0x88] sm:$0xff] %v214
    %321 = vst [vmem:[#allocation2 + $0x90] sm:$0xff] %v285
    %322 = vst [vmem:[#allocation2 + $0x98] sm:$0xff] %v287
    %323 = vst [vmem:[#allocation2 + $0xa0] sm:$0xff] %v216
    %324 = vst [vmem:[#allocation2 + $0xa8] sm:$0xff] %v218
    %325 = vst [vmem:[#allocation2 + $0xb0] sm:$0xff] %v289
    %326 = vst [vmem:[#allocation2 + $0xb8] sm:$0xff] %v291
    %327 = vst [vmem:[#allocation2 + $0xc0] sm:$0xff] %v222
    %328 = vst [vmem:[#allocation2 + $0xc8] sm:$0xff] %v224
    %329 = vst [vmem:[#allocation2 + $0xd0] sm:$0xff] %v295
    %330 = vst [vmem:[#allocation2 + $0xd8] sm:$0xff] %v297
    %331 = vst [vmem:[#allocation2 + $0xe0] sm:$0xff] %v226
    %332 = vst [vmem:[#allocation2 + $0xe8] sm:$0xff] %v228
    %333 = vst [vmem:[#allocation2 + $0xf0] sm:$0xff] %v299
    %334 = vst [vmem:[#allocation2 + $0xf8] sm:$0xff] %v301
    %v335 = vld [vmem:[#allocation3] sm:$0xff]
    %v336 = vld [vmem:[#allocation3 + $0x8] sm:$0xff]
    %v337 = vld [vmem:[#allocation3 + $0x10] sm:$0xff]
    %v338 = vld [vmem:[#allocation3 + $0x18] sm:$0xff]
    %v339 = vld [vmem:[#allocation3 + $0x20] sm:$0xff]
    %v340 = vld [vmem:[#allocation3 + $0x28] sm:$0xff]
    %v341 = vld [vmem:[#allocation3 + $0x30] sm:$0xff]
    %v342 = vld [vmem:[#allocation3 + $0x38] sm:$0xff]
    %v343 = vld [vmem:[#allocation3 + $0x40] sm:$0xff]
    %v344 = vld [vmem:[#allocation3 + $0x48] sm:$0xff]
    %v345 = vld [vmem:[#allocation3 + $0x50] sm:$0xff]
    %v346 = vld [vmem:[#allocation3 + $0x58] sm:$0xff]
    %v347 = vld [vmem:[#allocation3 + $0x60] sm:$0xff]
    %v348 = vld [vmem:[#allocation3 + $0x68] sm:$0xff]
    %v349 = vld [vmem:[#allocation3 + $0x70] sm:$0xff]
    %v350 = vld [vmem:[#allocation3 + $0x78] sm:$0xff]
    %v351 = vld [vmem:[#allocation3 + $0x80] sm:$0xff]
    %v352 = vld [vmem:[#allocation3 + $0x88] sm:$0xff]
    %v353 = vld [vmem:[#allocation3 + $0x90] sm:$0xff]
    %v354 = vld [vmem:[#allocation3 + $0x98] sm:$0xff]
    %v355 = vld [vmem:[#allocation3 + $0xa0] sm:$0xff]
    %v356 = vld [vmem:[#allocation3 + $0xa8] sm:$0xff]
    %v357 = vld [vmem:[#allocation3 + $0xb0] sm:$0xff]
    %v358 = vld [vmem:[#allocation3 + $0xb8] sm:$0xff]
    %v359 = vld [vmem:[#allocation3 + $0xc0] sm:$0xff]
    %v360 = vld [vmem:[#allocation3 + $0xc8] sm:$0xff]
    %v361 = vld [vmem:[#allocation3 + $0xd0] sm:$0xff]
    %v362 = vld [vmem:[#allocation3 + $0xd8] sm:$0xff]
    %v363 = vld [vmem:[#allocation3 + $0xe0] sm:$0xff]
    %v364 = vld [vmem:[#allocation3 + $0xe8] sm:$0xff]
    %v365 = vld [vmem:[#allocation3 + $0xf0] sm:$0xff]
    %v366 = vld [vmem:[#allocation3 + $0xf8] sm:$0xff]
    %v399 = vunpack.c.l.b16 %v335
    %v400 = vunpack.c.h.b16 %v335
    %v401 = vunpack.c.l.b16 %v336
    %v402 = vunpack.c.h.b16 %v336
    %v403 = vunpack.c.l.b16 %v337
    %v404 = vunpack.c.h.b16 %v337
    %v405 = vunpack.c.l.b16 %v338
    %v406 = vunpack.c.h.b16 %v338
    %v407 = vunpack.c.l.b16 %v339
    %v408 = vunpack.c.h.b16 %v339
    %v409 = vunpack.c.l.b16 %v340
    %v410 = vunpack.c.h.b16 %v340
    %v411 = vunpack.c.l.b16 %v341
    %v412 = vunpack.c.h.b16 %v341
    %v413 = vunpack.c.l.b16 %v342
    %v414 = vunpack.c.h.b16 %v342
    %v415 = vunpack.c.l.b16 %v343
    %v416 = vunpack.c.h.b16 %v343
    %v417 = vunpack.c.l.b16 %v344
    %v418 = vunpack.c.h.b16 %v344
    %v419 = vunpack.c.l.b16 %v345
    %v420 = vunpack.c.h.b16 %v345
    %v421 = vunpack.c.l.b16 %v346
    %v422 = vunpack.c.h.b16 %v346
    %v423 = vunpack.c.l.b16 %v347
    %v424 = vunpack.c.h.b16 %v347
    %v425 = vunpack.c.l.b16 %v348
    %v426 = vunpack.c.h.b16 %v348
    %v427 = vunpack.c.l.b16 %v349
    %v428 = vunpack.c.h.b16 %v349
    %v429 = vunpack.c.l.b16 %v350
    %v430 = vunpack.c.h.b16 %v350
    %v431 = vunpack.c.l.b16 %v351
    %v432 = vunpack.c.h.b16 %v351
    %v433 = vunpack.c.l.b16 %v352
    %v434 = vunpack.c.h.b16 %v352
    %v435 = vunpack.c.l.b16 %v353
    %v436 = vunpack.c.h.b16 %v353
    %v437 = vunpack.c.l.b16 %v354
    %v438 = vunpack.c.h.b16 %v354
    %v439 = vunpack.c.l.b16 %v355
    %v440 = vunpack.c.h.b16 %v355
    %v441 = vunpack.c.l.b16 %v356
    %v442 = vunpack.c.h.b16 %v356
    %v443 = vunpack.c.l.b16 %v357
    %v444 = vunpack.c.h.b16 %v357
    %v445 = vunpack.c.l.b16 %v358
    %v446 = vunpack.c.h.b16 %v358
    %v447 = vunpack.c.l.b16 %v359
    %v448 = vunpack.c.h.b16 %v359
    %v449 = vunpack.c.l.b16 %v360
    %v450 = vunpack.c.h.b16 %v360
    %v451 = vunpack.c.l.b16 %v361
    %v452 = vunpack.c.h.b16 %v361
    %v453 = vunpack.c.l.b16 %v362
    %v454 = vunpack.c.h.b16 %v362
    %v455 = vunpack.c.l.b16 %v363
    %v456 = vunpack.c.h.b16 %v363
    %v457 = vunpack.c.l.b16 %v364
    %v458 = vunpack.c.h.b16 %v364
    %v459 = vunpack.c.l.b16 %v365
    %v460 = vunpack.c.h.b16 %v365
    %v461 = vunpack.c.l.b16 %v366
    %v462 = vunpack.c.h.b16 %v366
    %v463 = vpack.c.b16 %v403, %v399
    %v464 = vpack.c.b16 %v404, %v400
    %v465 = vpack.c.b16 %v405, %v401
    %v466 = vpack.c.b16 %v406, %v402
    %v467 = vpack.c.b16 %v411, %v407
    %v468 = vpack.c.b16 %v412, %v408
    %v469 = vpack.c.b16 %v413, %v409
    %v470 = vpack.c.b16 %v414, %v410
    %v471 = vpack.c.b16 %v419, %v415
    %v472 = vpack.c.b16 %v420, %v416
    %v473 = vpack.c.b16 %v421, %v417
    %v474 = vpack.c.b16 %v422, %v418
    %v475 = vpack.c.b16 %v427, %v423
    %v476 = vpack.c.b16 %v428, %v424
    %v477 = vpack.c.b16 %v429, %v425
    %v478 = vpack.c.b16 %v430, %v426
    %v479 = vpack.c.b16 %v435, %v431
    %v480 = vpack.c.b16 %v436, %v432
    %v481 = vpack.c.b16 %v437, %v433
    %v482 = vpack.c.b16 %v438, %v434
    %v483 = vpack.c.b16 %v443, %v439
    %v484 = vpack.c.b16 %v444, %v440
    %v485 = vpack.c.b16 %v445, %v441
    %v486 = vpack.c.b16 %v446, %v442
    %v487 = vpack.c.b16 %v451, %v447
    %v488 = vpack.c.b16 %v452, %v448
    %v489 = vpack.c.b16 %v453, %v449
    %v490 = vpack.c.b16 %v454, %v450
    %v491 = vpack.c.b16 %v459, %v455
    %v492 = vpack.c.b16 %v460, %v456
    %v493 = vpack.c.b16 %v461, %v457
    %v494 = vpack.c.b16 %v462, %v458
    %527 = vmatprep.subr.bf16.mxu0 %v464
    %528 = vmatpush1.bf16.msra.mxu0 %v463
    %529 = vmatprep.subr.bf16.mxu0 %v468
    %530 = vmatpush1.bf16.msra.mxu0 %v467
    %531 = vmatprep.subr.bf16.mxu0 %v472
    %532 = vmatpush1.bf16.msra.mxu0 %v471
    %533 = vmatprep.subr.bf16.mxu0 %v476
    %534 = vmatpush1.bf16.msra.mxu0 %v475
    %535 = vmatprep.subr.bf16.mxu0 %v480
    %536 = vmatpush1.bf16.msra.mxu0 %v479
    %537 = vmatprep.subr.bf16.mxu0 %v484
    %538 = vmatpush1.bf16.msra.mxu0 %v483
    %539 = vmatprep.subr.bf16.mxu0 %v488
    %540 = vmatpush1.bf16.msra.mxu0 %v487
    %541 = vmatprep.subr.bf16.mxu0 %v492
    %542 = vmatpush1.bf16.msra.mxu0 %v491
    %543 = vmatprep.subr.bf16.mxu0 0
    %544 = vmatpush1.bf16.msra.mxu0 0
    %545 = vmatprep.subr.bf16.mxu0 0
    %546 = vmatpush1.bf16.msra.mxu0 0
    %547 = vmatprep.subr.bf16.mxu0 0
    %548 = vmatpush1.bf16.msra.mxu0 0
    %549 = vmatprep.subr.bf16.mxu0 0
    %550 = vmatpush1.bf16.msra.mxu0 0
    %551 = vmatprep.subr.bf16.mxu0 0
    %552 = vmatpush1.bf16.msra.mxu0 0
    %553 = vmatprep.subr.bf16.mxu0 0
    %554 = vmatpush1.bf16.msra.mxu0 0
    %555 = vmatprep.subr.bf16.mxu0 0
    %556 = vmatpush1.bf16.msra.mxu0 0
    %557 = vmatprep.subr.bf16.mxu0 0
    %558 = vmatpush1.bf16.msra.mxu0 0
    %559 = vmatprep.mubr.bf16.mxu0 0
    %560 = vmatmul.mubr.bf16.gmra.mrb[0].mxu0 0
    %v561 = vpop.f32.mrb[0].mxu0
    %v562 = vadd.f32 0.0, %v561
    %v563 = vpop.f32.mrb[0].mxu0
    %v564 = vadd.f32 0.0, %v563
    %v565 = vpop.f32.mrb[0].mxu0
    %v566 = vpop.f32.mrb[0].mxu0
    %567 = vdwg.mxu0
    %568 = vmatprep.subr.bf16.mxu0 %v466
    %569 = vmatpush1.bf16.msra.mxu0 %v465
    %570 = vmatprep.subr.bf16.mxu0 %v470
    %571 = vmatpush1.bf16.msra.mxu0 %v469
    %572 = vmatprep.subr.bf16.mxu0 %v474
    %573 = vmatpush1.bf16.msra.mxu0 %v473
    %574 = vmatprep.subr.bf16.mxu0 %v478
    %575 = vmatpush1.bf16.msra.mxu0 %v477
    %576 = vmatprep.subr.bf16.mxu0 %v482
    %577 = vmatpush1.bf16.msra.mxu0 %v481
    %578 = vmatprep.subr.bf16.mxu0 %v486
    %579 = vmatpush1.bf16.msra.mxu0 %v485
    %580 = vmatprep.subr.bf16.mxu0 %v490
    %581 = vmatpush1.bf16.msra.mxu0 %v489
    %582 = vmatprep.subr.bf16.mxu0 %v494
    %583 = vmatpush1.bf16.msra.mxu0 %v493
    %584 = vmatprep.subr.bf16.mxu0 0
    %585 = vmatpush1.bf16.msra.mxu0 0
    %586 = vmatprep.subr.bf16.mxu0 0
    %587 = vmatpush1.bf16.msra.mxu0 0
    %588 = vmatprep.subr.bf16.mxu0 0
    %589 = vmatpush1.bf16.msra.mxu0 0
    %590 = vmatprep.subr.bf16.mxu0 0
    %591 = vmatpush1.bf16.msra.mxu0 0
    %592 = vmatprep.subr.bf16.mxu0 0
    %593 = vmatpush1.bf16.msra.mxu0 0
    %594 = vmatprep.subr.bf16.mxu0 0
    %595 = vmatpush1.bf16.msra.mxu0 0
    %596 = vmatprep.subr.bf16.mxu0 0
    %597 = vmatpush1.bf16.msra.mxu0 0
    %598 = vmatprep.subr.bf16.mxu0 0
    %599 = vmatpush1.bf16.msra.mxu0 0
    %600 = vmatprep.mubr.bf16.mxu0 0
    %601 = vmatmul.mubr.bf16.gmra.mrb[0].mxu0 0
    %v602 = vpop.f32.mrb[0].mxu0
    %v603 = vadd.f32 0.0, %v602
    %v604 = vpop.f32.mrb[0].mxu0
    %v605 = vadd.f32 0.0, %v604
    %v606 = vpop.f32.mrb[0].mxu0
    %v607 = vpop.f32.mrb[0].mxu0
    %608 = vdwg.mxu0
    %v609 = vld [vmem:[#allocation2] sm:$0xff]
    %v610 = vld [vmem:[#allocation2 + $0x8] sm:$0xff]
    %v611 = vld [vmem:[#allocation2 + $0x10] sm:$0xff]
    %v612 = vld [vmem:[#allocation2 + $0x18] sm:$0xff]
    %v613 = vadd.f32 %v609, %v562
    %v614 = vadd.f32 %v610, %v564
    %v615 = vadd.f32 %v611, %v603
    %v616 = vadd.f32 %v612, %v605
    %v617 = vxor.u32 %v613, 2147483648
    %v618 = vxor.u32 %v614, 2147483648
    %v619 = vxor.u32 %v615, 2147483648
    %v620 = vmul.f32 %v617, 1.442695
    %v621 = vpow.pop %v620
    %v622 = vmul.f32 %v618, 1.442695
    %v623 = vpow.pop %v622
    %v624 = vmul.f32 %v619, 1.442695
    %v625 = vpow.pop %v624
    %v626 = vadd.f32 %v621, 1.0
    %v627 = vadd.f32 %v623, 1.0
    %v628 = vadd.f32 %v625, 1.0
    %v629 = vrcp.pop %v626
    %v630 = vmul.f32 1.0, %v629
    %v631 = vrcp.pop %v627
    %v632 = vmul.f32 1.0, %v631
    %v633 = vrcp.pop %v628
    %v634 = vmul.f32 1.0, %v633
    %v635 = vtanh.pop %v616
    %v636 = vmul.f32 %v632, 0.0
    %v637 = vmul.f32 %v630, %v635
    %v638 = vadd.f32 %v636, %v637
    %v639 = vtanh.pop %v638
    %v640 = vmul.f32 %v634, %v639
    %v641 = vld [vmem:[#allocation7] sm:$0xff]
    %v642 = vld [vmem:[#allocation7 + $0x8] sm:$0xff]
    %v643 = vld [vmem:[#allocation7 + $0x10] sm:$0xff]
    %v644 = vld [vmem:[#allocation7 + $0x18] sm:$0xff]
    %v645 = vld [vmem:[#allocation7 + $0x20] sm:$0xff]
    %v646 = vld [vmem:[#allocation7 + $0x28] sm:$0xff]
    %v647 = vld [vmem:[#allocation7 + $0x30] sm:$0xff]
    %v648 = vld [vmem:[#allocation7 + $0x38] sm:$0xff]
    %v649 = vld [vmem:[#allocation7 + $0x40] sm:$0xff]
    %v650 = vld [vmem:[#allocation7 + $0x48] sm:$0xff]
    %v651 = vld [vmem:[#allocation7 + $0x50] sm:$0xff]
    %v652 = vld [vmem:[#allocation7 + $0x58] sm:$0xff]
    %v653 = vld [vmem:[#allocation7 + $0x60] sm:$0xff]
    %v654 = vld [vmem:[#allocation7 + $0x68] sm:$0xff]
    %v655 = vld [vmem:[#allocation7 + $0x70] sm:$0xff]
    %v656 = vld [vmem:[#allocation7 + $0x78] sm:$0xff]
    %v657 = vld [vmem:[#allocation7 + $0x80] sm:$0xff]
    %v658 = vld [vmem:[#allocation7 + $0x88] sm:$0xff]
    %v659 = vld [vmem:[#allocation7 + $0x90] sm:$0xff]
    %v660 = vld [vmem:[#allocation7 + $0x98] sm:$0xff]
    %v661 = vld [vmem:[#allocation7 + $0xa0] sm:$0xff]
    %v662 = vld [vmem:[#allocation7 + $0xa8] sm:$0xff]
    %v663 = vld [vmem:[#allocation7 + $0xb0] sm:$0xff]
    %v664 = vld [vmem:[#allocation7 + $0xb8] sm:$0xff]
    %v665 = vld [vmem:[#allocation7 + $0xc0] sm:$0xff]
    %v666 = vld [vmem:[#allocation7 + $0xc8] sm:$0xff]
    %v667 = vld [vmem:[#allocation7 + $0xd0] sm:$0xff]
    %v668 = vld [vmem:[#allocation7 + $0xd8] sm:$0xff]
    %v669 = vld [vmem:[#allocation7 + $0xe0] sm:$0xff]
    %v670 = vld [vmem:[#allocation7 + $0xe8] sm:$0xff]
    %v671 = vld [vmem:[#allocation7 + $0xf0] sm:$0xff]
    %v672 = vld [vmem:[#allocation7 + $0xf8] sm:$0xff]
    %v705 = vunpack.c.l.b16 %v641
    %v706 = vunpack.c.h.b16 %v641
    %v707 = vunpack.c.l.b16 %v642
    %v708 = vunpack.c.h.b16 %v642
    %v709 = vunpack.c.l.b16 %v643
    %v710 = vunpack.c.h.b16 %v643
    %v711 = vunpack.c.l.b16 %v644
    %v712 = vunpack.c.h.b16 %v644
    %v713 = vunpack.c.l.b16 %v645
    %v714 = vunpack.c.h.b16 %v645
    %v715 = vunpack.c.l.b16 %v646
    %v716 = vunpack.c.h.b16 %v646
    %v717 = vunpack.c.l.b16 %v647
    %v718 = vunpack.c.h.b16 %v647
    %v719 = vunpack.c.l.b16 %v648
    %v720 = vunpack.c.h.b16 %v648
    %v721 = vunpack.c.l.b16 %v649
    %v722 = vunpack.c.h.b16 %v649
    %v723 = vunpack.c.l.b16 %v650
    %v724 = vunpack.c.h.b16 %v650
    %v725 = vunpack.c.l.b16 %v651
    %v726 = vunpack.c.h.b16 %v651
    %v727 = vunpack.c.l.b16 %v652
    %v728 = vunpack.c.h.b16 %v652
    %v729 = vunpack.c.l.b16 %v653
    %v730 = vunpack.c.h.b16 %v653
    %v731 = vunpack.c.l.b16 %v654
    %v732 = vunpack.c.h.b16 %v654
    %v733 = vunpack.c.l.b16 %v655
    %v734 = vunpack.c.h.b16 %v655
    %v735 = vunpack.c.l.b16 %v656
    %v736 = vunpack.c.h.b16 %v656
    %v737 = vunpack.c.l.b16 %v657
    %v738 = vunpack.c.h.b16 %v657
    %v739 = vunpack.c.l.b16 %v658
    %v740 = vunpack.c.h.b16 %v658
    %v741 = vunpack.c.l.b16 %v659
    %v742 = vunpack.c.h.b16 %v659
    %v743 = vunpack.c.l.b16 %v660
    %v744 = vunpack.c.h.b16 %v660
    %v745 = vunpack.c.l.b16 %v661
    %v746 = vunpack.c.h.b16 %v661
    %v747 = vunpack.c.l.b16 %v662
    %v748 = vunpack.c.h.b16 %v662
    %v749 = vunpack.c.l.b16 %v663
    %v750 = vunpack.c.h.b16 %v663
    %v751 = vunpack.c.l.b16 %v664
    %v752 = vunpack.c.h.b16 %v664
    %v753 = vunpack.c.l.b16 %v665
    %v754 = vunpack.c.h.b16 %v665
    %v755 = vunpack.c.l.b16 %v666
    %v756 = vunpack.c.h.b16 %v666
    %v757 = vunpack.c.l.b16 %v667
    %v758 = vunpack.c.h.b16 %v667
    %v759 = vunpack.c.l.b16 %v668
    %v760 = vunpack.c.h.b16 %v668
    %v761 = vunpack.c.l.b16 %v669
    %v762 = vunpack.c.h.b16 %v669
    %v763 = vunpack.c.l.b16 %v670
    %v764 = vunpack.c.h.b16 %v670
    %v765 = vunpack.c.l.b16 %v671
    %v766 = vunpack.c.h.b16 %v671
    %v767 = vunpack.c.l.b16 %v672
    %v768 = vunpack.c.h.b16 %v672
    %v769 = vpack.c.b16 %v709, %v705
    %v770 = vpack.c.b16 %v710, %v706
    %v771 = vpack.c.b16 %v711, %v707
    %v772 = vpack.c.b16 %v712, %v708
    %v773 = vpack.c.b16 %v717, %v713
    %v774 = vpack.c.b16 %v718, %v714
    %v775 = vpack.c.b16 %v719, %v715
    %v776 = vpack.c.b16 %v720, %v716
    %v777 = vpack.c.b16 %v725, %v721
    %v778 = vpack.c.b16 %v726, %v722
    %v779 = vpack.c.b16 %v727, %v723
    %v780 = vpack.c.b16 %v728, %v724
    %v781 = vpack.c.b16 %v733, %v729
    %v782 = vpack.c.b16 %v734, %v730
    %v783 = vpack.c.b16 %v735, %v731
    %v784 = vpack.c.b16 %v736, %v732
    %v785 = vpack.c.b16 %v741, %v737
    %v786 = vpack.c.b16 %v742, %v738
    %v787 = vpack.c.b16 %v743, %v739
    %v788 = vpack.c.b16 %v744, %v740
    %v789 = vpack.c.b16 %v749, %v745
    %v790 = vpack.c.b16 %v750, %v746
    %v791 = vpack.c.b16 %v751, %v747
    %v792 = vpack.c.b16 %v752, %v748
    %v793 = vpack.c.b16 %v757, %v753
    %v794 = vpack.c.b16 %v758, %v754
    %v795 = vpack.c.b16 %v759, %v755
    %v796 = vpack.c.b16 %v760, %v756
    %v797 = vpack.c.b16 %v765, %v761
    %v798 = vpack.c.b16 %v766, %v762
    %v799 = vpack.c.b16 %v767, %v763
    %v800 = vpack.c.b16 %v768, %v764
    %833 = vmatprep.subr.bf16.mxu0 %v770
    %834 = vmatpush1.bf16.msra.mxu0 %v769
    %835 = vmatprep.subr.bf16.mxu0 %v774
    %836 = vmatpush1.bf16.msra.mxu0 %v773
    %837 = vmatprep.subr.bf16.mxu0 %v778
    %838 = vmatpush1.bf16.msra.mxu0 %v777
    %839 = vmatprep.subr.bf16.mxu0 %v782
    %840 = vmatpush1.bf16.msra.mxu0 %v781
    %841 = vmatprep.subr.bf16.mxu0 %v786
    %842 = vmatpush1.bf16.msra.mxu0 %v785
    %843 = vmatprep.subr.bf16.mxu0 %v790
    %844 = vmatpush1.bf16.msra.mxu0 %v789
    %845 = vmatprep.subr.bf16.mxu0 %v794
    %846 = vmatpush1.bf16.msra.mxu0 %v793
    %847 = vmatprep.subr.bf16.mxu0 %v798
    %848 = vmatpush1.bf16.msra.mxu0 %v797
    %849 = vmatprep.subr.bf16.mxu0 0
    %850 = vmatpush1.bf16.msra.mxu0 0
    %851 = vmatprep.subr.bf16.mxu0 0
    %852 = vmatpush1.bf16.msra.mxu0 0
    %853 = vmatprep.subr.bf16.mxu0 0
    %854 = vmatpush1.bf16.msra.mxu0 0
    %855 = vmatprep.subr.bf16.mxu0 0
    %856 = vmatpush1.bf16.msra.mxu0 0
    %857 = vmatprep.subr.bf16.mxu0 0
    %858 = vmatpush1.bf16.msra.mxu0 0
    %859 = vmatprep.subr.bf16.mxu0 0
    %860 = vmatpush1.bf16.msra.mxu0 0
    %861 = vmatprep.subr.bf16.mxu0 0
    %862 = vmatpush1.bf16.msra.mxu0 0
    %863 = vmatprep.subr.bf16.mxu0 0
    %864 = vmatpush1.bf16.msra.mxu0 0
    %865 = vmatprep.mubr.bf16.mxu0 0
    %866 = vmatmul.mubr.bf16.gmra.mrb[0].mxu0 0
    %v867 = vpop.f32.mrb[0].mxu0
    %v868 = vadd.f32 0.0, %v867
    %v869 = vpop.f32.mrb[0].mxu0
    %v870 = vadd.f32 0.0, %v869
    %v871 = vpop.f32.mrb[0].mxu0
    %v872 = vpop.f32.mrb[0].mxu0
    %873 = vdwg.mxu0
    %874 = vmatprep.subr.bf16.mxu0 %v772
    %875 = vmatpush1.bf16.msra.mxu0 %v771
    %876 = vmatprep.subr.bf16.mxu0 %v776
    %877 = vmatpush1.bf16.msra.mxu0 %v775
    %878 = vmatprep.subr.bf16.mxu0 %v780
    %879 = vmatpush1.bf16.msra.mxu0 %v779
    %880 = vmatprep.subr.bf16.mxu0 %v784
    %881 = vmatpush1.bf16.msra.mxu0 %v783
    %882 = vmatprep.subr.bf16.mxu0 %v788
    %883 = vmatpush1.bf16.msra.mxu0 %v787
    %884 = vmatprep.subr.bf16.mxu0 %v792
    %885 = vmatpush1.bf16.msra.mxu0 %v791
    %886 = vmatprep.subr.bf16.mxu0 %v796
    %887 = vmatpush1.bf16.msra.mxu0 %v795
    %888 = vmatprep.subr.bf16.mxu0 %v800
    %889 = vmatpush1.bf16.msra.mxu0 %v799
    %890 = vmatprep.subr.bf16.mxu0 0
    %891 = vmatpush1.bf16.msra.mxu0 0
    %892 = vmatprep.subr.bf16.mxu0 0
    %893 = vmatpush1.bf16.msra.mxu0 0
    %894 = vmatprep.subr.bf16.mxu0 0
    %895 = vmatpush1.bf16.msra.mxu0 0
    %896 = vmatprep.subr.bf16.mxu0 0
    %897 = vmatpush1.bf16.msra.mxu0 0
    %898 = vmatprep.subr.bf16.mxu0 0
    %899 = vmatpush1.bf16.msra.mxu0 0
    %900 = vmatprep.subr.bf16.mxu0 0
    %901 = vmatpush1.bf16.msra.mxu0 0
    %902 = vmatprep.subr.bf16.mxu0 0
    %903 = vmatpush1.bf16.msra.mxu0 0
    %904 = vmatprep.subr.bf16.mxu0 0
    %905 = vmatpush1.bf16.msra.mxu0 0
    %906 = vmatprep.mubr.bf16.mxu0 0
    %907 = vmatmul.mubr.bf16.gmra.mrb[0].mxu0 0
    %v908 = vpop.f32.mrb[0].mxu0
    %v909 = vadd.f32 0.0, %v908
    %v910 = vpop.f32.mrb[0].mxu0
    %v911 = vadd.f32 0.0, %v910
    %v912 = vpop.f32.mrb[0].mxu0
    %v913 = vpop.f32.mrb[0].mxu0
    %914 = vdwg.mxu0
    %v915 = vpack.c.bf16 %v640, %v640
    %v916 = vld [vmem:[#allocation5] sm:$0xff]
    %v917 = vld [vmem:[#allocation5 + $0x8] sm:$0xff]
    %v918 = vld [vmem:[#allocation5 + $0x10] sm:$0xff]
    %v919 = vld [vmem:[#allocation5 + $0x18] sm:$0xff]
    %v920 = vld [vmem:[#allocation5 + $0x20] sm:$0xff]
    %v921 = vld [vmem:[#allocation5 + $0x28] sm:$0xff]
    %v922 = vld [vmem:[#allocation5 + $0x30] sm:$0xff]
    %v923 = vld [vmem:[#allocation5 + $0x38] sm:$0xff]
    %v924 = vld [vmem:[#allocation5 + $0x40] sm:$0xff]
    %v925 = vld [vmem:[#allocation5 + $0x48] sm:$0xff]
    %v926 = vld [vmem:[#allocation5 + $0x50] sm:$0xff]
    %v927 = vld [vmem:[#allocation5 + $0x58] sm:$0xff]
    %v928 = vld [vmem:[#allocation5 + $0x60] sm:$0xff]
    %v929 = vld [vmem:[#allocation5 + $0x68] sm:$0xff]
    %v930 = vld [vmem:[#allocation5 + $0x70] sm:$0xff]
    %v931 = vld [vmem:[#allocation5 + $0x78] sm:$0xff]
    %v932 = vld [vmem:[#allocation5 + $0x80] sm:$0xff]
    %v933 = vld [vmem:[#allocation5 + $0x88] sm:$0xff]
    %v934 = vld [vmem:[#allocation5 + $0x90] sm:$0xff]
    %v935 = vld [vmem:[#allocation5 + $0x98] sm:$0xff]
    %v936 = vld [vmem:[#allocation5 + $0xa0] sm:$0xff]
    %v937 = vld [vmem:[#allocation5 + $0xa8] sm:$0xff]
    %v938 = vld [vmem:[#allocation5 + $0xb0] sm:$0xff]
    %v939 = vld [vmem:[#allocation5 + $0xb8] sm:$0xff]
    %v940 = vld [vmem:[#allocation5 + $0xc0] sm:$0xff]
    %v941 = vld [vmem:[#allocation5 + $0xc8] sm:$0xff]
    %v942 = vld [vmem:[#allocation5 + $0xd0] sm:$0xff]
    %v943 = vld [vmem:[#allocation5 + $0xd8] sm:$0xff]
    %v944 = vld [vmem:[#allocation5 + $0xe0] sm:$0xff]
    %v945 = vld [vmem:[#allocation5 + $0xe8] sm:$0xff]
    %v946 = vld [vmem:[#allocation5 + $0xf0] sm:$0xff]
    %v947 = vld [vmem:[#allocation5 + $0xf8] sm:$0xff]
    %v980 = vunpack.c.l.b16 %v916
    %v981 = vunpack.c.h.b16 %v916
    %v982 = vunpack.c.l.b16 %v917
    %v983 = vunpack.c.h.b16 %v917
    %v984 = vunpack.c.l.b16 %v918
    %v985 = vunpack.c.h.b16 %v918
    %v986 = vunpack.c.l.b16 %v919
    %v987 = vunpack.c.h.b16 %v919
    %v988 = vunpack.c.l.b16 %v920
    %v989 = vunpack.c.h.b16 %v920
    %v990 = vunpack.c.l.b16 %v921
    %v991 = vunpack.c.h.b16 %v921
    %v992 = vunpack.c.l.b16 %v922
    %v993 = vunpack.c.h.b16 %v922
    %v994 = vunpack.c.l.b16 %v923
    %v995 = vunpack.c.h.b16 %v923
    %v996 = vunpack.c.l.b16 %v924
    %v997 = vunpack.c.h.b16 %v924
    %v998 = vunpack.c.l.b16 %v925
    %v999 = vunpack.c.h.b16 %v925
    %v1000 = vunpack.c.l.b16 %v926
    %v1001 = vunpack.c.h.b16 %v926
    %v1002 = vunpack.c.l.b16 %v927
    %v1003 = vunpack.c.h.b16 %v927
    %v1004 = vunpack.c.l.b16 %v928
    %v1005 = vunpack.c.h.b16 %v928
    %v1006 = vunpack.c.l.b16 %v929
    %v1007 = vunpack.c.h.b16 %v929
    %v1008 = vunpack.c.l.b16 %v930
    %v1009 = vunpack.c.h.b16 %v930
    %v1010 = vunpack.c.l.b16 %v931
    %v1011 = vunpack.c.h.b16 %v931
    %v1012 = vunpack.c.l.b16 %v932
    %v1013 = vunpack.c.h.b16 %v932
    %v1014 = vunpack.c.l.b16 %v933
    %v1015 = vunpack.c.h.b16 %v933
    %v1016 = vunpack.c.l.b16 %v934
    %v1017 = vunpack.c.h.b16 %v934
    %v1018 = vunpack.c.l.b16 %v935
    %v1019 = vunpack.c.h.b16 %v935
    %v1020 = vunpack.c.l.b16 %v936
    %v1021 = vunpack.c.h.b16 %v936
    %v1022 = vunpack.c.l.b16 %v937
    %v1023 = vunpack.c.h.b16 %v937
    %v1024 = vunpack.c.l.b16 %v938
    %v1025 = vunpack.c.h.b16 %v938
    %v1026 = vunpack.c.l.b16 %v939
    %v1027 = vunpack.c.h.b16 %v939
    %v1028 = vunpack.c.l.b16 %v940
    %v1029 = vunpack.c.h.b16 %v940
    %v1030 = vunpack.c.l.b16 %v941
    %v1031 = vunpack.c.h.b16 %v941
    %v1032 = vunpack.c.l.b16 %v942
    %v1033 = vunpack.c.h.b16 %v942
    %v1034 = vunpack.c.l.b16 %v943
    %v1035 = vunpack.c.h.b16 %v943
    %v1036 = vunpack.c.l.b16 %v944
    %v1037 = vunpack.c.h.b16 %v944
    %v1038 = vunpack.c.l.b16 %v945
    %v1039 = vunpack.c.h.b16 %v945
    %v1040 = vunpack.c.l.b16 %v946
    %v1041 = vunpack.c.h.b16 %v946
    %v1042 = vunpack.c.l.b16 %v947
    %v1043 = vunpack.c.h.b16 %v947
    %v1044 = vpack.c.b16 %v984, %v980
    %v1045 = vpack.c.b16 %v985, %v981
    %v1046 = vpack.c.b16 %v986, %v982
    %v1047 = vpack.c.b16 %v987, %v983
    %v1048 = vpack.c.b16 %v992, %v988
    %v1049 = vpack.c.b16 %v993, %v989
    %v1050 = vpack.c.b16 %v994, %v990
    %v1051 = vpack.c.b16 %v995, %v991
    %v1052 = vpack.c.b16 %v1000, %v996
    %v1053 = vpack.c.b16 %v1001, %v997
    %v1054 = vpack.c.b16 %v1002, %v998
    %v1055 = vpack.c.b16 %v1003, %v999
    %v1056 = vpack.c.b16 %v1008, %v1004
    %v1057 = vpack.c.b16 %v1009, %v1005
    %v1058 = vpack.c.b16 %v1010, %v1006
    %v1059 = vpack.c.b16 %v1011, %v1007
    %v1060 = vpack.c.b16 %v1016, %v1012
    %v1061 = vpack.c.b16 %v1017, %v1013
    %v1062 = vpack.c.b16 %v1018, %v1014
    %v1063 = vpack.c.b16 %v1019, %v1015
    %v1064 = vpack.c.b16 %v1024, %v1020
    %v1065 = vpack.c.b16 %v1025, %v1021
    %v1066 = vpack.c.b16 %v1026, %v1022
    %v1067 = vpack.c.b16 %v1027, %v1023
    %v1068 = vpack.c.b16 %v1032, %v1028
    %v1069 = vpack.c.b16 %v1033, %v1029
    %v1070 = vpack.c.b16 %v1034, %v1030
    %v1071 = vpack.c.b16 %v1035, %v1031
    %v1072 = vpack.c.b16 %v1040, %v1036
    %v1073 = vpack.c.b16 %v1041, %v1037
    %v1074 = vpack.c.b16 %v1042, %v1038
    %v1075 = vpack.c.b16 %v1043, %v1039
    %1108 = vmatprep.subr.bf16.mxu0 %v1045
    %1109 = vmatpush1.bf16.msra.mxu0 %v1044
    %1110 = vmatprep.subr.bf16.mxu0 %v1049
    %1111 = vmatpush1.bf16.msra.mxu0 %v1048
    %1112 = vmatprep.subr.bf16.mxu0 %v1053
    %1113 = vmatpush1.bf16.msra.mxu0 %v1052
    %1114 = vmatprep.subr.bf16.mxu0 %v1057
    %1115 = vmatpush1.bf16.msra.mxu0 %v1056
    %1116 = vmatprep.subr.bf16.mxu0 %v1061
    %1117 = vmatpush1.bf16.msra.mxu0 %v1060
    %1118 = vmatprep.subr.bf16.mxu0 %v1065
    %1119 = vmatpush1.bf16.msra.mxu0 %v1064
    %1120 = vmatprep.subr.bf16.mxu0 %v1069
    %1121 = vmatpush1.bf16.msra.mxu0 %v1068
    %1122 = vmatprep.subr.bf16.mxu0 %v1073
    %1123 = vmatpush1.bf16.msra.mxu0 %v1072
    %1124 = vmatprep.subr.bf16.mxu0 0
    %1125 = vmatpush1.bf16.msra.mxu0 0
    %1126 = vmatprep.subr.bf16.mxu0 0
    %1127 = vmatpush1.bf16.msra.mxu0 0
    %1128 = vmatprep.subr.bf16.mxu0 0
    %1129 = vmatpush1.bf16.msra.mxu0 0
    %1130 = vmatprep.subr.bf16.mxu0 0
    %1131 = vmatpush1.bf16.msra.mxu0 0
    %1132 = vmatprep.subr.bf16.mxu0 0
    %1133 = vmatpush1.bf16.msra.mxu0 0
    %1134 = vmatprep.subr.bf16.mxu0 0
    %1135 = vmatpush1.bf16.msra.mxu0 0
    %1136 = vmatprep.subr.bf16.mxu0 0
    %1137 = vmatpush1.bf16.msra.mxu0 0
    %1138 = vmatprep.subr.bf16.mxu0 0
    %1139 = vmatpush1.bf16.msra.mxu0 0
    %1140 = vmatprep.mubr.bf16.mxu0 0
    %1141 = vmatmul.mubr.bf16.gmra.mrb[0].mxu0 %v915
    %v1142 = vpop.f32.mrb[0].mxu0
    %v1143 = vadd.f32 %v868, %v1142
    %v1144 = vpop.f32.mrb[0].mxu0
    %v1145 = vadd.f32 %v870, %v1144
    %v1146 = vpop.f32.mrb[0].mxu0
    %v1147 = vpop.f32.mrb[0].mxu0
    %1148 = vdwg.mxu0
    %1149 = vmatprep.subr.bf16.mxu0 %v1047
    %1150 = vmatpush1.bf16.msra.mxu0 %v1046
    %1151 = vmatprep.subr.bf16.mxu0 %v1051
    %1152 = vmatpush1.bf16.msra.mxu0 %v1050
    %1153 = vmatprep.subr.bf16.mxu0 %v1055
    %1154 = vmatpush1.bf16.msra.mxu0 %v1054
    %1155 = vmatprep.subr.bf16.mxu0 %v1059
    %1156 = vmatpush1.bf16.msra.mxu0 %v1058
    %1157 = vmatprep.subr.bf16.mxu0 %v1063
    %1158 = vmatpush1.bf16.msra.mxu0 %v1062
    %1159 = vmatprep.subr.bf16.mxu0 %v1067
    %1160 = vmatpush1.bf16.msra.mxu0 %v1066
    %1161 = vmatprep.subr.bf16.mxu0 %v1071
    %1162 = vmatpush1.bf16.msra.mxu0 %v1070
    %1163 = vmatprep.subr.bf16.mxu0 %v1075
    %1164 = vmatpush1.bf16.msra.mxu0 %v1074
    %1165 = vmatprep.subr.bf16.mxu0 0
    %1166 = vmatpush1.bf16.msra.mxu0 0
    %1167 = vmatprep.subr.bf16.mxu0 0
    %1168 = vmatpush1.bf16.msra.mxu0 0
    %1169 = vmatprep.subr.bf16.mxu0 0
    %1170 = vmatpush1.bf16.msra.mxu0 0
    %1171 = vmatprep.subr.bf16.mxu0 0
    %1172 = vmatpush1.bf16.msra.mxu0 0
    %1173 = vmatprep.subr.bf16.mxu0 0
    %1174 = vmatpush1.bf16.msra.mxu0 0
    %1175 = vmatprep.subr.bf16.mxu0 0
    %1176 = vmatpush1.bf16.msra.mxu0 0
    %1177 = vmatprep.subr.bf16.mxu0 0
    %1178 = vmatpush1.bf16.msra.mxu0 0
    %1179 = vmatprep.subr.bf16.mxu0 0
    %1180 = vmatpush1.bf16.msra.mxu0 0
    %1181 = vmatprep.mubr.bf16.mxu0 0
    %1182 = vmatmul.mubr.bf16.gmra.mrb[0].mxu0 %v915
    %v1183 = vpop.f32.mrb[0].mxu0
    %v1184 = vadd.f32 %v909, %v1183
    %v1185 = vpop.f32.mrb[0].mxu0
    %v1186 = vadd.f32 %v911, %v1185
    %v1187 = vpop.f32.mrb[0].mxu0
    %v1188 = vpop.f32.mrb[0].mxu0
    %1189 = vdwg.mxu0
    %v1190 = vld [vmem:[%s6] sm:$0xf]
    %v1192 = vlaneseq
    %v1193 = vshrl.u32 %v1192, 7
    %v1194 = vsub.s32 0, %v1193
    %v1195 = vrot.slane %v1190, %v1194
    %v1196 = vlaneseq
    %v1197 = vshrl.u32 %v1196, 7
    %v1198 = vsub.s32 1, %v1197
    %v1199 = vrot.slane %v1190, %v1198
    %v1200 = vlaneseq
    %v1201 = vshrl.u32 %v1200, 7
    %v1202 = vsub.s32 2, %v1201
    %v1203 = vrot.slane %v1190, %v1202
    %v1204 = vlaneseq
    %v1205 = vshrl.u32 %v1204, 7
    %v1206 = vsub.s32 3, %v1205
    %v1207 = vrot.slane %v1190, %v1206
    %v1212 = vadd.f32 %v1143, %v1195
    %v1213 = vadd.f32 %v1145, %v1199
    %v1214 = vadd.f32 %v1184, %v1203
    %v1215 = vadd.f32 %v1186, %v1207
    %v1216 = vxor.u32 %v1212, 2147483648
    %v1217 = vxor.u32 %v1213, 2147483648
    %v1218 = vxor.u32 %v1214, 2147483648
    %v1219 = vmul.f32 %v1216, 1.442695
    %v1220 = vpow.pop %v1219
    %v1221 = vmul.f32 %v1217, 1.442695
    %v1222 = vpow.pop %v1221
    %v1223 = vmul.f32 %v1218, 1.442695
    %v1224 = vpow.pop %v1223
    %v1225 = vadd.f32 %v1220, 1.0
    %v1226 = vadd.f32 %v1222, 1.0
    %v1227 = vadd.f32 %v1224, 1.0
    %v1228 = vrcp.pop %v1225
    %v1229 = vmul.f32 1.0, %v1228
    %v1230 = vrcp.pop %v1226
    %v1231 = vmul.f32 1.0, %v1230
    %v1232 = vrcp.pop %v1227
    %v1233 = vmul.f32 1.0, %v1232
    %v1234 = vtanh.pop %v1215
    %v1235 = vmul.f32 %v1231, 0.0
    %v1236 = vmul.f32 %v1229, %v1234
    %v1237 = vadd.f32 %v1235, %v1236
    %v1238 = vtanh.pop %v1237
    %v1239 = vmul.f32 %v1233, %v1238
    %1240 = vst [vmem:[%s7] sm:$0xff] %v1239
    %v1241 = vld [vmem:[#allocation3] sm:$0xff]
    %v1242 = vld [vmem:[#allocation3 + $0x8] sm:$0xff]
    %v1243 = vld [vmem:[#allocation3 + $0x10] sm:$0xff]
    %v1244 = vld [vmem:[#allocation3 + $0x18] sm:$0xff]
    %v1245 = vld [vmem:[#allocation3 + $0x20] sm:$0xff]
    %v1246 = vld [vmem:[#allocation3 + $0x28] sm:$0xff]
    %v1247 = vld [vmem:[#allocation3 + $0x30] sm:$0xff]
    %v1248 = vld [vmem:[#allocation3 + $0x38] sm:$0xff]
    %v1249 = vld [vmem:[#allocation3 + $0x40] sm:$0xff]
    %v1250 = vld [vmem:[#allocation3 + $0x48] sm:$0xff]
    %v1251 = vld [vmem:[#allocation3 + $0x50] sm:$0xff]
    %v1252 = vld [vmem:[#allocation3 + $0x58] sm:$0xff]
    %v1253 = vld [vmem:[#allocation3 + $0x60] sm:$0xff]
    %v1254 = vld [vmem:[#allocation3 + $0x68] sm:$0xff]
    %v1255 = vld [vmem:[#allocation3 + $0x70] sm:$0xff]
    %v1256 = vld [vmem:[#allocation3 + $0x78] sm:$0xff]
    %v1257 = vld [vmem:[#allocation3 + $0x80] sm:$0xff]
    %v1258 = vld [vmem:[#allocation3 + $0x88] sm:$0xff]
    %v1259 = vld [vmem:[#allocation3 + $0x90] sm:$0xff]
    %v1260 = vld [vmem:[#allocation3 + $0x98] sm:$0xff]
    %v1261 = vld [vmem:[#allocation3 + $0xa0] sm:$0xff]
    %v1262 = vld [vmem:[#allocation3 + $0xa8] sm:$0xff]
    %v1263 = vld [vmem:[#allocation3 + $0xb0] sm:$0xff]
    %v1264 = vld [vmem:[#allocation3 + $0xb8] sm:$0xff]
    %v1265 = vld [vmem:[#allocation3 + $0xc0] sm:$0xff]
    %v1266 = vld [vmem:[#allocation3 + $0xc8] sm:$0xff]
    %v1267 = vld [vmem:[#allocation3 + $0xd0] sm:$0xff]
    %v1268 = vld [vmem:[#allocation3 + $0xd8] sm:$0xff]
    %v1269 = vld [vmem:[#allocation3 + $0xe0] sm:$0xff]
    %v1270 = vld [vmem:[#allocation3 + $0xe8] sm:$0xff]
    %v1271 = vld [vmem:[#allocation3 + $0xf0] sm:$0xff]
    %v1272 = vld [vmem:[#allocation3 + $0xf8] sm:$0xff]
    %v1305 = vunpack.c.l.b16 %v1241
    %v1306 = vunpack.c.h.b16 %v1241
    %v1307 = vunpack.c.l.b16 %v1242
    %v1308 = vunpack.c.h.b16 %v1242
    %v1309 = vunpack.c.l.b16 %v1243
    %v1310 = vunpack.c.h.b16 %v1243
    %v1311 = vunpack.c.l.b16 %v1244
    %v1312 = vunpack.c.h.b16 %v1244
    %v1313 = vunpack.c.l.b16 %v1245
    %v1314 = vunpack.c.h.b16 %v1245
    %v1315 = vunpack.c.l.b16 %v1246
    %v1316 = vunpack.c.h.b16 %v1246
    %v1317 = vunpack.c.l.b16 %v1247
    %v1318 = vunpack.c.h.b16 %v1247
    %v1319 = vunpack.c.l.b16 %v1248
    %v1320 = vunpack.c.h.b16 %v1248
    %v1321 = vunpack.c.l.b16 %v1249
    %v1322 = vunpack.c.h.b16 %v1249
    %v1323 = vunpack.c.l.b16 %v1250
    %v1324 = vunpack.c.h.b16 %v1250
    %v1325 = vunpack.c.l.b16 %v1251
    %v1326 = vunpack.c.h.b16 %v1251
    %v1327 = vunpack.c.l.b16 %v1252
    %v1328 = vunpack.c.h.b16 %v1252
    %v1329 = vunpack.c.l.b16 %v1253
    %v1330 = vunpack.c.h.b16 %v1253
    %v1331 = vunpack.c.l.b16 %v1254
    %v1332 = vunpack.c.h.b16 %v1254
    %v1333 = vunpack.c.l.b16 %v1255
    %v1334 = vunpack.c.h.b16 %v1255
    %v1335 = vunpack.c.l.b16 %v1256
    %v1336 = vunpack.c.h.b16 %v1256
    %v1337 = vunpack.c.l.b16 %v1257
    %v1338 = vunpack.c.h.b16 %v1257
    %v1339 = vunpack.c.l.b16 %v1258
    %v1340 = vunpack.c.h.b16 %v1258
    %v1341 = vunpack.c.l.b16 %v1259
    %v1342 = vunpack.c.h.b16 %v1259
    %v1343 = vunpack.c.l.b16 %v1260
    %v1344 = vunpack.c.h.b16 %v1260
    %v1345 = vunpack.c.l.b16 %v1261
    %v1346 = vunpack.c.h.b16 %v1261
    %v1347 = vunpack.c.l.b16 %v1262
    %v1348 = vunpack.c.h.b16 %v1262
    %v1349 = vunpack.c.l.b16 %v1263
    %v1350 = vunpack.c.h.b16 %v1263
    %v1351 = vunpack.c.l.b16 %v1264
    %v1352 = vunpack.c.h.b16 %v1264
    %v1353 = vunpack.c.l.b16 %v1265
    %v1354 = vunpack.c.h.b16 %v1265
    %v1355 = vunpack.c.l.b16 %v1266
    %v1356 = vunpack.c.h.b16 %v1266
    %v1357 = vunpack.c.l.b16 %v1267
    %v1358 = vunpack.c.h.b16 %v1267
    %v1359 = vunpack.c.l.b16 %v1268
    %v1360 = vunpack.c.h.b16 %v1268
    %v1361 = vunpack.c.l.b16 %v1269
    %v1362 = vunpack.c.h.b16 %v1269
    %v1363 = vunpack.c.l.b16 %v1270
    %v1364 = vunpack.c.h.b16 %v1270
    %v1365 = vunpack.c.l.b16 %v1271
    %v1366 = vunpack.c.h.b16 %v1271
    %v1367 = vunpack.c.l.b16 %v1272
    %v1368 = vunpack.c.h.b16 %v1272
    %v1369 = vpack.c.b16 %v1309, %v1305
    %v1370 = vpack.c.b16 %v1310, %v1306
    %v1371 = vpack.c.b16 %v1311, %v1307
    %v1372 = vpack.c.b16 %v1312, %v1308
    %v1373 = vpack.c.b16 %v1317, %v1313
    %v1374 = vpack.c.b16 %v1318, %v1314
    %v1375 = vpack.c.b16 %v1319, %v1315
    %v1376 = vpack.c.b16 %v1320, %v1316
    %v1377 = vpack.c.b16 %v1325, %v1321
    %v1378 = vpack.c.b16 %v1326, %v1322
    %v1379 = vpack.c.b16 %v1327, %v1323
    %v1380 = vpack.c.b16 %v1328, %v1324
    %v1381 = vpack.c.b16 %v1333, %v1329
    %v1382 = vpack.c.b16 %v1334, %v1330
    %v1383 = vpack.c.b16 %v1335, %v1331
    %v1384 = vpack.c.b16 %v1336, %v1332
    %v1385 = vpack.c.b16 %v1341, %v1337
    %v1386 = vpack.c.b16 %v1342, %v1338
    %v1387 = vpack.c.b16 %v1343, %v1339
    %v1388 = vpack.c.b16 %v1344, %v1340
    %v1389 = vpack.c.b16 %v1349, %v1345
    %v1390 = vpack.c.b16 %v1350, %v1346
    %v1391 = vpack.c.b16 %v1351, %v1347
    %v1392 = vpack.c.b16 %v1352, %v1348
    %v1393 = vpack.c.b16 %v1357, %v1353
    %v1394 = vpack.c.b16 %v1358, %v1354
    %v1395 = vpack.c.b16 %v1359, %v1355
    %v1396 = vpack.c.b16 %v1360, %v1356
    %v1397 = vpack.c.b16 %v1365, %v1361
    %v1398 = vpack.c.b16 %v1366, %v1362
    %v1399 = vpack.c.b16 %v1367, %v1363
    %v1400 = vpack.c.b16 %v1368, %v1364
    %1433 = vmatprep.subr.bf16.mxu0 %v1370
    %1434 = vmatpush1.bf16.msra.mxu0 %v1369
    %1435 = vmatprep.subr.bf16.mxu0 %v1374
    %1436 = vmatpush1.bf16.msra.mxu0 %v1373
    %1437 = vmatprep.subr.bf16.mxu0 %v1378
    %1438 = vmatpush1.bf16.msra.mxu0 %v1377
    %1439 = vmatprep.subr.bf16.mxu0 %v1382
    %1440 = vmatpush1.bf16.msra.mxu0 %v1381
    %1441 = vmatprep.subr.bf16.mxu0 %v1386
    %1442 = vmatpush1.bf16.msra.mxu0 %v1385
    %1443 = vmatprep.subr.bf16.mxu0 %v1390
    %1444 = vmatpush1.bf16.msra.mxu0 %v1389
    %1445 = vmatprep.subr.bf16.mxu0 %v1394
    %1446 = vmatpush1.bf16.msra.mxu0 %v1393
    %1447 = vmatprep.subr.bf16.mxu0 %v1398
    %1448 = vmatpush1.bf16.msra.mxu0 %v1397
    %1449 = vmatprep.subr.bf16.mxu0 0
    %1450 = vmatpush1.bf16.msra.mxu0 0
    %1451 = vmatprep.subr.bf16.mxu0 0
    %1452 = vmatpush1.bf16.msra.mxu0 0
    %1453 = vmatprep.subr.bf16.mxu0 0
    %1454 = vmatpush1.bf16.msra.mxu0 0
    %1455 = vmatprep.subr.bf16.mxu0 0
    %1456 = vmatpush1.bf16.msra.mxu0 0
    %1457 = vmatprep.subr.bf16.mxu0 0
    %1458 = vmatpush1.bf16.msra.mxu0 0
    %1459 = vmatprep.subr.bf16.mxu0 0
    %1460 = vmatpush1.bf16.msra.mxu0 0
    %1461 = vmatprep.subr.bf16.mxu0 0
    %1462 = vmatpush1.bf16.msra.mxu0 0
    %1463 = vmatprep.subr.bf16.mxu0 0
    %1464 = vmatpush1.bf16.msra.mxu0 0
    %1465 = vmatprep.mubr.bf16.mxu0 0
    %1466 = vmatmul.mubr.bf16.gmra.mrb[0].mxu0 %v915
    %v1467 = vpop.f32.mrb[0].mxu0
    %v1468 = vadd.f32 0.0, %v1467
    %v1469 = vpop.f32.mrb[0].mxu0
    %v1470 = vadd.f32 0.0, %v1469
    %v1471 = vpop.f32.mrb[0].mxu0
    %v1472 = vpop.f32.mrb[0].mxu0
    %1473 = vdwg.mxu0
    %1474 = vmatprep.subr.bf16.mxu0 %v1372
    %1475 = vmatpush1.bf16.msra.mxu0 %v1371
    %1476 = vmatprep.subr.bf16.mxu0 %v1376
    %1477 = vmatpush1.bf16.msra.mxu0 %v1375
    %1478 = vmatprep.subr.bf16.mxu0 %v1380
    %1479 = vmatpush1.bf16.msra.mxu0 %v1379
    %1480 = vmatprep.subr.bf16.mxu0 %v1384
    %1481 = vmatpush1.bf16.msra.mxu0 %v1383
    %1482 = vmatprep.subr.bf16.mxu0 %v1388
    %1483 = vmatpush1.bf16.msra.mxu0 %v1387
    %1484 = vmatprep.subr.bf16.mxu0 %v1392
    %1485 = vmatpush1.bf16.msra.mxu0 %v1391
    %1486 = vmatprep.subr.bf16.mxu0 %v1396
    %1487 = vmatpush1.bf16.msra.mxu0 %v1395
    %1488 = vmatprep.subr.bf16.mxu0 %v1400
    %1489 = vmatpush1.bf16.msra.mxu0 %v1399
    %1490 = vmatprep.subr.bf16.mxu0 0
    %1491 = vmatpush1.bf16.msra.mxu0 0
    %1492 = vmatprep.subr.bf16.mxu0 0
    %1493 = vmatpush1.bf16.msra.mxu0 0
    %1494 = vmatprep.subr.bf16.mxu0 0
    %1495 = vmatpush1.bf16.msra.mxu0 0
    %1496 = vmatprep.subr.bf16.mxu0 0
    %1497 = vmatpush1.bf16.msra.mxu0 0
    %1498 = vmatprep.subr.bf16.mxu0 0
    %1499 = vmatpush1.bf16.msra.mxu0 0
    %1500 = vmatprep.subr.bf16.mxu0 0
    %1501 = vmatpush1.bf16.msra.mxu0 0
    %1502 = vmatprep.subr.bf16.mxu0 0
    %1503 = vmatpush1.bf16.msra.mxu0 0
    %1504 = vmatprep.subr.bf16.mxu0 0
    %1505 = vmatpush1.bf16.msra.mxu0 0
    %1506 = vmatprep.mubr.bf16.mxu0 0
    %1507 = vmatmul.mubr.bf16.gmra.mrb[0].mxu0 %v915
    %v1508 = vpop.f32.mrb[0].mxu0
    %v1509 = vadd.f32 0.0, %v1508
    %v1510 = vpop.f32.mrb[0].mxu0
    %v1511 = vadd.f32 0.0, %v1510
    %v1512 = vpop.f32.mrb[0].mxu0
    %v1513 = vpop.f32.mrb[0].mxu0
    %1514 = vdwg.mxu0
    %s1515 = scalar_lea.vmem [#allocation2], 32
    %v1516 = vld [vmem:[%s1515] sm:$0xff]
    %v1517 = vld [vmem:[%s1515 + $0x8] sm:$0xff]
    %v1518 = vld [vmem:[%s1515 + $0x10] sm:$0xff]
    %v1519 = vld [vmem:[%s1515 + $0x18] sm:$0xff]
    %v1520 = vadd.f32 %v1516, %v1468
    %v1521 = vadd.f32 %v1517, %v1470
    %v1522 = vadd.f32 %v1518, %v1509
    %v1523 = vadd.f32 %v1519, %v1511
    %v1524 = vxor.u32 %v1520, 2147483648
    %v1525 = vxor.u32 %v1521, 2147483648
    %v1526 = vxor.u32 %v1522, 2147483648
    %v1527 = vmul.f32 %v1524, 1.442695
    %v1528 = vpow.pop %v1527
    %v1529 = vmul.f32 %v1525, 1.442695
    %v1530 = vpow.pop %v1529
    %v1531 = vmul.f32 %v1526, 1.442695
    %v1532 = vpow.pop %v1531
    %v1533 = vadd.f32 %v1528, 1.0
    %v1534 = vadd.f32 %v1530, 1.0
    %v1535 = vadd.f32 %v1532, 1.0
    %v1536 = vrcp.pop %v1533
    %v1537 = vmul.f32 1.0, %v1536
    %v1538 = vrcp.pop %v1534
    %v1539 = vmul.f32 1.0, %v1538
    %v1540 = vrcp.pop %v1535
    %v1541 = vmul.f32 1.0, %v1540
    %v1542 = vtanh.pop %v1523
    %v1543 = vmul.f32 %v1539, %v638
    %v1544 = vmul.f32 %v1537, %v1542
    %v1545 = vadd.f32 %v1543, %v1544
    %v1546 = vtanh.pop %v1545
    %v1547 = vmul.f32 %v1541, %v1546
    %v1548 = vpack.c.bf16 %v1239, %v1239
    %v1549 = vld [vmem:[#allocation7] sm:$0xff]
    %v1550 = vld [vmem:[#allocation7 + $0x8] sm:$0xff]
    %v1551 = vld [vmem:[#allocation7 + $0x10] sm:$0xff]
    %v1552 = vld [vmem:[#allocation7 + $0x18] sm:$0xff]
    %v1553 = vld [vmem:[#allocation7 + $0x20] sm:$0xff]
    %v1554 = vld [vmem:[#allocation7 + $0x28] sm:$0xff]
    %v1555 = vld [vmem:[#allocation7 + $0x30] sm:$0xff]
    %v1556 = vld [vmem:[#allocation7 + $0x38] sm:$0xff]
    %v1557 = vld [vmem:[#allocation7 + $0x40] sm:$0xff]
    %v1558 = vld [vmem:[#allocation7 + $0x48] sm:$0xff]
    %v1559 = vld [vmem:[#allocation7 + $0x50] sm:$0xff]
    %v1560 = vld [vmem:[#allocation7 + $0x58] sm:$0xff]
    %v1561 = vld [vmem:[#allocation7 + $0x60] sm:$0xff]
    %v1562 = vld [vmem:[#allocation7 + $0x68] sm:$0xff]
    %v1563 = vld [vmem:[#allocation7 + $0x70] sm:$0xff]
    %v1564 = vld [vmem:[#allocation7 + $0x78] sm:$0xff]
    %v1565 = vld [vmem:[#allocation7 + $0x80] sm:$0xff]
    %v1566 = vld [vmem:[#allocation7 + $0x88] sm:$0xff]
    %v1567 = vld [vmem:[#allocation7 + $0x90] sm:$0xff]
    %v1568 = vld [vmem:[#allocation7 + $0x98] sm:$0xff]
    %v1569 = vld [vmem:[#allocation7 + $0xa0] sm:$0xff]
    %v1570 = vld [vmem:[#allocation7 + $0xa8] sm:$0xff]
    %v1571 = vld [vmem:[#allocation7 + $0xb0] sm:$0xff]
    %v1572 = vld [vmem:[#allocation7 + $0xb8] sm:$0xff]
    %v1573 = vld [vmem:[#allocation7 + $0xc0] sm:$0xff]
    %v1574 = vld [vmem:[#allocation7 + $0xc8] sm:$0xff]
    %v1575 = vld [vmem:[#allocation7 + $0xd0] sm:$0xff]
    %v1576 = vld [vmem:[#allocation7 + $0xd8] sm:$0xff]
    %v1577 = vld [vmem:[#allocation7 + $0xe0] sm:$0xff]
    %v1578 = vld [vmem:[#allocation7 + $0xe8] sm:$0xff]
    %v1579 = vld [vmem:[#allocation7 + $0xf0] sm:$0xff]
    %v1580 = vld [vmem:[#allocation7 + $0xf8] sm:$0xff]
    %v1613 = vunpack.c.l.b16 %v1549
    %v1614 = vunpack.c.h.b16 %v1549
    %v1615 = vunpack.c.l.b16 %v1550
    %v1616 = vunpack.c.h.b16 %v1550
    %v1617 = vunpack.c.l.b16 %v1551
    %v1618 = vunpack.c.h.b16 %v1551
    %v1619 = vunpack.c.l.b16 %v1552
    %v1620 = vunpack.c.h.b16 %v1552
    %v1621 = vunpack.c.l.b16 %v1553
    %v1622 = vunpack.c.h.b16 %v1553
    %v1623 = vunpack.c.l.b16 %v1554
    %v1624 = vunpack.c.h.b16 %v1554
    %v1625 = vunpack.c.l.b16 %v1555
    %v1626 = vunpack.c.h.b16 %v1555
    %v1627 = vunpack.c.l.b16 %v1556
    %v1628 = vunpack.c.h.b16 %v1556
    %v1629 = vunpack.c.l.b16 %v1557
    %v1630 = vunpack.c.h.b16 %v1557
    %v1631 = vunpack.c.l.b16 %v1558
    %v1632 = vunpack.c.h.b16 %v1558
    %v1633 = vunpack.c.l.b16 %v1559
    %v1634 = vunpack.c.h.b16 %v1559
    %v1635 = vunpack.c.l.b16 %v1560
    %v1636 = vunpack.c.h.b16 %v1560
    %v1637 = vunpack.c.l.b16 %v1561
    %v1638 = vunpack.c.h.b16 %v1561
    %v1639 = vunpack.c.l.b16 %v1562
    %v1640 = vunpack.c.h.b16 %v1562
    %v1641 = vunpack.c.l.b16 %v1563
    %v1642 = vunpack.c.h.b16 %v1563
    %v1643 = vunpack.c.l.b16 %v1564
    %v1644 = vunpack.c.h.b16 %v1564
    %v1645 = vunpack.c.l.b16 %v1565
    %v1646 = vunpack.c.h.b16 %v1565
    %v1647 = vunpack.c.l.b16 %v1566
    %v1648 = vunpack.c.h.b16 %v1566
    %v1649 = vunpack.c.l.b16 %v1567
    %v1650 = vunpack.c.h.b16 %v1567
    %v1651 = vunpack.c.l.b16 %v1568
    %v1652 = vunpack.c.h.b16 %v1568
    %v1653 = vunpack.c.l.b16 %v1569
    %v1654 = vunpack.c.h.b16 %v1569
    %v1655 = vunpack.c.l.b16 %v1570
    %v1656 = vunpack.c.h.b16 %v1570
    %v1657 = vunpack.c.l.b16 %v1571
    %v1658 = vunpack.c.h.b16 %v1571
    %v1659 = vunpack.c.l.b16 %v1572
    %v1660 = vunpack.c.h.b16 %v1572
    %v1661 = vunpack.c.l.b16 %v1573
    %v1662 = vunpack.c.h.b16 %v1573
    %v1663 = vunpack.c.l.b16 %v1574
    %v1664 = vunpack.c.h.b16 %v1574
    %v1665 = vunpack.c.l.b16 %v1575
    %v1666 = vunpack.c.h.b16 %v1575
    %v1667 = vunpack.c.l.b16 %v1576
    %v1668 = vunpack.c.h.b16 %v1576
    %v1669 = vunpack.c.l.b16 %v1577
    %v1670 = vunpack.c.h.b16 %v1577
    %v1671 = vunpack.c.l.b16 %v1578
    %v1672 = vunpack.c.h.b16 %v1578
    %v1673 = vunpack.c.l.b16 %v1579
    %v1674 = vunpack.c.h.b16 %v1579
    %v1675 = vunpack.c.l.b16 %v1580
    %v1676 = vunpack.c.h.b16 %v1580
    %v1677 = vpack.c.b16 %v1617, %v1613
    %v1678 = vpack.c.b16 %v1618, %v1614
    %v1679 = vpack.c.b16 %v1619, %v1615
    %v1680 = vpack.c.b16 %v1620, %v1616
    %v1681 = vpack.c.b16 %v1625, %v1621
    %v1682 = vpack.c.b16 %v1626, %v1622
    %v1683 = vpack.c.b16 %v1627, %v1623
    %v1684 = vpack.c.b16 %v1628, %v1624
    %v1685 = vpack.c.b16 %v1633, %v1629
    %v1686 = vpack.c.b16 %v1634, %v1630
    %v1687 = vpack.c.b16 %v1635, %v1631
    %v1688 = vpack.c.b16 %v1636, %v1632
    %v1689 = vpack.c.b16 %v1641, %v1637
    %v1690 = vpack.c.b16 %v1642, %v1638
    %v1691 = vpack.c.b16 %v1643, %v1639
    %v1692 = vpack.c.b16 %v1644, %v1640
    %v1693 = vpack.c.b16 %v1649, %v1645
    %v1694 = vpack.c.b16 %v1650, %v1646
    %v1695 = vpack.c.b16 %v1651, %v1647
    %v1696 = vpack.c.b16 %v1652, %v1648
    %v1697 = vpack.c.b16 %v1657, %v1653
    %v1698 = vpack.c.b16 %v1658, %v1654
    %v1699 = vpack.c.b16 %v1659, %v1655
    %v1700 = vpack.c.b16 %v1660, %v1656
    %v1701 = vpack.c.b16 %v1665, %v1661
    %v1702 = vpack.c.b16 %v1666, %v1662
    %v1703 = vpack.c.b16 %v1667, %v1663
    %v1704 = vpack.c.b16 %v1668, %v1664
    %v1705 = vpack.c.b16 %v1673, %v1669
    %v1706 = vpack.c.b16 %v1674, %v1670
    %v1707 = vpack.c.b16 %v1675, %v1671
    %v1708 = vpack.c.b16 %v1676, %v1672
    %1741 = vmatprep.subr.bf16.mxu0 %v1678
    %1742 = vmatpush1.bf16.msra.mxu0 %v1677
    %1743 = vmatprep.subr.bf16.mxu0 %v1682
    %1744 = vmatpush1.bf16.msra.mxu0 %v1681
    %1745 = vmatprep.subr.bf16.mxu0 %v1686
    %1746 = vmatpush1.bf16.msra.mxu0 %v1685
    %1747 = vmatprep.subr.bf16.mxu0 %v1690
    %1748 = vmatpush1.bf16.msra.mxu0 %v1689
    %1749 = vmatprep.subr.bf16.mxu0 %v1694
    %1750 = vmatpush1.bf16.msra.mxu0 %v1693
    %1751 = vmatprep.subr.bf16.mxu0 %v1698
    %1752 = vmatpush1.bf16.msra.mxu0 %v1697
    %1753 = vmatprep.subr.bf16.mxu0 %v1702
    %1754 = vmatpush1.bf16.msra.mxu0 %v1701
    %1755 = vmatprep.subr.bf16.mxu0 %v1706
    %1756 = vmatpush1.bf16.msra.mxu0 %v1705
    %1757 = vmatprep.subr.bf16.mxu0 0
    %1758 = vmatpush1.bf16.msra.mxu0 0
    %1759 = vmatprep.subr.bf16.mxu0 0
    %1760 = vmatpush1.bf16.msra.mxu0 0
    %1761 = vmatprep.subr.bf16.mxu0 0
    %1762 = vmatpush1.bf16.msra.mxu0 0
    %1763 = vmatprep.subr.bf16.mxu0 0
    %1764 = vmatpush1.bf16.msra.mxu0 0
    %1765 = vmatprep.subr.bf16.mxu0 0
    %1766 = vmatpush1.bf16.msra.mxu0 0
    %1767 = vmatprep.subr.bf16.mxu0 0
    %1768 = vmatpush1.bf16.msra.mxu0 0
    %1769 = vmatprep.subr.bf16.mxu0 0
    %1770 = vmatpush1.bf16.msra.mxu0 0
    %1771 = vmatprep.subr.bf16.mxu0 0
    %1772 = vmatpush1.bf16.msra.mxu0 0
    %1773 = vmatprep.mubr.bf16.mxu0 0
    %1774 = vmatmul.mubr.bf16.gmra.mrb[0].mxu0 %v1548
    %v1775 = vpop.f32.mrb[0].mxu0
    %v1776 = vadd.f32 0.0, %v1775
    %v1777 = vpop.f32.mrb[0].mxu0
    %v1778 = vadd.f32 0.0, %v1777
    %v1779 = vpop.f32.mrb[0].mxu0
    %v1780 = vpop.f32.mrb[0].mxu0
    %1781 = vdwg.mxu0
    %1782 = vmatprep.subr.bf16.mxu0 %v1680
    %1783 = vmatpush1.bf16.msra.mxu0 %v1679
    %1784 = vmatprep.subr.bf16.mxu0 %v1684
    %1785 = vmatpush1.bf16.msra.mxu0 %v1683
    %1786 = vmatprep.subr.bf16.mxu0 %v1688
    %1787 = vmatpush1.bf16.msra.mxu0 %v1687
    %1788 = vmatprep.subr.bf16.mxu0 %v1692
    %1789 = vmatpush1.bf16.msra.mxu0 %v1691
    %1790 = vmatprep.subr.bf16.mxu0 %v1696
    %1791 = vmatpush1.bf16.msra.mxu0 %v1695
    %1792 = vmatprep.subr.bf16.mxu0 %v1700
    %1793 = vmatpush1.bf16.msra.mxu0 %v1699
    %1794 = vmatprep.subr.bf16.mxu0 %v1704
    %1795 = vmatpush1.bf16.msra.mxu0 %v1703
    %1796 = vmatprep.subr.bf16.mxu0 %v1708
    %1797 = vmatpush1.bf16.msra.mxu0 %v1707
    %1798 = vmatprep.subr.bf16.mxu0 0
    %1799 = vmatpush1.bf16.msra.mxu0 0
    %1800 = vmatprep.subr.bf16.mxu0 0
    %1801 = vmatpush1.bf16.msra.mxu0 0
    %1802 = vmatprep.subr.bf16.mxu0 0
    %1803 = vmatpush1.bf16.msra.mxu0 0
    %1804 = vmatprep.subr.bf16.mxu0 0
    %1805 = vmatpush1.bf16.msra.mxu0 0
    %1806 = vmatprep.subr.bf16.mxu0 0
    %1807 = vmatpush1.bf16.msra.mxu0 0
    %1808 = vmatprep.subr.bf16.mxu0 0
    %1809 = vmatpush1.bf16.msra.mxu0 0
    %1810 = vmatprep.subr.bf16.mxu0 0
    %1811 = vmatpush1.bf16.msra.mxu0 0
    %1812 = vmatprep.subr.bf16.mxu0 0
    %1813 = vmatpush1.bf16.msra.mxu0 0
    %1814 = vmatprep.mubr.bf16.mxu0 0
    %1815 = vmatmul.mubr.bf16.gmra.mrb[0].mxu0 %v1548
    %v1816 = vpop.f32.mrb[0].mxu0
    %v1817 = vadd.f32 0.0, %v1816
    %v1818 = vpop.f32.mrb[0].mxu0
    %v1819 = vadd.f32 0.0, %v1818
    %v1820 = vpop.f32.mrb[0].mxu0
    %v1821 = vpop.f32.mrb[0].mxu0
    %1822 = vdwg.mxu0
    %v1823 = vpack.c.bf16 %v1547, %v1547
    %v1824 = vld [vmem:[#allocation5] sm:$0xff]
    %v1825 = vld [vmem:[#allocation5 + $0x8] sm:$0xff]
    %v1826 = vld [vmem:[#allocation5 + $0x10] sm:$0xff]
    %v1827 = vld [vmem:[#allocation5 + $0x18] sm:$0xff]
    %v1828 = vld [vmem:[#allocation5 + $0x20] sm:$0xff]
    %v1829 = vld [vmem:[#allocation5 + $0x28] sm:$0xff]
    %v1830 = vld [vmem:[#allocation5 + $0x30] sm:$0xff]
    %v1831 = vld [vmem:[#allocation5 + $0x38] sm:$0xff]
    %v1832 = vld [vmem:[#allocation5 + $0x40] sm:$0xff]
    %v1833 = vld [vmem:[#allocation5 + $0x48] sm:$0xff]
    %v1834 = vld [vmem:[#allocation5 + $0x50] sm:$0xff]
    %v1835 = vld [vmem:[#allocation5 + $0x58] sm:$0xff]
    %v1836 = vld [vmem:[#allocation5 + $0x60] sm:$0xff]
    %v1837 = vld [vmem:[#allocation5 + $0x68] sm:$0xff]
    %v1838 = vld [vmem:[#allocation5 + $0x70] sm:$0xff]
    %v1839 = vld [vmem:[#allocation5 + $0x78] sm:$0xff]
    %v1840 = vld [vmem:[#allocation5 + $0x80] sm:$0xff]
    %v1841 = vld [vmem:[#allocation5 + $0x88] sm:$0xff]
    %v1842 = vld [vmem:[#allocation5 + $0x90] sm:$0xff]
    %v1843 = vld [vmem:[#allocation5 + $0x98] sm:$0xff]
    %v1844 = vld [vmem:[#allocation5 + $0xa0] sm:$0xff]
    %v1845 = vld [vmem:[#allocation5 + $0xa8] sm:$0xff]
    %v1846 = vld [vmem:[#allocation5 + $0xb0] sm:$0xff]
    %v1847 = vld [vmem:[#allocation5 + $0xb8] sm:$0xff]
    %v1848 = vld [vmem:[#allocation5 + $0xc0] sm:$0xff]
    %v1849 = vld [vmem:[#allocation5 + $0xc8] sm:$0xff]
    %v1850 = vld [vmem:[#allocation5 + $0xd0] sm:$0xff]
    %v1851 = vld [vmem:[#allocation5 + $0xd8] sm:$0xff]
    %v1852 = vld [vmem:[#allocation5 + $0xe0] sm:$0xff]
    %v1853 = vld [vmem:[#allocation5 + $0xe8] sm:$0xff]
    %v1854 = vld [vmem:[#allocation5 + $0xf0] sm:$0xff]
    %v1855 = vld [vmem:[#allocation5 + $0xf8] sm:$0xff]
    %v1888 = vunpack.c.l.b16 %v1824
    %v1889 = vunpack.c.h.b16 %v1824
    %v1890 = vunpack.c.l.b16 %v1825
    %v1891 = vunpack.c.h.b16 %v1825
    %v1892 = vunpack.c.l.b16 %v1826
    %v1893 = vunpack.c.h.b16 %v1826
    %v1894 = vunpack.c.l.b16 %v1827
    %v1895 = vunpack.c.h.b16 %v1827
    %v1896 = vunpack.c.l.b16 %v1828
    %v1897 = vunpack.c.h.b16 %v1828
    %v1898 = vunpack.c.l.b16 %v1829
    %v1899 = vunpack.c.h.b16 %v1829
    %v1900 = vunpack.c.l.b16 %v1830
    %v1901 = vunpack.c.h.b16 %v1830
    %v1902 = vunpack.c.l.b16 %v1831
    %v1903 = vunpack.c.h.b16 %v1831
    %v1904 = vunpack.c.l.b16 %v1832
    %v1905 = vunpack.c.h.b16 %v1832
    %v1906 = vunpack.c.l.b16 %v1833
    %v1907 = vunpack.c.h.b16 %v1833
    %v1908 = vunpack.c.l.b16 %v1834
    %v1909 = vunpack.c.h.b16 %v1834
    %v1910 = vunpack.c.l.b16 %v1835
    %v1911 = vunpack.c.h.b16 %v1835
    %v1912 = vunpack.c.l.b16 %v1836
    %v1913 = vunpack.c.h.b16 %v1836
    %v1914 = vunpack.c.l.b16 %v1837
    %v1915 = vunpack.c.h.b16 %v1837
    %v1916 = vunpack.c.l.b16 %v1838
    %v1917 = vunpack.c.h.b16 %v1838
    %v1918 = vunpack.c.l.b16 %v1839
    %v1919 = vunpack.c.h.b16 %v1839
    %v1920 = vunpack.c.l.b16 %v1840
    %v1921 = vunpack.c.h.b16 %v1840
    %v1922 = vunpack.c.l.b16 %v1841
    %v1923 = vunpack.c.h.b16 %v1841
    %v1924 = vunpack.c.l.b16 %v1842
    %v1925 = vunpack.c.h.b16 %v1842
    %v1926 = vunpack.c.l.b16 %v1843
    %v1927 = vunpack.c.h.b16 %v1843
    %v1928 = vunpack.c.l.b16 %v1844
    %v1929 = vunpack.c.h.b16 %v1844
    %v1930 = vunpack.c.l.b16 %v1845
    %v1931 = vunpack.c.h.b16 %v1845
    %v1932 = vunpack.c.l.b16 %v1846
    %v1933 = vunpack.c.h.b16 %v1846
    %v1934 = vunpack.c.l.b16 %v1847
    %v1935 = vunpack.c.h.b16 %v1847
    %v1936 = vunpack.c.l.b16 %v1848
    %v1937 = vunpack.c.h.b16 %v1848
    %v1938 = vunpack.c.l.b16 %v1849
    %v1939 = vunpack.c.h.b16 %v1849
    %v1940 = vunpack.c.l.b16 %v1850
    %v1941 = vunpack.c.h.b16 %v1850
    %v1942 = vunpack.c.l.b16 %v1851
    %v1943 = vunpack.c.h.b16 %v1851
    %v1944 = vunpack.c.l.b16 %v1852
    %v1945 = vunpack.c.h.b16 %v1852
    %v1946 = vunpack.c.l.b16 %v1853
    %v1947 = vunpack.c.h.b16 %v1853
    %v1948 = vunpack.c.l.b16 %v1854
    %v1949 = vunpack.c.h.b16 %v1854
    %v1950 = vunpack.c.l.b16 %v1855
    %v1951 = vunpack.c.h.b16 %v1855
    %v1952 = vpack.c.b16 %v1892, %v1888
    %v1953 = vpack.c.b16 %v1893, %v1889
    %v1954 = vpack.c.b16 %v1894, %v1890
    %v1955 = vpack.c.b16 %v1895, %v1891
    %v1956 = vpack.c.b16 %v1900, %v1896
    %v1957 = vpack.c.b16 %v1901, %v1897
    %v1958 = vpack.c.b16 %v1902, %v1898
    %v1959 = vpack.c.b16 %v1903, %v1899
    %v1960 = vpack.c.b16 %v1908, %v1904
    %v1961 = vpack.c.b16 %v1909, %v1905
    %v1962 = vpack.c.b16 %v1910, %v1906
    %v1963 = vpack.c.b16 %v1911, %v1907
    %v1964 = vpack.c.b16 %v1916, %v1912
    %v1965 = vpack.c.b16 %v1917, %v1913
    %v1966 = vpack.c.b16 %v1918, %v1914
    %v1967 = vpack.c.b16 %v1919, %v1915
    %v1968 = vpack.c.b16 %v1924, %v1920
    %v1969 = vpack.c.b16 %v1925, %v1921
    %v1970 = vpack.c.b16 %v1926, %v1922
    %v1971 = vpack.c.b16 %v1927, %v1923
    %v1972 = vpack.c.b16 %v1932, %v1928
    %v1973 = vpack.c.b16 %v1933, %v1929
    %v1974 = vpack.c.b16 %v1934, %v1930
    %v1975 = vpack.c.b16 %v1935, %v1931
    %v1976 = vpack.c.b16 %v1940, %v1936
    %v1977 = vpack.c.b16 %v1941, %v1937
    %v1978 = vpack.c.b16 %v1942, %v1938
    %v1979 = vpack.c.b16 %v1943, %v1939
    %v1980 = vpack.c.b16 %v1948, %v1944
    %v1981 = vpack.c.b16 %v1949, %v1945
    %v1982 = vpack.c.b16 %v1950, %v1946
    %v1983 = vpack.c.b16 %v1951, %v1947
    %2016 = vmatprep.subr.bf16.mxu0 %v1953
    %2017 = vmatpush1.bf16.msra.mxu0 %v1952
    %2018 = vmatprep.subr.bf16.mxu0 %v1957
    %2019 = vmatpush1.bf16.msra.mxu0 %v1956
    %2020 = vmatprep.subr.bf16.mxu0 %v1961
    %2021 = vmatpush1.bf16.msra.mxu0 %v1960
    %2022 = vmatprep.subr.bf16.mxu0 %v1965
    %2023 = vmatpush1.bf16.msra.mxu0 %v1964
    %2024 = vmatprep.subr.bf16.mxu0 %v1969
    %2025 = vmatpush1.bf16.msra.mxu0 %v1968
    %2026 = vmatprep.subr.bf16.mxu0 %v1973
    %2027 = vmatpush1.bf16.msra.mxu0 %v1972
    %2028 = vmatprep.subr.bf16.mxu0 %v1977
    %2029 = vmatpush1.bf16.msra.mxu0 %v1976
    %2030 = vmatprep.subr.bf16.mxu0 %v1981
    %2031 = vmatpush1.bf16.msra.mxu0 %v1980
    %2032 = vmatprep.subr.bf16.mxu0 0
    %2033 = vmatpush1.bf16.msra.mxu0 0
    %2034 = vmatprep.subr.bf16.mxu0 0
    %2035 = vmatpush1.bf16.msra.mxu0 0
    %2036 = vmatprep.subr.bf16.mxu0 0
    %2037 = vmatpush1.bf16.msra.mxu0 0
    %2038 = vmatprep.subr.bf16.mxu0 0
    %2039 = vmatpush1.bf16.msra.mxu0 0
    %2040 = vmatprep.subr.bf16.mxu0 0
    %2041 = vmatpush1.bf16.msra.mxu0 0
    %2042 = vmatprep.subr.bf16.mxu0 0
    %2043 = vmatpush1.bf16.msra.mxu0 0
    %2044 = vmatprep.subr.bf16.mxu0 0
    %2045 = vmatpush1.bf16.msra.mxu0 0
    %2046 = vmatprep.subr.bf16.mxu0 0
    %2047 = vmatpush1.bf16.msra.mxu0 0
    %2048 = vmatprep.mubr.bf16.mxu0 0
    %2049 = vmatmul.mubr.bf16.gmra.mrb[0].mxu0 %v1823
    %v2050 = vpop.f32.mrb[0].mxu0
    %v2051 = vadd.f32 %v1776, %v2050
    %v2052 = vpop.f32.mrb[0].mxu0
    %v2053 = vadd.f32 %v1778, %v2052
    %v2054 = vpop.f32.mrb[0].mxu0
    %v2055 = vpop.f32.mrb[0].mxu0
    %2056 = vdwg.mxu0
    %2057 = vmatprep.subr.bf16.mxu0 %v1955
    %2058 = vmatpush1.bf16.msra.mxu0 %v1954
    %2059 = vmatprep.subr.bf16.mxu0 %v1959
    %2060 = vmatpush1.bf16.msra.mxu0 %v1958
    %2061 = vmatprep.subr.bf16.mxu0 %v1963
    %2062 = vmatpush1.bf16.msra.mxu0 %v1962
    %2063 = vmatprep.subr.bf16.mxu0 %v1967
    %2064 = vmatpush1.bf16.msra.mxu0 %v1966
    %2065 = vmatprep.subr.bf16.mxu0 %v1971
    %2066 = vmatpush1.bf16.msra.mxu0 %v1970
    %2067 = vmatprep.subr.bf16.mxu0 %v1975
    %2068 = vmatpush1.bf16.msra.mxu0 %v1974
    %2069 = vmatprep.subr.bf16.mxu0 %v1979
    %2070 = vmatpush1.bf16.msra.mxu0 %v1978
    %2071 = vmatprep.subr.bf16.mxu0 %v1983
    %2072 = vmatpush1.bf16.msra.mxu0 %v1982
    %2073 = vmatprep.subr.bf16.mxu0 0
    %2074 = vmatpush1.bf16.msra.mxu0 0
    %2075 = vmatprep.subr.bf16.mxu0 0
    %2076 = vmatpush1.bf16.msra.mxu0 0
    %2077 = vmatprep.subr.bf16.mxu0 0
    %2078 = vmatpush1.bf16.msra.mxu0 0
    %2079 = vmatprep.subr.bf16.mxu0 0
    %2080 = vmatpush1.bf16.msra.mxu0 0
    %2081 = vmatprep.subr.bf16.mxu0 0
    %2082 = vmatpush1.bf16.msra.mxu0 0
    %2083 = vmatprep.subr.bf16.mxu0 0
    %2084 = vmatpush1.bf16.msra.mxu0 0
    %2085 = vmatprep.subr.bf16.mxu0 0
    %2086 = vmatpush1.bf16.msra.mxu0 0
    %2087 = vmatprep.subr.bf16.mxu0 0
    %2088 = vmatpush1.bf16.msra.mxu0 0
    %2089 = vmatprep.mubr.bf16.mxu0 0
    %2090 = vmatmul.mubr.bf16.gmra.mrb[0].mxu0 %v1823
    %v2091 = vpop.f32.mrb[0].mxu0
    %v2092 = vadd.f32 %v1817, %v2091
    %v2093 = vpop.f32.mrb[0].mxu0
    %v2094 = vadd.f32 %v1819, %v2093
    %v2095 = vpop.f32.mrb[0].mxu0
    %v2096 = vpop.f32.mrb[0].mxu0
    %2097 = vdwg.mxu0
    %v2098 = vld [vmem:[%s6] sm:$0xf]
    %v2100 = vlaneseq
    %v2101 = vshrl.u32 %v2100, 7
    %v2102 = vsub.s32 0, %v2101
    %v2103 = vrot.slane %v2098, %v2102
    %v2104 = vlaneseq
    %v2105 = vshrl.u32 %v2104, 7
    %v2106 = vsub.s32 1, %v2105
    %v2107 = vrot.slane %v2098, %v2106
    %v2108 = vlaneseq
    %v2109 = vshrl.u32 %v2108, 7
    %v2110 = vsub.s32 2, %v2109
    %v2111 = vrot.slane %v2098, %v2110
    %v2112 = vlaneseq
    %v2113 = vshrl.u32 %v2112, 7
    %v2114 = vsub.s32 3, %v2113
    %v2115 = vrot.slane %v2098, %v2114
    %v2120 = vadd.f32 %v2051, %v2103
    %v2121 = vadd.f32 %v2053, %v2107
    %v2122 = vadd.f32 %v2092, %v2111
    %v2123 = vadd.f32 %v2094, %v2115
    %v2124 = vxor.u32 %v2120, 2147483648
    %v2125 = vxor.u32 %v2121, 2147483648
    %v2126 = vxor.u32 %v2122, 2147483648
    %v2127 = vmul.f32 %v2124, 1.442695
    %v2128 = vpow.pop %v2127
    %v2129 = vmul.f32 %v2125, 1.442695
    %v2130 = vpow.pop %v2129
    %v2131 = vmul.f32 %v2126, 1.442695
    %v2132 = vpow.pop %v2131
    %v2133 = vadd.f32 %v2128, 1.0
    %v2134 = vadd.f32 %v2130, 1.0
    %v2135 = vadd.f32 %v2132, 1.0
    %v2136 = vrcp.pop %v2133
    %v2137 = vmul.f32 1.0, %v2136
    %v2138 = vrcp.pop %v2134
    %v2139 = vmul.f32 1.0, %v2138
    %v2140 = vrcp.pop %v2135
    %v2141 = vmul.f32 1.0, %v2140
    %v2142 = vtanh.pop %v2123
    %v2143 = vmul.f32 %v2139, %v1237
    %v2144 = vmul.f32 %v2137, %v2142
    %v2145 = vadd.f32 %v2143, %v2144
    %v2146 = vtanh.pop %v2145
    %v2147 = vmul.f32 %v2141, %v2146
    %s2148 = scalar_lea.vmem %s7, 8
    %2149 = vst [vmem:[%s2148] sm:$0xff] %v2147
    %v2150 = vld [vmem:[#allocation3] sm:$0xff]
    %v2151 = vld [vmem:[#allocation3 + $0x8] sm:$0xff]
    %v2152 = vld [vmem:[#allocation3 + $0x10] sm:$0xff]
    %v2153 = vld [vmem:[#allocation3 + $0x18] sm:$0xff]
    %v2154 = vld [vmem:[#allocation3 + $0x20] sm:$0xff]
    %v2155 = vld [vmem:[#allocation3 + $0x28] sm:$0xff]
    %v2156 = vld [vmem:[#allocation3 + $0x30] sm:$0xff]
    %v2157 = vld [vmem:[#allocation3 + $0x38] sm:$0xff]
    %v2158 = vld [vmem:[#allocation3 + $0x40] sm:$0xff]
    %v2159 = vld [vmem:[#allocation3 + $0x48] sm:$0xff]
    %v2160 = vld [vmem:[#allocation3 + $0x50] sm:$0xff]
    %v2161 = vld [vmem:[#allocation3 + $0x58] sm:$0xff]
    %v2162 = vld [vmem:[#allocation3 + $0x60] sm:$0xff]
    %v2163 = vld [vmem:[#allocation3 + $0x68] sm:$0xff]
    %v2164 = vld [vmem:[#allocation3 + $0x70] sm:$0xff]
    %v2165 = vld [vmem:[#allocation3 + $0x78] sm:$0xff]
    %v2166 = vld [vmem:[#allocation3 + $0x80] sm:$0xff]
    %v2167 = vld [vmem:[#allocation3 + $0x88] sm:$0xff]
    %v2168 = vld [vmem:[#allocation3 + $0x90] sm:$0xff]
    %v2169 = vld [vmem:[#allocation3 + $0x98] sm:$0xff]
    %v2170 = vld [vmem:[#allocation3 + $0xa0] sm:$0xff]
    %v2171 = vld [vmem:[#allocation3 + $0xa8] sm:$0xff]
    %v2172 = vld [vmem:[#allocation3 + $0xb0] sm:$0xff]
    %v2173 = vld [vmem:[#allocation3 + $0xb8] sm:$0xff]
    %v2174 = vld [vmem:[#allocation3 + $0xc0] sm:$0xff]
    %v2175 = vld [vmem:[#allocation3 + $0xc8] sm:$0xff]
    %v2176 = vld [vmem:[#allocation3 + $0xd0] sm:$0xff]
    %v2177 = vld [vmem:[#allocation3 + $0xd8] sm:$0xff]
    %v2178 = vld [vmem:[#allocation3 + $0xe0] sm:$0xff]
    %v2179 = vld [vmem:[#allocation3 + $0xe8] sm:$0xff]
    %v2180 = vld [vmem:[#allocation3 + $0xf0] sm:$0xff]
    %v2181 = vld [vmem:[#allocation3 + $0xf8] sm:$0xff]
    %v2214 = vunpack.c.l.b16 %v2150
    %v2215 = vunpack.c.h.b16 %v2150
    %v2216 = vunpack.c.l.b16 %v2151
    %v2217 = vunpack.c.h.b16 %v2151
    %v2218 = vunpack.c.l.b16 %v2152
    %v2219 = vunpack.c.h.b16 %v2152
    %v2220 = vunpack.c.l.b16 %v2153
    %v2221 = vunpack.c.h.b16 %v2153
    %v2222 = vunpack.c.l.b16 %v2154
    %v2223 = vunpack.c.h.b16 %v2154
    %v2224 = vunpack.c.l.b16 %v2155
    %v2225 = vunpack.c.h.b16 %v2155
    %v2226 = vunpack.c.l.b16 %v2156
    %v2227 = vunpack.c.h.b16 %v2156
    %v2228 = vunpack.c.l.b16 %v2157
    %v2229 = vunpack.c.h.b16 %v2157
    %v2230 = vunpack.c.l.b16 %v2158
    %v2231 = vunpack.c.h.b16 %v2158
    %v2232 = vunpack.c.l.b16 %v2159
    %v2233 = vunpack.c.h.b16 %v2159
    %v2234 = vunpack.c.l.b16 %v2160
    %v2235 = vunpack.c.h.b16 %v2160
    %v2236 = vunpack.c.l.b16 %v2161
    %v2237 = vunpack.c.h.b16 %v2161
    %v2238 = vunpack.c.l.b16 %v2162
    %v2239 = vunpack.c.h.b16 %v2162
    %v2240 = vunpack.c.l.b16 %v2163
    %v2241 = vunpack.c.h.b16 %v2163
    %v2242 = vunpack.c.l.b16 %v2164
    %v2243 = vunpack.c.h.b16 %v2164
    %v2244 = vunpack.c.l.b16 %v2165
    %v2245 = vunpack.c.h.b16 %v2165
    %v2246 = vunpack.c.l.b16 %v2166
    %v2247 = vunpack.c.h.b16 %v2166
    %v2248 = vunpack.c.l.b16 %v2167
    %v2249 = vunpack.c.h.b16 %v2167
    %v2250 = vunpack.c.l.b16 %v2168
    %v2251 = vunpack.c.h.b16 %v2168
    %v2252 = vunpack.c.l.b16 %v2169
    %v2253 = vunpack.c.h.b16 %v2169
    %v2254 = vunpack.c.l.b16 %v2170
    %v2255 = vunpack.c.h.b16 %v2170
    %v2256 = vunpack.c.l.b16 %v2171
    %v2257 = vunpack.c.h.b16 %v2171
    %v2258 = vunpack.c.l.b16 %v2172
    %v2259 = vunpack.c.h.b16 %v2172
    %v2260 = vunpack.c.l.b16 %v2173
    %v2261 = vunpack.c.h.b16 %v2173
    %v2262 = vunpack.c.l.b16 %v2174
    %v2263 = vunpack.c.h.b16 %v2174
    %v2264 = vunpack.c.l.b16 %v2175
    %v2265 = vunpack.c.h.b16 %v2175
    %v2266 = vunpack.c.l.b16 %v2176
    %v2267 = vunpack.c.h.b16 %v2176
    %v2268 = vunpack.c.l.b16 %v2177
    %v2269 = vunpack.c.h.b16 %v2177
    %v2270 = vunpack.c.l.b16 %v2178
    %v2271 = vunpack.c.h.b16 %v2178
    %v2272 = vunpack.c.l.b16 %v2179
    %v2273 = vunpack.c.h.b16 %v2179
    %v2274 = vunpack.c.l.b16 %v2180
    %v2275 = vunpack.c.h.b16 %v2180
    %v2276 = vunpack.c.l.b16 %v2181
    %v2277 = vunpack.c.h.b16 %v2181
    %v2278 = vpack.c.b16 %v2218, %v2214
    %v2279 = vpack.c.b16 %v2219, %v2215
    %v2280 = vpack.c.b16 %v2220, %v2216
    %v2281 = vpack.c.b16 %v2221, %v2217
    %v2282 = vpack.c.b16 %v2226, %v2222
    %v2283 = vpack.c.b16 %v2227, %v2223
    %v2284 = vpack.c.b16 %v2228, %v2224
    %v2285 = vpack.c.b16 %v2229, %v2225
    %v2286 = vpack.c.b16 %v2234, %v2230
    %v2287 = vpack.c.b16 %v2235, %v2231
    %v2288 = vpack.c.b16 %v2236, %v2232
    %v2289 = vpack.c.b16 %v2237, %v2233
    %v2290 = vpack.c.b16 %v2242, %v2238
    %v2291 = vpack.c.b16 %v2243, %v2239
    %v2292 = vpack.c.b16 %v2244, %v2240
    %v2293 = vpack.c.b16 %v2245, %v2241
    %v2294 = vpack.c.b16 %v2250, %v2246
    %v2295 = vpack.c.b16 %v2251, %v2247
    %v2296 = vpack.c.b16 %v2252, %v2248
    %v2297 = vpack.c.b16 %v2253, %v2249
    %v2298 = vpack.c.b16 %v2258, %v2254
    %v2299 = vpack.c.b16 %v2259, %v2255
    %v2300 = vpack.c.b16 %v2260, %v2256
    %v2301 = vpack.c.b16 %v2261, %v2257
    %v2302 = vpack.c.b16 %v2266, %v2262
    %v2303 = vpack.c.b16 %v2267, %v2263
    %v2304 = vpack.c.b16 %v2268, %v2264
    %v2305 = vpack.c.b16 %v2269, %v2265
    %v2306 = vpack.c.b16 %v2274, %v2270
    %v2307 = vpack.c.b16 %v2275, %v2271
    %v2308 = vpack.c.b16 %v2276, %v2272
    %v2309 = vpack.c.b16 %v2277, %v2273
    %2342 = vmatprep.subr.bf16.mxu0 %v2279
    %2343 = vmatpush1.bf16.msra.mxu0 %v2278
    %2344 = vmatprep.subr.bf16.mxu0 %v2283
    %2345 = vmatpush1.bf16.msra.mxu0 %v2282
    %2346 = vmatprep.subr.bf16.mxu0 %v2287
    %2347 = vmatpush1.bf16.msra.mxu0 %v2286
    %2348 = vmatprep.subr.bf16.mxu0 %v2291
    %2349 = vmatpush1.bf16.msra.mxu0 %v2290
    %2350 = vmatprep.subr.bf16.mxu0 %v2295
    %2351 = vmatpush1.bf16.msra.mxu0 %v2294
    %2352 = vmatprep.subr.bf16.mxu0 %v2299
    %2353 = vmatpush1.bf16.msra.mxu0 %v2298
    %2354 = vmatprep.subr.bf16.mxu0 %v2303
    %2355 = vmatpush1.bf16.msra.mxu0 %v2302
    %2356 = vmatprep.subr.bf16.mxu0 %v2307
    %2357 = vmatpush1.bf16.msra.mxu0 %v2306
    %2358 = vmatprep.subr.bf16.mxu0 0
    %2359 = vmatpush1.bf16.msra.mxu0 0
    %2360 = vmatprep.subr.bf16.mxu0 0
    %2361 = vmatpush1.bf16.msra.mxu0 0
    %2362 = vmatprep.subr.bf16.mxu0 0
    %2363 = vmatpush1.bf16.msra.mxu0 0
    %2364 = vmatprep.subr.bf16.mxu0 0
    %2365 = vmatpush1.bf16.msra.mxu0 0
    %2366 = vmatprep.subr.bf16.mxu0 0
    %2367 = vmatpush1.bf16.msra.mxu0 0
    %2368 = vmatprep.subr.bf16.mxu0 0
    %2369 = vmatpush1.bf16.msra.mxu0 0
    %2370 = vmatprep.subr.bf16.mxu0 0
    %2371 = vmatpush1.bf16.msra.mxu0 0
    %2372 = vmatprep.subr.bf16.mxu0 0
    %2373 = vmatpush1.bf16.msra.mxu0 0
    %2374 = vmatprep.mubr.bf16.mxu0 0
    %2375 = vmatmul.mubr.bf16.gmra.mrb[0].mxu0 %v1823
    %v2376 = vpop.f32.mrb[0].mxu0
    %v2377 = vadd.f32 0.0, %v2376
    %v2378 = vpop.f32.mrb[0].mxu0
    %v2379 = vadd.f32 0.0, %v2378
    %v2380 = vpop.f32.mrb[0].mxu0
    %v2381 = vpop.f32.mrb[0].mxu0
    %2382 = vdwg.mxu0
    %2383 = vmatprep.subr.bf16.mxu0 %v2281
    %2384 = vmatpush1.bf16.msra.mxu0 %v2280
    %2385 = vmatprep.subr.bf16.mxu0 %v2285
    %2386 = vmatpush1.bf16.msra.mxu0 %v2284
    %2387 = vmatprep.subr.bf16.mxu0 %v2289
    %2388 = vmatpush1.bf16.msra.mxu0 %v2288
    %2389 = vmatprep.subr.bf16.mxu0 %v2293
    %2390 = vmatpush1.bf16.msra.mxu0 %v2292
    %2391 = vmatprep.subr.bf16.mxu0 %v2297
    %2392 = vmatpush1.bf16.msra.mxu0 %v2296
    %2393 = vmatprep.subr.bf16.mxu0 %v2301
    %2394 = vmatpush1.bf16.msra.mxu0 %v2300
    %2395 = vmatprep.subr.bf16.mxu0 %v2305
    %2396 = vmatpush1.bf16.msra.mxu0 %v2304
    %2397 = vmatprep.subr.bf16.mxu0 %v2309
    %2398 = vmatpush1.bf16.msra.mxu0 %v2308
    %2399 = vmatprep.subr.bf16.mxu0 0
    %2400 = vmatpush1.bf16.msra.mxu0 0
    %2401 = vmatprep.subr.bf16.mxu0 0
    %2402 = vmatpush1.bf16.msra.mxu0 0
    %2403 = vmatprep.subr.bf16.mxu0 0
    %2404 = vmatpush1.bf16.msra.mxu0 0
    %2405 = vmatprep.subr.bf16.mxu0 0
    %2406 = vmatpush1.bf16.msra.mxu0 0
    %2407 = vmatprep.subr.bf16.mxu0 0
    %2408 = vmatpush1.bf16.msra.mxu0 0
    %2409 = vmatprep.subr.bf16.mxu0 0
    %2410 = vmatpush1.bf16.msra.mxu0 0
    %2411 = vmatprep.subr.bf16.mxu0 0
    %2412 = vmatpush1.bf16.msra.mxu0 0
    %2413 = vmatprep.subr.bf16.mxu0 0
    %2414 = vmatpush1.bf16.msra.mxu0 0
    %2415 = vmatprep.mubr.bf16.mxu0 0
    %2416 = vmatmul.mubr.bf16.gmra.mrb[0].mxu0 %v1823
    %v2417 = vpop.f32.mrb[0].mxu0
    %v2418 = vadd.f32 0.0, %v2417
    %v2419 = vpop.f32.mrb[0].mxu0
    %v2420 = vadd.f32 0.0, %v2419
    %v2421 = vpop.f32.mrb[0].mxu0
    %v2422 = vpop.f32.mrb[0].mxu0
    %2423 = vdwg.mxu0
    %s2424 = scalar_lea.vmem [#allocation2], 64
    %v2425 = vld [vmem:[%s2424] sm:$0xff]
    %v2426 = vld [vmem:[%s2424 + $0x8] sm:$0xff]
    %v2427 = vld [vmem:[%s2424 + $0x10] sm:$0xff]
    %v2428 = vld [vmem:[%s2424 + $0x18] sm:$0xff]
    %v2429 = vadd.f32 %v2425, %v2377
    %v2430 = vadd.f32 %v2426, %v2379
    %v2431 = vadd.f32 %v2427, %v2418
    %v2432 = vadd.f32 %v2428, %v2420
    %v2433 = vxor.u32 %v2429, 2147483648
    %v2434 = vxor.u32 %v2430, 2147483648
    %v2435 = vxor.u32 %v2431, 2147483648
    %v2436 = vmul.f32 %v2433, 1.442695
    %v2437 = vpow.pop %v2436
    %v2438 = vmul.f32 %v2434, 1.442695
    %v2439 = vpow.pop %v2438
    %v2440 = vmul.f32 %v2435, 1.442695
    %v2441 = vpow.pop %v2440
    %v2442 = vadd.f32 %v2437, 1.0
    %v2443 = vadd.f32 %v2439, 1.0
    %v2444 = vadd.f32 %v2441, 1.0
    %v2445 = vrcp.pop %v2442
    %v2446 = vmul.f32 1.0, %v2445
    %v2447 = vrcp.pop %v2443
    %v2448 = vmul.f32 1.0, %v2447
    %v2449 = vrcp.pop %v2444
    %v2450 = vmul.f32 1.0, %v2449
    %v2451 = vtanh.pop %v2432
    %v2452 = vmul.f32 %v2448, %v1545
    %v2453 = vmul.f32 %v2446, %v2451
    %v2454 = vadd.f32 %v2452, %v2453
    %v2455 = vtanh.pop %v2454
    %v2456 = vmul.f32 %v2450, %v2455
    %v2457 = vpack.c.bf16 %v2147, %v2147
    %v2458 = vld [vmem:[#allocation7] sm:$0xff]
    %v2459 = vld [vmem:[#allocation7 + $0x8] sm:$0xff]
    %v2460 = vld [vmem:[#allocation7 + $0x10] sm:$0xff]
    %v2461 = vld [vmem:[#allocation7 + $0x18] sm:$0xff]
    %v2462 = vld [vmem:[#allocation7 + $0x20] sm:$0xff]
    %v2463 = vld [vmem:[#allocation7 + $0x28] sm:$0xff]
    %v2464 = vld [vmem:[#allocation7 + $0x30] sm:$0xff]
    %v2465 = vld [vmem:[#allocation7 + $0x38] sm:$0xff]
    %v2466 = vld [vmem:[#allocation7 + $0x40] sm:$0xff]
    %v2467 = vld [vmem:[#allocation7 + $0x48] sm:$0xff]
    %v2468 = vld [vmem:[#allocation7 + $0x50] sm:$0xff]
    %v2469 = vld [vmem:[#allocation7 + $0x58] sm:$0xff]
    %v2470 = vld [vmem:[#allocation7 + $0x60] sm:$0xff]
    %v2471 = vld [vmem:[#allocation7 + $0x68] sm:$0xff]
    %v2472 = vld [vmem:[#allocation7 + $0x70] sm:$0xff]
    %v2473 = vld [vmem:[#allocation7 + $0x78] sm:$0xff]
    %v2474 = vld [vmem:[#allocation7 + $0x80] sm:$0xff]
    %v2475 = vld [vmem:[#allocation7 + $0x88] sm:$0xff]
    %v2476 = vld [vmem:[#allocation7 + $0x90] sm:$0xff]
    %v2477 = vld [vmem:[#allocation7 + $0x98] sm:$0xff]
    %v2478 = vld [vmem:[#allocation7 + $0xa0] sm:$0xff]
    %v2479 = vld [vmem:[#allocation7 + $0xa8] sm:$0xff]
    %v2480 = vld [vmem:[#allocation7 + $0xb0] sm:$0xff]
    %v2481 = vld [vmem:[#allocation7 + $0xb8] sm:$0xff]
    %v2482 = vld [vmem:[#allocation7 + $0xc0] sm:$0xff]
    %v2483 = vld [vmem:[#allocation7 + $0xc8] sm:$0xff]
    %v2484 = vld [vmem:[#allocation7 + $0xd0] sm:$0xff]
    %v2485 = vld [vmem:[#allocation7 + $0xd8] sm:$0xff]
    %v2486 = vld [vmem:[#allocation7 + $0xe0] sm:$0xff]
    %v2487 = vld [vmem:[#allocation7 + $0xe8] sm:$0xff]
    %v2488 = vld [vmem:[#allocation7 + $0xf0] sm:$0xff]
    %v2489 = vld [vmem:[#allocation7 + $0xf8] sm:$0xff]
    %v2522 = vunpack.c.l.b16 %v2458
    %v2523 = vunpack.c.h.b16 %v2458
    %v2524 = vunpack.c.l.b16 %v2459
    %v2525 = vunpack.c.h.b16 %v2459
    %v2526 = vunpack.c.l.b16 %v2460
    %v2527 = vunpack.c.h.b16 %v2460
    %v2528 = vunpack.c.l.b16 %v2461
    %v2529 = vunpack.c.h.b16 %v2461
    %v2530 = vunpack.c.l.b16 %v2462
    %v2531 = vunpack.c.h.b16 %v2462
    %v2532 = vunpack.c.l.b16 %v2463
    %v2533 = vunpack.c.h.b16 %v2463
    %v2534 = vunpack.c.l.b16 %v2464
    %v2535 = vunpack.c.h.b16 %v2464
    %v2536 = vunpack.c.l.b16 %v2465
    %v2537 = vunpack.c.h.b16 %v2465
    %v2538 = vunpack.c.l.b16 %v2466
    %v2539 = vunpack.c.h.b16 %v2466
    %v2540 = vunpack.c.l.b16 %v2467
    %v2541 = vunpack.c.h.b16 %v2467
    %v2542 = vunpack.c.l.b16 %v2468
    %v2543 = vunpack.c.h.b16 %v2468
    %v2544 = vunpack.c.l.b16 %v2469
    %v2545 = vunpack.c.h.b16 %v2469
    %v2546 = vunpack.c.l.b16 %v2470
    %v2547 = vunpack.c.h.b16 %v2470
    %v2548 = vunpack.c.l.b16 %v2471
    %v2549 = vunpack.c.h.b16 %v2471
    %v2550 = vunpack.c.l.b16 %v2472
    %v2551 = vunpack.c.h.b16 %v2472
    %v2552 = vunpack.c.l.b16 %v2473
    %v2553 = vunpack.c.h.b16 %v2473
    %v2554 = vunpack.c.l.b16 %v2474
    %v2555 = vunpack.c.h.b16 %v2474
    %v2556 = vunpack.c.l.b16 %v2475
    %v2557 = vunpack.c.h.b16 %v2475
    %v2558 = vunpack.c.l.b16 %v2476
    %v2559 = vunpack.c.h.b16 %v2476
    %v2560 = vunpack.c.l.b16 %v2477
    %v2561 = vunpack.c.h.b16 %v2477
    %v2562 = vunpack.c.l.b16 %v2478
    %v2563 = vunpack.c.h.b16 %v2478
    %v2564 = vunpack.c.l.b16 %v2479
    %v2565 = vunpack.c.h.b16 %v2479
    %v2566 = vunpack.c.l.b16 %v2480
    %v2567 = vunpack.c.h.b16 %v2480
    %v2568 = vunpack.c.l.b16 %v2481
    %v2569 = vunpack.c.h.b16 %v2481
    %v2570 = vunpack.c.l.b16 %v2482
    %v2571 = vunpack.c.h.b16 %v2482
    %v2572 = vunpack.c.l.b16 %v2483
    %v2573 = vunpack.c.h.b16 %v2483
    %v2574 = vunpack.c.l.b16 %v2484
    %v2575 = vunpack.c.h.b16 %v2484
    %v2576 = vunpack.c.l.b16 %v2485
    %v2577 = vunpack.c.h.b16 %v2485
    %v2578 = vunpack.c.l.b16 %v2486
    %v2579 = vunpack.c.h.b16 %v2486
    %v2580 = vunpack.c.l.b16 %v2487
    %v2581 = vunpack.c.h.b16 %v2487
    %v2582 = vunpack.c.l.b16 %v2488
    %v2583 = vunpack.c.h.b16 %v2488
    %v2584 = vunpack.c.l.b16 %v2489
    %v2585 = vunpack.c.h.b16 %v2489
    %v2586 = vpack.c.b16 %v2526, %v2522
    %v2587 = vpack.c.b16 %v2527, %v2523
    %v2588 = vpack.c.b16 %v2528, %v2524
    %v2589 = vpack.c.b16 %v2529, %v2525
    %v2590 = vpack.c.b16 %v2534, %v2530
    %v2591 = vpack.c.b16 %v2535, %v2531
    %v2592 = vpack.c.b16 %v2536, %v2532
    %v2593 = vpack.c.b16 %v2537, %v2533
    %v2594 = vpack.c.b16 %v2542, %v2538
    %v2595 = vpack.c.b16 %v2543, %v2539
    %v2596 = vpack.c.b16 %v2544, %v2540
    %v2597 = vpack.c.b16 %v2545, %v2541
    %v2598 = vpack.c.b16 %v2550, %v2546
    %v2599 = vpack.c.b16 %v2551, %v2547
    %v2600 = vpack.c.b16 %v2552, %v2548
    %v2601 = vpack.c.b16 %v2553, %v2549
    %v2602 = vpack.c.b16 %v2558, %v2554
    %v2603 = vpack.c.b16 %v2559, %v2555
    %v2604 = vpack.c.b16 %v2560, %v2556
    %v2605 = vpack.c.b16 %v2561, %v2557
    %v2606 = vpack.c.b16 %v2566, %v2562
    %v2607 = vpack.c.b16 %v2567, %v2563
    %v2608 = vpack.c.b16 %v2568, %v2564
    %v2609 = vpack.c.b16 %v2569, %v2565
    %v2610 = vpack.c.b16 %v2574, %v2570
    %v2611 = vpack.c.b16 %v2575, %v2571
    %v2612 = vpack.c.b16 %v2576, %v2572
    %v2613 = vpack.c.b16 %v2577, %v2573
    %v2614 = vpack.c.b16 %v2582, %v2578
    %v2615 = vpack.c.b16 %v2583, %v2579
    %v2616 = vpack.c.b16 %v2584, %v2580
    %v2617 = vpack.c.b16 %v2585, %v2581
    %2650 = vmatprep.subr.bf16.mxu0 %v2587
    %2651 = vmatpush1.bf16.msra.mxu0 %v2586
    %2652 = vmatprep.subr.bf16.mxu0 %v2591
    %2653 = vmatpush1.bf16.msra.mxu0 %v2590
    %2654 = vmatprep.subr.bf16.mxu0 %v2595
    %2655 = vmatpush1.bf16.msra.mxu0 %v2594
    %2656 = vmatprep.subr.bf16.mxu0 %v2599
    %2657 = vmatpush1.bf16.msra.mxu0 %v2598
    %2658 = vmatprep.subr.bf16.mxu0 %v2603
    %2659 = vmatpush1.bf16.msra.mxu0 %v2602
    %2660 = vmatprep.subr.bf16.mxu0 %v2607
    %2661 = vmatpush1.bf16.msra.mxu0 %v2606
    %2662 = vmatprep.subr.bf16.mxu0 %v2611
    %2663 = vmatpush1.bf16.msra.mxu0 %v2610
    %2664 = vmatprep.subr.bf16.mxu0 %v2615
    %2665 = vmatpush1.bf16.msra.mxu0 %v2614
    %2666 = vmatprep.subr.bf16.mxu0 0
    %2667 = vmatpush1.bf16.msra.mxu0 0
    %2668 = vmatprep.subr.bf16.mxu0 0
    %2669 = vmatpush1.bf16.msra.mxu0 0
    %2670 = vmatprep.subr.bf16.mxu0 0
    %2671 = vmatpush1.bf16.msra.mxu0 0
    %2672 = vmatprep.subr.bf16.mxu0 0
    %2673 = vmatpush1.bf16.msra.mxu0 0
    %2674 = vmatprep.subr.bf16.mxu0 0
    %2675 = vmatpush1.bf16.msra.mxu0 0
    %2676 = vmatprep.subr.bf16.mxu0 0
    %2677 = vmatpush1.bf16.msra.mxu0 0
    %2678 = vmatprep.subr.bf16.mxu0 0
    %2679 = vmatpush1.bf16.msra.mxu0 0
    %2680 = vmatprep.subr.bf16.mxu0 0
    %2681 = vmatpush1.bf16.msra.mxu0 0
    %2682 = vmatprep.mubr.bf16.mxu0 0
    %2683 = vmatmul.mubr.bf16.gmra.mrb[0].mxu0 %v2457
    %v2684 = vpop.f32.mrb[0].mxu0
    %v2685 = vadd.f32 0.0, %v2684
    %v2686 = vpop.f32.mrb[0].mxu0
    %v2687 = vadd.f32 0.0, %v2686
    %v2688 = vpop.f32.mrb[0].mxu0
    %v2689 = vpop.f32.mrb[0].mxu0
    %2690 = vdwg.mxu0
    %2691 = vmatprep.subr.bf16.mxu0 %v2589
    %2692 = vmatpush1.bf16.msra.mxu0 %v2588
    %2693 = vmatprep.subr.bf16.mxu0 %v2593
    %2694 = vmatpush1.bf16.msra.mxu0 %v2592
    %2695 = vmatprep.subr.bf16.mxu0 %v2597
    %2696 = vmatpush1.bf16.msra.mxu0 %v2596
    %2697 = vmatprep.subr.bf16.mxu0 %v2601
    %2698 = vmatpush1.bf16.msra.mxu0 %v2600
    %2699 = vmatprep.subr.bf16.mxu0 %v2605
    %2700 = vmatpush1.bf16.msra.mxu0 %v2604
    %2701 = vmatprep.subr.bf16.mxu0 %v2609
    %2702 = vmatpush1.bf16.msra.mxu0 %v2608
    %2703 = vmatprep.subr.bf16.mxu0 %v2613
    %2704 = vmatpush1.bf16.msra.mxu0 %v2612
    %2705 = vmatprep.subr.bf16.mxu0 %v2617
    %2706 = vmatpush1.bf16.msra.mxu0 %v2616
    %2707 = vmatprep.subr.bf16.mxu0 0
    %2708 = vmatpush1.bf16.msra.mxu0 0
    %2709 = vmatprep.subr.bf16.mxu0 0
    %2710 = vmatpush1.bf16.msra.mxu0 0
    %2711 = vmatprep.subr.bf16.mxu0 0
    %2712 = vmatpush1.bf16.msra.mxu0 0
    %2713 = vmatprep.subr.bf16.mxu0 0
    %2714 = vmatpush1.bf16.msra.mxu0 0
    %2715 = vmatprep.subr.bf16.mxu0 0
    %2716 = vmatpush1.bf16.msra.mxu0 0
    %2717 = vmatprep.subr.bf16.mxu0 0
    %2718 = vmatpush1.bf16.msra.mxu0 0
    %2719 = vmatprep.subr.bf16.mxu0 0
    %2720 = vmatpush1.bf16.msra.mxu0 0
    %2721 = vmatprep.subr.bf16.mxu0 0
    %2722 = vmatpush1.bf16.msra.mxu0 0
    %2723 = vmatprep.mubr.bf16.mxu0 0
    %2724 = vmatmul.mubr.bf16.gmra.mrb[0].mxu0 %v2457
    %v2725 = vpop.f32.mrb[0].mxu0
    %v2726 = vadd.f32 0.0, %v2725
    %v2727 = vpop.f32.mrb[0].mxu0
    %v2728 = vadd.f32 0.0, %v2727
    %v2729 = vpop.f32.mrb[0].mxu0
    %v2730 = vpop.f32.mrb[0].mxu0
    %2731 = vdwg.mxu0
    %v2732 = vpack.c.bf16 %v2456, %v2456
    %v2733 = vld [vmem:[#allocation5] sm:$0xff]
    %v2734 = vld [vmem:[#allocation5 + $0x8] sm:$0xff]
    %v2735 = vld [vmem:[#allocation5 + $0x10] sm:$0xff]
    %v2736 = vld [vmem:[#allocation5 + $0x18] sm:$0xff]
    %v2737 = vld [vmem:[#allocation5 + $0x20] sm:$0xff]
    %v2738 = vld [vmem:[#allocation5 + $0x28] sm:$0xff]
    %v2739 = vld [vmem:[#allocation5 + $0x30] sm:$0xff]
    %v2740 = vld [vmem:[#allocation5 + $0x38] sm:$0xff]
    %v2741 = vld [vmem:[#allocation5 + $0x40] sm:$0xff]
    %v2742 = vld [vmem:[#allocation5 + $0x48] sm:$0xff]
    %v2743 = vld [vmem:[#allocation5 + $0x50] sm:$0xff]
    %v2744 = vld [vmem:[#allocation5 + $0x58] sm:$0xff]
    %v2745 = vld [vmem:[#allocation5 + $0x60] sm:$0xff]
    %v2746 = vld [vmem:[#allocation5 + $0x68] sm:$0xff]
    %v2747 = vld [vmem:[#allocation5 + $0x70] sm:$0xff]
    %v2748 = vld [vmem:[#allocation5 + $0x78] sm:$0xff]
    %v2749 = vld [vmem:[#allocation5 + $0x80] sm:$0xff]
    %v2750 = vld [vmem:[#allocation5 + $0x88] sm:$0xff]
    %v2751 = vld [vmem:[#allocation5 + $0x90] sm:$0xff]
    %v2752 = vld [vmem:[#allocation5 + $0x98] sm:$0xff]
    %v2753 = vld [vmem:[#allocation5 + $0xa0] sm:$0xff]
    %v2754 = vld [vmem:[#allocation5 + $0xa8] sm:$0xff]
    %v2755 = vld [vmem:[#allocation5 + $0xb0] sm:$0xff]
    %v2756 = vld [vmem:[#allocation5 + $0xb8] sm:$0xff]
    %v2757 = vld [vmem:[#allocation5 + $0xc0] sm:$0xff]
    %v2758 = vld [vmem:[#allocation5 + $0xc8] sm:$0xff]
    %v2759 = vld [vmem:[#allocation5 + $0xd0] sm:$0xff]
    %v2760 = vld [vmem:[#allocation5 + $0xd8] sm:$0xff]
    %v2761 = vld [vmem:[#allocation5 + $0xe0] sm:$0xff]
    %v2762 = vld [vmem:[#allocation5 + $0xe8] sm:$0xff]
    %v2763 = vld [vmem:[#allocation5 + $0xf0] sm:$0xff]
    %v2764 = vld [vmem:[#allocation5 + $0xf8] sm:$0xff]
    %v2797 = vunpack.c.l.b16 %v2733
    %v2798 = vunpack.c.h.b16 %v2733
    %v2799 = vunpack.c.l.b16 %v2734
    %v2800 = vunpack.c.h.b16 %v2734
    %v2801 = vunpack.c.l.b16 %v2735
    %v2802 = vunpack.c.h.b16 %v2735
    %v2803 = vunpack.c.l.b16 %v2736
    %v2804 = vunpack.c.h.b16 %v2736
    %v2805 = vunpack.c.l.b16 %v2737
    %v2806 = vunpack.c.h.b16 %v2737
    %v2807 = vunpack.c.l.b16 %v2738
    %v2808 = vunpack.c.h.b16 %v2738
    %v2809 = vunpack.c.l.b16 %v2739
    %v2810 = vunpack.c.h.b16 %v2739
    %v2811 = vunpack.c.l.b16 %v2740
    %v2812 = vunpack.c.h.b16 %v2740
    %v2813 = vunpack.c.l.b16 %v2741
    %v2814 = vunpack.c.h.b16 %v2741
    %v2815 = vunpack.c.l.b16 %v2742
    %v2816 = vunpack.c.h.b16 %v2742
    %v2817 = vunpack.c.l.b16 %v2743
    %v2818 = vunpack.c.h.b16 %v2743
    %v2819 = vunpack.c.l.b16 %v2744
    %v2820 = vunpack.c.h.b16 %v2744
    %v2821 = vunpack.c.l.b16 %v2745
    %v2822 = vunpack.c.h.b16 %v2745
    %v2823 = vunpack.c.l.b16 %v2746
    %v2824 = vunpack.c.h.b16 %v2746
    %v2825 = vunpack.c.l.b16 %v2747
    %v2826 = vunpack.c.h.b16 %v2747
    %v2827 = vunpack.c.l.b16 %v2748
    %v2828 = vunpack.c.h.b16 %v2748
    %v2829 = vunpack.c.l.b16 %v2749
    %v2830 = vunpack.c.h.b16 %v2749
    %v2831 = vunpack.c.l.b16 %v2750
    %v2832 = vunpack.c.h.b16 %v2750
    %v2833 = vunpack.c.l.b16 %v2751
    %v2834 = vunpack.c.h.b16 %v2751
    %v2835 = vunpack.c.l.b16 %v2752
    %v2836 = vunpack.c.h.b16 %v2752
    %v2837 = vunpack.c.l.b16 %v2753
    %v2838 = vunpack.c.h.b16 %v2753
    %v2839 = vunpack.c.l.b16 %v2754
    %v2840 = vunpack.c.h.b16 %v2754
    %v2841 = vunpack.c.l.b16 %v2755
    %v2842 = vunpack.c.h.b16 %v2755
    %v2843 = vunpack.c.l.b16 %v2756
    %v2844 = vunpack.c.h.b16 %v2756
    %v2845 = vunpack.c.l.b16 %v2757
    %v2846 = vunpack.c.h.b16 %v2757
    %v2847 = vunpack.c.l.b16 %v2758
    %v2848 = vunpack.c.h.b16 %v2758
    %v2849 = vunpack.c.l.b16 %v2759
    %v2850 = vunpack.c.h.b16 %v2759
    %v2851 = vunpack.c.l.b16 %v2760
    %v2852 = vunpack.c.h.b16 %v2760
    %v2853 = vunpack.c.l.b16 %v2761
    %v2854 = vunpack.c.h.b16 %v2761
    %v2855 = vunpack.c.l.b16 %v2762
    %v2856 = vunpack.c.h.b16 %v2762
    %v2857 = vunpack.c.l.b16 %v2763
    %v2858 = vunpack.c.h.b16 %v2763
    %v2859 = vunpack.c.l.b16 %v2764
    %v2860 = vunpack.c.h.b16 %v2764
    %v2861 = vpack.c.b16 %v2801, %v2797
    %v2862 = vpack.c.b16 %v2802, %v2798
    %v2863 = vpack.c.b16 %v2803, %v2799
    %v2864 = vpack.c.b16 %v2804, %v2800
    %v2865 = vpack.c.b16 %v2809, %v2805
    %v2866 = vpack.c.b16 %v2810, %v2806
    %v2867 = vpack.c.b16 %v2811, %v2807
    %v2868 = vpack.c.b16 %v2812, %v2808
    %v2869 = vpack.c.b16 %v2817, %v2813
    %v2870 = vpack.c.b16 %v2818, %v2814
    %v2871 = vpack.c.b16 %v2819, %v2815
    %v2872 = vpack.c.b16 %v2820, %v2816
    %v2873 = vpack.c.b16 %v2825, %v2821
    %v2874 = vpack.c.b16 %v2826, %v2822
    %v2875 = vpack.c.b16 %v2827, %v2823
    %v2876 = vpack.c.b16 %v2828, %v2824
    %v2877 = vpack.c.b16 %v2833, %v2829
    %v2878 = vpack.c.b16 %v2834, %v2830
    %v2879 = vpack.c.b16 %v2835, %v2831
    %v2880 = vpack.c.b16 %v2836, %v2832
    %v2881 = vpack.c.b16 %v2841, %v2837
    %v2882 = vpack.c.b16 %v2842, %v2838
    %v2883 = vpack.c.b16 %v2843, %v2839
    %v2884 = vpack.c.b16 %v2844, %v2840
    %v2885 = vpack.c.b16 %v2849, %v2845
    %v2886 = vpack.c.b16 %v2850, %v2846
    %v2887 = vpack.c.b16 %v2851, %v2847
    %v2888 = vpack.c.b16 %v2852, %v2848
    %v2889 = vpack.c.b16 %v2857, %v2853
    %v2890 = vpack.c.b16 %v2858, %v2854
    %v2891 = vpack.c.b16 %v2859, %v2855
    %v2892 = vpack.c.b16 %v2860, %v2856
    %2925 = vmatprep.subr.bf16.mxu0 %v2862
    %2926 = vmatpush1.bf16.msra.mxu0 %v2861
    %2927 = vmatprep.subr.bf16.mxu0 %v2866
    %2928 = vmatpush1.bf16.msra.mxu0 %v2865
    %2929 = vmatprep.subr.bf16.mxu0 %v2870
    %2930 = vmatpush1.bf16.msra.mxu0 %v2869
    %2931 = vmatprep.subr.bf16.mxu0 %v2874
    %2932 = vmatpush1.bf16.msra.mxu0 %v2873
    %2933 = vmatprep.subr.bf16.mxu0 %v2878
    %2934 = vmatpush1.bf16.msra.mxu0 %v2877
    %2935 = vmatprep.subr.bf16.mxu0 %v2882
    %2936 = vmatpush1.bf16.msra.mxu0 %v2881
    %2937 = vmatprep.subr.bf16.mxu0 %v2886
    %2938 = vmatpush1.bf16.msra.mxu0 %v2885
    %2939 = vmatprep.subr.bf16.mxu0 %v2890
    %2940 = vmatpush1.bf16.msra.mxu0 %v2889
    %2941 = vmatprep.subr.bf16.mxu0 0
    %2942 = vmatpush1.bf16.msra.mxu0 0
    %2943 = vmatprep.subr.bf16.mxu0 0
    %2944 = vmatpush1.bf16.msra.mxu0 0
    %2945 = vmatprep.subr.bf16.mxu0 0
    %2946 = vmatpush1.bf16.msra.mxu0 0
    %2947 = vmatprep.subr.bf16.mxu0 0
    %2948 = vmatpush1.bf16.msra.mxu0 0
    %2949 = vmatprep.subr.bf16.mxu0 0
    %2950 = vmatpush1.bf16.msra.mxu0 0
    %2951 = vmatprep.subr.bf16.mxu0 0
    %2952 = vmatpush1.bf16.msra.mxu0 0
    %2953 = vmatprep.subr.bf16.mxu0 0
    %2954 = vmatpush1.bf16.msra.mxu0 0
    %2955 = vmatprep.subr.bf16.mxu0 0
    %2956 = vmatpush1.bf16.msra.mxu0 0
    %2957 = vmatprep.mubr.bf16.mxu0 0
    %2958 = vmatmul.mubr.bf16.gmra.mrb[0].mxu0 %v2732
    %v2959 = vpop.f32.mrb[0].mxu0
    %v2960 = vadd.f32 %v2685, %v2959
    %v2961 = vpop.f32.mrb[0].mxu0
    %v2962 = vadd.f32 %v2687, %v2961
    %v2963 = vpop.f32.mrb[0].mxu0
    %v2964 = vpop.f32.mrb[0].mxu0
    %2965 = vdwg.mxu0
    %2966 = vmatprep.subr.bf16.mxu0 %v2864
    %2967 = vmatpush1.bf16.msra.mxu0 %v2863
    %2968 = vmatprep.subr.bf16.mxu0 %v2868
    %2969 = vmatpush1.bf16.msra.mxu0 %v2867
    %2970 = vmatprep.subr.bf16.mxu0 %v2872
    %2971 = vmatpush1.bf16.msra.mxu0 %v2871
    %2972 = vmatprep.subr.bf16.mxu0 %v2876
    %2973 = vmatpush1.bf16.msra.mxu0 %v2875
    %2974 = vmatprep.subr.bf16.mxu0 %v2880
    %2975 = vmatpush1.bf16.msra.mxu0 %v2879
    %2976 = vmatprep.subr.bf16.mxu0 %v2884
    %2977 = vmatpush1.bf16.msra.mxu0 %v2883
    %2978 = vmatprep.subr.bf16.mxu0 %v2888
    %2979 = vmatpush1.bf16.msra.mxu0 %v2887
    %2980 = vmatprep.subr.bf16.mxu0 %v2892
    %2981 = vmatpush1.bf16.msra.mxu0 %v2891
    %2982 = vmatprep.subr.bf16.mxu0 0
    %2983 = vmatpush1.bf16.msra.mxu0 0
    %2984 = vmatprep.subr.bf16.mxu0 0
    %2985 = vmatpush1.bf16.msra.mxu0 0
    %2986 = vmatprep.subr.bf16.mxu0 0
    %2987 = vmatpush1.bf16.msra.mxu0 0
    %2988 = vmatprep.subr.bf16.mxu0 0
    %2989 = vmatpush1.bf16.msra.mxu0 0
    %2990 = vmatprep.subr.bf16.mxu0 0
    %2991 = vmatpush1.bf16.msra.mxu0 0
    %2992 = vmatprep.subr.bf16.mxu0 0
    %2993 = vmatpush1.bf16.msra.mxu0 0
    %2994 = vmatprep.subr.bf16.mxu0 0
    %2995 = vmatpush1.bf16.msra.mxu0 0
    %2996 = vmatprep.subr.bf16.mxu0 0
    %2997 = vmatpush1.bf16.msra.mxu0 0
    %2998 = vmatprep.mubr.bf16.mxu0 0
    %2999 = vmatmul.mubr.bf16.gmra.mrb[0].mxu0 %v2732
    %v3000 = vpop.f32.mrb[0].mxu0
    %v3001 = vadd.f32 %v2726, %v3000
    %v3002 = vpop.f32.mrb[0].mxu0
    %v3003 = vadd.f32 %v2728, %v3002
    %v3004 = vpop.f32.mrb[0].mxu0
    %v3005 = vpop.f32.mrb[0].mxu0
    %3006 = vdwg.mxu0
    %v3007 = vld [vmem:[%s6] sm:$0xf]
    %v3009 = vlaneseq
    %v3010 = vshrl.u32 %v3009, 7
    %v3011 = vsub.s32 0, %v3010
    %v3012 = vrot.slane %v3007, %v3011
    %v3013 = vlaneseq
    %v3014 = vshrl.u32 %v3013, 7
    %v3015 = vsub.s32 1, %v3014
    %v3016 = vrot.slane %v3007, %v3015
    %v3017 = vlaneseq
    %v3018 = vshrl.u32 %v3017, 7
    %v3019 = vsub.s32 2, %v3018
    %v3020 = vrot.slane %v3007, %v3019
    %v3021 = vlaneseq
    %v3022 = vshrl.u32 %v3021, 7
    %v3023 = vsub.s32 3, %v3022
    %v3024 = vrot.slane %v3007, %v3023
    %v3029 = vadd.f32 %v2960, %v3012
    %v3030 = vadd.f32 %v2962, %v3016
    %v3031 = vadd.f32 %v3001, %v3020
    %v3032 = vadd.f32 %v3003, %v3024
    %v3033 = vxor.u32 %v3029, 2147483648
    %v3034 = vxor.u32 %v3030, 2147483648
    %v3035 = vxor.u32 %v3031, 2147483648
    %v3036 = vmul.f32 %v3033, 1.442695
    %v3037 = vpow.pop %v3036
    %v3038 = vmul.f32 %v3034, 1.442695
    %v3039 = vpow.pop %v3038
    %v3040 = vmul.f32 %v3035, 1.442695
    %v3041 = vpow.pop %v3040
    %v3042 = vadd.f32 %v3037, 1.0
    %v3043 = vadd.f32 %v3039, 1.0
    %v3044 = vadd.f32 %v3041, 1.0
    %v3045 = vrcp.pop %v3042
    %v3046 = vmul.f32 1.0, %v3045
    %v3047 = vrcp.pop %v3043
    %v3048 = vmul.f32 1.0, %v3047
    %v3049 = vrcp.pop %v3044
    %v3050 = vmul.f32 1.0, %v3049
    %v3051 = vtanh.pop %v3032
    %v3052 = vmul.f32 %v3048, %v2145
    %v3053 = vmul.f32 %v3046, %v3051
    %v3054 = vadd.f32 %v3052, %v3053
    %v3055 = vtanh.pop %v3054
    %v3056 = vmul.f32 %v3050, %v3055
    %s3057 = scalar_lea.vmem %s7, 16
    %3058 = vst [vmem:[%s3057] sm:$0xff] %v3056
    %v3059 = vld [vmem:[#allocation3] sm:$0xff]
    %v3060 = vld [vmem:[#allocation3 + $0x8] sm:$0xff]
    %v3061 = vld [vmem:[#allocation3 + $0x10] sm:$0xff]
    %v3062 = vld [vmem:[#allocation3 + $0x18] sm:$0xff]
    %v3063 = vld [vmem:[#allocation3 + $0x20] sm:$0xff]
    %v3064 = vld [vmem:[#allocation3 + $0x28] sm:$0xff]
    %v3065 = vld [vmem:[#allocation3 + $0x30] sm:$0xff]
    %v3066 = vld [vmem:[#allocation3 + $0x38] sm:$0xff]
    %v3067 = vld [vmem:[#allocation3 + $0x40] sm:$0xff]
    %v3068 = vld [vmem:[#allocation3 + $0x48] sm:$0xff]
    %v3069 = vld [vmem:[#allocation3 + $0x50] sm:$0xff]
    %v3070 = vld [vmem:[#allocation3 + $0x58] sm:$0xff]
    %v3071 = vld [vmem:[#allocation3 + $0x60] sm:$0xff]
    %v3072 = vld [vmem:[#allocation3 + $0x68] sm:$0xff]
    %v3073 = vld [vmem:[#allocation3 + $0x70] sm:$0xff]
    %v3074 = vld [vmem:[#allocation3 + $0x78] sm:$0xff]
    %v3075 = vld [vmem:[#allocation3 + $0x80] sm:$0xff]
    %v3076 = vld [vmem:[#allocation3 + $0x88] sm:$0xff]
    %v3077 = vld [vmem:[#allocation3 + $0x90] sm:$0xff]
    %v3078 = vld [vmem:[#allocation3 + $0x98] sm:$0xff]
    %v3079 = vld [vmem:[#allocation3 + $0xa0] sm:$0xff]
    %v3080 = vld [vmem:[#allocation3 + $0xa8] sm:$0xff]
    %v3081 = vld [vmem:[#allocation3 + $0xb0] sm:$0xff]
    %v3082 = vld [vmem:[#allocation3 + $0xb8] sm:$0xff]
    %v3083 = vld [vmem:[#allocation3 + $0xc0] sm:$0xff]
    %v3084 = vld [vmem:[#allocation3 + $0xc8] sm:$0xff]
    %v3085 = vld [vmem:[#allocation3 + $0xd0] sm:$0xff]
    %v3086 = vld [vmem:[#allocation3 + $0xd8] sm:$0xff]
    %v3087 = vld [vmem:[#allocation3 + $0xe0] sm:$0xff]
    %v3088 = vld [vmem:[#allocation3 + $0xe8] sm:$0xff]
    %v3089 = vld [vmem:[#allocation3 + $0xf0] sm:$0xff]
    %v3090 = vld [vmem:[#allocation3 + $0xf8] sm:$0xff]
    %v3123 = vunpack.c.l.b16 %v3059
    %v3124 = vunpack.c.h.b16 %v3059
    %v3125 = vunpack.c.l.b16 %v3060
    %v3126 = vunpack.c.h.b16 %v3060
    %v3127 = vunpack.c.l.b16 %v3061
    %v3128 = vunpack.c.h.b16 %v3061
    %v3129 = vunpack.c.l.b16 %v3062
    %v3130 = vunpack.c.h.b16 %v3062
    %v3131 = vunpack.c.l.b16 %v3063
    %v3132 = vunpack.c.h.b16 %v3063
    %v3133 = vunpack.c.l.b16 %v3064
    %v3134 = vunpack.c.h.b16 %v3064
    %v3135 = vunpack.c.l.b16 %v3065
    %v3136 = vunpack.c.h.b16 %v3065
    %v3137 = vunpack.c.l.b16 %v3066
    %v3138 = vunpack.c.h.b16 %v3066
    %v3139 = vunpack.c.l.b16 %v3067
    %v3140 = vunpack.c.h.b16 %v3067
    %v3141 = vunpack.c.l.b16 %v3068
    %v3142 = vunpack.c.h.b16 %v3068
    %v3143 = vunpack.c.l.b16 %v3069
    %v3144 = vunpack.c.h.b16 %v3069
    %v3145 = vunpack.c.l.b16 %v3070
    %v3146 = vunpack.c.h.b16 %v3070
    %v3147 = vunpack.c.l.b16 %v3071
    %v3148 = vunpack.c.h.b16 %v3071
    %v3149 = vunpack.c.l.b16 %v3072
    %v3150 = vunpack.c.h.b16 %v3072
    %v3151 = vunpack.c.l.b16 %v3073
    %v3152 = vunpack.c.h.b16 %v3073
    %v3153 = vunpack.c.l.b16 %v3074
    %v3154 = vunpack.c.h.b16 %v3074
    %v3155 = vunpack.c.l.b16 %v3075
    %v3156 = vunpack.c.h.b16 %v3075
    %v3157 = vunpack.c.l.b16 %v3076
    %v3158 = vunpack.c.h.b16 %v3076
    %v3159 = vunpack.c.l.b16 %v3077
    %v3160 = vunpack.c.h.b16 %v3077
    %v3161 = vunpack.c.l.b16 %v3078
    %v3162 = vunpack.c.h.b16 %v3078
    %v3163 = vunpack.c.l.b16 %v3079
    %v3164 = vunpack.c.h.b16 %v3079
    %v3165 = vunpack.c.l.b16 %v3080
    %v3166 = vunpack.c.h.b16 %v3080
    %v3167 = vunpack.c.l.b16 %v3081
    %v3168 = vunpack.c.h.b16 %v3081
    %v3169 = vunpack.c.l.b16 %v3082
    %v3170 = vunpack.c.h.b16 %v3082
    %v3171 = vunpack.c.l.b16 %v3083
    %v3172 = vunpack.c.h.b16 %v3083
    %v3173 = vunpack.c.l.b16 %v3084
    %v3174 = vunpack.c.h.b16 %v3084
    %v3175 = vunpack.c.l.b16 %v3085
    %v3176 = vunpack.c.h.b16 %v3085
    %v3177 = vunpack.c.l.b16 %v3086
    %v3178 = vunpack.c.h.b16 %v3086
    %v3179 = vunpack.c.l.b16 %v3087
    %v3180 = vunpack.c.h.b16 %v3087
    %v3181 = vunpack.c.l.b16 %v3088
    %v3182 = vunpack.c.h.b16 %v3088
    %v3183 = vunpack.c.l.b16 %v3089
    %v3184 = vunpack.c.h.b16 %v3089
    %v3185 = vunpack.c.l.b16 %v3090
    %v3186 = vunpack.c.h.b16 %v3090
    %v3187 = vpack.c.b16 %v3127, %v3123
    %v3188 = vpack.c.b16 %v3128, %v3124
    %v3189 = vpack.c.b16 %v3129, %v3125
    %v3190 = vpack.c.b16 %v3130, %v3126
    %v3191 = vpack.c.b16 %v3135, %v3131
    %v3192 = vpack.c.b16 %v3136, %v3132
    %v3193 = vpack.c.b16 %v3137, %v3133
    %v3194 = vpack.c.b16 %v3138, %v3134
    %v3195 = vpack.c.b16 %v3143, %v3139
    %v3196 = vpack.c.b16 %v3144, %v3140
    %v3197 = vpack.c.b16 %v3145, %v3141
    %v3198 = vpack.c.b16 %v3146, %v3142
    %v3199 = vpack.c.b16 %v3151, %v3147
    %v3200 = vpack.c.b16 %v3152, %v3148
    %v3201 = vpack.c.b16 %v3153, %v3149
    %v3202 = vpack.c.b16 %v3154, %v3150
    %v3203 = vpack.c.b16 %v3159, %v3155
    %v3204 = vpack.c.b16 %v3160, %v3156
    %v3205 = vpack.c.b16 %v3161, %v3157
    %v3206 = vpack.c.b16 %v3162, %v3158
    %v3207 = vpack.c.b16 %v3167, %v3163
    %v3208 = vpack.c.b16 %v3168, %v3164
    %v3209 = vpack.c.b16 %v3169, %v3165
    %v3210 = vpack.c.b16 %v3170, %v3166
    %v3211 = vpack.c.b16 %v3175, %v3171
    %v3212 = vpack.c.b16 %v3176, %v3172
    %v3213 = vpack.c.b16 %v3177, %v3173
    %v3214 = vpack.c.b16 %v3178, %v3174
    %v3215 = vpack.c.b16 %v3183, %v3179
    %v3216 = vpack.c.b16 %v3184, %v3180
    %v3217 = vpack.c.b16 %v3185, %v3181
    %v3218 = vpack.c.b16 %v3186, %v3182
    %3251 = vmatprep.subr.bf16.mxu0 %v3188
    %3252 = vmatpush1.bf16.msra.mxu0 %v3187
    %3253 = vmatprep.subr.bf16.mxu0 %v3192
    %3254 = vmatpush1.bf16.msra.mxu0 %v3191
    %3255 = vmatprep.subr.bf16.mxu0 %v3196
    %3256 = vmatpush1.bf16.msra.mxu0 %v3195
    %3257 = vmatprep.subr.bf16.mxu0 %v3200
    %3258 = vmatpush1.bf16.msra.mxu0 %v3199
    %3259 = vmatprep.subr.bf16.mxu0 %v3204
    %3260 = vmatpush1.bf16.msra.mxu0 %v3203
    %3261 = vmatprep.subr.bf16.mxu0 %v3208
    %3262 = vmatpush1.bf16.msra.mxu0 %v3207
    %3263 = vmatprep.subr.bf16.mxu0 %v3212
    %3264 = vmatpush1.bf16.msra.mxu0 %v3211
    %3265 = vmatprep.subr.bf16.mxu0 %v3216
    %3266 = vmatpush1.bf16.msra.mxu0 %v3215
    %3267 = vmatprep.subr.bf16.mxu0 0
    %3268 = vmatpush1.bf16.msra.mxu0 0
    %3269 = vmatprep.subr.bf16.mxu0 0
    %3270 = vmatpush1.bf16.msra.mxu0 0
    %3271 = vmatprep.subr.bf16.mxu0 0
    %3272 = vmatpush1.bf16.msra.mxu0 0
    %3273 = vmatprep.subr.bf16.mxu0 0
    %3274 = vmatpush1.bf16.msra.mxu0 0
    %3275 = vmatprep.subr.bf16.mxu0 0
    %3276 = vmatpush1.bf16.msra.mxu0 0
    %3277 = vmatprep.subr.bf16.mxu0 0
    %3278 = vmatpush1.bf16.msra.mxu0 0
    %3279 = vmatprep.subr.bf16.mxu0 0
    %3280 = vmatpush1.bf16.msra.mxu0 0
    %3281 = vmatprep.subr.bf16.mxu0 0
    %3282 = vmatpush1.bf16.msra.mxu0 0
    %3283 = vmatprep.mubr.bf16.mxu0 0
    %3284 = vmatmul.mubr.bf16.gmra.mrb[0].mxu0 %v2732
    %v3285 = vpop.f32.mrb[0].mxu0
    %v3286 = vadd.f32 0.0, %v3285
    %v3287 = vpop.f32.mrb[0].mxu0
    %v3288 = vadd.f32 0.0, %v3287
    %v3289 = vpop.f32.mrb[0].mxu0
    %v3290 = vpop.f32.mrb[0].mxu0
    %3291 = vdwg.mxu0
    %3292 = vmatprep.subr.bf16.mxu0 %v3190
    %3293 = vmatpush1.bf16.msra.mxu0 %v3189
    %3294 = vmatprep.subr.bf16.mxu0 %v3194
    %3295 = vmatpush1.bf16.msra.mxu0 %v3193
    %3296 = vmatprep.subr.bf16.mxu0 %v3198
    %3297 = vmatpush1.bf16.msra.mxu0 %v3197
    %3298 = vmatprep.subr.bf16.mxu0 %v3202
    %3299 = vmatpush1.bf16.msra.mxu0 %v3201
    %3300 = vmatprep.subr.bf16.mxu0 %v3206
    %3301 = vmatpush1.bf16.msra.mxu0 %v3205
    %3302 = vmatprep.subr.bf16.mxu0 %v3210
    %3303 = vmatpush1.bf16.msra.mxu0 %v3209
    %3304 = vmatprep.subr.bf16.mxu0 %v3214
    %3305 = vmatpush1.bf16.msra.mxu0 %v3213
    %3306 = vmatprep.subr.bf16.mxu0 %v3218
    %3307 = vmatpush1.bf16.msra.mxu0 %v3217
    %3308 = vmatprep.subr.bf16.mxu0 0
    %3309 = vmatpush1.bf16.msra.mxu0 0
    %3310 = vmatprep.subr.bf16.mxu0 0
    %3311 = vmatpush1.bf16.msra.mxu0 0
    %3312 = vmatprep.subr.bf16.mxu0 0
    %3313 = vmatpush1.bf16.msra.mxu0 0
    %3314 = vmatprep.subr.bf16.mxu0 0
    %3315 = vmatpush1.bf16.msra.mxu0 0
    %3316 = vmatprep.subr.bf16.mxu0 0
    %3317 = vmatpush1.bf16.msra.mxu0 0
    %3318 = vmatprep.subr.bf16.mxu0 0
    %3319 = vmatpush1.bf16.msra.mxu0 0
    %3320 = vmatprep.subr.bf16.mxu0 0
    %3321 = vmatpush1.bf16.msra.mxu0 0
    %3322 = vmatprep.subr.bf16.mxu0 0
    %3323 = vmatpush1.bf16.msra.mxu0 0
    %3324 = vmatprep.mubr.bf16.mxu0 0
    %3325 = vmatmul.mubr.bf16.gmra.mrb[0].mxu0 %v2732
    %v3326 = vpop.f32.mrb[0].mxu0
    %v3327 = vadd.f32 0.0, %v3326
    %v3328 = vpop.f32.mrb[0].mxu0
    %v3329 = vadd.f32 0.0, %v3328
    %v3330 = vpop.f32.mrb[0].mxu0
    %v3331 = vpop.f32.mrb[0].mxu0
    %3332 = vdwg.mxu0
    %s3333 = scalar_lea.vmem [#allocation2], 96
    %v3334 = vld [vmem:[%s3333] sm:$0xff]
    %v3335 = vld [vmem:[%s3333 + $0x8] sm:$0xff]
    %v3336 = vld [vmem:[%s3333 + $0x10] sm:$0xff]
    %v3337 = vld [vmem:[%s3333 + $0x18] sm:$0xff]
    %v3338 = vadd.f32 %v3334, %v3286
    %v3339 = vadd.f32 %v3335, %v3288
    %v3340 = vadd.f32 %v3336, %v3327
    %v3341 = vadd.f32 %v3337, %v3329
    %v3342 = vxor.u32 %v3338, 2147483648
    %v3343 = vxor.u32 %v3339, 2147483648
    %v3344 = vxor.u32 %v3340, 2147483648
    %v3345 = vmul.f32 %v3342, 1.442695
    %v3346 = vpow.pop %v3345
    %v3347 = vmul.f32 %v3343, 1.442695
    %v3348 = vpow.pop %v3347
    %v3349 = vmul.f32 %v3344, 1.442695
    %v3350 = vpow.pop %v3349
    %v3351 = vadd.f32 %v3346, 1.0
    %v3352 = vadd.f32 %v3348, 1.0
    %v3353 = vadd.f32 %v3350, 1.0
    %v3354 = vrcp.pop %v3351
    %v3355 = vmul.f32 1.0, %v3354
    %v3356 = vrcp.pop %v3352
    %v3357 = vmul.f32 1.0, %v3356
    %v3358 = vrcp.pop %v3353
    %v3359 = vmul.f32 1.0, %v3358
    %v3360 = vtanh.pop %v3341
    %v3361 = vmul.f32 %v3357, %v2454
    %v3362 = vmul.f32 %v3355, %v3360
    %v3363 = vadd.f32 %v3361, %v3362
    %v3364 = vtanh.pop %v3363
    %v3365 = vmul.f32 %v3359, %v3364
    %v3366 = vpack.c.bf16 %v3056, %v3056
    %v3367 = vld [vmem:[#allocation7] sm:$0xff]
    %v3368 = vld [vmem:[#allocation7 + $0x8] sm:$0xff]
    %v3369 = vld [vmem:[#allocation7 + $0x10] sm:$0xff]
    %v3370 = vld [vmem:[#allocation7 + $0x18] sm:$0xff]
    %v3371 = vld [vmem:[#allocation7 + $0x20] sm:$0xff]
    %v3372 = vld [vmem:[#allocation7 + $0x28] sm:$0xff]
    %v3373 = vld [vmem:[#allocation7 + $0x30] sm:$0xff]
    %v3374 = vld [vmem:[#allocation7 + $0x38] sm:$0xff]
    %v3375 = vld [vmem:[#allocation7 + $0x40] sm:$0xff]
    %v3376 = vld [vmem:[#allocation7 + $0x48] sm:$0xff]
    %v3377 = vld [vmem:[#allocation7 + $0x50] sm:$0xff]
    %v3378 = vld [vmem:[#allocation7 + $0x58] sm:$0xff]
    %v3379 = vld [vmem:[#allocation7 + $0x60] sm:$0xff]
    %v3380 = vld [vmem:[#allocation7 + $0x68] sm:$0xff]
    %v3381 = vld [vmem:[#allocation7 + $0x70] sm:$0xff]
    %v3382 = vld [vmem:[#allocation7 + $0x78] sm:$0xff]
    %v3383 = vld [vmem:[#allocation7 + $0x80] sm:$0xff]
    %v3384 = vld [vmem:[#allocation7 + $0x88] sm:$0xff]
    %v3385 = vld [vmem:[#allocation7 + $0x90] sm:$0xff]
    %v3386 = vld [vmem:[#allocation7 + $0x98] sm:$0xff]
    %v3387 = vld [vmem:[#allocation7 + $0xa0] sm:$0xff]
    %v3388 = vld [vmem:[#allocation7 + $0xa8] sm:$0xff]
    %v3389 = vld [vmem:[#allocation7 + $0xb0] sm:$0xff]
    %v3390 = vld [vmem:[#allocation7 + $0xb8] sm:$0xff]
    %v3391 = vld [vmem:[#allocation7 + $0xc0] sm:$0xff]
    %v3392 = vld [vmem:[#allocation7 + $0xc8] sm:$0xff]
    %v3393 = vld [vmem:[#allocation7 + $0xd0] sm:$0xff]
    %v3394 = vld [vmem:[#allocation7 + $0xd8] sm:$0xff]
    %v3395 = vld [vmem:[#allocation7 + $0xe0] sm:$0xff]
    %v3396 = vld [vmem:[#allocation7 + $0xe8] sm:$0xff]
    %v3397 = vld [vmem:[#allocation7 + $0xf0] sm:$0xff]
    %v3398 = vld [vmem:[#allocation7 + $0xf8] sm:$0xff]
    %v3431 = vunpack.c.l.b16 %v3367
    %v3432 = vunpack.c.h.b16 %v3367
    %v3433 = vunpack.c.l.b16 %v3368
    %v3434 = vunpack.c.h.b16 %v3368
    %v3435 = vunpack.c.l.b16 %v3369
    %v3436 = vunpack.c.h.b16 %v3369
    %v3437 = vunpack.c.l.b16 %v3370
    %v3438 = vunpack.c.h.b16 %v3370
    %v3439 = vunpack.c.l.b16 %v3371
    %v3440 = vunpack.c.h.b16 %v3371
    %v3441 = vunpack.c.l.b16 %v3372
    %v3442 = vunpack.c.h.b16 %v3372
    %v3443 = vunpack.c.l.b16 %v3373
    %v3444 = vunpack.c.h.b16 %v3373
    %v3445 = vunpack.c.l.b16 %v3374
    %v3446 = vunpack.c.h.b16 %v3374
    %v3447 = vunpack.c.l.b16 %v3375
    %v3448 = vunpack.c.h.b16 %v3375
    %v3449 = vunpack.c.l.b16 %v3376
    %v3450 = vunpack.c.h.b16 %v3376
    %v3451 = vunpack.c.l.b16 %v3377
    %v3452 = vunpack.c.h.b16 %v3377
    %v3453 = vunpack.c.l.b16 %v3378
    %v3454 = vunpack.c.h.b16 %v3378
    %v3455 = vunpack.c.l.b16 %v3379
    %v3456 = vunpack.c.h.b16 %v3379
    %v3457 = vunpack.c.l.b16 %v3380
    %v3458 = vunpack.c.h.b16 %v3380
    %v3459 = vunpack.c.l.b16 %v3381
    %v3460 = vunpack.c.h.b16 %v3381
    %v3461 = vunpack.c.l.b16 %v3382
    %v3462 = vunpack.c.h.b16 %v3382
    %v3463 = vunpack.c.l.b16 %v3383
    %v3464 = vunpack.c.h.b16 %v3383
    %v3465 = vunpack.c.l.b16 %v3384
    %v3466 = vunpack.c.h.b16 %v3384
    %v3467 = vunpack.c.l.b16 %v3385
    %v3468 = vunpack.c.h.b16 %v3385
    %v3469 = vunpack.c.l.b16 %v3386
    %v3470 = vunpack.c.h.b16 %v3386
    %v3471 = vunpack.c.l.b16 %v3387
    %v3472 = vunpack.c.h.b16 %v3387
    %v3473 = vunpack.c.l.b16 %v3388
    %v3474 = vunpack.c.h.b16 %v3388
    %v3475 = vunpack.c.l.b16 %v3389
    %v3476 = vunpack.c.h.b16 %v3389
    %v3477 = vunpack.c.l.b16 %v3390
    %v3478 = vunpack.c.h.b16 %v3390
    %v3479 = vunpack.c.l.b16 %v3391
    %v3480 = vunpack.c.h.b16 %v3391
    %v3481 = vunpack.c.l.b16 %v3392
    %v3482 = vunpack.c.h.b16 %v3392
    %v3483 = vunpack.c.l.b16 %v3393
    %v3484 = vunpack.c.h.b16 %v3393
    %v3485 = vunpack.c.l.b16 %v3394
    %v3486 = vunpack.c.h.b16 %v3394
    %v3487 = vunpack.c.l.b16 %v3395
    %v3488 = vunpack.c.h.b16 %v3395
    %v3489 = vunpack.c.l.b16 %v3396
    %v3490 = vunpack.c.h.b16 %v3396
    %v3491 = vunpack.c.l.b16 %v3397
    %v3492 = vunpack.c.h.b16 %v3397
    %v3493 = vunpack.c.l.b16 %v3398
    %v3494 = vunpack.c.h.b16 %v3398
    %v3495 = vpack.c.b16 %v3435, %v3431
    %v3496 = vpack.c.b16 %v3436, %v3432
    %v3497 = vpack.c.b16 %v3437, %v3433
    %v3498 = vpack.c.b16 %v3438, %v3434
    %v3499 = vpack.c.b16 %v3443, %v3439
    %v3500 = vpack.c.b16 %v3444, %v3440
    %v3501 = vpack.c.b16 %v3445, %v3441
    %v3502 = vpack.c.b16 %v3446, %v3442
    %v3503 = vpack.c.b16 %v3451, %v3447
    %v3504 = vpack.c.b16 %v3452, %v3448
    %v3505 = vpack.c.b16 %v3453, %v3449
    %v3506 = vpack.c.b16 %v3454, %v3450
    %v3507 = vpack.c.b16 %v3459, %v3455
    %v3508 = vpack.c.b16 %v3460, %v3456
    %v3509 = vpack.c.b16 %v3461, %v3457
    %v3510 = vpack.c.b16 %v3462, %v3458
    %v3511 = vpack.c.b16 %v3467, %v3463
    %v3512 = vpack.c.b16 %v3468, %v3464
    %v3513 = vpack.c.b16 %v3469, %v3465
    %v3514 = vpack.c.b16 %v3470, %v3466
    %v3515 = vpack.c.b16 %v3475, %v3471
    %v3516 = vpack.c.b16 %v3476, %v3472
    %v3517 = vpack.c.b16 %v3477, %v3473
    %v3518 = vpack.c.b16 %v3478, %v3474
    %v3519 = vpack.c.b16 %v3483, %v3479
    %v3520 = vpack.c.b16 %v3484, %v3480
    %v3521 = vpack.c.b16 %v3485, %v3481
    %v3522 = vpack.c.b16 %v3486, %v3482
    %v3523 = vpack.c.b16 %v3491, %v3487
    %v3524 = vpack.c.b16 %v3492, %v3488
    %v3525 = vpack.c.b16 %v3493, %v3489
    %v3526 = vpack.c.b16 %v3494, %v3490
    %3559 = vmatprep.subr.bf16.mxu0 %v3496
    %3560 = vmatpush1.bf16.msra.mxu0 %v3495
    %3561 = vmatprep.subr.bf16.mxu0 %v3500
    %3562 = vmatpush1.bf16.msra.mxu0 %v3499
    %3563 = vmatprep.subr.bf16.mxu0 %v3504
    %3564 = vmatpush1.bf16.msra.mxu0 %v3503
    %3565 = vmatprep.subr.bf16.mxu0 %v3508
    %3566 = vmatpush1.bf16.msra.mxu0 %v3507
    %3567 = vmatprep.subr.bf16.mxu0 %v3512
    %3568 = vmatpush1.bf16.msra.mxu0 %v3511
    %3569 = vmatprep.subr.bf16.mxu0 %v3516
    %3570 = vmatpush1.bf16.msra.mxu0 %v3515
    %3571 = vmatprep.subr.bf16.mxu0 %v3520
    %3572 = vmatpush1.bf16.msra.mxu0 %v3519
    %3573 = vmatprep.subr.bf16.mxu0 %v3524
    %3574 = vmatpush1.bf16.msra.mxu0 %v3523
    %3575 = vmatprep.subr.bf16.mxu0 0
    %3576 = vmatpush1.bf16.msra.mxu0 0
    %3577 = vmatprep.subr.bf16.mxu0 0
    %3578 = vmatpush1.bf16.msra.mxu0 0
    %3579 = vmatprep.subr.bf16.mxu0 0
    %3580 = vmatpush1.bf16.msra.mxu0 0
    %3581 = vmatprep.subr.bf16.mxu0 0
    %3582 = vmatpush1.bf16.msra.mxu0 0
    %3583 = vmatprep.subr.bf16.mxu0 0
    %3584 = vmatpush1.bf16.msra.mxu0 0
    %3585 = vmatprep.subr.bf16.mxu0 0
    %3586 = vmatpush1.bf16.msra.mxu0 0
    %3587 = vmatprep.subr.bf16.mxu0 0
    %3588 = vmatpush1.bf16.msra.mxu0 0
    %3589 = vmatprep.subr.bf16.mxu0 0
    %3590 = vmatpush1.bf16.msra.mxu0 0
    %3591 = vmatprep.mubr.bf16.mxu0 0
    %3592 = vmatmul.mubr.bf16.gmra.mrb[0].mxu0 %v3366
    %v3593 = vpop.f32.mrb[0].mxu0
    %v3594 = vadd.f32 0.0, %v3593
    %v3595 = vpop.f32.mrb[0].mxu0
    %v3596 = vadd.f32 0.0, %v3595
    %v3597 = vpop.f32.mrb[0].mxu0
    %v3598 = vpop.f32.mrb[0].mxu0
    %3599 = vdwg.mxu0
    %3600 = vmatprep.subr.bf16.mxu0 %v3498
    %3601 = vmatpush1.bf16.msra.mxu0 %v3497
    %3602 = vmatprep.subr.bf16.mxu0 %v3502
    %3603 = vmatpush1.bf16.msra.mxu0 %v3501
    %3604 = vmatprep.subr.bf16.mxu0 %v3506
    %3605 = vmatpush1.bf16.msra.mxu0 %v3505
    %3606 = vmatprep.subr.bf16.mxu0 %v3510
    %3607 = vmatpush1.bf16.msra.mxu0 %v3509
    %3608 = vmatprep.subr.bf16.mxu0 %v3514
    %3609 = vmatpush1.bf16.msra.mxu0 %v3513
    %3610 = vmatprep.subr.bf16.mxu0 %v3518
    %3611 = vmatpush1.bf16.msra.mxu0 %v3517
    %3612 = vmatprep.subr.bf16.mxu0 %v3522
    %3613 = vmatpush1.bf16.msra.mxu0 %v3521
    %3614 = vmatprep.subr.bf16.mxu0 %v3526
    %3615 = vmatpush1.bf16.msra.mxu0 %v3525
    %3616 = vmatprep.subr.bf16.mxu0 0
    %3617 = vmatpush1.bf16.msra.mxu0 0
    %3618 = vmatprep.subr.bf16.mxu0 0
    %3619 = vmatpush1.bf16.msra.mxu0 0
    %3620 = vmatprep.subr.bf16.mxu0 0
    %3621 = vmatpush1.bf16.msra.mxu0 0
    %3622 = vmatprep.subr.bf16.mxu0 0
    %3623 = vmatpush1.bf16.msra.mxu0 0
    %3624 = vmatprep.subr.bf16.mxu0 0
    %3625 = vmatpush1.bf16.msra.mxu0 0
    %3626 = vmatprep.subr.bf16.mxu0 0
    %3627 = vmatpush1.bf16.msra.mxu0 0
    %3628 = vmatprep.subr.bf16.mxu0 0
    %3629 = vmatpush1.bf16.msra.mxu0 0
    %3630 = vmatprep.subr.bf16.mxu0 0
    %3631 = vmatpush1.bf16.msra.mxu0 0
    %3632 = vmatprep.mubr.bf16.mxu0 0
    %3633 = vmatmul.mubr.bf16.gmra.mrb[0].mxu0 %v3366
    %v3634 = vpop.f32.mrb[0].mxu0
    %v3635 = vadd.f32 0.0, %v3634
    %v3636 = vpop.f32.mrb[0].mxu0
    %v3637 = vadd.f32 0.0, %v3636
    %v3638 = vpop.f32.mrb[0].mxu0
    %v3639 = vpop.f32.mrb[0].mxu0
    %3640 = vdwg.mxu0
    %v3641 = vpack.c.bf16 %v3365, %v3365
    %v3642 = vld [vmem:[#allocation5] sm:$0xff]
    %v3643 = vld [vmem:[#allocation5 + $0x8] sm:$0xff]
    %v3644 = vld [vmem:[#allocation5 + $0x10] sm:$0xff]
    %v3645 = vld [vmem:[#allocation5 + $0x18] sm:$0xff]
    %v3646 = vld [vmem:[#allocation5 + $0x20] sm:$0xff]
    %v3647 = vld [vmem:[#allocation5 + $0x28] sm:$0xff]
    %v3648 = vld [vmem:[#allocation5 + $0x30] sm:$0xff]
    %v3649 = vld [vmem:[#allocation5 + $0x38] sm:$0xff]
    %v3650 = vld [vmem:[#allocation5 + $0x40] sm:$0xff]
    %v3651 = vld [vmem:[#allocation5 + $0x48] sm:$0xff]
    %v3652 = vld [vmem:[#allocation5 + $0x50] sm:$0xff]
    %v3653 = vld [vmem:[#allocation5 + $0x58] sm:$0xff]
    %v3654 = vld [vmem:[#allocation5 + $0x60] sm:$0xff]
    %v3655 = vld [vmem:[#allocation5 + $0x68] sm:$0xff]
    %v3656 = vld [vmem:[#allocation5 + $0x70] sm:$0xff]
    %v3657 = vld [vmem:[#allocation5 + $0x78] sm:$0xff]
    %v3658 = vld [vmem:[#allocation5 + $0x80] sm:$0xff]
    %v3659 = vld [vmem:[#allocation5 + $0x88] sm:$0xff]
    %v3660 = vld [vmem:[#allocation5 + $0x90] sm:$0xff]
    %v3661 = vld [vmem:[#allocation5 + $0x98] sm:$0xff]
    %v3662 = vld [vmem:[#allocation5 + $0xa0] sm:$0xff]
    %v3663 = vld [vmem:[#allocation5 + $0xa8] sm:$0xff]
    %v3664 = vld [vmem:[#allocation5 + $0xb0] sm:$0xff]
    %v3665 = vld [vmem:[#allocation5 + $0xb8] sm:$0xff]
    %v3666 = vld [vmem:[#allocation5 + $0xc0] sm:$0xff]
    %v3667 = vld [vmem:[#allocation5 + $0xc8] sm:$0xff]
    %v3668 = vld [vmem:[#allocation5 + $0xd0] sm:$0xff]
    %v3669 = vld [vmem:[#allocation5 + $0xd8] sm:$0xff]
    %v3670 = vld [vmem:[#allocation5 + $0xe0] sm:$0xff]
    %v3671 = vld [vmem:[#allocation5 + $0xe8] sm:$0xff]
    %v3672 = vld [vmem:[#allocation5 + $0xf0] sm:$0xff]
    %v3673 = vld [vmem:[#allocation5 + $0xf8] sm:$0xff]
    %v3706 = vunpack.c.l.b16 %v3642
    %v3707 = vunpack.c.h.b16 %v3642
    %v3708 = vunpack.c.l.b16 %v3643
    %v3709 = vunpack.c.h.b16 %v3643
    %v3710 = vunpack.c.l.b16 %v3644
    %v3711 = vunpack.c.h.b16 %v3644
    %v3712 = vunpack.c.l.b16 %v3645
    %v3713 = vunpack.c.h.b16 %v3645
    %v3714 = vunpack.c.l.b16 %v3646
    %v3715 = vunpack.c.h.b16 %v3646
    %v3716 = vunpack.c.l.b16 %v3647
    %v3717 = vunpack.c.h.b16 %v3647
    %v3718 = vunpack.c.l.b16 %v3648
    %v3719 = vunpack.c.h.b16 %v3648
    %v3720 = vunpack.c.l.b16 %v3649
    %v3721 = vunpack.c.h.b16 %v3649
    %v3722 = vunpack.c.l.b16 %v3650
    %v3723 = vunpack.c.h.b16 %v3650
    %v3724 = vunpack.c.l.b16 %v3651
    %v3725 = vunpack.c.h.b16 %v3651
    %v3726 = vunpack.c.l.b16 %v3652
    %v3727 = vunpack.c.h.b16 %v3652
    %v3728 = vunpack.c.l.b16 %v3653
    %v3729 = vunpack.c.h.b16 %v3653
    %v3730 = vunpack.c.l.b16 %v3654
    %v3731 = vunpack.c.h.b16 %v3654
    %v3732 = vunpack.c.l.b16 %v3655
    %v3733 = vunpack.c.h.b16 %v3655
    %v3734 = vunpack.c.l.b16 %v3656
    %v3735 = vunpack.c.h.b16 %v3656
    %v3736 = vunpack.c.l.b16 %v3657
    %v3737 = vunpack.c.h.b16 %v3657
    %v3738 = vunpack.c.l.b16 %v3658
    %v3739 = vunpack.c.h.b16 %v3658
    %v3740 = vunpack.c.l.b16 %v3659
    %v3741 = vunpack.c.h.b16 %v3659
    %v3742 = vunpack.c.l.b16 %v3660
    %v3743 = vunpack.c.h.b16 %v3660
    %v3744 = vunpack.c.l.b16 %v3661
    %v3745 = vunpack.c.h.b16 %v3661
    %v3746 = vunpack.c.l.b16 %v3662
    %v3747 = vunpack.c.h.b16 %v3662
    %v3748 = vunpack.c.l.b16 %v3663
    %v3749 = vunpack.c.h.b16 %v3663
    %v3750 = vunpack.c.l.b16 %v3664
    %v3751 = vunpack.c.h.b16 %v3664
    %v3752 = vunpack.c.l.b16 %v3665
    %v3753 = vunpack.c.h.b16 %v3665
    %v3754 = vunpack.c.l.b16 %v3666
    %v3755 = vunpack.c.h.b16 %v3666
    %v3756 = vunpack.c.l.b16 %v3667
    %v3757 = vunpack.c.h.b16 %v3667
    %v3758 = vunpack.c.l.b16 %v3668
    %v3759 = vunpack.c.h.b16 %v3668
    %v3760 = vunpack.c.l.b16 %v3669
    %v3761 = vunpack.c.h.b16 %v3669
    %v3762 = vunpack.c.l.b16 %v3670
    %v3763 = vunpack.c.h.b16 %v3670
    %v3764 = vunpack.c.l.b16 %v3671
    %v3765 = vunpack.c.h.b16 %v3671
    %v3766 = vunpack.c.l.b16 %v3672
    %v3767 = vunpack.c.h.b16 %v3672
    %v3768 = vunpack.c.l.b16 %v3673
    %v3769 = vunpack.c.h.b16 %v3673
    %v3770 = vpack.c.b16 %v3710, %v3706
    %v3771 = vpack.c.b16 %v3711, %v3707
    %v3772 = vpack.c.b16 %v3712, %v3708
    %v3773 = vpack.c.b16 %v3713, %v3709
    %v3774 = vpack.c.b16 %v3718, %v3714
    %v3775 = vpack.c.b16 %v3719, %v3715
    %v3776 = vpack.c.b16 %v3720, %v3716
    %v3777 = vpack.c.b16 %v3721, %v3717
    %v3778 = vpack.c.b16 %v3726, %v3722
    %v3779 = vpack.c.b16 %v3727, %v3723
    %v3780 = vpack.c.b16 %v3728, %v3724
    %v3781 = vpack.c.b16 %v3729, %v3725
    %v3782 = vpack.c.b16 %v3734, %v3730
    %v3783 = vpack.c.b16 %v3735, %v3731
    %v3784 = vpack.c.b16 %v3736, %v3732
    %v3785 = vpack.c.b16 %v3737, %v3733
    %v3786 = vpack.c.b16 %v3742, %v3738
    %v3787 = vpack.c.b16 %v3743, %v3739
    %v3788 = vpack.c.b16 %v3744, %v3740
    %v3789 = vpack.c.b16 %v3745, %v3741
    %v3790 = vpack.c.b16 %v3750, %v3746
    %v3791 = vpack.c.b16 %v3751, %v3747
    %v3792 = vpack.c.b16 %v3752, %v3748
    %v3793 = vpack.c.b16 %v3753, %v3749
    %v3794 = vpack.c.b16 %v3758, %v3754
    %v3795 = vpack.c.b16 %v3759, %v3755
    %v3796 = vpack.c.b16 %v3760, %v3756
    %v3797 = vpack.c.b16 %v3761, %v3757
    %v3798 = vpack.c.b16 %v3766, %v3762
    %v3799 = vpack.c.b16 %v3767, %v3763
    %v3800 = vpack.c.b16 %v3768, %v3764
    %v3801 = vpack.c.b16 %v3769, %v3765
    %3834 = vmatprep.subr.bf16.mxu0 %v3771
    %3835 = vmatpush1.bf16.msra.mxu0 %v3770
    %3836 = vmatprep.subr.bf16.mxu0 %v3775
    %3837 = vmatpush1.bf16.msra.mxu0 %v3774
    %3838 = vmatprep.subr.bf16.mxu0 %v3779
    %3839 = vmatpush1.bf16.msra.mxu0 %v3778
    %3840 = vmatprep.subr.bf16.mxu0 %v3783
    %3841 = vmatpush1.bf16.msra.mxu0 %v3782
    %3842 = vmatprep.subr.bf16.mxu0 %v3787
    %3843 = vmatpush1.bf16.msra.mxu0 %v3786
    %3844 = vmatprep.subr.bf16.mxu0 %v3791
    %3845 = vmatpush1.bf16.msra.mxu0 %v3790
    %3846 = vmatprep.subr.bf16.mxu0 %v3795
    %3847 = vmatpush1.bf16.msra.mxu0 %v3794
    %3848 = vmatprep.subr.bf16.mxu0 %v3799
    %3849 = vmatpush1.bf16.msra.mxu0 %v3798
    %3850 = vmatprep.subr.bf16.mxu0 0
    %3851 = vmatpush1.bf16.msra.mxu0 0
    %3852 = vmatprep.subr.bf16.mxu0 0
    %3853 = vmatpush1.bf16.msra.mxu0 0
    %3854 = vmatprep.subr.bf16.mxu0 0
    %3855 = vmatpush1.bf16.msra.mxu0 0
    %3856 = vmatprep.subr.bf16.mxu0 0
    %3857 = vmatpush1.bf16.msra.mxu0 0
    %3858 = vmatprep.subr.bf16.mxu0 0
    %3859 = vmatpush1.bf16.msra.mxu0 0
    %3860 = vmatprep.subr.bf16.mxu0 0
    %3861 = vmatpush1.bf16.msra.mxu0 0
    %3862 = vmatprep.subr.bf16.mxu0 0
    %3863 = vmatpush1.bf16.msra.mxu0 0
    %3864 = vmatprep.subr.bf16.mxu0 0
    %3865 = vmatpush1.bf16.msra.mxu0 0
    %3866 = vmatprep.mubr.bf16.mxu0 0
    %3867 = vmatmul.mubr.bf16.gmra.mrb[0].mxu0 %v3641
    %v3868 = vpop.f32.mrb[0].mxu0
    %v3869 = vadd.f32 %v3594, %v3868
    %v3870 = vpop.f32.mrb[0].mxu0
    %v3871 = vadd.f32 %v3596, %v3870
    %v3872 = vpop.f32.mrb[0].mxu0
    %v3873 = vpop.f32.mrb[0].mxu0
    %3874 = vdwg.mxu0
    %3875 = vmatprep.subr.bf16.mxu0 %v3773
    %3876 = vmatpush1.bf16.msra.mxu0 %v3772
    %3877 = vmatprep.subr.bf16.mxu0 %v3777
    %3878 = vmatpush1.bf16.msra.mxu0 %v3776
    %3879 = vmatprep.subr.bf16.mxu0 %v3781
    %3880 = vmatpush1.bf16.msra.mxu0 %v3780
    %3881 = vmatprep.subr.bf16.mxu0 %v3785
    %3882 = vmatpush1.bf16.msra.mxu0 %v3784
    %3883 = vmatprep.subr.bf16.mxu0 %v3789
    %3884 = vmatpush1.bf16.msra.mxu0 %v3788
    %3885 = vmatprep.subr.bf16.mxu0 %v3793
    %3886 = vmatpush1.bf16.msra.mxu0 %v3792
    %3887 = vmatprep.subr.bf16.mxu0 %v3797
    %3888 = vmatpush1.bf16.msra.mxu0 %v3796
    %3889 = vmatprep.subr.bf16.mxu0 %v3801
    %3890 = vmatpush1.bf16.msra.mxu0 %v3800
    %3891 = vmatprep.subr.bf16.mxu0 0
    %3892 = vmatpush1.bf16.msra.mxu0 0
    %3893 = vmatprep.subr.bf16.mxu0 0
    %3894 = vmatpush1.bf16.msra.mxu0 0
    %3895 = vmatprep.subr.bf16.mxu0 0
    %3896 = vmatpush1.bf16.msra.mxu0 0
    %3897 = vmatprep.subr.bf16.mxu0 0
    %3898 = vmatpush1.bf16.msra.mxu0 0
    %3899 = vmatprep.subr.bf16.mxu0 0
    %3900 = vmatpush1.bf16.msra.mxu0 0
    %3901 = vmatprep.subr.bf16.mxu0 0
    %3902 = vmatpush1.bf16.msra.mxu0 0
    %3903 = vmatprep.subr.bf16.mxu0 0
    %3904 = vmatpush1.bf16.msra.mxu0 0
    %3905 = vmatprep.subr.bf16.mxu0 0
    %3906 = vmatpush1.bf16.msra.mxu0 0
    %3907 = vmatprep.mubr.bf16.mxu0 0
    %3908 = vmatmul.mubr.bf16.gmra.mrb[0].mxu0 %v3641
    %v3909 = vpop.f32.mrb[0].mxu0
    %v3910 = vadd.f32 %v3635, %v3909
    %v3911 = vpop.f32.mrb[0].mxu0
    %v3912 = vadd.f32 %v3637, %v3911
    %v3913 = vpop.f32.mrb[0].mxu0
    %v3914 = vpop.f32.mrb[0].mxu0
    %3915 = vdwg.mxu0
    %v3916 = vld [vmem:[%s6] sm:$0xf]
    %v3918 = vlaneseq
    %v3919 = vshrl.u32 %v3918, 7
    %v3920 = vsub.s32 0, %v3919
    %v3921 = vrot.slane %v3916, %v3920
    %v3922 = vlaneseq
    %v3923 = vshrl.u32 %v3922, 7
    %v3924 = vsub.s32 1, %v3923
    %v3925 = vrot.slane %v3916, %v3924
    %v3926 = vlaneseq
    %v3927 = vshrl.u32 %v3926, 7
    %v3928 = vsub.s32 2, %v3927
    %v3929 = vrot.slane %v3916, %v3928
    %v3930 = vlaneseq
    %v3931 = vshrl.u32 %v3930, 7
    %v3932 = vsub.s32 3, %v3931
    %v3933 = vrot.slane %v3916, %v3932
    %v3938 = vadd.f32 %v3869, %v3921
    %v3939 = vadd.f32 %v3871, %v3925
    %v3940 = vadd.f32 %v3910, %v3929
    %v3941 = vadd.f32 %v3912, %v3933
    %v3942 = vxor.u32 %v3938, 2147483648
    %v3943 = vxor.u32 %v3939, 2147483648
    %v3944 = vxor.u32 %v3940, 2147483648
    %v3945 = vmul.f32 %v3942, 1.442695
    %v3946 = vpow.pop %v3945
    %v3947 = vmul.f32 %v3943, 1.442695
    %v3948 = vpow.pop %v3947
    %v3949 = vmul.f32 %v3944, 1.442695
    %v3950 = vpow.pop %v3949
    %v3951 = vadd.f32 %v3946, 1.0
    %v3952 = vadd.f32 %v3948, 1.0
    %v3953 = vadd.f32 %v3950, 1.0
    %v3954 = vrcp.pop %v3951
    %v3955 = vmul.f32 1.0, %v3954
    %v3956 = vrcp.pop %v3952
    %v3957 = vmul.f32 1.0, %v3956
    %v3958 = vrcp.pop %v3953
    %v3959 = vmul.f32 1.0, %v3958
    %v3960 = vtanh.pop %v3941
    %v3961 = vmul.f32 %v3957, %v3054
    %v3962 = vmul.f32 %v3955, %v3960
    %v3963 = vadd.f32 %v3961, %v3962
    %v3964 = vtanh.pop %v3963
    %v3965 = vmul.f32 %v3959, %v3964
    %s3966 = scalar_lea.vmem %s7, 24
    %3967 = vst [vmem:[%s3966] sm:$0xff] %v3965
    %v3968 = vld [vmem:[#allocation3] sm:$0xff]
    %v3969 = vld [vmem:[#allocation3 + $0x8] sm:$0xff]
    %v3970 = vld [vmem:[#allocation3 + $0x10] sm:$0xff]
    %v3971 = vld [vmem:[#allocation3 + $0x18] sm:$0xff]
    %v3972 = vld [vmem:[#allocation3 + $0x20] sm:$0xff]
    %v3973 = vld [vmem:[#allocation3 + $0x28] sm:$0xff]
    %v3974 = vld [vmem:[#allocation3 + $0x30] sm:$0xff]
    %v3975 = vld [vmem:[#allocation3 + $0x38] sm:$0xff]
    %v3976 = vld [vmem:[#allocation3 + $0x40] sm:$0xff]
    %v3977 = vld [vmem:[#allocation3 + $0x48] sm:$0xff]
    %v3978 = vld [vmem:[#allocation3 + $0x50] sm:$0xff]
    %v3979 = vld [vmem:[#allocation3 + $0x58] sm:$0xff]
    %v3980 = vld [vmem:[#allocation3 + $0x60] sm:$0xff]
    %v3981 = vld [vmem:[#allocation3 + $0x68] sm:$0xff]
    %v3982 = vld [vmem:[#allocation3 + $0x70] sm:$0xff]
    %v3983 = vld [vmem:[#allocation3 + $0x78] sm:$0xff]
    %v3984 = vld [vmem:[#allocation3 + $0x80] sm:$0xff]
    %v3985 = vld [vmem:[#allocation3 + $0x88] sm:$0xff]
    %v3986 = vld [vmem:[#allocation3 + $0x90] sm:$0xff]
    %v3987 = vld [vmem:[#allocation3 + $0x98] sm:$0xff]
    %v3988 = vld [vmem:[#allocation3 + $0xa0] sm:$0xff]
    %v3989 = vld [vmem:[#allocation3 + $0xa8] sm:$0xff]
    %v3990 = vld [vmem:[#allocation3 + $0xb0] sm:$0xff]
    %v3991 = vld [vmem:[#allocation3 + $0xb8] sm:$0xff]
    %v3992 = vld [vmem:[#allocation3 + $0xc0] sm:$0xff]
    %v3993 = vld [vmem:[#allocation3 + $0xc8] sm:$0xff]
    %v3994 = vld [vmem:[#allocation3 + $0xd0] sm:$0xff]
    %v3995 = vld [vmem:[#allocation3 + $0xd8] sm:$0xff]
    %v3996 = vld [vmem:[#allocation3 + $0xe0] sm:$0xff]
    %v3997 = vld [vmem:[#allocation3 + $0xe8] sm:$0xff]
    %v3998 = vld [vmem:[#allocation3 + $0xf0] sm:$0xff]
    %v3999 = vld [vmem:[#allocation3 + $0xf8] sm:$0xff]
    %v4032 = vunpack.c.l.b16 %v3968
    %v4033 = vunpack.c.h.b16 %v3968
    %v4034 = vunpack.c.l.b16 %v3969
    %v4035 = vunpack.c.h.b16 %v3969
    %v4036 = vunpack.c.l.b16 %v3970
    %v4037 = vunpack.c.h.b16 %v3970
    %v4038 = vunpack.c.l.b16 %v3971
    %v4039 = vunpack.c.h.b16 %v3971
    %v4040 = vunpack.c.l.b16 %v3972
    %v4041 = vunpack.c.h.b16 %v3972
    %v4042 = vunpack.c.l.b16 %v3973
    %v4043 = vunpack.c.h.b16 %v3973
    %v4044 = vunpack.c.l.b16 %v3974
    %v4045 = vunpack.c.h.b16 %v3974
    %v4046 = vunpack.c.l.b16 %v3975
    %v4047 = vunpack.c.h.b16 %v3975
    %v4048 = vunpack.c.l.b16 %v3976
    %v4049 = vunpack.c.h.b16 %v3976
    %v4050 = vunpack.c.l.b16 %v3977
    %v4051 = vunpack.c.h.b16 %v3977
    %v4052 = vunpack.c.l.b16 %v3978
    %v4053 = vunpack.c.h.b16 %v3978
    %v4054 = vunpack.c.l.b16 %v3979
    %v4055 = vunpack.c.h.b16 %v3979
    %v4056 = vunpack.c.l.b16 %v3980
    %v4057 = vunpack.c.h.b16 %v3980
    %v4058 = vunpack.c.l.b16 %v3981
    %v4059 = vunpack.c.h.b16 %v3981
    %v4060 = vunpack.c.l.b16 %v3982
    %v4061 = vunpack.c.h.b16 %v3982
    %v4062 = vunpack.c.l.b16 %v3983
    %v4063 = vunpack.c.h.b16 %v3983
    %v4064 = vunpack.c.l.b16 %v3984
    %v4065 = vunpack.c.h.b16 %v3984
    %v4066 = vunpack.c.l.b16 %v3985
    %v4067 = vunpack.c.h.b16 %v3985
    %v4068 = vunpack.c.l.b16 %v3986
    %v4069 = vunpack.c.h.b16 %v3986
    %v4070 = vunpack.c.l.b16 %v3987
    %v4071 = vunpack.c.h.b16 %v3987
    %v4072 = vunpack.c.l.b16 %v3988
    %v4073 = vunpack.c.h.b16 %v3988
    %v4074 = vunpack.c.l.b16 %v3989
    %v4075 = vunpack.c.h.b16 %v3989
    %v4076 = vunpack.c.l.b16 %v3990
    %v4077 = vunpack.c.h.b16 %v3990
    %v4078 = vunpack.c.l.b16 %v3991
    %v4079 = vunpack.c.h.b16 %v3991
    %v4080 = vunpack.c.l.b16 %v3992
    %v4081 = vunpack.c.h.b16 %v3992
    %v4082 = vunpack.c.l.b16 %v3993
    %v4083 = vunpack.c.h.b16 %v3993
    %v4084 = vunpack.c.l.b16 %v3994
    %v4085 = vunpack.c.h.b16 %v3994
    %v4086 = vunpack.c.l.b16 %v3995
    %v4087 = vunpack.c.h.b16 %v3995
    %v4088 = vunpack.c.l.b16 %v3996
    %v4089 = vunpack.c.h.b16 %v3996
    %v4090 = vunpack.c.l.b16 %v3997
    %v4091 = vunpack.c.h.b16 %v3997
    %v4092 = vunpack.c.l.b16 %v3998
    %v4093 = vunpack.c.h.b16 %v3998
    %v4094 = vunpack.c.l.b16 %v3999
    %v4095 = vunpack.c.h.b16 %v3999
    %v4096 = vpack.c.b16 %v4036, %v4032
    %v4097 = vpack.c.b16 %v4037, %v4033
    %v4098 = vpack.c.b16 %v4038, %v4034
    %v4099 = vpack.c.b16 %v4039, %v4035
    %v4100 = vpack.c.b16 %v4044, %v4040
    %v4101 = vpack.c.b16 %v4045, %v4041
    %v4102 = vpack.c.b16 %v4046, %v4042
    %v4103 = vpack.c.b16 %v4047, %v4043
    %v4104 = vpack.c.b16 %v4052, %v4048
    %v4105 = vpack.c.b16 %v4053, %v4049
    %v4106 = vpack.c.b16 %v4054, %v4050
    %v4107 = vpack.c.b16 %v4055, %v4051
    %v4108 = vpack.c.b16 %v4060, %v4056
    %v4109 = vpack.c.b16 %v4061, %v4057
    %v4110 = vpack.c.b16 %v4062, %v4058
    %v4111 = vpack.c.b16 %v4063, %v4059
    %v4112 = vpack.c.b16 %v4068, %v4064
    %v4113 = vpack.c.b16 %v4069, %v4065
    %v4114 = vpack.c.b16 %v4070, %v4066
    %v4115 = vpack.c.b16 %v4071, %v4067
    %v4116 = vpack.c.b16 %v4076, %v4072
    %v4117 = vpack.c.b16 %v4077, %v4073
    %v4118 = vpack.c.b16 %v4078, %v4074
    %v4119 = vpack.c.b16 %v4079, %v4075
    %v4120 = vpack.c.b16 %v4084, %v4080
    %v4121 = vpack.c.b16 %v4085, %v4081
    %v4122 = vpack.c.b16 %v4086, %v4082
    %v4123 = vpack.c.b16 %v4087, %v4083
    %v4124 = vpack.c.b16 %v4092, %v4088
    %v4125 = vpack.c.b16 %v4093, %v4089
    %v4126 = vpack.c.b16 %v4094, %v4090
    %v4127 = vpack.c.b16 %v4095, %v4091
    %4160 = vmatprep.subr.bf16.mxu0 %v4097
    %4161 = vmatpush1.bf16.msra.mxu0 %v4096
    %4162 = vmatprep.subr.bf16.mxu0 %v4101
    %4163 = vmatpush1.bf16.msra.mxu0 %v4100
    %4164 = vmatprep.subr.bf16.mxu0 %v4105
    %4165 = vmatpush1.bf16.msra.mxu0 %v4104
    %4166 = vmatprep.subr.bf16.mxu0 %v4109
    %4167 = vmatpush1.bf16.msra.mxu0 %v4108
    %4168 = vmatprep.subr.bf16.mxu0 %v4113
    %4169 = vmatpush1.bf16.msra.mxu0 %v4112
    %4170 = vmatprep.subr.bf16.mxu0 %v4117
    %4171 = vmatpush1.bf16.msra.mxu0 %v4116
    %4172 = vmatprep.subr.bf16.mxu0 %v4121
    %4173 = vmatpush1.bf16.msra.mxu0 %v4120
    %4174 = vmatprep.subr.bf16.mxu0 %v4125
    %4175 = vmatpush1.bf16.msra.mxu0 %v4124
    %4176 = vmatprep.subr.bf16.mxu0 0
    %4177 = vmatpush1.bf16.msra.mxu0 0
    %4178 = vmatprep.subr.bf16.mxu0 0
    %4179 = vmatpush1.bf16.msra.mxu0 0
    %4180 = vmatprep.subr.bf16.mxu0 0
    %4181 = vmatpush1.bf16.msra.mxu0 0
    %4182 = vmatprep.subr.bf16.mxu0 0
    %4183 = vmatpush1.bf16.msra.mxu0 0
    %4184 = vmatprep.subr.bf16.mxu0 0
    %4185 = vmatpush1.bf16.msra.mxu0 0
    %4186 = vmatprep.subr.bf16.mxu0 0
    %4187 = vmatpush1.bf16.msra.mxu0 0
    %4188 = vmatprep.subr.bf16.mxu0 0
    %4189 = vmatpush1.bf16.msra.mxu0 0
    %4190 = vmatprep.subr.bf16.mxu0 0
    %4191 = vmatpush1.bf16.msra.mxu0 0
    %4192 = vmatprep.mubr.bf16.mxu0 0
    %4193 = vmatmul.mubr.bf16.gmra.mrb[0].mxu0 %v3641
    %v4194 = vpop.f32.mrb[0].mxu0
    %v4195 = vadd.f32 0.0, %v4194
    %v4196 = vpop.f32.mrb[0].mxu0
    %v4197 = vadd.f32 0.0, %v4196
    %v4198 = vpop.f32.mrb[0].mxu0
    %v4199 = vpop.f32.mrb[0].mxu0
    %4200 = vdwg.mxu0
    %4201 = vmatprep.subr.bf16.mxu0 %v4099
    %4202 = vmatpush1.bf16.msra.mxu0 %v4098
    %4203 = vmatprep.subr.bf16.mxu0 %v4103
    %4204 = vmatpush1.bf16.msra.mxu0 %v4102
    %4205 = vmatprep.subr.bf16.mxu0 %v4107
    %4206 = vmatpush1.bf16.msra.mxu0 %v4106
    %4207 = vmatprep.subr.bf16.mxu0 %v4111
    %4208 = vmatpush1.bf16.msra.mxu0 %v4110
    %4209 = vmatprep.subr.bf16.mxu0 %v4115
    %4210 = vmatpush1.bf16.msra.mxu0 %v4114
    %4211 = vmatprep.subr.bf16.mxu0 %v4119
    %4212 = vmatpush1.bf16.msra.mxu0 %v4118
    %4213 = vmatprep.subr.bf16.mxu0 %v4123
    %4214 = vmatpush1.bf16.msra.mxu0 %v4122
    %4215 = vmatprep.subr.bf16.mxu0 %v4127
    %4216 = vmatpush1.bf16.msra.mxu0 %v4126
    %4217 = vmatprep.subr.bf16.mxu0 0
    %4218 = vmatpush1.bf16.msra.mxu0 0
    %4219 = vmatprep.subr.bf16.mxu0 0
    %4220 = vmatpush1.bf16.msra.mxu0 0
    %4221 = vmatprep.subr.bf16.mxu0 0
    %4222 = vmatpush1.bf16.msra.mxu0 0
    %4223 = vmatprep.subr.bf16.mxu0 0
    %4224 = vmatpush1.bf16.msra.mxu0 0
    %4225 = vmatprep.subr.bf16.mxu0 0
    %4226 = vmatpush1.bf16.msra.mxu0 0
    %4227 = vmatprep.subr.bf16.mxu0 0
    %4228 = vmatpush1.bf16.msra.mxu0 0
    %4229 = vmatprep.subr.bf16.mxu0 0
    %4230 = vmatpush1.bf16.msra.mxu0 0
    %4231 = vmatprep.subr.bf16.mxu0 0
    %4232 = vmatpush1.bf16.msra.mxu0 0
    %4233 = vmatprep.mubr.bf16.mxu0 0
    %4234 = vmatmul.mubr.bf16.gmra.mrb[0].mxu0 %v3641
    %v4235 = vpop.f32.mrb[0].mxu0
    %v4236 = vadd.f32 0.0, %v4235
    %v4237 = vpop.f32.mrb[0].mxu0
    %v4238 = vadd.f32 0.0, %v4237
    %v4239 = vpop.f32.mrb[0].mxu0
    %v4240 = vpop.f32.mrb[0].mxu0
    %4241 = vdwg.mxu0
    %s4242 = scalar_lea.vmem [#allocation2], 128
    %v4243 = vld [vmem:[%s4242] sm:$0xff]
    %v4244 = vld [vmem:[%s4242 + $0x8] sm:$0xff]
    %v4245 = vld [vmem:[%s4242 + $0x10] sm:$0xff]
    %v4246 = vld [vmem:[%s4242 + $0x18] sm:$0xff]
    %v4247 = vadd.f32 %v4243, %v4195
    %v4248 = vadd.f32 %v4244, %v4197
    %v4249 = vadd.f32 %v4245, %v4236
    %v4250 = vadd.f32 %v4246, %v4238
    %v4251 = vxor.u32 %v4247, 2147483648
    %v4252 = vxor.u32 %v4248, 2147483648
    %v4253 = vxor.u32 %v4249, 2147483648
    %v4254 = vmul.f32 %v4251, 1.442695
    %v4255 = vpow.pop %v4254
    %v4256 = vmul.f32 %v4252, 1.442695
    %v4257 = vpow.pop %v4256
    %v4258 = vmul.f32 %v4253, 1.442695
    %v4259 = vpow.pop %v4258
    %v4260 = vadd.f32 %v4255, 1.0
    %v4261 = vadd.f32 %v4257, 1.0
    %v4262 = vadd.f32 %v4259, 1.0
    %v4263 = vrcp.pop %v4260
    %v4264 = vmul.f32 1.0, %v4263
    %v4265 = vrcp.pop %v4261
    %v4266 = vmul.f32 1.0, %v4265
    %v4267 = vrcp.pop %v4262
    %v4268 = vmul.f32 1.0, %v4267
    %v4269 = vtanh.pop %v4250
    %v4270 = vmul.f32 %v4266, %v3363
    %v4271 = vmul.f32 %v4264, %v4269
    %v4272 = vadd.f32 %v4270, %v4271
    %v4273 = vtanh.pop %v4272
    %v4274 = vmul.f32 %v4268, %v4273
    %v4275 = vpack.c.bf16 %v3965, %v3965
    %v4276 = vld [vmem:[#allocation7] sm:$0xff]
    %v4277 = vld [vmem:[#allocation7 + $0x8] sm:$0xff]
    %v4278 = vld [vmem:[#allocation7 + $0x10] sm:$0xff]
    %v4279 = vld [vmem:[#allocation7 + $0x18] sm:$0xff]
    %v4280 = vld [vmem:[#allocation7 + $0x20] sm:$0xff]
    %v4281 = vld [vmem:[#allocation7 + $0x28] sm:$0xff]
    %v4282 = vld [vmem:[#allocation7 + $0x30] sm:$0xff]
    %v4283 = vld [vmem:[#allocation7 + $0x38] sm:$0xff]
    %v4284 = vld [vmem:[#allocation7 + $0x40] sm:$0xff]
    %v4285 = vld [vmem:[#allocation7 + $0x48] sm:$0xff]
    %v4286 = vld [vmem:[#allocation7 + $0x50] sm:$0xff]
    %v4287 = vld [vmem:[#allocation7 + $0x58] sm:$0xff]
    %v4288 = vld [vmem:[#allocation7 + $0x60] sm:$0xff]
    %v4289 = vld [vmem:[#allocation7 + $0x68] sm:$0xff]
    %v4290 = vld [vmem:[#allocation7 + $0x70] sm:$0xff]
    %v4291 = vld [vmem:[#allocation7 + $0x78] sm:$0xff]
    %v4292 = vld [vmem:[#allocation7 + $0x80] sm:$0xff]
    %v4293 = vld [vmem:[#allocation7 + $0x88] sm:$0xff]
    %v4294 = vld [vmem:[#allocation7 + $0x90] sm:$0xff]
    %v4295 = vld [vmem:[#allocation7 + $0x98] sm:$0xff]
    %v4296 = vld [vmem:[#allocation7 + $0xa0] sm:$0xff]
    %v4297 = vld [vmem:[#allocation7 + $0xa8] sm:$0xff]
    %v4298 = vld [vmem:[#allocation7 + $0xb0] sm:$0xff]
    %v4299 = vld [vmem:[#allocation7 + $0xb8] sm:$0xff]
    %v4300 = vld [vmem:[#allocation7 + $0xc0] sm:$0xff]
    %v4301 = vld [vmem:[#allocation7 + $0xc8] sm:$0xff]
    %v4302 = vld [vmem:[#allocation7 + $0xd0] sm:$0xff]
    %v4303 = vld [vmem:[#allocation7 + $0xd8] sm:$0xff]
    %v4304 = vld [vmem:[#allocation7 + $0xe0] sm:$0xff]
    %v4305 = vld [vmem:[#allocation7 + $0xe8] sm:$0xff]
    %v4306 = vld [vmem:[#allocation7 + $0xf0] sm:$0xff]
    %v4307 = vld [vmem:[#allocation7 + $0xf8] sm:$0xff]
    %v4340 = vunpack.c.l.b16 %v4276
    %v4341 = vunpack.c.h.b16 %v4276
    %v4342 = vunpack.c.l.b16 %v4277
    %v4343 = vunpack.c.h.b16 %v4277
    %v4344 = vunpack.c.l.b16 %v4278
    %v4345 = vunpack.c.h.b16 %v4278
    %v4346 = vunpack.c.l.b16 %v4279
    %v4347 = vunpack.c.h.b16 %v4279
    %v4348 = vunpack.c.l.b16 %v4280
    %v4349 = vunpack.c.h.b16 %v4280
    %v4350 = vunpack.c.l.b16 %v4281
    %v4351 = vunpack.c.h.b16 %v4281
    %v4352 = vunpack.c.l.b16 %v4282
    %v4353 = vunpack.c.h.b16 %v4282
    %v4354 = vunpack.c.l.b16 %v4283
    %v4355 = vunpack.c.h.b16 %v4283
    %v4356 = vunpack.c.l.b16 %v4284
    %v4357 = vunpack.c.h.b16 %v4284
    %v4358 = vunpack.c.l.b16 %v4285
    %v4359 = vunpack.c.h.b16 %v4285
    %v4360 = vunpack.c.l.b16 %v4286
    %v4361 = vunpack.c.h.b16 %v4286
    %v4362 = vunpack.c.l.b16 %v4287
    %v4363 = vunpack.c.h.b16 %v4287
    %v4364 = vunpack.c.l.b16 %v4288
    %v4365 = vunpack.c.h.b16 %v4288
    %v4366 = vunpack.c.l.b16 %v4289
    %v4367 = vunpack.c.h.b16 %v4289
    %v4368 = vunpack.c.l.b16 %v4290
    %v4369 = vunpack.c.h.b16 %v4290
    %v4370 = vunpack.c.l.b16 %v4291
    %v4371 = vunpack.c.h.b16 %v4291
    %v4372 = vunpack.c.l.b16 %v4292
    %v4373 = vunpack.c.h.b16 %v4292
    %v4374 = vunpack.c.l.b16 %v4293
    %v4375 = vunpack.c.h.b16 %v4293
    %v4376 = vunpack.c.l.b16 %v4294
    %v4377 = vunpack.c.h.b16 %v4294
    %v4378 = vunpack.c.l.b16 %v4295
    %v4379 = vunpack.c.h.b16 %v4295
    %v4380 = vunpack.c.l.b16 %v4296
    %v4381 = vunpack.c.h.b16 %v4296
    %v4382 = vunpack.c.l.b16 %v4297
    %v4383 = vunpack.c.h.b16 %v4297
    %v4384 = vunpack.c.l.b16 %v4298
    %v4385 = vunpack.c.h.b16 %v4298
    %v4386 = vunpack.c.l.b16 %v4299
    %v4387 = vunpack.c.h.b16 %v4299
    %v4388 = vunpack.c.l.b16 %v4300
    %v4389 = vunpack.c.h.b16 %v4300
    %v4390 = vunpack.c.l.b16 %v4301
    %v4391 = vunpack.c.h.b16 %v4301
    %v4392 = vunpack.c.l.b16 %v4302
    %v4393 = vunpack.c.h.b16 %v4302
    %v4394 = vunpack.c.l.b16 %v4303
    %v4395 = vunpack.c.h.b16 %v4303
    %v4396 = vunpack.c.l.b16 %v4304
    %v4397 = vunpack.c.h.b16 %v4304
    %v4398 = vunpack.c.l.b16 %v4305
    %v4399 = vunpack.c.h.b16 %v4305
    %v4400 = vunpack.c.l.b16 %v4306
    %v4401 = vunpack.c.h.b16 %v4306
    %v4402 = vunpack.c.l.b16 %v4307
    %v4403 = vunpack.c.h.b16 %v4307
    %v4404 = vpack.c.b16 %v4344, %v4340
    %v4405 = vpack.c.b16 %v4345, %v4341
    %v4406 = vpack.c.b16 %v4346, %v4342
    %v4407 = vpack.c.b16 %v4347, %v4343
    %v4408 = vpack.c.b16 %v4352, %v4348
    %v4409 = vpack.c.b16 %v4353, %v4349
    %v4410 = vpack.c.b16 %v4354, %v4350
    %v4411 = vpack.c.b16 %v4355, %v4351
    %v4412 = vpack.c.b16 %v4360, %v4356
    %v4413 = vpack.c.b16 %v4361, %v4357
    %v4414 = vpack.c.b16 %v4362, %v4358
    %v4415 = vpack.c.b16 %v4363, %v4359
    %v4416 = vpack.c.b16 %v4368, %v4364
    %v4417 = vpack.c.b16 %v4369, %v4365
    %v4418 = vpack.c.b16 %v4370, %v4366
    %v4419 = vpack.c.b16 %v4371, %v4367
    %v4420 = vpack.c.b16 %v4376, %v4372
    %v4421 = vpack.c.b16 %v4377, %v4373
    %v4422 = vpack.c.b16 %v4378, %v4374
    %v4423 = vpack.c.b16 %v4379, %v4375
    %v4424 = vpack.c.b16 %v4384, %v4380
    %v4425 = vpack.c.b16 %v4385, %v4381
    %v4426 = vpack.c.b16 %v4386, %v4382
    %v4427 = vpack.c.b16 %v4387, %v4383
    %v4428 = vpack.c.b16 %v4392, %v4388
    %v4429 = vpack.c.b16 %v4393, %v4389
    %v4430 = vpack.c.b16 %v4394, %v4390
    %v4431 = vpack.c.b16 %v4395, %v4391
    %v4432 = vpack.c.b16 %v4400, %v4396
    %v4433 = vpack.c.b16 %v4401, %v4397
    %v4434 = vpack.c.b16 %v4402, %v4398
    %v4435 = vpack.c.b16 %v4403, %v4399
    %4468 = vmatprep.subr.bf16.mxu0 %v4405
    %4469 = vmatpush1.bf16.msra.mxu0 %v4404
    %4470 = vmatprep.subr.bf16.mxu0 %v4409
    %4471 = vmatpush1.bf16.msra.mxu0 %v4408
    %4472 = vmatprep.subr.bf16.mxu0 %v4413
    %4473 = vmatpush1.bf16.msra.mxu0 %v4412
    %4474 = vmatprep.subr.bf16.mxu0 %v4417
    %4475 = vmatpush1.bf16.msra.mxu0 %v4416
    %4476 = vmatprep.subr.bf16.mxu0 %v4421
    %4477 = vmatpush1.bf16.msra.mxu0 %v4420
    %4478 = vmatprep.subr.bf16.mxu0 %v4425
    %4479 = vmatpush1.bf16.msra.mxu0 %v4424
    %4480 = vmatprep.subr.bf16.mxu0 %v4429
    %4481 = vmatpush1.bf16.msra.mxu0 %v4428
    %4482 = vmatprep.subr.bf16.mxu0 %v4433
    %4483 = vmatpush1.bf16.msra.mxu0 %v4432
    %4484 = vmatprep.subr.bf16.mxu0 0
    %4485 = vmatpush1.bf16.msra.mxu0 0
    %4486 = vmatprep.subr.bf16.mxu0 0
    %4487 = vmatpush1.bf16.msra.mxu0 0
    %4488 = vmatprep.subr.bf16.mxu0 0
    %4489 = vmatpush1.bf16.msra.mxu0 0
    %4490 = vmatprep.subr.bf16.mxu0 0
    %4491 = vmatpush1.bf16.msra.mxu0 0
    %4492 = vmatprep.subr.bf16.mxu0 0
    %4493 = vmatpush1.bf16.msra.mxu0 0
    %4494 = vmatprep.subr.bf16.mxu0 0
    %4495 = vmatpush1.bf16.msra.mxu0 0
    %4496 = vmatprep.subr.bf16.mxu0 0
    %4497 = vmatpush1.bf16.msra.mxu0 0
    %4498 = vmatprep.subr.bf16.mxu0 0
    %4499 = vmatpush1.bf16.msra.mxu0 0
    %4500 = vmatprep.mubr.bf16.mxu0 0
    %4501 = vmatmul.mubr.bf16.gmra.mrb[0].mxu0 %v4275
    %v4502 = vpop.f32.mrb[0].mxu0
    %v4503 = vadd.f32 0.0, %v4502
    %v4504 = vpop.f32.mrb[0].mxu0
    %v4505 = vadd.f32 0.0, %v4504
    %v4506 = vpop.f32.mrb[0].mxu0
    %v4507 = vpop.f32.mrb[0].mxu0
    %4508 = vdwg.mxu0
    %4509 = vmatprep.subr.bf16.mxu0 %v4407
    %4510 = vmatpush1.bf16.msra.mxu0 %v4406
    %4511 = vmatprep.subr.bf16.mxu0 %v4411
    %4512 = vmatpush1.bf16.msra.mxu0 %v4410
    %4513 = vmatprep.subr.bf16.mxu0 %v4415
    %4514 = vmatpush1.bf16.msra.mxu0 %v4414
    %4515 = vmatprep.subr.bf16.mxu0 %v4419
    %4516 = vmatpush1.bf16.msra.mxu0 %v4418
    %4517 = vmatprep.subr.bf16.mxu0 %v4423
    %4518 = vmatpush1.bf16.msra.mxu0 %v4422
    %4519 = vmatprep.subr.bf16.mxu0 %v4427
    %4520 = vmatpush1.bf16.msra.mxu0 %v4426
    %4521 = vmatprep.subr.bf16.mxu0 %v4431
    %4522 = vmatpush1.bf16.msra.mxu0 %v4430
    %4523 = vmatprep.subr.bf16.mxu0 %v4435
    %4524 = vmatpush1.bf16.msra.mxu0 %v4434
    %4525 = vmatprep.subr.bf16.mxu0 0
    %4526 = vmatpush1.bf16.msra.mxu0 0
    %4527 = vmatprep.subr.bf16.mxu0 0
    %4528 = vmatpush1.bf16.msra.mxu0 0
    %4529 = vmatprep.subr.bf16.mxu0 0
    %4530 = vmatpush1.bf16.msra.mxu0 0
    %4531 = vmatprep.subr.bf16.mxu0 0
    %4532 = vmatpush1.bf16.msra.mxu0 0
    %4533 = vmatprep.subr.bf16.mxu0 0
    %4534 = vmatpush1.bf16.msra.mxu0 0
    %4535 = vmatprep.subr.bf16.mxu0 0
    %4536 = vmatpush1.bf16.msra.mxu0 0
    %4537 = vmatprep.subr.bf16.mxu0 0
    %4538 = vmatpush1.bf16.msra.mxu0 0
    %4539 = vmatprep.subr.bf16.mxu0 0
    %4540 = vmatpush1.bf16.msra.mxu0 0
    %4541 = vmatprep.mubr.bf16.mxu0 0
    %4542 = vmatmul.mubr.bf16.gmra.mrb[0].mxu0 %v4275
    %v4543 = vpop.f32.mrb[0].mxu0
    %v4544 = vadd.f32 0.0, %v4543
    %v4545 = vpop.f32.mrb[0].mxu0
    %v4546 = vadd.f32 0.0, %v4545
    %v4547 = vpop.f32.mrb[0].mxu0
    %v4548 = vpop.f32.mrb[0].mxu0
    %4549 = vdwg.mxu0
    %v4550 = vpack.c.bf16 %v4274, %v4274
    %v4551 = vld [vmem:[#allocation5] sm:$0xff]
    %v4552 = vld [vmem:[#allocation5 + $0x8] sm:$0xff]
    %v4553 = vld [vmem:[#allocation5 + $0x10] sm:$0xff]
    %v4554 = vld [vmem:[#allocation5 + $0x18] sm:$0xff]
    %v4555 = vld [vmem:[#allocation5 + $0x20] sm:$0xff]
    %v4556 = vld [vmem:[#allocation5 + $0x28] sm:$0xff]
    %v4557 = vld [vmem:[#allocation5 + $0x30] sm:$0xff]
    %v4558 = vld [vmem:[#allocation5 + $0x38] sm:$0xff]
    %v4559 = vld [vmem:[#allocation5 + $0x40] sm:$0xff]
    %v4560 = vld [vmem:[#allocation5 + $0x48] sm:$0xff]
    %v4561 = vld [vmem:[#allocation5 + $0x50] sm:$0xff]
    %v4562 = vld [vmem:[#allocation5 + $0x58] sm:$0xff]
    %v4563 = vld [vmem:[#allocation5 + $0x60] sm:$0xff]
    %v4564 = vld [vmem:[#allocation5 + $0x68] sm:$0xff]
    %v4565 = vld [vmem:[#allocation5 + $0x70] sm:$0xff]
    %v4566 = vld [vmem:[#allocation5 + $0x78] sm:$0xff]
    %v4567 = vld [vmem:[#allocation5 + $0x80] sm:$0xff]
    %v4568 = vld [vmem:[#allocation5 + $0x88] sm:$0xff]
    %v4569 = vld [vmem:[#allocation5 + $0x90] sm:$0xff]
    %v4570 = vld [vmem:[#allocation5 + $0x98] sm:$0xff]
    %v4571 = vld [vmem:[#allocation5 + $0xa0] sm:$0xff]
    %v4572 = vld [vmem:[#allocation5 + $0xa8] sm:$0xff]
    %v4573 = vld [vmem:[#allocation5 + $0xb0] sm:$0xff]
    %v4574 = vld [vmem:[#allocation5 + $0xb8] sm:$0xff]
    %v4575 = vld [vmem:[#allocation5 + $0xc0] sm:$0xff]
    %v4576 = vld [vmem:[#allocation5 + $0xc8] sm:$0xff]
    %v4577 = vld [vmem:[#allocation5 + $0xd0] sm:$0xff]
    %v4578 = vld [vmem:[#allocation5 + $0xd8] sm:$0xff]
    %v4579 = vld [vmem:[#allocation5 + $0xe0] sm:$0xff]
    %v4580 = vld [vmem:[#allocation5 + $0xe8] sm:$0xff]
    %v4581 = vld [vmem:[#allocation5 + $0xf0] sm:$0xff]
    %v4582 = vld [vmem:[#allocation5 + $0xf8] sm:$0xff]
    %v4615 = vunpack.c.l.b16 %v4551
    %v4616 = vunpack.c.h.b16 %v4551
    %v4617 = vunpack.c.l.b16 %v4552
    %v4618 = vunpack.c.h.b16 %v4552
    %v4619 = vunpack.c.l.b16 %v4553
    %v4620 = vunpack.c.h.b16 %v4553
    %v4621 = vunpack.c.l.b16 %v4554
    %v4622 = vunpack.c.h.b16 %v4554
    %v4623 = vunpack.c.l.b16 %v4555
    %v4624 = vunpack.c.h.b16 %v4555
    %v4625 = vunpack.c.l.b16 %v4556
    %v4626 = vunpack.c.h.b16 %v4556
    %v4627 = vunpack.c.l.b16 %v4557
    %v4628 = vunpack.c.h.b16 %v4557
    %v4629 = vunpack.c.l.b16 %v4558
    %v4630 = vunpack.c.h.b16 %v4558
    %v4631 = vunpack.c.l.b16 %v4559
    %v4632 = vunpack.c.h.b16 %v4559
    %v4633 = vunpack.c.l.b16 %v4560
    %v4634 = vunpack.c.h.b16 %v4560
    %v4635 = vunpack.c.l.b16 %v4561
    %v4636 = vunpack.c.h.b16 %v4561
    %v4637 = vunpack.c.l.b16 %v4562
    %v4638 = vunpack.c.h.b16 %v4562
    %v4639 = vunpack.c.l.b16 %v4563
    %v4640 = vunpack.c.h.b16 %v4563
    %v4641 = vunpack.c.l.b16 %v4564
    %v4642 = vunpack.c.h.b16 %v4564
    %v4643 = vunpack.c.l.b16 %v4565
    %v4644 = vunpack.c.h.b16 %v4565
    %v4645 = vunpack.c.l.b16 %v4566
    %v4646 = vunpack.c.h.b16 %v4566
    %v4647 = vunpack.c.l.b16 %v4567
    %v4648 = vunpack.c.h.b16 %v4567
    %v4649 = vunpack.c.l.b16 %v4568
    %v4650 = vunpack.c.h.b16 %v4568
    %v4651 = vunpack.c.l.b16 %v4569
    %v4652 = vunpack.c.h.b16 %v4569
    %v4653 = vunpack.c.l.b16 %v4570
    %v4654 = vunpack.c.h.b16 %v4570
    %v4655 = vunpack.c.l.b16 %v4571
    %v4656 = vunpack.c.h.b16 %v4571
    %v4657 = vunpack.c.l.b16 %v4572
    %v4658 = vunpack.c.h.b16 %v4572
    %v4659 = vunpack.c.l.b16 %v4573
    %v4660 = vunpack.c.h.b16 %v4573
    %v4661 = vunpack.c.l.b16 %v4574
    %v4662 = vunpack.c.h.b16 %v4574
    %v4663 = vunpack.c.l.b16 %v4575
    %v4664 = vunpack.c.h.b16 %v4575
    %v4665 = vunpack.c.l.b16 %v4576
    %v4666 = vunpack.c.h.b16 %v4576
    %v4667 = vunpack.c.l.b16 %v4577
    %v4668 = vunpack.c.h.b16 %v4577
    %v4669 = vunpack.c.l.b16 %v4578
    %v4670 = vunpack.c.h.b16 %v4578
    %v4671 = vunpack.c.l.b16 %v4579
    %v4672 = vunpack.c.h.b16 %v4579
    %v4673 = vunpack.c.l.b16 %v4580
    %v4674 = vunpack.c.h.b16 %v4580
    %v4675 = vunpack.c.l.b16 %v4581
    %v4676 = vunpack.c.h.b16 %v4581
    %v4677 = vunpack.c.l.b16 %v4582
    %v4678 = vunpack.c.h.b16 %v4582
    %v4679 = vpack.c.b16 %v4619, %v4615
    %v4680 = vpack.c.b16 %v4620, %v4616
    %v4681 = vpack.c.b16 %v4621, %v4617
    %v4682 = vpack.c.b16 %v4622, %v4618
    %v4683 = vpack.c.b16 %v4627, %v4623
    %v4684 = vpack.c.b16 %v4628, %v4624
    %v4685 = vpack.c.b16 %v4629, %v4625
    %v4686 = vpack.c.b16 %v4630, %v4626
    %v4687 = vpack.c.b16 %v4635, %v4631
    %v4688 = vpack.c.b16 %v4636, %v4632
    %v4689 = vpack.c.b16 %v4637, %v4633
    %v4690 = vpack.c.b16 %v4638, %v4634
    %v4691 = vpack.c.b16 %v4643, %v4639
    %v4692 = vpack.c.b16 %v4644, %v4640
    %v4693 = vpack.c.b16 %v4645, %v4641
    %v4694 = vpack.c.b16 %v4646, %v4642
    %v4695 = vpack.c.b16 %v4651, %v4647
    %v4696 = vpack.c.b16 %v4652, %v4648
    %v4697 = vpack.c.b16 %v4653, %v4649
    %v4698 = vpack.c.b16 %v4654, %v4650
    %v4699 = vpack.c.b16 %v4659, %v4655
    %v4700 = vpack.c.b16 %v4660, %v4656
    %v4701 = vpack.c.b16 %v4661, %v4657
    %v4702 = vpack.c.b16 %v4662, %v4658
    %v4703 = vpack.c.b16 %v4667, %v4663
    %v4704 = vpack.c.b16 %v4668, %v4664
    %v4705 = vpack.c.b16 %v4669, %v4665
    %v4706 = vpack.c.b16 %v4670, %v4666
    %v4707 = vpack.c.b16 %v4675, %v4671
    %v4708 = vpack.c.b16 %v4676, %v4672
    %v4709 = vpack.c.b16 %v4677, %v4673
    %v4710 = vpack.c.b16 %v4678, %v4674
    %4743 = vmatprep.subr.bf16.mxu0 %v4680
    %4744 = vmatpush1.bf16.msra.mxu0 %v4679
    %4745 = vmatprep.subr.bf16.mxu0 %v4684
    %4746 = vmatpush1.bf16.msra.mxu0 %v4683
    %4747 = vmatprep.subr.bf16.mxu0 %v4688
    %4748 = vmatpush1.bf16.msra.mxu0 %v4687
    %4749 = vmatprep.subr.bf16.mxu0 %v4692
    %4750 = vmatpush1.bf16.msra.mxu0 %v4691
    %4751 = vmatprep.subr.bf16.mxu0 %v4696
    %4752 = vmatpush1.bf16.msra.mxu0 %v4695
    %4753 = vmatprep.subr.bf16.mxu0 %v4700
    %4754 = vmatpush1.bf16.msra.mxu0 %v4699
    %4755 = vmatprep.subr.bf16.mxu0 %v4704
    %4756 = vmatpush1.bf16.msra.mxu0 %v4703
    %4757 = vmatprep.subr.bf16.mxu0 %v4708
    %4758 = vmatpush1.bf16.msra.mxu0 %v4707
    %4759 = vmatprep.subr.bf16.mxu0 0
    %4760 = vmatpush1.bf16.msra.mxu0 0
    %4761 = vmatprep.subr.bf16.mxu0 0
    %4762 = vmatpush1.bf16.msra.mxu0 0
    %4763 = vmatprep.subr.bf16.mxu0 0
    %4764 = vmatpush1.bf16.msra.mxu0 0
    %4765 = vmatprep.subr.bf16.mxu0 0
    %4766 = vmatpush1.bf16.msra.mxu0 0
    %4767 = vmatprep.subr.bf16.mxu0 0
    %4768 = vmatpush1.bf16.msra.mxu0 0
    %4769 = vmatprep.subr.bf16.mxu0 0
    %4770 = vmatpush1.bf16.msra.mxu0 0
    %4771 = vmatprep.subr.bf16.mxu0 0
    %4772 = vmatpush1.bf16.msra.mxu0 0
    %4773 = vmatprep.subr.bf16.mxu0 0
    %4774 = vmatpush1.bf16.msra.mxu0 0
    %4775 = vmatprep.mubr.bf16.mxu0 0
    %4776 = vmatmul.mubr.bf16.gmra.mrb[0].mxu0 %v4550
    %v4777 = vpop.f32.mrb[0].mxu0
    %v4778 = vadd.f32 %v4503, %v4777
    %v4779 = vpop.f32.mrb[0].mxu0
    %v4780 = vadd.f32 %v4505, %v4779
    %v4781 = vpop.f32.mrb[0].mxu0
    %v4782 = vpop.f32.mrb[0].mxu0
    %4783 = vdwg.mxu0
    %4784 = vmatprep.subr.bf16.mxu0 %v4682
    %4785 = vmatpush1.bf16.msra.mxu0 %v4681
    %4786 = vmatprep.subr.bf16.mxu0 %v4686
    %4787 = vmatpush1.bf16.msra.mxu0 %v4685
    %4788 = vmatprep.subr.bf16.mxu0 %v4690
    %4789 = vmatpush1.bf16.msra.mxu0 %v4689
    %4790 = vmatprep.subr.bf16.mxu0 %v4694
    %4791 = vmatpush1.bf16.msra.mxu0 %v4693
    %4792 = vmatprep.subr.bf16.mxu0 %v4698
    %4793 = vmatpush1.bf16.msra.mxu0 %v4697
    %4794 = vmatprep.subr.bf16.mxu0 %v4702
    %4795 = vmatpush1.bf16.msra.mxu0 %v4701
    %4796 = vmatprep.subr.bf16.mxu0 %v4706
    %4797 = vmatpush1.bf16.msra.mxu0 %v4705
    %4798 = vmatprep.subr.bf16.mxu0 %v4710
    %4799 = vmatpush1.bf16.msra.mxu0 %v4709
    %4800 = vmatprep.subr.bf16.mxu0 0
    %4801 = vmatpush1.bf16.msra.mxu0 0
    %4802 = vmatprep.subr.bf16.mxu0 0
    %4803 = vmatpush1.bf16.msra.mxu0 0
    %4804 = vmatprep.subr.bf16.mxu0 0
    %4805 = vmatpush1.bf16.msra.mxu0 0
    %4806 = vmatprep.subr.bf16.mxu0 0
    %4807 = vmatpush1.bf16.msra.mxu0 0
    %4808 = vmatprep.subr.bf16.mxu0 0
    %4809 = vmatpush1.bf16.msra.mxu0 0
    %4810 = vmatprep.subr.bf16.mxu0 0
    %4811 = vmatpush1.bf16.msra.mxu0 0
    %4812 = vmatprep.subr.bf16.mxu0 0
    %4813 = vmatpush1.bf16.msra.mxu0 0
    %4814 = vmatprep.subr.bf16.mxu0 0
    %4815 = vmatpush1.bf16.msra.mxu0 0
    %4816 = vmatprep.mubr.bf16.mxu0 0
    %4817 = vmatmul.mubr.bf16.gmra.mrb[0].mxu0 %v4550
    %v4818 = vpop.f32.mrb[0].mxu0
    %v4819 = vadd.f32 %v4544, %v4818
    %v4820 = vpop.f32.mrb[0].mxu0
    %v4821 = vadd.f32 %v4546, %v4820
    %v4822 = vpop.f32.mrb[0].mxu0
    %v4823 = vpop.f32.mrb[0].mxu0
    %4824 = vdwg.mxu0
    %v4825 = vld [vmem:[%s6] sm:$0xf]
    %v4827 = vlaneseq
    %v4828 = vshrl.u32 %v4827, 7
    %v4829 = vsub.s32 0, %v4828
    %v4830 = vrot.slane %v4825, %v4829
    %v4831 = vlaneseq
    %v4832 = vshrl.u32 %v4831, 7
    %v4833 = vsub.s32 1, %v4832
    %v4834 = vrot.slane %v4825, %v4833
    %v4835 = vlaneseq
    %v4836 = vshrl.u32 %v4835, 7
    %v4837 = vsub.s32 2, %v4836
    %v4838 = vrot.slane %v4825, %v4837
    %v4839 = vlaneseq
    %v4840 = vshrl.u32 %v4839, 7
    %v4841 = vsub.s32 3, %v4840
    %v4842 = vrot.slane %v4825, %v4841
    %v4847 = vadd.f32 %v4778, %v4830
    %v4848 = vadd.f32 %v4780, %v4834
    %v4849 = vadd.f32 %v4819, %v4838
    %v4850 = vadd.f32 %v4821, %v4842
    %v4851 = vxor.u32 %v4847, 2147483648
    %v4852 = vxor.u32 %v4848, 2147483648
    %v4853 = vxor.u32 %v4849, 2147483648
    %v4854 = vmul.f32 %v4851, 1.442695
    %v4855 = vpow.pop %v4854
    %v4856 = vmul.f32 %v4852, 1.442695
    %v4857 = vpow.pop %v4856
    %v4858 = vmul.f32 %v4853, 1.442695
    %v4859 = vpow.pop %v4858
    %v4860 = vadd.f32 %v4855, 1.0
    %v4861 = vadd.f32 %v4857, 1.0
    %v4862 = vadd.f32 %v4859, 1.0
    %v4863 = vrcp.pop %v4860
    %v4864 = vmul.f32 1.0, %v4863
    %v4865 = vrcp.pop %v4861
    %v4866 = vmul.f32 1.0, %v4865
    %v4867 = vrcp.pop %v4862
    %v4868 = vmul.f32 1.0, %v4867
    %v4869 = vtanh.pop %v4850
    %v4870 = vmul.f32 %v4866, %v3963
    %v4871 = vmul.f32 %v4864, %v4869
    %v4872 = vadd.f32 %v4870, %v4871
    %v4873 = vtanh.pop %v4872
    %v4874 = vmul.f32 %v4868, %v4873
    %s4875 = scalar_lea.vmem %s7, 32
    %4876 = vst [vmem:[%s4875] sm:$0xff] %v4874
    %v4877 = vld [vmem:[#allocation3] sm:$0xff]
    %v4878 = vld [vmem:[#allocation3 + $0x8] sm:$0xff]
    %v4879 = vld [vmem:[#allocation3 + $0x10] sm:$0xff]
    %v4880 = vld [vmem:[#allocation3 + $0x18] sm:$0xff]
    %v4881 = vld [vmem:[#allocation3 + $0x20] sm:$0xff]
    %v4882 = vld [vmem:[#allocation3 + $0x28] sm:$0xff]
    %v4883 = vld [vmem:[#allocation3 + $0x30] sm:$0xff]
    %v4884 = vld [vmem:[#allocation3 + $0x38] sm:$0xff]
    %v4885 = vld [vmem:[#allocation3 + $0x40] sm:$0xff]
    %v4886 = vld [vmem:[#allocation3 + $0x48] sm:$0xff]
    %v4887 = vld [vmem:[#allocation3 + $0x50] sm:$0xff]
    %v4888 = vld [vmem:[#allocation3 + $0x58] sm:$0xff]
    %v4889 = vld [vmem:[#allocation3 + $0x60] sm:$0xff]
    %v4890 = vld [vmem:[#allocation3 + $0x68] sm:$0xff]
    %v4891 = vld [vmem:[#allocation3 + $0x70] sm:$0xff]
    %v4892 = vld [vmem:[#allocation3 + $0x78] sm:$0xff]
    %v4893 = vld [vmem:[#allocation3 + $0x80] sm:$0xff]
    %v4894 = vld [vmem:[#allocation3 + $0x88] sm:$0xff]
    %v4895 = vld [vmem:[#allocation3 + $0x90] sm:$0xff]
    %v4896 = vld [vmem:[#allocation3 + $0x98] sm:$0xff]
    %v4897 = vld [vmem:[#allocation3 + $0xa0] sm:$0xff]
    %v4898 = vld [vmem:[#allocation3 + $0xa8] sm:$0xff]
    %v4899 = vld [vmem:[#allocation3 + $0xb0] sm:$0xff]
    %v4900 = vld [vmem:[#allocation3 + $0xb8] sm:$0xff]
    %v4901 = vld [vmem:[#allocation3 + $0xc0] sm:$0xff]
    %v4902 = vld [vmem:[#allocation3 + $0xc8] sm:$0xff]
    %v4903 = vld [vmem:[#allocation3 + $0xd0] sm:$0xff]
    %v4904 = vld [vmem:[#allocation3 + $0xd8] sm:$0xff]
    %v4905 = vld [vmem:[#allocation3 + $0xe0] sm:$0xff]
    %v4906 = vld [vmem:[#allocation3 + $0xe8] sm:$0xff]
    %v4907 = vld [vmem:[#allocation3 + $0xf0] sm:$0xff]
    %v4908 = vld [vmem:[#allocation3 + $0xf8] sm:$0xff]
    %v4941 = vunpack.c.l.b16 %v4877
    %v4942 = vunpack.c.h.b16 %v4877
    %v4943 = vunpack.c.l.b16 %v4878
    %v4944 = vunpack.c.h.b16 %v4878
    %v4945 = vunpack.c.l.b16 %v4879
    %v4946 = vunpack.c.h.b16 %v4879
    %v4947 = vunpack.c.l.b16 %v4880
    %v4948 = vunpack.c.h.b16 %v4880
    %v4949 = vunpack.c.l.b16 %v4881
    %v4950 = vunpack.c.h.b16 %v4881
    %v4951 = vunpack.c.l.b16 %v4882
    %v4952 = vunpack.c.h.b16 %v4882
    %v4953 = vunpack.c.l.b16 %v4883
    %v4954 = vunpack.c.h.b16 %v4883
    %v4955 = vunpack.c.l.b16 %v4884
    %v4956 = vunpack.c.h.b16 %v4884
    %v4957 = vunpack.c.l.b16 %v4885
    %v4958 = vunpack.c.h.b16 %v4885
    %v4959 = vunpack.c.l.b16 %v4886
    %v4960 = vunpack.c.h.b16 %v4886
    %v4961 = vunpack.c.l.b16 %v4887
    %v4962 = vunpack.c.h.b16 %v4887
    %v4963 = vunpack.c.l.b16 %v4888
    %v4964 = vunpack.c.h.b16 %v4888
    %v4965 = vunpack.c.l.b16 %v4889
    %v4966 = vunpack.c.h.b16 %v4889
    %v4967 = vunpack.c.l.b16 %v4890
    %v4968 = vunpack.c.h.b16 %v4890
    %v4969 = vunpack.c.l.b16 %v4891
    %v4970 = vunpack.c.h.b16 %v4891
    %v4971 = vunpack.c.l.b16 %v4892
    %v4972 = vunpack.c.h.b16 %v4892
    %v4973 = vunpack.c.l.b16 %v4893
    %v4974 = vunpack.c.h.b16 %v4893
    %v4975 = vunpack.c.l.b16 %v4894
    %v4976 = vunpack.c.h.b16 %v4894
    %v4977 = vunpack.c.l.b16 %v4895
    %v4978 = vunpack.c.h.b16 %v4895
    %v4979 = vunpack.c.l.b16 %v4896
    %v4980 = vunpack.c.h.b16 %v4896
    %v4981 = vunpack.c.l.b16 %v4897
    %v4982 = vunpack.c.h.b16 %v4897
    %v4983 = vunpack.c.l.b16 %v4898
    %v4984 = vunpack.c.h.b16 %v4898
    %v4985 = vunpack.c.l.b16 %v4899
    %v4986 = vunpack.c.h.b16 %v4899
    %v4987 = vunpack.c.l.b16 %v4900
    %v4988 = vunpack.c.h.b16 %v4900
    %v4989 = vunpack.c.l.b16 %v4901
    %v4990 = vunpack.c.h.b16 %v4901
    %v4991 = vunpack.c.l.b16 %v4902
    %v4992 = vunpack.c.h.b16 %v4902
    %v4993 = vunpack.c.l.b16 %v4903
    %v4994 = vunpack.c.h.b16 %v4903
    %v4995 = vunpack.c.l.b16 %v4904
    %v4996 = vunpack.c.h.b16 %v4904
    %v4997 = vunpack.c.l.b16 %v4905
    %v4998 = vunpack.c.h.b16 %v4905
    %v4999 = vunpack.c.l.b16 %v4906
    %v5000 = vunpack.c.h.b16 %v4906
    %v5001 = vunpack.c.l.b16 %v4907
    %v5002 = vunpack.c.h.b16 %v4907
    %v5003 = vunpack.c.l.b16 %v4908
    %v5004 = vunpack.c.h.b16 %v4908
    %v5005 = vpack.c.b16 %v4945, %v4941
    %v5006 = vpack.c.b16 %v4946, %v4942
    %v5007 = vpack.c.b16 %v4947, %v4943
    %v5008 = vpack.c.b16 %v4948, %v4944
    %v5009 = vpack.c.b16 %v4953, %v4949
    %v5010 = vpack.c.b16 %v4954, %v4950
    %v5011 = vpack.c.b16 %v4955, %v4951
    %v5012 = vpack.c.b16 %v4956, %v4952
    %v5013 = vpack.c.b16 %v4961, %v4957
    %v5014 = vpack.c.b16 %v4962, %v4958
    %v5015 = vpack.c.b16 %v4963, %v4959
    %v5016 = vpack.c.b16 %v4964, %v4960
    %v5017 = vpack.c.b16 %v4969, %v4965
    %v5018 = vpack.c.b16 %v4970, %v4966
    %v5019 = vpack.c.b16 %v4971, %v4967
    %v5020 = vpack.c.b16 %v4972, %v4968
    %v5021 = vpack.c.b16 %v4977, %v4973
    %v5022 = vpack.c.b16 %v4978, %v4974
    %v5023 = vpack.c.b16 %v4979, %v4975
    %v5024 = vpack.c.b16 %v4980, %v4976
    %v5025 = vpack.c.b16 %v4985, %v4981
    %v5026 = vpack.c.b16 %v4986, %v4982
    %v5027 = vpack.c.b16 %v4987, %v4983
    %v5028 = vpack.c.b16 %v4988, %v4984
    %v5029 = vpack.c.b16 %v4993, %v4989
    %v5030 = vpack.c.b16 %v4994, %v4990
    %v5031 = vpack.c.b16 %v4995, %v4991
    %v5032 = vpack.c.b16 %v4996, %v4992
    %v5033 = vpack.c.b16 %v5001, %v4997
    %v5034 = vpack.c.b16 %v5002, %v4998
    %v5035 = vpack.c.b16 %v5003, %v4999
    %v5036 = vpack.c.b16 %v5004, %v5000
    %5069 = vmatprep.subr.bf16.mxu0 %v5006
    %5070 = vmatpush1.bf16.msra.mxu0 %v5005
    %5071 = vmatprep.subr.bf16.mxu0 %v5010
    %5072 = vmatpush1.bf16.msra.mxu0 %v5009
    %5073 = vmatprep.subr.bf16.mxu0 %v5014
    %5074 = vmatpush1.bf16.msra.mxu0 %v5013
    %5075 = vmatprep.subr.bf16.mxu0 %v5018
    %5076 = vmatpush1.bf16.msra.mxu0 %v5017
    %5077 = vmatprep.subr.bf16.mxu0 %v5022
    %5078 = vmatpush1.bf16.msra.mxu0 %v5021
    %5079 = vmatprep.subr.bf16.mxu0 %v5026
    %5080 = vmatpush1.bf16.msra.mxu0 %v5025
    %5081 = vmatprep.subr.bf16.mxu0 %v5030
    %5082 = vmatpush1.bf16.msra.mxu0 %v5029
    %5083 = vmatprep.subr.bf16.mxu0 %v5034
    %5084 = vmatpush1.bf16.msra.mxu0 %v5033
    %5085 = vmatprep.subr.bf16.mxu0 0
    %5086 = vmatpush1.bf16.msra.mxu0 0
    %5087 = vmatprep.subr.bf16.mxu0 0
    %5088 = vmatpush1.bf16.msra.mxu0 0
    %5089 = vmatprep.subr.bf16.mxu0 0
    %5090 = vmatpush1.bf16.msra.mxu0 0
    %5091 = vmatprep.subr.bf16.mxu0 0
    %5092 = vmatpush1.bf16.msra.mxu0 0
    %5093 = vmatprep.subr.bf16.mxu0 0
    %5094 = vmatpush1.bf16.msra.mxu0 0
    %5095 = vmatprep.subr.bf16.mxu0 0
    %5096 = vmatpush1.bf16.msra.mxu0 0
    %5097 = vmatprep.subr.bf16.mxu0 0
    %5098 = vmatpush1.bf16.msra.mxu0 0
    %5099 = vmatprep.subr.bf16.mxu0 0
    %5100 = vmatpush1.bf16.msra.mxu0 0
    %5101 = vmatprep.mubr.bf16.mxu0 0
    %5102 = vmatmul.mubr.bf16.gmra.mrb[0].mxu0 %v4550
    %v5103 = vpop.f32.mrb[0].mxu0
    %v5104 = vadd.f32 0.0, %v5103
    %v5105 = vpop.f32.mrb[0].mxu0
    %v5106 = vadd.f32 0.0, %v5105
    %v5107 = vpop.f32.mrb[0].mxu0
    %v5108 = vpop.f32.mrb[0].mxu0
    %5109 = vdwg.mxu0
    %5110 = vmatprep.subr.bf16.mxu0 %v5008
    %5111 = vmatpush1.bf16.msra.mxu0 %v5007
    %5112 = vmatprep.subr.bf16.mxu0 %v5012
    %5113 = vmatpush1.bf16.msra.mxu0 %v5011
    %5114 = vmatprep.subr.bf16.mxu0 %v5016
    %5115 = vmatpush1.bf16.msra.mxu0 %v5015
    %5116 = vmatprep.subr.bf16.mxu0 %v5020
    %5117 = vmatpush1.bf16.msra.mxu0 %v5019
    %5118 = vmatprep.subr.bf16.mxu0 %v5024
    %5119 = vmatpush1.bf16.msra.mxu0 %v5023
    %5120 = vmatprep.subr.bf16.mxu0 %v5028
    %5121 = vmatpush1.bf16.msra.mxu0 %v5027
    %5122 = vmatprep.subr.bf16.mxu0 %v5032
    %5123 = vmatpush1.bf16.msra.mxu0 %v5031
    %5124 = vmatprep.subr.bf16.mxu0 %v5036
    %5125 = vmatpush1.bf16.msra.mxu0 %v5035
    %5126 = vmatprep.subr.bf16.mxu0 0
    %5127 = vmatpush1.bf16.msra.mxu0 0
    %5128 = vmatprep.subr.bf16.mxu0 0
    %5129 = vmatpush1.bf16.msra.mxu0 0
    %5130 = vmatprep.subr.bf16.mxu0 0
    %5131 = vmatpush1.bf16.msra.mxu0 0
    %5132 = vmatprep.subr.bf16.mxu0 0
    %5133 = vmatpush1.bf16.msra.mxu0 0
    %5134 = vmatprep.subr.bf16.mxu0 0
    %5135 = vmatpush1.bf16.msra.mxu0 0
    %5136 = vmatprep.subr.bf16.mxu0 0
    %5137 = vmatpush1.bf16.msra.mxu0 0
    %5138 = vmatprep.subr.bf16.mxu0 0
    %5139 = vmatpush1.bf16.msra.mxu0 0
    %5140 = vmatprep.subr.bf16.mxu0 0
    %5141 = vmatpush1.bf16.msra.mxu0 0
    %5142 = vmatprep.mubr.bf16.mxu0 0
    %5143 = vmatmul.mubr.bf16.gmra.mrb[0].mxu0 %v4550
    %v5144 = vpop.f32.mrb[0].mxu0
    %v5145 = vadd.f32 0.0, %v5144
    %v5146 = vpop.f32.mrb[0].mxu0
    %v5147 = vadd.f32 0.0, %v5146
    %v5148 = vpop.f32.mrb[0].mxu0
    %v5149 = vpop.f32.mrb[0].mxu0
    %5150 = vdwg.mxu0
    %s5151 = scalar_lea.vmem [#allocation2], 160
    %v5152 = vld [vmem:[%s5151] sm:$0xff]
    %v5153 = vld [vmem:[%s5151 + $0x8] sm:$0xff]
    %v5154 = vld [vmem:[%s5151 + $0x10] sm:$0xff]
    %v5155 = vld [vmem:[%s5151 + $0x18] sm:$0xff]
    %v5156 = vadd.f32 %v5152, %v5104
    %v5157 = vadd.f32 %v5153, %v5106
    %v5158 = vadd.f32 %v5154, %v5145
    %v5159 = vadd.f32 %v5155, %v5147
    %v5160 = vxor.u32 %v5156, 2147483648
    %v5161 = vxor.u32 %v5157, 2147483648
    %v5162 = vxor.u32 %v5158, 2147483648
    %v5163 = vmul.f32 %v5160, 1.442695
    %v5164 = vpow.pop %v5163
    %v5165 = vmul.f32 %v5161, 1.442695
    %v5166 = vpow.pop %v5165
    %v5167 = vmul.f32 %v5162, 1.442695
    %v5168 = vpow.pop %v5167
    %v5169 = vadd.f32 %v5164, 1.0
    %v5170 = vadd.f32 %v5166, 1.0
    %v5171 = vadd.f32 %v5168, 1.0
    %v5172 = vrcp.pop %v5169
    %v5173 = vmul.f32 1.0, %v5172
    %v5174 = vrcp.pop %v5170
    %v5175 = vmul.f32 1.0, %v5174
    %v5176 = vrcp.pop %v5171
    %v5177 = vmul.f32 1.0, %v5176
    %v5178 = vtanh.pop %v5159
    %v5179 = vmul.f32 %v5175, %v4272
    %v5180 = vmul.f32 %v5173, %v5178
    %v5181 = vadd.f32 %v5179, %v5180
    %v5182 = vtanh.pop %v5181
    %v5183 = vmul.f32 %v5177, %v5182
    %v5184 = vpack.c.bf16 %v4874, %v4874
    %v5185 = vld [vmem:[#allocation7] sm:$0xff]
    %v5186 = vld [vmem:[#allocation7 + $0x8] sm:$0xff]
    %v5187 = vld [vmem:[#allocation7 + $0x10] sm:$0xff]
    %v5188 = vld [vmem:[#allocation7 + $0x18] sm:$0xff]
    %v5189 = vld [vmem:[#allocation7 + $0x20] sm:$0xff]
    %v5190 = vld [vmem:[#allocation7 + $0x28] sm:$0xff]
    %v5191 = vld [vmem:[#allocation7 + $0x30] sm:$0xff]
    %v5192 = vld [vmem:[#allocation7 + $0x38] sm:$0xff]
    %v5193 = vld [vmem:[#allocation7 + $0x40] sm:$0xff]
    %v5194 = vld [vmem:[#allocation7 + $0x48] sm:$0xff]
    %v5195 = vld [vmem:[#allocation7 + $0x50] sm:$0xff]
    %v5196 = vld [vmem:[#allocation7 + $0x58] sm:$0xff]
    %v5197 = vld [vmem:[#allocation7 + $0x60] sm:$0xff]
    %v5198 = vld [vmem:[#allocation7 + $0x68] sm:$0xff]
    %v5199 = vld [vmem:[#allocation7 + $0x70] sm:$0xff]
    %v5200 = vld [vmem:[#allocation7 + $0x78] sm:$0xff]
    %v5201 = vld [vmem:[#allocation7 + $0x80] sm:$0xff]
    %v5202 = vld [vmem:[#allocation7 + $0x88] sm:$0xff]
    %v5203 = vld [vmem:[#allocation7 + $0x90] sm:$0xff]
    %v5204 = vld [vmem:[#allocation7 + $0x98] sm:$0xff]
    %v5205 = vld [vmem:[#allocation7 + $0xa0] sm:$0xff]
    %v5206 = vld [vmem:[#allocation7 + $0xa8] sm:$0xff]
    %v5207 = vld [vmem:[#allocation7 + $0xb0] sm:$0xff]
    %v5208 = vld [vmem:[#allocation7 + $0xb8] sm:$0xff]
    %v5209 = vld [vmem:[#allocation7 + $0xc0] sm:$0xff]
    %v5210 = vld [vmem:[#allocation7 + $0xc8] sm:$0xff]
    %v5211 = vld [vmem:[#allocation7 + $0xd0] sm:$0xff]
    %v5212 = vld [vmem:[#allocation7 + $0xd8] sm:$0xff]
    %v5213 = vld [vmem:[#allocation7 + $0xe0] sm:$0xff]
    %v5214 = vld [vmem:[#allocation7 + $0xe8] sm:$0xff]
    %v5215 = vld [vmem:[#allocation7 + $0xf0] sm:$0xff]
    %v5216 = vld [vmem:[#allocation7 + $0xf8] sm:$0xff]
    %v5249 = vunpack.c.l.b16 %v5185
    %v5250 = vunpack.c.h.b16 %v5185
    %v5251 = vunpack.c.l.b16 %v5186
    %v5252 = vunpack.c.h.b16 %v5186
    %v5253 = vunpack.c.l.b16 %v5187
    %v5254 = vunpack.c.h.b16 %v5187
    %v5255 = vunpack.c.l.b16 %v5188
    %v5256 = vunpack.c.h.b16 %v5188
    %v5257 = vunpack.c.l.b16 %v5189
    %v5258 = vunpack.c.h.b16 %v5189
    %v5259 = vunpack.c.l.b16 %v5190
    %v5260 = vunpack.c.h.b16 %v5190
    %v5261 = vunpack.c.l.b16 %v5191
    %v5262 = vunpack.c.h.b16 %v5191
    %v5263 = vunpack.c.l.b16 %v5192
    %v5264 = vunpack.c.h.b16 %v5192
    %v5265 = vunpack.c.l.b16 %v5193
    %v5266 = vunpack.c.h.b16 %v5193
    %v5267 = vunpack.c.l.b16 %v5194
    %v5268 = vunpack.c.h.b16 %v5194
    %v5269 = vunpack.c.l.b16 %v5195
    %v5270 = vunpack.c.h.b16 %v5195
    %v5271 = vunpack.c.l.b16 %v5196
    %v5272 = vunpack.c.h.b16 %v5196
    %v5273 = vunpack.c.l.b16 %v5197
    %v5274 = vunpack.c.h.b16 %v5197
    %v5275 = vunpack.c.l.b16 %v5198
    %v5276 = vunpack.c.h.b16 %v5198
    %v5277 = vunpack.c.l.b16 %v5199
    %v5278 = vunpack.c.h.b16 %v5199
    %v5279 = vunpack.c.l.b16 %v5200
    %v5280 = vunpack.c.h.b16 %v5200
    %v5281 = vunpack.c.l.b16 %v5201
    %v5282 = vunpack.c.h.b16 %v5201
    %v5283 = vunpack.c.l.b16 %v5202
    %v5284 = vunpack.c.h.b16 %v5202
    %v5285 = vunpack.c.l.b16 %v5203
    %v5286 = vunpack.c.h.b16 %v5203
    %v5287 = vunpack.c.l.b16 %v5204
    %v5288 = vunpack.c.h.b16 %v5204
    %v5289 = vunpack.c.l.b16 %v5205
    %v5290 = vunpack.c.h.b16 %v5205
    %v5291 = vunpack.c.l.b16 %v5206
    %v5292 = vunpack.c.h.b16 %v5206
    %v5293 = vunpack.c.l.b16 %v5207
    %v5294 = vunpack.c.h.b16 %v5207
    %v5295 = vunpack.c.l.b16 %v5208
    %v5296 = vunpack.c.h.b16 %v5208
    %v5297 = vunpack.c.l.b16 %v5209
    %v5298 = vunpack.c.h.b16 %v5209
    %v5299 = vunpack.c.l.b16 %v5210
    %v5300 = vunpack.c.h.b16 %v5210
    %v5301 = vunpack.c.l.b16 %v5211
    %v5302 = vunpack.c.h.b16 %v5211
    %v5303 = vunpack.c.l.b16 %v5212
    %v5304 = vunpack.c.h.b16 %v5212
    %v5305 = vunpack.c.l.b16 %v5213
    %v5306 = vunpack.c.h.b16 %v5213
    %v5307 = vunpack.c.l.b16 %v5214
    %v5308 = vunpack.c.h.b16 %v5214
    %v5309 = vunpack.c.l.b16 %v5215
    %v5310 = vunpack.c.h.b16 %v5215
    %v5311 = vunpack.c.l.b16 %v5216
    %v5312 = vunpack.c.h.b16 %v5216
    %v5313 = vpack.c.b16 %v5253, %v5249
    %v5314 = vpack.c.b16 %v5254, %v5250
    %v5315 = vpack.c.b16 %v5255, %v5251
    %v5316 = vpack.c.b16 %v5256, %v5252
    %v5317 = vpack.c.b16 %v5261, %v5257
    %v5318 = vpack.c.b16 %v5262, %v5258
    %v5319 = vpack.c.b16 %v5263, %v5259
    %v5320 = vpack.c.b16 %v5264, %v5260
    %v5321 = vpack.c.b16 %v5269, %v5265
    %v5322 = vpack.c.b16 %v5270, %v5266
    %v5323 = vpack.c.b16 %v5271, %v5267
    %v5324 = vpack.c.b16 %v5272, %v5268
    %v5325 = vpack.c.b16 %v5277, %v5273
    %v5326 = vpack.c.b16 %v5278, %v5274
    %v5327 = vpack.c.b16 %v5279, %v5275
    %v5328 = vpack.c.b16 %v5280, %v5276
    %v5329 = vpack.c.b16 %v5285, %v5281
    %v5330 = vpack.c.b16 %v5286, %v5282
    %v5331 = vpack.c.b16 %v5287, %v5283
    %v5332 = vpack.c.b16 %v5288, %v5284
    %v5333 = vpack.c.b16 %v5293, %v5289
    %v5334 = vpack.c.b16 %v5294, %v5290
    %v5335 = vpack.c.b16 %v5295, %v5291
    %v5336 = vpack.c.b16 %v5296, %v5292
    %v5337 = vpack.c.b16 %v5301, %v5297
    %v5338 = vpack.c.b16 %v5302, %v5298
    %v5339 = vpack.c.b16 %v5303, %v5299
    %v5340 = vpack.c.b16 %v5304, %v5300
    %v5341 = vpack.c.b16 %v5309, %v5305
    %v5342 = vpack.c.b16 %v5310, %v5306
    %v5343 = vpack.c.b16 %v5311, %v5307
    %v5344 = vpack.c.b16 %v5312, %v5308
    %5377 = vmatprep.subr.bf16.mxu0 %v5314
    %5378 = vmatpush1.bf16.msra.mxu0 %v5313
    %5379 = vmatprep.subr.bf16.mxu0 %v5318
    %5380 = vmatpush1.bf16.msra.mxu0 %v5317
    %5381 = vmatprep.subr.bf16.mxu0 %v5322
    %5382 = vmatpush1.bf16.msra.mxu0 %v5321
    %5383 = vmatprep.subr.bf16.mxu0 %v5326
    %5384 = vmatpush1.bf16.msra.mxu0 %v5325
    %5385 = vmatprep.subr.bf16.mxu0 %v5330
    %5386 = vmatpush1.bf16.msra.mxu0 %v5329
    %5387 = vmatprep.subr.bf16.mxu0 %v5334
    %5388 = vmatpush1.bf16.msra.mxu0 %v5333
    %5389 = vmatprep.subr.bf16.mxu0 %v5338
    %5390 = vmatpush1.bf16.msra.mxu0 %v5337
    %5391 = vmatprep.subr.bf16.mxu0 %v5342
    %5392 = vmatpush1.bf16.msra.mxu0 %v5341
    %5393 = vmatprep.subr.bf16.mxu0 0
    %5394 = vmatpush1.bf16.msra.mxu0 0
    %5395 = vmatprep.subr.bf16.mxu0 0
    %5396 = vmatpush1.bf16.msra.mxu0 0
    %5397 = vmatprep.subr.bf16.mxu0 0
    %5398 = vmatpush1.bf16.msra.mxu0 0
    %5399 = vmatprep.subr.bf16.mxu0 0
    %5400 = vmatpush1.bf16.msra.mxu0 0
    %5401 = vmatprep.subr.bf16.mxu0 0
    %5402 = vmatpush1.bf16.msra.mxu0 0
    %5403 = vmatprep.subr.bf16.mxu0 0
    %5404 = vmatpush1.bf16.msra.mxu0 0
    %5405 = vmatprep.subr.bf16.mxu0 0
    %5406 = vmatpush1.bf16.msra.mxu0 0
    %5407 = vmatprep.subr.bf16.mxu0 0
    %5408 = vmatpush1.bf16.msra.mxu0 0
    %5409 = vmatprep.mubr.bf16.mxu0 0
    %5410 = vmatmul.mubr.bf16.gmra.mrb[0].mxu0 %v5184
    %v5411 = vpop.f32.mrb[0].mxu0
    %v5412 = vadd.f32 0.0, %v5411
    %v5413 = vpop.f32.mrb[0].mxu0
    %v5414 = vadd.f32 0.0, %v5413
    %v5415 = vpop.f32.mrb[0].mxu0
    %v5416 = vpop.f32.mrb[0].mxu0
    %5417 = vdwg.mxu0
    %5418 = vmatprep.subr.bf16.mxu0 %v5316
    %5419 = vmatpush1.bf16.msra.mxu0 %v5315
    %5420 = vmatprep.subr.bf16.mxu0 %v5320
    %5421 = vmatpush1.bf16.msra.mxu0 %v5319
    %5422 = vmatprep.subr.bf16.mxu0 %v5324
    %5423 = vmatpush1.bf16.msra.mxu0 %v5323
    %5424 = vmatprep.subr.bf16.mxu0 %v5328
    %5425 = vmatpush1.bf16.msra.mxu0 %v5327
    %5426 = vmatprep.subr.bf16.mxu0 %v5332
    %5427 = vmatpush1.bf16.msra.mxu0 %v5331
    %5428 = vmatprep.subr.bf16.mxu0 %v5336
    %5429 = vmatpush1.bf16.msra.mxu0 %v5335
    %5430 = vmatprep.subr.bf16.mxu0 %v5340
    %5431 = vmatpush1.bf16.msra.mxu0 %v5339
    %5432 = vmatprep.subr.bf16.mxu0 %v5344
    %5433 = vmatpush1.bf16.msra.mxu0 %v5343
    %5434 = vmatprep.subr.bf16.mxu0 0
    %5435 = vmatpush1.bf16.msra.mxu0 0
    %5436 = vmatprep.subr.bf16.mxu0 0
    %5437 = vmatpush1.bf16.msra.mxu0 0
    %5438 = vmatprep.subr.bf16.mxu0 0
    %5439 = vmatpush1.bf16.msra.mxu0 0
    %5440 = vmatprep.subr.bf16.mxu0 0
    %5441 = vmatpush1.bf16.msra.mxu0 0
    %5442 = vmatprep.subr.bf16.mxu0 0
    %5443 = vmatpush1.bf16.msra.mxu0 0
    %5444 = vmatprep.subr.bf16.mxu0 0
    %5445 = vmatpush1.bf16.msra.mxu0 0
    %5446 = vmatprep.subr.bf16.mxu0 0
    %5447 = vmatpush1.bf16.msra.mxu0 0
    %5448 = vmatprep.subr.bf16.mxu0 0
    %5449 = vmatpush1.bf16.msra.mxu0 0
    %5450 = vmatprep.mubr.bf16.mxu0 0
    %5451 = vmatmul.mubr.bf16.gmra.mrb[0].mxu0 %v5184
    %v5452 = vpop.f32.mrb[0].mxu0
    %v5453 = vadd.f32 0.0, %v5452
    %v5454 = vpop.f32.mrb[0].mxu0
    %v5455 = vadd.f32 0.0, %v5454
    %v5456 = vpop.f32.mrb[0].mxu0
    %v5457 = vpop.f32.mrb[0].mxu0
    %5458 = vdwg.mxu0
    %v5459 = vpack.c.bf16 %v5183, %v5183
    %v5460 = vld [vmem:[#allocation5] sm:$0xff]
    %v5461 = vld [vmem:[#allocation5 + $0x8] sm:$0xff]
    %v5462 = vld [vmem:[#allocation5 + $0x10] sm:$0xff]
    %v5463 = vld [vmem:[#allocation5 + $0x18] sm:$0xff]
    %v5464 = vld [vmem:[#allocation5 + $0x20] sm:$0xff]
    %v5465 = vld [vmem:[#allocation5 + $0x28] sm:$0xff]
    %v5466 = vld [vmem:[#allocation5 + $0x30] sm:$0xff]
    %v5467 = vld [vmem:[#allocation5 + $0x38] sm:$0xff]
    %v5468 = vld [vmem:[#allocation5 + $0x40] sm:$0xff]
    %v5469 = vld [vmem:[#allocation5 + $0x48] sm:$0xff]
    %v5470 = vld [vmem:[#allocation5 + $0x50] sm:$0xff]
    %v5471 = vld [vmem:[#allocation5 + $0x58] sm:$0xff]
    %v5472 = vld [vmem:[#allocation5 + $0x60] sm:$0xff]
    %v5473 = vld [vmem:[#allocation5 + $0x68] sm:$0xff]
    %v5474 = vld [vmem:[#allocation5 + $0x70] sm:$0xff]
    %v5475 = vld [vmem:[#allocation5 + $0x78] sm:$0xff]
    %v5476 = vld [vmem:[#allocation5 + $0x80] sm:$0xff]
    %v5477 = vld [vmem:[#allocation5 + $0x88] sm:$0xff]
    %v5478 = vld [vmem:[#allocation5 + $0x90] sm:$0xff]
    %v5479 = vld [vmem:[#allocation5 + $0x98] sm:$0xff]
    %v5480 = vld [vmem:[#allocation5 + $0xa0] sm:$0xff]
    %v5481 = vld [vmem:[#allocation5 + $0xa8] sm:$0xff]
    %v5482 = vld [vmem:[#allocation5 + $0xb0] sm:$0xff]
    %v5483 = vld [vmem:[#allocation5 + $0xb8] sm:$0xff]
    %v5484 = vld [vmem:[#allocation5 + $0xc0] sm:$0xff]
    %v5485 = vld [vmem:[#allocation5 + $0xc8] sm:$0xff]
    %v5486 = vld [vmem:[#allocation5 + $0xd0] sm:$0xff]
    %v5487 = vld [vmem:[#allocation5 + $0xd8] sm:$0xff]
    %v5488 = vld [vmem:[#allocation5 + $0xe0] sm:$0xff]
    %v5489 = vld [vmem:[#allocation5 + $0xe8] sm:$0xff]
    %v5490 = vld [vmem:[#allocation5 + $0xf0] sm:$0xff]
    %v5491 = vld [vmem:[#allocation5 + $0xf8] sm:$0xff]
    %v5524 = vunpack.c.l.b16 %v5460
    %v5525 = vunpack.c.h.b16 %v5460
    %v5526 = vunpack.c.l.b16 %v5461
    %v5527 = vunpack.c.h.b16 %v5461
    %v5528 = vunpack.c.l.b16 %v5462
    %v5529 = vunpack.c.h.b16 %v5462
    %v5530 = vunpack.c.l.b16 %v5463
    %v5531 = vunpack.c.h.b16 %v5463
    %v5532 = vunpack.c.l.b16 %v5464
    %v5533 = vunpack.c.h.b16 %v5464
    %v5534 = vunpack.c.l.b16 %v5465
    %v5535 = vunpack.c.h.b16 %v5465
    %v5536 = vunpack.c.l.b16 %v5466
    %v5537 = vunpack.c.h.b16 %v5466
    %v5538 = vunpack.c.l.b16 %v5467
    %v5539 = vunpack.c.h.b16 %v5467
    %v5540 = vunpack.c.l.b16 %v5468
    %v5541 = vunpack.c.h.b16 %v5468
    %v5542 = vunpack.c.l.b16 %v5469
    %v5543 = vunpack.c.h.b16 %v5469
    %v5544 = vunpack.c.l.b16 %v5470
    %v5545 = vunpack.c.h.b16 %v5470
    %v5546 = vunpack.c.l.b16 %v5471
    %v5547 = vunpack.c.h.b16 %v5471
    %v5548 = vunpack.c.l.b16 %v5472
    %v5549 = vunpack.c.h.b16 %v5472
    %v5550 = vunpack.c.l.b16 %v5473
    %v5551 = vunpack.c.h.b16 %v5473
    %v5552 = vunpack.c.l.b16 %v5474
    %v5553 = vunpack.c.h.b16 %v5474
    %v5554 = vunpack.c.l.b16 %v5475
    %v5555 = vunpack.c.h.b16 %v5475
    %v5556 = vunpack.c.l.b16 %v5476
    %v5557 = vunpack.c.h.b16 %v5476
    %v5558 = vunpack.c.l.b16 %v5477
    %v5559 = vunpack.c.h.b16 %v5477
    %v5560 = vunpack.c.l.b16 %v5478
    %v5561 = vunpack.c.h.b16 %v5478
    %v5562 = vunpack.c.l.b16 %v5479
    %v5563 = vunpack.c.h.b16 %v5479
    %v5564 = vunpack.c.l.b16 %v5480
    %v5565 = vunpack.c.h.b16 %v5480
    %v5566 = vunpack.c.l.b16 %v5481
    %v5567 = vunpack.c.h.b16 %v5481
    %v5568 = vunpack.c.l.b16 %v5482
    %v5569 = vunpack.c.h.b16 %v5482
    %v5570 = vunpack.c.l.b16 %v5483
    %v5571 = vunpack.c.h.b16 %v5483
    %v5572 = vunpack.c.l.b16 %v5484
    %v5573 = vunpack.c.h.b16 %v5484
    %v5574 = vunpack.c.l.b16 %v5485
    %v5575 = vunpack.c.h.b16 %v5485
    %v5576 = vunpack.c.l.b16 %v5486
    %v5577 = vunpack.c.h.b16 %v5486
    %v5578 = vunpack.c.l.b16 %v5487
    %v5579 = vunpack.c.h.b16 %v5487
    %v5580 = vunpack.c.l.b16 %v5488
    %v5581 = vunpack.c.h.b16 %v5488
    %v5582 = vunpack.c.l.b16 %v5489
    %v5583 = vunpack.c.h.b16 %v5489
    %v5584 = vunpack.c.l.b16 %v5490
    %v5585 = vunpack.c.h.b16 %v5490
    %v5586 = vunpack.c.l.b16 %v5491
    %v5587 = vunpack.c.h.b16 %v5491
    %v5588 = vpack.c.b16 %v5528, %v5524
    %v5589 = vpack.c.b16 %v5529, %v5525
    %v5590 = vpack.c.b16 %v5530, %v5526
    %v5591 = vpack.c.b16 %v5531, %v5527
    %v5592 = vpack.c.b16 %v5536, %v5532
    %v5593 = vpack.c.b16 %v5537, %v5533
    %v5594 = vpack.c.b16 %v5538, %v5534
    %v5595 = vpack.c.b16 %v5539, %v5535
    %v5596 = vpack.c.b16 %v5544, %v5540
    %v5597 = vpack.c.b16 %v5545, %v5541
    %v5598 = vpack.c.b16 %v5546, %v5542
    %v5599 = vpack.c.b16 %v5547, %v5543
    %v5600 = vpack.c.b16 %v5552, %v5548
    %v5601 = vpack.c.b16 %v5553, %v5549
    %v5602 = vpack.c.b16 %v5554, %v5550
    %v5603 = vpack.c.b16 %v5555, %v5551
    %v5604 = vpack.c.b16 %v5560, %v5556
    %v5605 = vpack.c.b16 %v5561, %v5557
    %v5606 = vpack.c.b16 %v5562, %v5558
    %v5607 = vpack.c.b16 %v5563, %v5559
    %v5608 = vpack.c.b16 %v5568, %v5564
    %v5609 = vpack.c.b16 %v5569, %v5565
    %v5610 = vpack.c.b16 %v5570, %v5566
    %v5611 = vpack.c.b16 %v5571, %v5567
    %v5612 = vpack.c.b16 %v5576, %v5572
    %v5613 = vpack.c.b16 %v5577, %v5573
    %v5614 = vpack.c.b16 %v5578, %v5574
    %v5615 = vpack.c.b16 %v5579, %v5575
    %v5616 = vpack.c.b16 %v5584, %v5580
    %v5617 = vpack.c.b16 %v5585, %v5581
    %v5618 = vpack.c.b16 %v5586, %v5582
    %v5619 = vpack.c.b16 %v5587, %v5583
    %5652 = vmatprep.subr.bf16.mxu0 %v5589
    %5653 = vmatpush1.bf16.msra.mxu0 %v5588
    %5654 = vmatprep.subr.bf16.mxu0 %v5593
    %5655 = vmatpush1.bf16.msra.mxu0 %v5592
    %5656 = vmatprep.subr.bf16.mxu0 %v5597
    %5657 = vmatpush1.bf16.msra.mxu0 %v5596
    %5658 = vmatprep.subr.bf16.mxu0 %v5601
    %5659 = vmatpush1.bf16.msra.mxu0 %v5600
    %5660 = vmatprep.subr.bf16.mxu0 %v5605
    %5661 = vmatpush1.bf16.msra.mxu0 %v5604
    %5662 = vmatprep.subr.bf16.mxu0 %v5609
    %5663 = vmatpush1.bf16.msra.mxu0 %v5608
    %5664 = vmatprep.subr.bf16.mxu0 %v5613
    %5665 = vmatpush1.bf16.msra.mxu0 %v5612
    %5666 = vmatprep.subr.bf16.mxu0 %v5617
    %5667 = vmatpush1.bf16.msra.mxu0 %v5616
    %5668 = vmatprep.subr.bf16.mxu0 0
    %5669 = vmatpush1.bf16.msra.mxu0 0
    %5670 = vmatprep.subr.bf16.mxu0 0
    %5671 = vmatpush1.bf16.msra.mxu0 0
    %5672 = vmatprep.subr.bf16.mxu0 0
    %5673 = vmatpush1.bf16.msra.mxu0 0
    %5674 = vmatprep.subr.bf16.mxu0 0
    %5675 = vmatpush1.bf16.msra.mxu0 0
    %5676 = vmatprep.subr.bf16.mxu0 0
    %5677 = vmatpush1.bf16.msra.mxu0 0
    %5678 = vmatprep.subr.bf16.mxu0 0
    %5679 = vmatpush1.bf16.msra.mxu0 0
    %5680 = vmatprep.subr.bf16.mxu0 0
    %5681 = vmatpush1.bf16.msra.mxu0 0
    %5682 = vmatprep.subr.bf16.mxu0 0
    %5683 = vmatpush1.bf16.msra.mxu0 0
    %5684 = vmatprep.mubr.bf16.mxu0 0
    %5685 = vmatmul.mubr.bf16.gmra.mrb[0].mxu0 %v5459
    %v5686 = vpop.f32.mrb[0].mxu0
    %v5687 = vadd.f32 %v5412, %v5686
    %v5688 = vpop.f32.mrb[0].mxu0
    %v5689 = vadd.f32 %v5414, %v5688
    %v5690 = vpop.f32.mrb[0].mxu0
    %v5691 = vpop.f32.mrb[0].mxu0
    %5692 = vdwg.mxu0
    %5693 = vmatprep.subr.bf16.mxu0 %v5591
    %5694 = vmatpush1.bf16.msra.mxu0 %v5590
    %5695 = vmatprep.subr.bf16.mxu0 %v5595
    %5696 = vmatpush1.bf16.msra.mxu0 %v5594
    %5697 = vmatprep.subr.bf16.mxu0 %v5599
    %5698 = vmatpush1.bf16.msra.mxu0 %v5598
    %5699 = vmatprep.subr.bf16.mxu0 %v5603
    %5700 = vmatpush1.bf16.msra.mxu0 %v5602
    %5701 = vmatprep.subr.bf16.mxu0 %v5607
    %5702 = vmatpush1.bf16.msra.mxu0 %v5606
    %5703 = vmatprep.subr.bf16.mxu0 %v5611
    %5704 = vmatpush1.bf16.msra.mxu0 %v5610
    %5705 = vmatprep.subr.bf16.mxu0 %v5615
    %5706 = vmatpush1.bf16.msra.mxu0 %v5614
    %5707 = vmatprep.subr.bf16.mxu0 %v5619
    %5708 = vmatpush1.bf16.msra.mxu0 %v5618
    %5709 = vmatprep.subr.bf16.mxu0 0
    %5710 = vmatpush1.bf16.msra.mxu0 0
    %5711 = vmatprep.subr.bf16.mxu0 0
    %5712 = vmatpush1.bf16.msra.mxu0 0
    %5713 = vmatprep.subr.bf16.mxu0 0
    %5714 = vmatpush1.bf16.msra.mxu0 0
    %5715 = vmatprep.subr.bf16.mxu0 0
    %5716 = vmatpush1.bf16.msra.mxu0 0
    %5717 = vmatprep.subr.bf16.mxu0 0
    %5718 = vmatpush1.bf16.msra.mxu0 0
    %5719 = vmatprep.subr.bf16.mxu0 0
    %5720 = vmatpush1.bf16.msra.mxu0 0
    %5721 = vmatprep.subr.bf16.mxu0 0
    %5722 = vmatpush1.bf16.msra.mxu0 0
    %5723 = vmatprep.subr.bf16.mxu0 0
    %5724 = vmatpush1.bf16.msra.mxu0 0
    %5725 = vmatprep.mubr.bf16.mxu0 0
    %5726 = vmatmul.mubr.bf16.gmra.mrb[0].mxu0 %v5459
    %v5727 = vpop.f32.mrb[0].mxu0
    %v5728 = vadd.f32 %v5453, %v5727
    %v5729 = vpop.f32.mrb[0].mxu0
    %v5730 = vadd.f32 %v5455, %v5729
    %v5731 = vpop.f32.mrb[0].mxu0
    %v5732 = vpop.f32.mrb[0].mxu0
    %5733 = vdwg.mxu0
    %v5734 = vld [vmem:[%s6] sm:$0xf]
    %v5736 = vlaneseq
    %v5737 = vshrl.u32 %v5736, 7
    %v5738 = vsub.s32 0, %v5737
    %v5739 = vrot.slane %v5734, %v5738
    %v5740 = vlaneseq
    %v5741 = vshrl.u32 %v5740, 7
    %v5742 = vsub.s32 1, %v5741
    %v5743 = vrot.slane %v5734, %v5742
    %v5744 = vlaneseq
    %v5745 = vshrl.u32 %v5744, 7
    %v5746 = vsub.s32 2, %v5745
    %v5747 = vrot.slane %v5734, %v5746
    %v5748 = vlaneseq
    %v5749 = vshrl.u32 %v5748, 7
    %v5750 = vsub.s32 3, %v5749
    %v5751 = vrot.slane %v5734, %v5750
    %v5756 = vadd.f32 %v5687, %v5739
    %v5757 = vadd.f32 %v5689, %v5743
    %v5758 = vadd.f32 %v5728, %v5747
    %v5759 = vadd.f32 %v5730, %v5751
    %v5760 = vxor.u32 %v5756, 2147483648
    %v5761 = vxor.u32 %v5757, 2147483648
    %v5762 = vxor.u32 %v5758, 2147483648
    %v5763 = vmul.f32 %v5760, 1.442695
    %v5764 = vpow.pop %v5763
    %v5765 = vmul.f32 %v5761, 1.442695
    %v5766 = vpow.pop %v5765
    %v5767 = vmul.f32 %v5762, 1.442695
    %v5768 = vpow.pop %v5767
    %v5769 = vadd.f32 %v5764, 1.0
    %v5770 = vadd.f32 %v5766, 1.0
    %v5771 = vadd.f32 %v5768, 1.0
    %v5772 = vrcp.pop %v5769
    %v5773 = vmul.f32 1.0, %v5772
    %v5774 = vrcp.pop %v5770
    %v5775 = vmul.f32 1.0, %v5774
    %v5776 = vrcp.pop %v5771
    %v5777 = vmul.f32 1.0, %v5776
    %v5778 = vtanh.pop %v5759
    %v5779 = vmul.f32 %v5775, %v4872
    %v5780 = vmul.f32 %v5773, %v5778
    %v5781 = vadd.f32 %v5779, %v5780
    %v5782 = vtanh.pop %v5781
    %v5783 = vmul.f32 %v5777, %v5782
    %s5784 = scalar_lea.vmem %s7, 40
    %5785 = vst [vmem:[%s5784] sm:$0xff] %v5783
    %v5786 = vld [vmem:[#allocation3] sm:$0xff]
    %v5787 = vld [vmem:[#allocation3 + $0x8] sm:$0xff]
    %v5788 = vld [vmem:[#allocation3 + $0x10] sm:$0xff]
    %v5789 = vld [vmem:[#allocation3 + $0x18] sm:$0xff]
    %v5790 = vld [vmem:[#allocation3 + $0x20] sm:$0xff]
    %v5791 = vld [vmem:[#allocation3 + $0x28] sm:$0xff]
    %v5792 = vld [vmem:[#allocation3 + $0x30] sm:$0xff]
    %v5793 = vld [vmem:[#allocation3 + $0x38] sm:$0xff]
    %v5794 = vld [vmem:[#allocation3 + $0x40] sm:$0xff]
    %v5795 = vld [vmem:[#allocation3 + $0x48] sm:$0xff]
    %v5796 = vld [vmem:[#allocation3 + $0x50] sm:$0xff]
    %v5797 = vld [vmem:[#allocation3 + $0x58] sm:$0xff]
    %v5798 = vld [vmem:[#allocation3 + $0x60] sm:$0xff]
    %v5799 = vld [vmem:[#allocation3 + $0x68] sm:$0xff]
    %v5800 = vld [vmem:[#allocation3 + $0x70] sm:$0xff]
    %v5801 = vld [vmem:[#allocation3 + $0x78] sm:$0xff]
    %v5802 = vld [vmem:[#allocation3 + $0x80] sm:$0xff]
    %v5803 = vld [vmem:[#allocation3 + $0x88] sm:$0xff]
    %v5804 = vld [vmem:[#allocation3 + $0x90] sm:$0xff]
    %v5805 = vld [vmem:[#allocation3 + $0x98] sm:$0xff]
    %v5806 = vld [vmem:[#allocation3 + $0xa0] sm:$0xff]
    %v5807 = vld [vmem:[#allocation3 + $0xa8] sm:$0xff]
    %v5808 = vld [vmem:[#allocation3 + $0xb0] sm:$0xff]
    %v5809 = vld [vmem:[#allocation3 + $0xb8] sm:$0xff]
    %v5810 = vld [vmem:[#allocation3 + $0xc0] sm:$0xff]
    %v5811 = vld [vmem:[#allocation3 + $0xc8] sm:$0xff]
    %v5812 = vld [vmem:[#allocation3 + $0xd0] sm:$0xff]
    %v5813 = vld [vmem:[#allocation3 + $0xd8] sm:$0xff]
    %v5814 = vld [vmem:[#allocation3 + $0xe0] sm:$0xff]
    %v5815 = vld [vmem:[#allocation3 + $0xe8] sm:$0xff]
    %v5816 = vld [vmem:[#allocation3 + $0xf0] sm:$0xff]
    %v5817 = vld [vmem:[#allocation3 + $0xf8] sm:$0xff]
    %v5850 = vunpack.c.l.b16 %v5786
    %v5851 = vunpack.c.h.b16 %v5786
    %v5852 = vunpack.c.l.b16 %v5787
    %v5853 = vunpack.c.h.b16 %v5787
    %v5854 = vunpack.c.l.b16 %v5788
    %v5855 = vunpack.c.h.b16 %v5788
    %v5856 = vunpack.c.l.b16 %v5789
    %v5857 = vunpack.c.h.b16 %v5789
    %v5858 = vunpack.c.l.b16 %v5790
    %v5859 = vunpack.c.h.b16 %v5790
    %v5860 = vunpack.c.l.b16 %v5791
    %v5861 = vunpack.c.h.b16 %v5791
    %v5862 = vunpack.c.l.b16 %v5792
    %v5863 = vunpack.c.h.b16 %v5792
    %v5864 = vunpack.c.l.b16 %v5793
    %v5865 = vunpack.c.h.b16 %v5793
    %v5866 = vunpack.c.l.b16 %v5794
    %v5867 = vunpack.c.h.b16 %v5794
    %v5868 = vunpack.c.l.b16 %v5795
    %v5869 = vunpack.c.h.b16 %v5795
    %v5870 = vunpack.c.l.b16 %v5796
    %v5871 = vunpack.c.h.b16 %v5796
    %v5872 = vunpack.c.l.b16 %v5797
    %v5873 = vunpack.c.h.b16 %v5797
    %v5874 = vunpack.c.l.b16 %v5798
    %v5875 = vunpack.c.h.b16 %v5798
    %v5876 = vunpack.c.l.b16 %v5799
    %v5877 = vunpack.c.h.b16 %v5799
    %v5878 = vunpack.c.l.b16 %v5800
    %v5879 = vunpack.c.h.b16 %v5800
    %v5880 = vunpack.c.l.b16 %v5801
    %v5881 = vunpack.c.h.b16 %v5801
    %v5882 = vunpack.c.l.b16 %v5802
    %v5883 = vunpack.c.h.b16 %v5802
    %v5884 = vunpack.c.l.b16 %v5803
    %v5885 = vunpack.c.h.b16 %v5803
    %v5886 = vunpack.c.l.b16 %v5804
    %v5887 = vunpack.c.h.b16 %v5804
    %v5888 = vunpack.c.l.b16 %v5805
    %v5889 = vunpack.c.h.b16 %v5805
    %v5890 = vunpack.c.l.b16 %v5806
    %v5891 = vunpack.c.h.b16 %v5806
    %v5892 = vunpack.c.l.b16 %v5807
    %v5893 = vunpack.c.h.b16 %v5807
    %v5894 = vunpack.c.l.b16 %v5808
    %v5895 = vunpack.c.h.b16 %v5808
    %v5896 = vunpack.c.l.b16 %v5809
    %v5897 = vunpack.c.h.b16 %v5809
    %v5898 = vunpack.c.l.b16 %v5810
    %v5899 = vunpack.c.h.b16 %v5810
    %v5900 = vunpack.c.l.b16 %v5811
    %v5901 = vunpack.c.h.b16 %v5811
    %v5902 = vunpack.c.l.b16 %v5812
    %v5903 = vunpack.c.h.b16 %v5812
    %v5904 = vunpack.c.l.b16 %v5813
    %v5905 = vunpack.c.h.b16 %v5813
    %v5906 = vunpack.c.l.b16 %v5814
    %v5907 = vunpack.c.h.b16 %v5814
    %v5908 = vunpack.c.l.b16 %v5815
    %v5909 = vunpack.c.h.b16 %v5815
    %v5910 = vunpack.c.l.b16 %v5816
    %v5911 = vunpack.c.h.b16 %v5816
    %v5912 = vunpack.c.l.b16 %v5817
    %v5913 = vunpack.c.h.b16 %v5817
    %v5914 = vpack.c.b16 %v5854, %v5850
    %v5915 = vpack.c.b16 %v5855, %v5851
    %v5916 = vpack.c.b16 %v5856, %v5852
    %v5917 = vpack.c.b16 %v5857, %v5853
    %v5918 = vpack.c.b16 %v5862, %v5858
    %v5919 = vpack.c.b16 %v5863, %v5859
    %v5920 = vpack.c.b16 %v5864, %v5860
    %v5921 = vpack.c.b16 %v5865, %v5861
    %v5922 = vpack.c.b16 %v5870, %v5866
    %v5923 = vpack.c.b16 %v5871, %v5867
    %v5924 = vpack.c.b16 %v5872, %v5868
    %v5925 = vpack.c.b16 %v5873, %v5869
    %v5926 = vpack.c.b16 %v5878, %v5874
    %v5927 = vpack.c.b16 %v5879, %v5875
    %v5928 = vpack.c.b16 %v5880, %v5876
    %v5929 = vpack.c.b16 %v5881, %v5877
    %v5930 = vpack.c.b16 %v5886, %v5882
    %v5931 = vpack.c.b16 %v5887, %v5883
    %v5932 = vpack.c.b16 %v5888, %v5884
    %v5933 = vpack.c.b16 %v5889, %v5885
    %v5934 = vpack.c.b16 %v5894, %v5890
    %v5935 = vpack.c.b16 %v5895, %v5891
    %v5936 = vpack.c.b16 %v5896, %v5892
    %v5937 = vpack.c.b16 %v5897, %v5893
    %v5938 = vpack.c.b16 %v5902, %v5898
    %v5939 = vpack.c.b16 %v5903, %v5899
    %v5940 = vpack.c.b16 %v5904, %v5900
    %v5941 = vpack.c.b16 %v5905, %v5901
    %v5942 = vpack.c.b16 %v5910, %v5906
    %v5943 = vpack.c.b16 %v5911, %v5907
    %v5944 = vpack.c.b16 %v5912, %v5908
    %v5945 = vpack.c.b16 %v5913, %v5909
    %5978 = vmatprep.subr.bf16.mxu0 %v5915
    %5979 = vmatpush1.bf16.msra.mxu0 %v5914
    %5980 = vmatprep.subr.bf16.mxu0 %v5919
    %5981 = vmatpush1.bf16.msra.mxu0 %v5918
    %5982 = vmatprep.subr.bf16.mxu0 %v5923
    %5983 = vmatpush1.bf16.msra.mxu0 %v5922
    %5984 = vmatprep.subr.bf16.mxu0 %v5927
    %5985 = vmatpush1.bf16.msra.mxu0 %v5926
    %5986 = vmatprep.subr.bf16.mxu0 %v5931
    %5987 = vmatpush1.bf16.msra.mxu0 %v5930
    %5988 = vmatprep.subr.bf16.mxu0 %v5935
    %5989 = vmatpush1.bf16.msra.mxu0 %v5934
    %5990 = vmatprep.subr.bf16.mxu0 %v5939
    %5991 = vmatpush1.bf16.msra.mxu0 %v5938
    %5992 = vmatprep.subr.bf16.mxu0 %v5943
    %5993 = vmatpush1.bf16.msra.mxu0 %v5942
    %5994 = vmatprep.subr.bf16.mxu0 0
    %5995 = vmatpush1.bf16.msra.mxu0 0
    %5996 = vmatprep.subr.bf16.mxu0 0
    %5997 = vmatpush1.bf16.msra.mxu0 0
    %5998 = vmatprep.subr.bf16.mxu0 0
    %5999 = vmatpush1.bf16.msra.mxu0 0
    %6000 = vmatprep.subr.bf16.mxu0 0
    %6001 = vmatpush1.bf16.msra.mxu0 0
    %6002 = vmatprep.subr.bf16.mxu0 0
    %6003 = vmatpush1.bf16.msra.mxu0 0
    %6004 = vmatprep.subr.bf16.mxu0 0
    %6005 = vmatpush1.bf16.msra.mxu0 0
    %6006 = vmatprep.subr.bf16.mxu0 0
    %6007 = vmatpush1.bf16.msra.mxu0 0
    %6008 = vmatprep.subr.bf16.mxu0 0
    %6009 = vmatpush1.bf16.msra.mxu0 0
    %6010 = vmatprep.mubr.bf16.mxu0 0
    %6011 = vmatmul.mubr.bf16.gmra.mrb[0].mxu0 %v5459
    %v6012 = vpop.f32.mrb[0].mxu0
    %v6013 = vadd.f32 0.0, %v6012
    %v6014 = vpop.f32.mrb[0].mxu0
    %v6015 = vadd.f32 0.0, %v6014
    %v6016 = vpop.f32.mrb[0].mxu0
    %v6017 = vpop.f32.mrb[0].mxu0
    %6018 = vdwg.mxu0
    %6019 = vmatprep.subr.bf16.mxu0 %v5917
    %6020 = vmatpush1.bf16.msra.mxu0 %v5916
    %6021 = vmatprep.subr.bf16.mxu0 %v5921
    %6022 = vmatpush1.bf16.msra.mxu0 %v5920
    %6023 = vmatprep.subr.bf16.mxu0 %v5925
    %6024 = vmatpush1.bf16.msra.mxu0 %v5924
    %6025 = vmatprep.subr.bf16.mxu0 %v5929
    %6026 = vmatpush1.bf16.msra.mxu0 %v5928
    %6027 = vmatprep.subr.bf16.mxu0 %v5933
    %6028 = vmatpush1.bf16.msra.mxu0 %v5932
    %6029 = vmatprep.subr.bf16.mxu0 %v5937
    %6030 = vmatpush1.bf16.msra.mxu0 %v5936
    %6031 = vmatprep.subr.bf16.mxu0 %v5941
    %6032 = vmatpush1.bf16.msra.mxu0 %v5940
    %6033 = vmatprep.subr.bf16.mxu0 %v5945
    %6034 = vmatpush1.bf16.msra.mxu0 %v5944
    %6035 = vmatprep.subr.bf16.mxu0 0
    %6036 = vmatpush1.bf16.msra.mxu0 0
    %6037 = vmatprep.subr.bf16.mxu0 0
    %6038 = vmatpush1.bf16.msra.mxu0 0
    %6039 = vmatprep.subr.bf16.mxu0 0
    %6040 = vmatpush1.bf16.msra.mxu0 0
    %6041 = vmatprep.subr.bf16.mxu0 0
    %6042 = vmatpush1.bf16.msra.mxu0 0
    %6043 = vmatprep.subr.bf16.mxu0 0
    %6044 = vmatpush1.bf16.msra.mxu0 0
    %6045 = vmatprep.subr.bf16.mxu0 0
    %6046 = vmatpush1.bf16.msra.mxu0 0
    %6047 = vmatprep.subr.bf16.mxu0 0
    %6048 = vmatpush1.bf16.msra.mxu0 0
    %6049 = vmatprep.subr.bf16.mxu0 0
    %6050 = vmatpush1.bf16.msra.mxu0 0
    %6051 = vmatprep.mubr.bf16.mxu0 0
    %6052 = vmatmul.mubr.bf16.gmra.mrb[0].mxu0 %v5459
    %v6053 = vpop.f32.mrb[0].mxu0
    %v6054 = vadd.f32 0.0, %v6053
    %v6055 = vpop.f32.mrb[0].mxu0
    %v6056 = vadd.f32 0.0, %v6055
    %v6057 = vpop.f32.mrb[0].mxu0
    %v6058 = vpop.f32.mrb[0].mxu0
    %6059 = vdwg.mxu0
    %s6060 = scalar_lea.vmem [#allocation2], 192
    %v6061 = vld [vmem:[%s6060] sm:$0xff]
    %v6062 = vld [vmem:[%s6060 + $0x8] sm:$0xff]
    %v6063 = vld [vmem:[%s6060 + $0x10] sm:$0xff]
    %v6064 = vld [vmem:[%s6060 + $0x18] sm:$0xff]
    %v6065 = vadd.f32 %v6061, %v6013
    %v6066 = vadd.f32 %v6062, %v6015
    %v6067 = vadd.f32 %v6063, %v6054
    %v6068 = vadd.f32 %v6064, %v6056
    %v6069 = vxor.u32 %v6065, 2147483648
    %v6070 = vxor.u32 %v6066, 2147483648
    %v6071 = vxor.u32 %v6067, 2147483648
    %v6072 = vmul.f32 %v6069, 1.442695
    %v6073 = vpow.pop %v6072
    %v6074 = vmul.f32 %v6070, 1.442695
    %v6075 = vpow.pop %v6074
    %v6076 = vmul.f32 %v6071, 1.442695
    %v6077 = vpow.pop %v6076
    %v6078 = vadd.f32 %v6073, 1.0
    %v6079 = vadd.f32 %v6075, 1.0
    %v6080 = vadd.f32 %v6077, 1.0
    %v6081 = vrcp.pop %v6078
    %v6082 = vmul.f32 1.0, %v6081
    %v6083 = vrcp.pop %v6079
    %v6084 = vmul.f32 1.0, %v6083
    %v6085 = vrcp.pop %v6080
    %v6086 = vmul.f32 1.0, %v6085
    %v6087 = vtanh.pop %v6068
    %v6088 = vmul.f32 %v6084, %v5181
    %v6089 = vmul.f32 %v6082, %v6087
    %v6090 = vadd.f32 %v6088, %v6089
    %v6091 = vtanh.pop %v6090
    %v6092 = vmul.f32 %v6086, %v6091
    %v6093 = vpack.c.bf16 %v5783, %v5783
    %v6094 = vld [vmem:[#allocation7] sm:$0xff]
    %v6095 = vld [vmem:[#allocation7 + $0x8] sm:$0xff]
    %v6096 = vld [vmem:[#allocation7 + $0x10] sm:$0xff]
    %v6097 = vld [vmem:[#allocation7 + $0x18] sm:$0xff]
    %v6098 = vld [vmem:[#allocation7 + $0x20] sm:$0xff]
    %v6099 = vld [vmem:[#allocation7 + $0x28] sm:$0xff]
    %v6100 = vld [vmem:[#allocation7 + $0x30] sm:$0xff]
    %v6101 = vld [vmem:[#allocation7 + $0x38] sm:$0xff]
    %v6102 = vld [vmem:[#allocation7 + $0x40] sm:$0xff]
    %v6103 = vld [vmem:[#allocation7 + $0x48] sm:$0xff]
    %v6104 = vld [vmem:[#allocation7 + $0x50] sm:$0xff]
    %v6105 = vld [vmem:[#allocation7 + $0x58] sm:$0xff]
    %v6106 = vld [vmem:[#allocation7 + $0x60] sm:$0xff]
    %v6107 = vld [vmem:[#allocation7 + $0x68] sm:$0xff]
    %v6108 = vld [vmem:[#allocation7 + $0x70] sm:$0xff]
    %v6109 = vld [vmem:[#allocation7 + $0x78] sm:$0xff]
    %v6110 = vld [vmem:[#allocation7 + $0x80] sm:$0xff]
    %v6111 = vld [vmem:[#allocation7 + $0x88] sm:$0xff]
    %v6112 = vld [vmem:[#allocation7 + $0x90] sm:$0xff]
    %v6113 = vld [vmem:[#allocation7 + $0x98] sm:$0xff]
    %v6114 = vld [vmem:[#allocation7 + $0xa0] sm:$0xff]
    %v6115 = vld [vmem:[#allocation7 + $0xa8] sm:$0xff]
    %v6116 = vld [vmem:[#allocation7 + $0xb0] sm:$0xff]
    %v6117 = vld [vmem:[#allocation7 + $0xb8] sm:$0xff]
    %v6118 = vld [vmem:[#allocation7 + $0xc0] sm:$0xff]
    %v6119 = vld [vmem:[#allocation7 + $0xc8] sm:$0xff]
    %v6120 = vld [vmem:[#allocation7 + $0xd0] sm:$0xff]
    %v6121 = vld [vmem:[#allocation7 + $0xd8] sm:$0xff]
    %v6122 = vld [vmem:[#allocation7 + $0xe0] sm:$0xff]
    %v6123 = vld [vmem:[#allocation7 + $0xe8] sm:$0xff]
    %v6124 = vld [vmem:[#allocation7 + $0xf0] sm:$0xff]
    %v6125 = vld [vmem:[#allocation7 + $0xf8] sm:$0xff]
    %v6158 = vunpack.c.l.b16 %v6094
    %v6159 = vunpack.c.h.b16 %v6094
    %v6160 = vunpack.c.l.b16 %v6095
    %v6161 = vunpack.c.h.b16 %v6095
    %v6162 = vunpack.c.l.b16 %v6096
    %v6163 = vunpack.c.h.b16 %v6096
    %v6164 = vunpack.c.l.b16 %v6097
    %v6165 = vunpack.c.h.b16 %v6097
    %v6166 = vunpack.c.l.b16 %v6098
    %v6167 = vunpack.c.h.b16 %v6098
    %v6168 = vunpack.c.l.b16 %v6099
    %v6169 = vunpack.c.h.b16 %v6099
    %v6170 = vunpack.c.l.b16 %v6100
    %v6171 = vunpack.c.h.b16 %v6100
    %v6172 = vunpack.c.l.b16 %v6101
    %v6173 = vunpack.c.h.b16 %v6101
    %v6174 = vunpack.c.l.b16 %v6102
    %v6175 = vunpack.c.h.b16 %v6102
    %v6176 = vunpack.c.l.b16 %v6103
    %v6177 = vunpack.c.h.b16 %v6103
    %v6178 = vunpack.c.l.b16 %v6104
    %v6179 = vunpack.c.h.b16 %v6104
    %v6180 = vunpack.c.l.b16 %v6105
    %v6181 = vunpack.c.h.b16 %v6105
    %v6182 = vunpack.c.l.b16 %v6106
    %v6183 = vunpack.c.h.b16 %v6106
    %v6184 = vunpack.c.l.b16 %v6107
    %v6185 = vunpack.c.h.b16 %v6107
    %v6186 = vunpack.c.l.b16 %v6108
    %v6187 = vunpack.c.h.b16 %v6108
    %v6188 = vunpack.c.l.b16 %v6109
    %v6189 = vunpack.c.h.b16 %v6109
    %v6190 = vunpack.c.l.b16 %v6110
    %v6191 = vunpack.c.h.b16 %v6110
    %v6192 = vunpack.c.l.b16 %v6111
    %v6193 = vunpack.c.h.b16 %v6111
    %v6194 = vunpack.c.l.b16 %v6112
    %v6195 = vunpack.c.h.b16 %v6112
    %v6196 = vunpack.c.l.b16 %v6113
    %v6197 = vunpack.c.h.b16 %v6113
    %v6198 = vunpack.c.l.b16 %v6114
    %v6199 = vunpack.c.h.b16 %v6114
    %v6200 = vunpack.c.l.b16 %v6115
    %v6201 = vunpack.c.h.b16 %v6115
    %v6202 = vunpack.c.l.b16 %v6116
    %v6203 = vunpack.c.h.b16 %v6116
    %v6204 = vunpack.c.l.b16 %v6117
    %v6205 = vunpack.c.h.b16 %v6117
    %v6206 = vunpack.c.l.b16 %v6118
    %v6207 = vunpack.c.h.b16 %v6118
    %v6208 = vunpack.c.l.b16 %v6119
    %v6209 = vunpack.c.h.b16 %v6119
    %v6210 = vunpack.c.l.b16 %v6120
    %v6211 = vunpack.c.h.b16 %v6120
    %v6212 = vunpack.c.l.b16 %v6121
    %v6213 = vunpack.c.h.b16 %v6121
    %v6214 = vunpack.c.l.b16 %v6122
    %v6215 = vunpack.c.h.b16 %v6122
    %v6216 = vunpack.c.l.b16 %v6123
    %v6217 = vunpack.c.h.b16 %v6123
    %v6218 = vunpack.c.l.b16 %v6124
    %v6219 = vunpack.c.h.b16 %v6124
    %v6220 = vunpack.c.l.b16 %v6125
    %v6221 = vunpack.c.h.b16 %v6125
    %v6222 = vpack.c.b16 %v6162, %v6158
    %v6223 = vpack.c.b16 %v6163, %v6159
    %v6224 = vpack.c.b16 %v6164, %v6160
    %v6225 = vpack.c.b16 %v6165, %v6161
    %v6226 = vpack.c.b16 %v6170, %v6166
    %v6227 = vpack.c.b16 %v6171, %v6167
    %v6228 = vpack.c.b16 %v6172, %v6168
    %v6229 = vpack.c.b16 %v6173, %v6169
    %v6230 = vpack.c.b16 %v6178, %v6174
    %v6231 = vpack.c.b16 %v6179, %v6175
    %v6232 = vpack.c.b16 %v6180, %v6176
    %v6233 = vpack.c.b16 %v6181, %v6177
    %v6234 = vpack.c.b16 %v6186, %v6182
    %v6235 = vpack.c.b16 %v6187, %v6183
    %v6236 = vpack.c.b16 %v6188, %v6184
    %v6237 = vpack.c.b16 %v6189, %v6185
    %v6238 = vpack.c.b16 %v6194, %v6190
    %v6239 = vpack.c.b16 %v6195, %v6191
    %v6240 = vpack.c.b16 %v6196, %v6192
    %v6241 = vpack.c.b16 %v6197, %v6193
    %v6242 = vpack.c.b16 %v6202, %v6198
    %v6243 = vpack.c.b16 %v6203, %v6199
    %v6244 = vpack.c.b16 %v6204, %v6200
    %v6245 = vpack.c.b16 %v6205, %v6201
    %v6246 = vpack.c.b16 %v6210, %v6206
    %v6247 = vpack.c.b16 %v6211, %v6207
    %v6248 = vpack.c.b16 %v6212, %v6208
    %v6249 = vpack.c.b16 %v6213, %v6209
    %v6250 = vpack.c.b16 %v6218, %v6214
    %v6251 = vpack.c.b16 %v6219, %v6215
    %v6252 = vpack.c.b16 %v6220, %v6216
    %v6253 = vpack.c.b16 %v6221, %v6217
    %6286 = vmatprep.subr.bf16.mxu0 %v6223
    %6287 = vmatpush1.bf16.msra.mxu0 %v6222
    %6288 = vmatprep.subr.bf16.mxu0 %v6227
    %6289 = vmatpush1.bf16.msra.mxu0 %v6226
    %6290 = vmatprep.subr.bf16.mxu0 %v6231
    %6291 = vmatpush1.bf16.msra.mxu0 %v6230
    %6292 = vmatprep.subr.bf16.mxu0 %v6235
    %6293 = vmatpush1.bf16.msra.mxu0 %v6234
    %6294 = vmatprep.subr.bf16.mxu0 %v6239
    %6295 = vmatpush1.bf16.msra.mxu0 %v6238
    %6296 = vmatprep.subr.bf16.mxu0 %v6243
    %6297 = vmatpush1.bf16.msra.mxu0 %v6242
    %6298 = vmatprep.subr.bf16.mxu0 %v6247
    %6299 = vmatpush1.bf16.msra.mxu0 %v6246
    %6300 = vmatprep.subr.bf16.mxu0 %v6251
    %6301 = vmatpush1.bf16.msra.mxu0 %v6250
    %6302 = vmatprep.subr.bf16.mxu0 0
    %6303 = vmatpush1.bf16.msra.mxu0 0
    %6304 = vmatprep.subr.bf16.mxu0 0
    %6305 = vmatpush1.bf16.msra.mxu0 0
    %6306 = vmatprep.subr.bf16.mxu0 0
    %6307 = vmatpush1.bf16.msra.mxu0 0
    %6308 = vmatprep.subr.bf16.mxu0 0
    %6309 = vmatpush1.bf16.msra.mxu0 0
    %6310 = vmatprep.subr.bf16.mxu0 0
    %6311 = vmatpush1.bf16.msra.mxu0 0
    %6312 = vmatprep.subr.bf16.mxu0 0
    %6313 = vmatpush1.bf16.msra.mxu0 0
    %6314 = vmatprep.subr.bf16.mxu0 0
    %6315 = vmatpush1.bf16.msra.mxu0 0
    %6316 = vmatprep.subr.bf16.mxu0 0
    %6317 = vmatpush1.bf16.msra.mxu0 0
    %6318 = vmatprep.mubr.bf16.mxu0 0
    %6319 = vmatmul.mubr.bf16.gmra.mrb[0].mxu0 %v6093
    %v6320 = vpop.f32.mrb[0].mxu0
    %v6321 = vadd.f32 0.0, %v6320
    %v6322 = vpop.f32.mrb[0].mxu0
    %v6323 = vadd.f32 0.0, %v6322
    %v6324 = vpop.f32.mrb[0].mxu0
    %v6325 = vpop.f32.mrb[0].mxu0
    %6326 = vdwg.mxu0
    %6327 = vmatprep.subr.bf16.mxu0 %v6225
    %6328 = vmatpush1.bf16.msra.mxu0 %v6224
    %6329 = vmatprep.subr.bf16.mxu0 %v6229
    %6330 = vmatpush1.bf16.msra.mxu0 %v6228
    %6331 = vmatprep.subr.bf16.mxu0 %v6233
    %6332 = vmatpush1.bf16.msra.mxu0 %v6232
    %6333 = vmatprep.subr.bf16.mxu0 %v6237
    %6334 = vmatpush1.bf16.msra.mxu0 %v6236
    %6335 = vmatprep.subr.bf16.mxu0 %v6241
    %6336 = vmatpush1.bf16.msra.mxu0 %v6240
    %6337 = vmatprep.subr.bf16.mxu0 %v6245
    %6338 = vmatpush1.bf16.msra.mxu0 %v6244
    %6339 = vmatprep.subr.bf16.mxu0 %v6249
    %6340 = vmatpush1.bf16.msra.mxu0 %v6248
    %6341 = vmatprep.subr.bf16.mxu0 %v6253
    %6342 = vmatpush1.bf16.msra.mxu0 %v6252
    %6343 = vmatprep.subr.bf16.mxu0 0
    %6344 = vmatpush1.bf16.msra.mxu0 0
    %6345 = vmatprep.subr.bf16.mxu0 0
    %6346 = vmatpush1.bf16.msra.mxu0 0
    %6347 = vmatprep.subr.bf16.mxu0 0
    %6348 = vmatpush1.bf16.msra.mxu0 0
    %6349 = vmatprep.subr.bf16.mxu0 0
    %6350 = vmatpush1.bf16.msra.mxu0 0
    %6351 = vmatprep.subr.bf16.mxu0 0
    %6352 = vmatpush1.bf16.msra.mxu0 0
    %6353 = vmatprep.subr.bf16.mxu0 0
    %6354 = vmatpush1.bf16.msra.mxu0 0
    %6355 = vmatprep.subr.bf16.mxu0 0
    %6356 = vmatpush1.bf16.msra.mxu0 0
    %6357 = vmatprep.subr.bf16.mxu0 0
    %6358 = vmatpush1.bf16.msra.mxu0 0
    %6359 = vmatprep.mubr.bf16.mxu0 0
    %6360 = vmatmul.mubr.bf16.gmra.mrb[0].mxu0 %v6093
    %v6361 = vpop.f32.mrb[0].mxu0
    %v6362 = vadd.f32 0.0, %v6361
    %v6363 = vpop.f32.mrb[0].mxu0
    %v6364 = vadd.f32 0.0, %v6363
    %v6365 = vpop.f32.mrb[0].mxu0
    %v6366 = vpop.f32.mrb[0].mxu0
    %6367 = vdwg.mxu0
    %v6368 = vpack.c.bf16 %v6092, %v6092
    %v6369 = vld [vmem:[#allocation5] sm:$0xff]
    %v6370 = vld [vmem:[#allocation5 + $0x8] sm:$0xff]
    %v6371 = vld [vmem:[#allocation5 + $0x10] sm:$0xff]
    %v6372 = vld [vmem:[#allocation5 + $0x18] sm:$0xff]
    %v6373 = vld [vmem:[#allocation5 + $0x20] sm:$0xff]
    %v6374 = vld [vmem:[#allocation5 + $0x28] sm:$0xff]
    %v6375 = vld [vmem:[#allocation5 + $0x30] sm:$0xff]
    %v6376 = vld [vmem:[#allocation5 + $0x38] sm:$0xff]
    %v6377 = vld [vmem:[#allocation5 + $0x40] sm:$0xff]
    %v6378 = vld [vmem:[#allocation5 + $0x48] sm:$0xff]
    %v6379 = vld [vmem:[#allocation5 + $0x50] sm:$0xff]
    %v6380 = vld [vmem:[#allocation5 + $0x58] sm:$0xff]
    %v6381 = vld [vmem:[#allocation5 + $0x60] sm:$0xff]
    %v6382 = vld [vmem:[#allocation5 + $0x68] sm:$0xff]
    %v6383 = vld [vmem:[#allocation5 + $0x70] sm:$0xff]
    %v6384 = vld [vmem:[#allocation5 + $0x78] sm:$0xff]
    %v6385 = vld [vmem:[#allocation5 + $0x80] sm:$0xff]
    %v6386 = vld [vmem:[#allocation5 + $0x88] sm:$0xff]
    %v6387 = vld [vmem:[#allocation5 + $0x90] sm:$0xff]
    %v6388 = vld [vmem:[#allocation5 + $0x98] sm:$0xff]
    %v6389 = vld [vmem:[#allocation5 + $0xa0] sm:$0xff]
    %v6390 = vld [vmem:[#allocation5 + $0xa8] sm:$0xff]
    %v6391 = vld [vmem:[#allocation5 + $0xb0] sm:$0xff]
    %v6392 = vld [vmem:[#allocation5 + $0xb8] sm:$0xff]
    %v6393 = vld [vmem:[#allocation5 + $0xc0] sm:$0xff]
    %v6394 = vld [vmem:[#allocation5 + $0xc8] sm:$0xff]
    %v6395 = vld [vmem:[#allocation5 + $0xd0] sm:$0xff]
    %v6396 = vld [vmem:[#allocation5 + $0xd8] sm:$0xff]
    %v6397 = vld [vmem:[#allocation5 + $0xe0] sm:$0xff]
    %v6398 = vld [vmem:[#allocation5 + $0xe8] sm:$0xff]
    %v6399 = vld [vmem:[#allocation5 + $0xf0] sm:$0xff]
    %v6400 = vld [vmem:[#allocation5 + $0xf8] sm:$0xff]
    %v6433 = vunpack.c.l.b16 %v6369
    %v6434 = vunpack.c.h.b16 %v6369
    %v6435 = vunpack.c.l.b16 %v6370
    %v6436 = vunpack.c.h.b16 %v6370
    %v6437 = vunpack.c.l.b16 %v6371
    %v6438 = vunpack.c.h.b16 %v6371
    %v6439 = vunpack.c.l.b16 %v6372
    %v6440 = vunpack.c.h.b16 %v6372
    %v6441 = vunpack.c.l.b16 %v6373
    %v6442 = vunpack.c.h.b16 %v6373
    %v6443 = vunpack.c.l.b16 %v6374
    %v6444 = vunpack.c.h.b16 %v6374
    %v6445 = vunpack.c.l.b16 %v6375
    %v6446 = vunpack.c.h.b16 %v6375
    %v6447 = vunpack.c.l.b16 %v6376
    %v6448 = vunpack.c.h.b16 %v6376
    %v6449 = vunpack.c.l.b16 %v6377
    %v6450 = vunpack.c.h.b16 %v6377
    %v6451 = vunpack.c.l.b16 %v6378
    %v6452 = vunpack.c.h.b16 %v6378
    %v6453 = vunpack.c.l.b16 %v6379
    %v6454 = vunpack.c.h.b16 %v6379
    %v6455 = vunpack.c.l.b16 %v6380
    %v6456 = vunpack.c.h.b16 %v6380
    %v6457 = vunpack.c.l.b16 %v6381
    %v6458 = vunpack.c.h.b16 %v6381
    %v6459 = vunpack.c.l.b16 %v6382
    %v6460 = vunpack.c.h.b16 %v6382
    %v6461 = vunpack.c.l.b16 %v6383
    %v6462 = vunpack.c.h.b16 %v6383
    %v6463 = vunpack.c.l.b16 %v6384
    %v6464 = vunpack.c.h.b16 %v6384
    %v6465 = vunpack.c.l.b16 %v6385
    %v6466 = vunpack.c.h.b16 %v6385
    %v6467 = vunpack.c.l.b16 %v6386
    %v6468 = vunpack.c.h.b16 %v6386
    %v6469 = vunpack.c.l.b16 %v6387
    %v6470 = vunpack.c.h.b16 %v6387
    %v6471 = vunpack.c.l.b16 %v6388
    %v6472 = vunpack.c.h.b16 %v6388
    %v6473 = vunpack.c.l.b16 %v6389
    %v6474 = vunpack.c.h.b16 %v6389
    %v6475 = vunpack.c.l.b16 %v6390
    %v6476 = vunpack.c.h.b16 %v6390
    %v6477 = vunpack.c.l.b16 %v6391
    %v6478 = vunpack.c.h.b16 %v6391
    %v6479 = vunpack.c.l.b16 %v6392
    %v6480 = vunpack.c.h.b16 %v6392
    %v6481 = vunpack.c.l.b16 %v6393
    %v6482 = vunpack.c.h.b16 %v6393
    %v6483 = vunpack.c.l.b16 %v6394
    %v6484 = vunpack.c.h.b16 %v6394
    %v6485 = vunpack.c.l.b16 %v6395
    %v6486 = vunpack.c.h.b16 %v6395
    %v6487 = vunpack.c.l.b16 %v6396
    %v6488 = vunpack.c.h.b16 %v6396
    %v6489 = vunpack.c.l.b16 %v6397
    %v6490 = vunpack.c.h.b16 %v6397
    %v6491 = vunpack.c.l.b16 %v6398
    %v6492 = vunpack.c.h.b16 %v6398
    %v6493 = vunpack.c.l.b16 %v6399
    %v6494 = vunpack.c.h.b16 %v6399
    %v6495 = vunpack.c.l.b16 %v6400
    %v6496 = vunpack.c.h.b16 %v6400
    %v6497 = vpack.c.b16 %v6437, %v6433
    %v6498 = vpack.c.b16 %v6438, %v6434
    %v6499 = vpack.c.b16 %v6439, %v6435
    %v6500 = vpack.c.b16 %v6440, %v6436
    %v6501 = vpack.c.b16 %v6445, %v6441
    %v6502 = vpack.c.b16 %v6446, %v6442
    %v6503 = vpack.c.b16 %v6447, %v6443
    %v6504 = vpack.c.b16 %v6448, %v6444
    %v6505 = vpack.c.b16 %v6453, %v6449
    %v6506 = vpack.c.b16 %v6454, %v6450
    %v6507 = vpack.c.b16 %v6455, %v6451
    %v6508 = vpack.c.b16 %v6456, %v6452
    %v6509 = vpack.c.b16 %v6461, %v6457
    %v6510 = vpack.c.b16 %v6462, %v6458
    %v6511 = vpack.c.b16 %v6463, %v6459
    %v6512 = vpack.c.b16 %v6464, %v6460
    %v6513 = vpack.c.b16 %v6469, %v6465
    %v6514 = vpack.c.b16 %v6470, %v6466
    %v6515 = vpack.c.b16 %v6471, %v6467
    %v6516 = vpack.c.b16 %v6472, %v6468
    %v6517 = vpack.c.b16 %v6477, %v6473
    %v6518 = vpack.c.b16 %v6478, %v6474
    %v6519 = vpack.c.b16 %v6479, %v6475
    %v6520 = vpack.c.b16 %v6480, %v6476
    %v6521 = vpack.c.b16 %v6485, %v6481
    %v6522 = vpack.c.b16 %v6486, %v6482
    %v6523 = vpack.c.b16 %v6487, %v6483
    %v6524 = vpack.c.b16 %v6488, %v6484
    %v6525 = vpack.c.b16 %v6493, %v6489
    %v6526 = vpack.c.b16 %v6494, %v6490
    %v6527 = vpack.c.b16 %v6495, %v6491
    %v6528 = vpack.c.b16 %v6496, %v6492
    %6561 = vmatprep.subr.bf16.mxu0 %v6498
    %6562 = vmatpush1.bf16.msra.mxu0 %v6497
    %6563 = vmatprep.subr.bf16.mxu0 %v6502
    %6564 = vmatpush1.bf16.msra.mxu0 %v6501
    %6565 = vmatprep.subr.bf16.mxu0 %v6506
    %6566 = vmatpush1.bf16.msra.mxu0 %v6505
    %6567 = vmatprep.subr.bf16.mxu0 %v6510
    %6568 = vmatpush1.bf16.msra.mxu0 %v6509
    %6569 = vmatprep.subr.bf16.mxu0 %v6514
    %6570 = vmatpush1.bf16.msra.mxu0 %v6513
    %6571 = vmatprep.subr.bf16.mxu0 %v6518
    %6572 = vmatpush1.bf16.msra.mxu0 %v6517
    %6573 = vmatprep.subr.bf16.mxu0 %v6522
    %6574 = vmatpush1.bf16.msra.mxu0 %v6521
    %6575 = vmatprep.subr.bf16.mxu0 %v6526
    %6576 = vmatpush1.bf16.msra.mxu0 %v6525
    %6577 = vmatprep.subr.bf16.mxu0 0
    %6578 = vmatpush1.bf16.msra.mxu0 0
    %6579 = vmatprep.subr.bf16.mxu0 0
    %6580 = vmatpush1.bf16.msra.mxu0 0
    %6581 = vmatprep.subr.bf16.mxu0 0
    %6582 = vmatpush1.bf16.msra.mxu0 0
    %6583 = vmatprep.subr.bf16.mxu0 0
    %6584 = vmatpush1.bf16.msra.mxu0 0
    %6585 = vmatprep.subr.bf16.mxu0 0
    %6586 = vmatpush1.bf16.msra.mxu0 0
    %6587 = vmatprep.subr.bf16.mxu0 0
    %6588 = vmatpush1.bf16.msra.mxu0 0
    %6589 = vmatprep.subr.bf16.mxu0 0
    %6590 = vmatpush1.bf16.msra.mxu0 0
    %6591 = vmatprep.subr.bf16.mxu0 0
    %6592 = vmatpush1.bf16.msra.mxu0 0
    %6593 = vmatprep.mubr.bf16.mxu0 0
    %6594 = vmatmul.mubr.bf16.gmra.mrb[0].mxu0 %v6368
    %v6595 = vpop.f32.mrb[0].mxu0
    %v6596 = vadd.f32 %v6321, %v6595
    %v6597 = vpop.f32.mrb[0].mxu0
    %v6598 = vadd.f32 %v6323, %v6597
    %v6599 = vpop.f32.mrb[0].mxu0
    %v6600 = vpop.f32.mrb[0].mxu0
    %6601 = vdwg.mxu0
    %6602 = vmatprep.subr.bf16.mxu0 %v6500
    %6603 = vmatpush1.bf16.msra.mxu0 %v6499
    %6604 = vmatprep.subr.bf16.mxu0 %v6504
    %6605 = vmatpush1.bf16.msra.mxu0 %v6503
    %6606 = vmatprep.subr.bf16.mxu0 %v6508
    %6607 = vmatpush1.bf16.msra.mxu0 %v6507
    %6608 = vmatprep.subr.bf16.mxu0 %v6512
    %6609 = vmatpush1.bf16.msra.mxu0 %v6511
    %6610 = vmatprep.subr.bf16.mxu0 %v6516
    %6611 = vmatpush1.bf16.msra.mxu0 %v6515
    %6612 = vmatprep.subr.bf16.mxu0 %v6520
    %6613 = vmatpush1.bf16.msra.mxu0 %v6519
    %6614 = vmatprep.subr.bf16.mxu0 %v6524
    %6615 = vmatpush1.bf16.msra.mxu0 %v6523
    %6616 = vmatprep.subr.bf16.mxu0 %v6528
    %6617 = vmatpush1.bf16.msra.mxu0 %v6527
    %6618 = vmatprep.subr.bf16.mxu0 0
    %6619 = vmatpush1.bf16.msra.mxu0 0
    %6620 = vmatprep.subr.bf16.mxu0 0
    %6621 = vmatpush1.bf16.msra.mxu0 0
    %6622 = vmatprep.subr.bf16.mxu0 0
    %6623 = vmatpush1.bf16.msra.mxu0 0
    %6624 = vmatprep.subr.bf16.mxu0 0
    %6625 = vmatpush1.bf16.msra.mxu0 0
    %6626 = vmatprep.subr.bf16.mxu0 0
    %6627 = vmatpush1.bf16.msra.mxu0 0
    %6628 = vmatprep.subr.bf16.mxu0 0
    %6629 = vmatpush1.bf16.msra.mxu0 0
    %6630 = vmatprep.subr.bf16.mxu0 0
    %6631 = vmatpush1.bf16.msra.mxu0 0
    %6632 = vmatprep.subr.bf16.mxu0 0
    %6633 = vmatpush1.bf16.msra.mxu0 0
    %6634 = vmatprep.mubr.bf16.mxu0 0
    %6635 = vmatmul.mubr.bf16.gmra.mrb[0].mxu0 %v6368
    %v6636 = vpop.f32.mrb[0].mxu0
    %v6637 = vadd.f32 %v6362, %v6636
    %v6638 = vpop.f32.mrb[0].mxu0
    %v6639 = vadd.f32 %v6364, %v6638
    %v6640 = vpop.f32.mrb[0].mxu0
    %v6641 = vpop.f32.mrb[0].mxu0
    %6642 = vdwg.mxu0
    %v6643 = vld [vmem:[%s6] sm:$0xf]
    %v6645 = vlaneseq
    %v6646 = vshrl.u32 %v6645, 7
    %v6647 = vsub.s32 0, %v6646
    %v6648 = vrot.slane %v6643, %v6647
    %v6649 = vlaneseq
    %v6650 = vshrl.u32 %v6649, 7
    %v6651 = vsub.s32 1, %v6650
    %v6652 = vrot.slane %v6643, %v6651
    %v6653 = vlaneseq
    %v6654 = vshrl.u32 %v6653, 7
    %v6655 = vsub.s32 2, %v6654
    %v6656 = vrot.slane %v6643, %v6655
    %v6657 = vlaneseq
    %v6658 = vshrl.u32 %v6657, 7
    %v6659 = vsub.s32 3, %v6658
    %v6660 = vrot.slane %v6643, %v6659
    %v6665 = vadd.f32 %v6596, %v6648
    %v6666 = vadd.f32 %v6598, %v6652
    %v6667 = vadd.f32 %v6637, %v6656
    %v6668 = vadd.f32 %v6639, %v6660
    %v6669 = vxor.u32 %v6665, 2147483648
    %v6670 = vxor.u32 %v6666, 2147483648
    %v6671 = vxor.u32 %v6667, 2147483648
    %v6672 = vmul.f32 %v6669, 1.442695
    %v6673 = vpow.pop %v6672
    %v6674 = vmul.f32 %v6670, 1.442695
    %v6675 = vpow.pop %v6674
    %v6676 = vmul.f32 %v6671, 1.442695
    %v6677 = vpow.pop %v6676
    %v6678 = vadd.f32 %v6673, 1.0
    %v6679 = vadd.f32 %v6675, 1.0
    %v6680 = vadd.f32 %v6677, 1.0
    %v6681 = vrcp.pop %v6678
    %v6682 = vmul.f32 1.0, %v6681
    %v6683 = vrcp.pop %v6679
    %v6684 = vmul.f32 1.0, %v6683
    %v6685 = vrcp.pop %v6680
    %v6686 = vmul.f32 1.0, %v6685
    %v6687 = vtanh.pop %v6668
    %v6688 = vmul.f32 %v6684, %v5781
    %v6689 = vmul.f32 %v6682, %v6687
    %v6690 = vadd.f32 %v6688, %v6689
    %v6691 = vtanh.pop %v6690
    %v6692 = vmul.f32 %v6686, %v6691
    %s6693 = scalar_lea.vmem %s7, 48
    %6694 = vst [vmem:[%s6693] sm:$0xff] %v6692
    %v6695 = vld [vmem:[#allocation3] sm:$0xff]
    %v6696 = vld [vmem:[#allocation3 + $0x8] sm:$0xff]
    %v6697 = vld [vmem:[#allocation3 + $0x10] sm:$0xff]
    %v6698 = vld [vmem:[#allocation3 + $0x18] sm:$0xff]
    %v6699 = vld [vmem:[#allocation3 + $0x20] sm:$0xff]
    %v6700 = vld [vmem:[#allocation3 + $0x28] sm:$0xff]
    %v6701 = vld [vmem:[#allocation3 + $0x30] sm:$0xff]
    %v6702 = vld [vmem:[#allocation3 + $0x38] sm:$0xff]
    %v6703 = vld [vmem:[#allocation3 + $0x40] sm:$0xff]
    %v6704 = vld [vmem:[#allocation3 + $0x48] sm:$0xff]
    %v6705 = vld [vmem:[#allocation3 + $0x50] sm:$0xff]
    %v6706 = vld [vmem:[#allocation3 + $0x58] sm:$0xff]
    %v6707 = vld [vmem:[#allocation3 + $0x60] sm:$0xff]
    %v6708 = vld [vmem:[#allocation3 + $0x68] sm:$0xff]
    %v6709 = vld [vmem:[#allocation3 + $0x70] sm:$0xff]
    %v6710 = vld [vmem:[#allocation3 + $0x78] sm:$0xff]
    %v6711 = vld [vmem:[#allocation3 + $0x80] sm:$0xff]
    %v6712 = vld [vmem:[#allocation3 + $0x88] sm:$0xff]
    %v6713 = vld [vmem:[#allocation3 + $0x90] sm:$0xff]
    %v6714 = vld [vmem:[#allocation3 + $0x98] sm:$0xff]
    %v6715 = vld [vmem:[#allocation3 + $0xa0] sm:$0xff]
    %v6716 = vld [vmem:[#allocation3 + $0xa8] sm:$0xff]
    %v6717 = vld [vmem:[#allocation3 + $0xb0] sm:$0xff]
    %v6718 = vld [vmem:[#allocation3 + $0xb8] sm:$0xff]
    %v6719 = vld [vmem:[#allocation3 + $0xc0] sm:$0xff]
    %v6720 = vld [vmem:[#allocation3 + $0xc8] sm:$0xff]
    %v6721 = vld [vmem:[#allocation3 + $0xd0] sm:$0xff]
    %v6722 = vld [vmem:[#allocation3 + $0xd8] sm:$0xff]
    %v6723 = vld [vmem:[#allocation3 + $0xe0] sm:$0xff]
    %v6724 = vld [vmem:[#allocation3 + $0xe8] sm:$0xff]
    %v6725 = vld [vmem:[#allocation3 + $0xf0] sm:$0xff]
    %v6726 = vld [vmem:[#allocation3 + $0xf8] sm:$0xff]
    %v6759 = vunpack.c.l.b16 %v6695
    %v6760 = vunpack.c.h.b16 %v6695
    %v6761 = vunpack.c.l.b16 %v6696
    %v6762 = vunpack.c.h.b16 %v6696
    %v6763 = vunpack.c.l.b16 %v6697
    %v6764 = vunpack.c.h.b16 %v6697
    %v6765 = vunpack.c.l.b16 %v6698
    %v6766 = vunpack.c.h.b16 %v6698
    %v6767 = vunpack.c.l.b16 %v6699
    %v6768 = vunpack.c.h.b16 %v6699
    %v6769 = vunpack.c.l.b16 %v6700
    %v6770 = vunpack.c.h.b16 %v6700
    %v6771 = vunpack.c.l.b16 %v6701
    %v6772 = vunpack.c.h.b16 %v6701
    %v6773 = vunpack.c.l.b16 %v6702
    %v6774 = vunpack.c.h.b16 %v6702
    %v6775 = vunpack.c.l.b16 %v6703
    %v6776 = vunpack.c.h.b16 %v6703
    %v6777 = vunpack.c.l.b16 %v6704
    %v6778 = vunpack.c.h.b16 %v6704
    %v6779 = vunpack.c.l.b16 %v6705
    %v6780 = vunpack.c.h.b16 %v6705
    %v6781 = vunpack.c.l.b16 %v6706
    %v6782 = vunpack.c.h.b16 %v6706
    %v6783 = vunpack.c.l.b16 %v6707
    %v6784 = vunpack.c.h.b16 %v6707
    %v6785 = vunpack.c.l.b16 %v6708
    %v6786 = vunpack.c.h.b16 %v6708
    %v6787 = vunpack.c.l.b16 %v6709
    %v6788 = vunpack.c.h.b16 %v6709
    %v6789 = vunpack.c.l.b16 %v6710
    %v6790 = vunpack.c.h.b16 %v6710
    %v6791 = vunpack.c.l.b16 %v6711
    %v6792 = vunpack.c.h.b16 %v6711
    %v6793 = vunpack.c.l.b16 %v6712
    %v6794 = vunpack.c.h.b16 %v6712
    %v6795 = vunpack.c.l.b16 %v6713
    %v6796 = vunpack.c.h.b16 %v6713
    %v6797 = vunpack.c.l.b16 %v6714
    %v6798 = vunpack.c.h.b16 %v6714
    %v6799 = vunpack.c.l.b16 %v6715
    %v6800 = vunpack.c.h.b16 %v6715
    %v6801 = vunpack.c.l.b16 %v6716
    %v6802 = vunpack.c.h.b16 %v6716
    %v6803 = vunpack.c.l.b16 %v6717
    %v6804 = vunpack.c.h.b16 %v6717
    %v6805 = vunpack.c.l.b16 %v6718
    %v6806 = vunpack.c.h.b16 %v6718
    %v6807 = vunpack.c.l.b16 %v6719
    %v6808 = vunpack.c.h.b16 %v6719
    %v6809 = vunpack.c.l.b16 %v6720
    %v6810 = vunpack.c.h.b16 %v6720
    %v6811 = vunpack.c.l.b16 %v6721
    %v6812 = vunpack.c.h.b16 %v6721
    %v6813 = vunpack.c.l.b16 %v6722
    %v6814 = vunpack.c.h.b16 %v6722
    %v6815 = vunpack.c.l.b16 %v6723
    %v6816 = vunpack.c.h.b16 %v6723
    %v6817 = vunpack.c.l.b16 %v6724
    %v6818 = vunpack.c.h.b16 %v6724
    %v6819 = vunpack.c.l.b16 %v6725
    %v6820 = vunpack.c.h.b16 %v6725
    %v6821 = vunpack.c.l.b16 %v6726
    %v6822 = vunpack.c.h.b16 %v6726
    %v6823 = vpack.c.b16 %v6763, %v6759
    %v6824 = vpack.c.b16 %v6764, %v6760
    %v6825 = vpack.c.b16 %v6765, %v6761
    %v6826 = vpack.c.b16 %v6766, %v6762
    %v6827 = vpack.c.b16 %v6771, %v6767
    %v6828 = vpack.c.b16 %v6772, %v6768
    %v6829 = vpack.c.b16 %v6773, %v6769
    %v6830 = vpack.c.b16 %v6774, %v6770
    %v6831 = vpack.c.b16 %v6779, %v6775
    %v6832 = vpack.c.b16 %v6780, %v6776
    %v6833 = vpack.c.b16 %v6781, %v6777
    %v6834 = vpack.c.b16 %v6782, %v6778
    %v6835 = vpack.c.b16 %v6787, %v6783
    %v6836 = vpack.c.b16 %v6788, %v6784
    %v6837 = vpack.c.b16 %v6789, %v6785
    %v6838 = vpack.c.b16 %v6790, %v6786
    %v6839 = vpack.c.b16 %v6795, %v6791
    %v6840 = vpack.c.b16 %v6796, %v6792
    %v6841 = vpack.c.b16 %v6797, %v6793
    %v6842 = vpack.c.b16 %v6798, %v6794
    %v6843 = vpack.c.b16 %v6803, %v6799
    %v6844 = vpack.c.b16 %v6804, %v6800
    %v6845 = vpack.c.b16 %v6805, %v6801
    %v6846 = vpack.c.b16 %v6806, %v6802
    %v6847 = vpack.c.b16 %v6811, %v6807
    %v6848 = vpack.c.b16 %v6812, %v6808
    %v6849 = vpack.c.b16 %v6813, %v6809
    %v6850 = vpack.c.b16 %v6814, %v6810
    %v6851 = vpack.c.b16 %v6819, %v6815
    %v6852 = vpack.c.b16 %v6820, %v6816
    %v6853 = vpack.c.b16 %v6821, %v6817
    %v6854 = vpack.c.b16 %v6822, %v6818
    %6887 = vmatprep.subr.bf16.mxu0 %v6824
    %6888 = vmatpush1.bf16.msra.mxu0 %v6823
    %6889 = vmatprep.subr.bf16.mxu0 %v6828
    %6890 = vmatpush1.bf16.msra.mxu0 %v6827
    %6891 = vmatprep.subr.bf16.mxu0 %v6832
    %6892 = vmatpush1.bf16.msra.mxu0 %v6831
    %6893 = vmatprep.subr.bf16.mxu0 %v6836
    %6894 = vmatpush1.bf16.msra.mxu0 %v6835
    %6895 = vmatprep.subr.bf16.mxu0 %v6840
    %6896 = vmatpush1.bf16.msra.mxu0 %v6839
    %6897 = vmatprep.subr.bf16.mxu0 %v6844
    %6898 = vmatpush1.bf16.msra.mxu0 %v6843
    %6899 = vmatprep.subr.bf16.mxu0 %v6848
    %6900 = vmatpush1.bf16.msra.mxu0 %v6847
    %6901 = vmatprep.subr.bf16.mxu0 %v6852
    %6902 = vmatpush1.bf16.msra.mxu0 %v6851
    %6903 = vmatprep.subr.bf16.mxu0 0
    %6904 = vmatpush1.bf16.msra.mxu0 0
    %6905 = vmatprep.subr.bf16.mxu0 0
    %6906 = vmatpush1.bf16.msra.mxu0 0
    %6907 = vmatprep.subr.bf16.mxu0 0
    %6908 = vmatpush1.bf16.msra.mxu0 0
    %6909 = vmatprep.subr.bf16.mxu0 0
    %6910 = vmatpush1.bf16.msra.mxu0 0
    %6911 = vmatprep.subr.bf16.mxu0 0
    %6912 = vmatpush1.bf16.msra.mxu0 0
    %6913 = vmatprep.subr.bf16.mxu0 0
    %6914 = vmatpush1.bf16.msra.mxu0 0
    %6915 = vmatprep.subr.bf16.mxu0 0
    %6916 = vmatpush1.bf16.msra.mxu0 0
    %6917 = vmatprep.subr.bf16.mxu0 0
    %6918 = vmatpush1.bf16.msra.mxu0 0
    %6919 = vmatprep.mubr.bf16.mxu0 0
    %6920 = vmatmul.mubr.bf16.gmra.mrb[0].mxu0 %v6368
    %v6921 = vpop.f32.mrb[0].mxu0
    %v6922 = vadd.f32 0.0, %v6921
    %v6923 = vpop.f32.mrb[0].mxu0
    %v6924 = vadd.f32 0.0, %v6923
    %v6925 = vpop.f32.mrb[0].mxu0
    %v6926 = vpop.f32.mrb[0].mxu0
    %6927 = vdwg.mxu0
    %6928 = vmatprep.subr.bf16.mxu0 %v6826
    %6929 = vmatpush1.bf16.msra.mxu0 %v6825
    %6930 = vmatprep.subr.bf16.mxu0 %v6830
    %6931 = vmatpush1.bf16.msra.mxu0 %v6829
    %6932 = vmatprep.subr.bf16.mxu0 %v6834
    %6933 = vmatpush1.bf16.msra.mxu0 %v6833
    %6934 = vmatprep.subr.bf16.mxu0 %v6838
    %6935 = vmatpush1.bf16.msra.mxu0 %v6837
    %6936 = vmatprep.subr.bf16.mxu0 %v6842
    %6937 = vmatpush1.bf16.msra.mxu0 %v6841
    %6938 = vmatprep.subr.bf16.mxu0 %v6846
    %6939 = vmatpush1.bf16.msra.mxu0 %v6845
    %6940 = vmatprep.subr.bf16.mxu0 %v6850
    %6941 = vmatpush1.bf16.msra.mxu0 %v6849
    %6942 = vmatprep.subr.bf16.mxu0 %v6854
    %6943 = vmatpush1.bf16.msra.mxu0 %v6853
    %6944 = vmatprep.subr.bf16.mxu0 0
    %6945 = vmatpush1.bf16.msra.mxu0 0
    %6946 = vmatprep.subr.bf16.mxu0 0
    %6947 = vmatpush1.bf16.msra.mxu0 0
    %6948 = vmatprep.subr.bf16.mxu0 0
    %6949 = vmatpush1.bf16.msra.mxu0 0
    %6950 = vmatprep.subr.bf16.mxu0 0
    %6951 = vmatpush1.bf16.msra.mxu0 0
    %6952 = vmatprep.subr.bf16.mxu0 0
    %6953 = vmatpush1.bf16.msra.mxu0 0
    %6954 = vmatprep.subr.bf16.mxu0 0
    %6955 = vmatpush1.bf16.msra.mxu0 0
    %6956 = vmatprep.subr.bf16.mxu0 0
    %6957 = vmatpush1.bf16.msra.mxu0 0
    %6958 = vmatprep.subr.bf16.mxu0 0
    %6959 = vmatpush1.bf16.msra.mxu0 0
    %6960 = vmatprep.mubr.bf16.mxu0 0
    %6961 = vmatmul.mubr.bf16.gmra.mrb[0].mxu0 %v6368
    %v6962 = vpop.f32.mrb[0].mxu0
    %v6963 = vadd.f32 0.0, %v6962
    %v6964 = vpop.f32.mrb[0].mxu0
    %v6965 = vadd.f32 0.0, %v6964
    %v6966 = vpop.f32.mrb[0].mxu0
    %v6967 = vpop.f32.mrb[0].mxu0
    %6968 = vdwg.mxu0
    %s6969 = scalar_lea.vmem [#allocation2], 224
    %v6970 = vld [vmem:[%s6969] sm:$0xff]
    %v6971 = vld [vmem:[%s6969 + $0x8] sm:$0xff]
    %v6972 = vld [vmem:[%s6969 + $0x10] sm:$0xff]
    %v6973 = vld [vmem:[%s6969 + $0x18] sm:$0xff]
    %v6974 = vadd.f32 %v6970, %v6922
    %v6975 = vadd.f32 %v6971, %v6924
    %v6976 = vadd.f32 %v6972, %v6963
    %v6977 = vadd.f32 %v6973, %v6965
    %v6978 = vxor.u32 %v6974, 2147483648
    %v6979 = vxor.u32 %v6975, 2147483648
    %v6980 = vxor.u32 %v6976, 2147483648
    %v6981 = vmul.f32 %v6978, 1.442695
    %v6982 = vpow.pop %v6981
    %v6983 = vmul.f32 %v6979, 1.442695
    %v6984 = vpow.pop %v6983
    %v6985 = vmul.f32 %v6980, 1.442695
    %v6986 = vpow.pop %v6985
    %v6987 = vadd.f32 %v6982, 1.0
    %v6988 = vadd.f32 %v6984, 1.0
    %v6989 = vadd.f32 %v6986, 1.0
    %v6990 = vrcp.pop %v6987
    %v6991 = vmul.f32 1.0, %v6990
    %v6992 = vrcp.pop %v6988
    %v6993 = vmul.f32 1.0, %v6992
    %v6994 = vrcp.pop %v6989
    %v6995 = vmul.f32 1.0, %v6994
    %v6996 = vtanh.pop %v6977
    %v6997 = vmul.f32 %v6993, %v6090
    %v6998 = vmul.f32 %v6991, %v6996
    %v6999 = vadd.f32 %v6997, %v6998
    %v7000 = vtanh.pop %v6999
    %v7001 = vmul.f32 %v6995, %v7000
    %v7002 = vpack.c.bf16 %v6692, %v6692
    %v7003 = vld [vmem:[#allocation7] sm:$0xff]
    %v7004 = vld [vmem:[#allocation7 + $0x8] sm:$0xff]
    %v7005 = vld [vmem:[#allocation7 + $0x10] sm:$0xff]
    %v7006 = vld [vmem:[#allocation7 + $0x18] sm:$0xff]
    %v7007 = vld [vmem:[#allocation7 + $0x20] sm:$0xff]
    %v7008 = vld [vmem:[#allocation7 + $0x28] sm:$0xff]
    %v7009 = vld [vmem:[#allocation7 + $0x30] sm:$0xff]
    %v7010 = vld [vmem:[#allocation7 + $0x38] sm:$0xff]
    %v7011 = vld [vmem:[#allocation7 + $0x40] sm:$0xff]
    %v7012 = vld [vmem:[#allocation7 + $0x48] sm:$0xff]
    %v7013 = vld [vmem:[#allocation7 + $0x50] sm:$0xff]
    %v7014 = vld [vmem:[#allocation7 + $0x58] sm:$0xff]
    %v7015 = vld [vmem:[#allocation7 + $0x60] sm:$0xff]
    %v7016 = vld [vmem:[#allocation7 + $0x68] sm:$0xff]
    %v7017 = vld [vmem:[#allocation7 + $0x70] sm:$0xff]
    %v7018 = vld [vmem:[#allocation7 + $0x78] sm:$0xff]
    %v7019 = vld [vmem:[#allocation7 + $0x80] sm:$0xff]
    %v7020 = vld [vmem:[#allocation7 + $0x88] sm:$0xff]
    %v7021 = vld [vmem:[#allocation7 + $0x90] sm:$0xff]
    %v7022 = vld [vmem:[#allocation7 + $0x98] sm:$0xff]
    %v7023 = vld [vmem:[#allocation7 + $0xa0] sm:$0xff]
    %v7024 = vld [vmem:[#allocation7 + $0xa8] sm:$0xff]
    %v7025 = vld [vmem:[#allocation7 + $0xb0] sm:$0xff]
    %v7026 = vld [vmem:[#allocation7 + $0xb8] sm:$0xff]
    %v7027 = vld [vmem:[#allocation7 + $0xc0] sm:$0xff]
    %v7028 = vld [vmem:[#allocation7 + $0xc8] sm:$0xff]
    %v7029 = vld [vmem:[#allocation7 + $0xd0] sm:$0xff]
    %v7030 = vld [vmem:[#allocation7 + $0xd8] sm:$0xff]
    %v7031 = vld [vmem:[#allocation7 + $0xe0] sm:$0xff]
    %v7032 = vld [vmem:[#allocation7 + $0xe8] sm:$0xff]
    %v7033 = vld [vmem:[#allocation7 + $0xf0] sm:$0xff]
    %v7034 = vld [vmem:[#allocation7 + $0xf8] sm:$0xff]
    %v7067 = vunpack.c.l.b16 %v7003
    %v7068 = vunpack.c.h.b16 %v7003
    %v7069 = vunpack.c.l.b16 %v7004
    %v7070 = vunpack.c.h.b16 %v7004
    %v7071 = vunpack.c.l.b16 %v7005
    %v7072 = vunpack.c.h.b16 %v7005
    %v7073 = vunpack.c.l.b16 %v7006
    %v7074 = vunpack.c.h.b16 %v7006
    %v7075 = vunpack.c.l.b16 %v7007
    %v7076 = vunpack.c.h.b16 %v7007
    %v7077 = vunpack.c.l.b16 %v7008
    %v7078 = vunpack.c.h.b16 %v7008
    %v7079 = vunpack.c.l.b16 %v7009
    %v7080 = vunpack.c.h.b16 %v7009
    %v7081 = vunpack.c.l.b16 %v7010
    %v7082 = vunpack.c.h.b16 %v7010
    %v7083 = vunpack.c.l.b16 %v7011
    %v7084 = vunpack.c.h.b16 %v7011
    %v7085 = vunpack.c.l.b16 %v7012
    %v7086 = vunpack.c.h.b16 %v7012
    %v7087 = vunpack.c.l.b16 %v7013
    %v7088 = vunpack.c.h.b16 %v7013
    %v7089 = vunpack.c.l.b16 %v7014
    %v7090 = vunpack.c.h.b16 %v7014
    %v7091 = vunpack.c.l.b16 %v7015
    %v7092 = vunpack.c.h.b16 %v7015
    %v7093 = vunpack.c.l.b16 %v7016
    %v7094 = vunpack.c.h.b16 %v7016
    %v7095 = vunpack.c.l.b16 %v7017
    %v7096 = vunpack.c.h.b16 %v7017
    %v7097 = vunpack.c.l.b16 %v7018
    %v7098 = vunpack.c.h.b16 %v7018
    %v7099 = vunpack.c.l.b16 %v7019
    %v7100 = vunpack.c.h.b16 %v7019
    %v7101 = vunpack.c.l.b16 %v7020
    %v7102 = vunpack.c.h.b16 %v7020
    %v7103 = vunpack.c.l.b16 %v7021
    %v7104 = vunpack.c.h.b16 %v7021
    %v7105 = vunpack.c.l.b16 %v7022
    %v7106 = vunpack.c.h.b16 %v7022
    %v7107 = vunpack.c.l.b16 %v7023
    %v7108 = vunpack.c.h.b16 %v7023
    %v7109 = vunpack.c.l.b16 %v7024
    %v7110 = vunpack.c.h.b16 %v7024
    %v7111 = vunpack.c.l.b16 %v7025
    %v7112 = vunpack.c.h.b16 %v7025
    %v7113 = vunpack.c.l.b16 %v7026
    %v7114 = vunpack.c.h.b16 %v7026
    %v7115 = vunpack.c.l.b16 %v7027
    %v7116 = vunpack.c.h.b16 %v7027
    %v7117 = vunpack.c.l.b16 %v7028
    %v7118 = vunpack.c.h.b16 %v7028
    %v7119 = vunpack.c.l.b16 %v7029
    %v7120 = vunpack.c.h.b16 %v7029
    %v7121 = vunpack.c.l.b16 %v7030
    %v7122 = vunpack.c.h.b16 %v7030
    %v7123 = vunpack.c.l.b16 %v7031
    %v7124 = vunpack.c.h.b16 %v7031
    %v7125 = vunpack.c.l.b16 %v7032
    %v7126 = vunpack.c.h.b16 %v7032
    %v7127 = vunpack.c.l.b16 %v7033
    %v7128 = vunpack.c.h.b16 %v7033
    %v7129 = vunpack.c.l.b16 %v7034
    %v7130 = vunpack.c.h.b16 %v7034
    %v7131 = vpack.c.b16 %v7071, %v7067
    %v7132 = vpack.c.b16 %v7072, %v7068
    %v7133 = vpack.c.b16 %v7073, %v7069
    %v7134 = vpack.c.b16 %v7074, %v7070
    %v7135 = vpack.c.b16 %v7079, %v7075
    %v7136 = vpack.c.b16 %v7080, %v7076
    %v7137 = vpack.c.b16 %v7081, %v7077
    %v7138 = vpack.c.b16 %v7082, %v7078
    %v7139 = vpack.c.b16 %v7087, %v7083
    %v7140 = vpack.c.b16 %v7088, %v7084
    %v7141 = vpack.c.b16 %v7089, %v7085
    %v7142 = vpack.c.b16 %v7090, %v7086
    %v7143 = vpack.c.b16 %v7095, %v7091
    %v7144 = vpack.c.b16 %v7096, %v7092
    %v7145 = vpack.c.b16 %v7097, %v7093
    %v7146 = vpack.c.b16 %v7098, %v7094
    %v7147 = vpack.c.b16 %v7103, %v7099
    %v7148 = vpack.c.b16 %v7104, %v7100
    %v7149 = vpack.c.b16 %v7105, %v7101
    %v7150 = vpack.c.b16 %v7106, %v7102
    %v7151 = vpack.c.b16 %v7111, %v7107
    %v7152 = vpack.c.b16 %v7112, %v7108
    %v7153 = vpack.c.b16 %v7113, %v7109
    %v7154 = vpack.c.b16 %v7114, %v7110
    %v7155 = vpack.c.b16 %v7119, %v7115
    %v7156 = vpack.c.b16 %v7120, %v7116
    %v7157 = vpack.c.b16 %v7121, %v7117
    %v7158 = vpack.c.b16 %v7122, %v7118
    %v7159 = vpack.c.b16 %v7127, %v7123
    %v7160 = vpack.c.b16 %v7128, %v7124
    %v7161 = vpack.c.b16 %v7129, %v7125
    %v7162 = vpack.c.b16 %v7130, %v7126
    %7195 = vmatprep.subr.bf16.mxu0 %v7132
    %7196 = vmatpush1.bf16.msra.mxu0 %v7131
    %7197 = vmatprep.subr.bf16.mxu0 %v7136
    %7198 = vmatpush1.bf16.msra.mxu0 %v7135
    %7199 = vmatprep.subr.bf16.mxu0 %v7140
    %7200 = vmatpush1.bf16.msra.mxu0 %v7139
    %7201 = vmatprep.subr.bf16.mxu0 %v7144
    %7202 = vmatpush1.bf16.msra.mxu0 %v7143
    %7203 = vmatprep.subr.bf16.mxu0 %v7148
    %7204 = vmatpush1.bf16.msra.mxu0 %v7147
    %7205 = vmatprep.subr.bf16.mxu0 %v7152
    %7206 = vmatpush1.bf16.msra.mxu0 %v7151
    %7207 = vmatprep.subr.bf16.mxu0 %v7156
    %7208 = vmatpush1.bf16.msra.mxu0 %v7155
    %7209 = vmatprep.subr.bf16.mxu0 %v7160
    %7210 = vmatpush1.bf16.msra.mxu0 %v7159
    %7211 = vmatprep.subr.bf16.mxu0 0
    %7212 = vmatpush1.bf16.msra.mxu0 0
    %7213 = vmatprep.subr.bf16.mxu0 0
    %7214 = vmatpush1.bf16.msra.mxu0 0
    %7215 = vmatprep.subr.bf16.mxu0 0
    %7216 = vmatpush1.bf16.msra.mxu0 0
    %7217 = vmatprep.subr.bf16.mxu0 0
    %7218 = vmatpush1.bf16.msra.mxu0 0
    %7219 = vmatprep.subr.bf16.mxu0 0
    %7220 = vmatpush1.bf16.msra.mxu0 0
    %7221 = vmatprep.subr.bf16.mxu0 0
    %7222 = vmatpush1.bf16.msra.mxu0 0
    %7223 = vmatprep.subr.bf16.mxu0 0
    %7224 = vmatpush1.bf16.msra.mxu0 0
    %7225 = vmatprep.subr.bf16.mxu0 0
    %7226 = vmatpush1.bf16.msra.mxu0 0
    %7227 = vmatprep.mubr.bf16.mxu0 0
    %7228 = vmatmul.mubr.bf16.gmra.mrb[0].mxu0 %v7002
    %v7229 = vpop.f32.mrb[0].mxu0
    %v7230 = vadd.f32 0.0, %v7229
    %v7231 = vpop.f32.mrb[0].mxu0
    %v7232 = vadd.f32 0.0, %v7231
    %v7233 = vpop.f32.mrb[0].mxu0
    %v7234 = vpop.f32.mrb[0].mxu0
    %7235 = vdwg.mxu0
    %7236 = vmatprep.subr.bf16.mxu0 %v7134
    %7237 = vmatpush1.bf16.msra.mxu0 %v7133
    %7238 = vmatprep.subr.bf16.mxu0 %v7138
    %7239 = vmatpush1.bf16.msra.mxu0 %v7137
    %7240 = vmatprep.subr.bf16.mxu0 %v7142
    %7241 = vmatpush1.bf16.msra.mxu0 %v7141
    %7242 = vmatprep.subr.bf16.mxu0 %v7146
    %7243 = vmatpush1.bf16.msra.mxu0 %v7145
    %7244 = vmatprep.subr.bf16.mxu0 %v7150
    %7245 = vmatpush1.bf16.msra.mxu0 %v7149
    %7246 = vmatprep.subr.bf16.mxu0 %v7154
    %7247 = vmatpush1.bf16.msra.mxu0 %v7153
    %7248 = vmatprep.subr.bf16.mxu0 %v7158
    %7249 = vmatpush1.bf16.msra.mxu0 %v7157
    %7250 = vmatprep.subr.bf16.mxu0 %v7162
    %7251 = vmatpush1.bf16.msra.mxu0 %v7161
    %7252 = vmatprep.subr.bf16.mxu0 0
    %7253 = vmatpush1.bf16.msra.mxu0 0
    %7254 = vmatprep.subr.bf16.mxu0 0
    %7255 = vmatpush1.bf16.msra.mxu0 0
    %7256 = vmatprep.subr.bf16.mxu0 0
    %7257 = vmatpush1.bf16.msra.mxu0 0
    %7258 = vmatprep.subr.bf16.mxu0 0
    %7259 = vmatpush1.bf16.msra.mxu0 0
    %7260 = vmatprep.subr.bf16.mxu0 0
    %7261 = vmatpush1.bf16.msra.mxu0 0
    %7262 = vmatprep.subr.bf16.mxu0 0
    %7263 = vmatpush1.bf16.msra.mxu0 0
    %7264 = vmatprep.subr.bf16.mxu0 0
    %7265 = vmatpush1.bf16.msra.mxu0 0
    %7266 = vmatprep.subr.bf16.mxu0 0
    %7267 = vmatpush1.bf16.msra.mxu0 0
    %7268 = vmatprep.mubr.bf16.mxu0 0
    %7269 = vmatmul.mubr.bf16.gmra.mrb[0].mxu0 %v7002
    %v7270 = vpop.f32.mrb[0].mxu0
    %v7271 = vadd.f32 0.0, %v7270
    %v7272 = vpop.f32.mrb[0].mxu0
    %v7273 = vadd.f32 0.0, %v7272
    %v7274 = vpop.f32.mrb[0].mxu0
    %v7275 = vpop.f32.mrb[0].mxu0
    %7276 = vdwg.mxu0
    %v7277 = vpack.c.bf16 %v7001, %v7001
    %v7278 = vld [vmem:[#allocation5] sm:$0xff]
    %v7279 = vld [vmem:[#allocation5 + $0x8] sm:$0xff]
    %v7280 = vld [vmem:[#allocation5 + $0x10] sm:$0xff]
    %v7281 = vld [vmem:[#allocation5 + $0x18] sm:$0xff]
    %v7282 = vld [vmem:[#allocation5 + $0x20] sm:$0xff]
    %v7283 = vld [vmem:[#allocation5 + $0x28] sm:$0xff]
    %v7284 = vld [vmem:[#allocation5 + $0x30] sm:$0xff]
    %v7285 = vld [vmem:[#allocation5 + $0x38] sm:$0xff]
    %v7286 = vld [vmem:[#allocation5 + $0x40] sm:$0xff]
    %v7287 = vld [vmem:[#allocation5 + $0x48] sm:$0xff]
    %v7288 = vld [vmem:[#allocation5 + $0x50] sm:$0xff]
    %v7289 = vld [vmem:[#allocation5 + $0x58] sm:$0xff]
    %v7290 = vld [vmem:[#allocation5 + $0x60] sm:$0xff]
    %v7291 = vld [vmem:[#allocation5 + $0x68] sm:$0xff]
    %v7292 = vld [vmem:[#allocation5 + $0x70] sm:$0xff]
    %v7293 = vld [vmem:[#allocation5 + $0x78] sm:$0xff]
    %v7294 = vld [vmem:[#allocation5 + $0x80] sm:$0xff]
    %v7295 = vld [vmem:[#allocation5 + $0x88] sm:$0xff]
    %v7296 = vld [vmem:[#allocation5 + $0x90] sm:$0xff]
    %v7297 = vld [vmem:[#allocation5 + $0x98] sm:$0xff]
    %v7298 = vld [vmem:[#allocation5 + $0xa0] sm:$0xff]
    %v7299 = vld [vmem:[#allocation5 + $0xa8] sm:$0xff]
    %v7300 = vld [vmem:[#allocation5 + $0xb0] sm:$0xff]
    %v7301 = vld [vmem:[#allocation5 + $0xb8] sm:$0xff]
    %v7302 = vld [vmem:[#allocation5 + $0xc0] sm:$0xff]
    %v7303 = vld [vmem:[#allocation5 + $0xc8] sm:$0xff]
    %v7304 = vld [vmem:[#allocation5 + $0xd0] sm:$0xff]
    %v7305 = vld [vmem:[#allocation5 + $0xd8] sm:$0xff]
    %v7306 = vld [vmem:[#allocation5 + $0xe0] sm:$0xff]
    %v7307 = vld [vmem:[#allocation5 + $0xe8] sm:$0xff]
    %v7308 = vld [vmem:[#allocation5 + $0xf0] sm:$0xff]
    %v7309 = vld [vmem:[#allocation5 + $0xf8] sm:$0xff]
    %v7342 = vunpack.c.l.b16 %v7278
    %v7343 = vunpack.c.h.b16 %v7278
    %v7344 = vunpack.c.l.b16 %v7279
    %v7345 = vunpack.c.h.b16 %v7279
    %v7346 = vunpack.c.l.b16 %v7280
    %v7347 = vunpack.c.h.b16 %v7280
    %v7348 = vunpack.c.l.b16 %v7281
    %v7349 = vunpack.c.h.b16 %v7281
    %v7350 = vunpack.c.l.b16 %v7282
    %v7351 = vunpack.c.h.b16 %v7282
    %v7352 = vunpack.c.l.b16 %v7283
    %v7353 = vunpack.c.h.b16 %v7283
    %v7354 = vunpack.c.l.b16 %v7284
    %v7355 = vunpack.c.h.b16 %v7284
    %v7356 = vunpack.c.l.b16 %v7285
    %v7357 = vunpack.c.h.b16 %v7285
    %v7358 = vunpack.c.l.b16 %v7286
    %v7359 = vunpack.c.h.b16 %v7286
    %v7360 = vunpack.c.l.b16 %v7287
    %v7361 = vunpack.c.h.b16 %v7287
    %v7362 = vunpack.c.l.b16 %v7288
    %v7363 = vunpack.c.h.b16 %v7288
    %v7364 = vunpack.c.l.b16 %v7289
    %v7365 = vunpack.c.h.b16 %v7289
    %v7366 = vunpack.c.l.b16 %v7290
    %v7367 = vunpack.c.h.b16 %v7290
    %v7368 = vunpack.c.l.b16 %v7291
    %v7369 = vunpack.c.h.b16 %v7291
    %v7370 = vunpack.c.l.b16 %v7292
    %v7371 = vunpack.c.h.b16 %v7292
    %v7372 = vunpack.c.l.b16 %v7293
    %v7373 = vunpack.c.h.b16 %v7293
    %v7374 = vunpack.c.l.b16 %v7294
    %v7375 = vunpack.c.h.b16 %v7294
    %v7376 = vunpack.c.l.b16 %v7295
    %v7377 = vunpack.c.h.b16 %v7295
    %v7378 = vunpack.c.l.b16 %v7296
    %v7379 = vunpack.c.h.b16 %v7296
    %v7380 = vunpack.c.l.b16 %v7297
    %v7381 = vunpack.c.h.b16 %v7297
    %v7382 = vunpack.c.l.b16 %v7298
    %v7383 = vunpack.c.h.b16 %v7298
    %v7384 = vunpack.c.l.b16 %v7299
    %v7385 = vunpack.c.h.b16 %v7299
    %v7386 = vunpack.c.l.b16 %v7300
    %v7387 = vunpack.c.h.b16 %v7300
    %v7388 = vunpack.c.l.b16 %v7301
    %v7389 = vunpack.c.h.b16 %v7301
    %v7390 = vunpack.c.l.b16 %v7302
    %v7391 = vunpack.c.h.b16 %v7302
    %v7392 = vunpack.c.l.b16 %v7303
    %v7393 = vunpack.c.h.b16 %v7303
    %v7394 = vunpack.c.l.b16 %v7304
    %v7395 = vunpack.c.h.b16 %v7304
    %v7396 = vunpack.c.l.b16 %v7305
    %v7397 = vunpack.c.h.b16 %v7305
    %v7398 = vunpack.c.l.b16 %v7306
    %v7399 = vunpack.c.h.b16 %v7306
    %v7400 = vunpack.c.l.b16 %v7307
    %v7401 = vunpack.c.h.b16 %v7307
    %v7402 = vunpack.c.l.b16 %v7308
    %v7403 = vunpack.c.h.b16 %v7308
    %v7404 = vunpack.c.l.b16 %v7309
    %v7405 = vunpack.c.h.b16 %v7309
    %v7406 = vpack.c.b16 %v7346, %v7342
    %v7407 = vpack.c.b16 %v7347, %v7343
    %v7408 = vpack.c.b16 %v7348, %v7344
    %v7409 = vpack.c.b16 %v7349, %v7345
    %v7410 = vpack.c.b16 %v7354, %v7350
    %v7411 = vpack.c.b16 %v7355, %v7351
    %v7412 = vpack.c.b16 %v7356, %v7352
    %v7413 = vpack.c.b16 %v7357, %v7353
    %v7414 = vpack.c.b16 %v7362, %v7358
    %v7415 = vpack.c.b16 %v7363, %v7359
    %v7416 = vpack.c.b16 %v7364, %v7360
    %v7417 = vpack.c.b16 %v7365, %v7361
    %v7418 = vpack.c.b16 %v7370, %v7366
    %v7419 = vpack.c.b16 %v7371, %v7367
    %v7420 = vpack.c.b16 %v7372, %v7368
    %v7421 = vpack.c.b16 %v7373, %v7369
    %v7422 = vpack.c.b16 %v7378, %v7374
    %v7423 = vpack.c.b16 %v7379, %v7375
    %v7424 = vpack.c.b16 %v7380, %v7376
    %v7425 = vpack.c.b16 %v7381, %v7377
    %v7426 = vpack.c.b16 %v7386, %v7382
    %v7427 = vpack.c.b16 %v7387, %v7383
    %v7428 = vpack.c.b16 %v7388, %v7384
    %v7429 = vpack.c.b16 %v7389, %v7385
    %v7430 = vpack.c.b16 %v7394, %v7390
    %v7431 = vpack.c.b16 %v7395, %v7391
    %v7432 = vpack.c.b16 %v7396, %v7392
    %v7433 = vpack.c.b16 %v7397, %v7393
    %v7434 = vpack.c.b16 %v7402, %v7398
    %v7435 = vpack.c.b16 %v7403, %v7399
    %v7436 = vpack.c.b16 %v7404, %v7400
    %v7437 = vpack.c.b16 %v7405, %v7401
    %7470 = vmatprep.subr.bf16.mxu0 %v7407
    %7471 = vmatpush1.bf16.msra.mxu0 %v7406
    %7472 = vmatprep.subr.bf16.mxu0 %v7411
    %7473 = vmatpush1.bf16.msra.mxu0 %v7410
    %7474 = vmatprep.subr.bf16.mxu0 %v7415
    %7475 = vmatpush1.bf16.msra.mxu0 %v7414
    %7476 = vmatprep.subr.bf16.mxu0 %v7419
    %7477 = vmatpush1.bf16.msra.mxu0 %v7418
    %7478 = vmatprep.subr.bf16.mxu0 %v7423
    %7479 = vmatpush1.bf16.msra.mxu0 %v7422
    %7480 = vmatprep.subr.bf16.mxu0 %v7427
    %7481 = vmatpush1.bf16.msra.mxu0 %v7426
    %7482 = vmatprep.subr.bf16.mxu0 %v7431
    %7483 = vmatpush1.bf16.msra.mxu0 %v7430
    %7484 = vmatprep.subr.bf16.mxu0 %v7435
    %7485 = vmatpush1.bf16.msra.mxu0 %v7434
    %7486 = vmatprep.subr.bf16.mxu0 0
    %7487 = vmatpush1.bf16.msra.mxu0 0
    %7488 = vmatprep.subr.bf16.mxu0 0
    %7489 = vmatpush1.bf16.msra.mxu0 0
    %7490 = vmatprep.subr.bf16.mxu0 0
    %7491 = vmatpush1.bf16.msra.mxu0 0
    %7492 = vmatprep.subr.bf16.mxu0 0
    %7493 = vmatpush1.bf16.msra.mxu0 0
    %7494 = vmatprep.subr.bf16.mxu0 0
    %7495 = vmatpush1.bf16.msra.mxu0 0
    %7496 = vmatprep.subr.bf16.mxu0 0
    %7497 = vmatpush1.bf16.msra.mxu0 0
    %7498 = vmatprep.subr.bf16.mxu0 0
    %7499 = vmatpush1.bf16.msra.mxu0 0
    %7500 = vmatprep.subr.bf16.mxu0 0
    %7501 = vmatpush1.bf16.msra.mxu0 0
    %7502 = vmatprep.mubr.bf16.mxu0 0
    %7503 = vmatmul.mubr.bf16.gmra.mrb[0].mxu0 %v7277
    %v7504 = vpop.f32.mrb[0].mxu0
    %v7505 = vadd.f32 %v7230, %v7504
    %v7506 = vpop.f32.mrb[0].mxu0
    %v7507 = vadd.f32 %v7232, %v7506
    %v7508 = vpop.f32.mrb[0].mxu0
    %v7509 = vpop.f32.mrb[0].mxu0
    %7510 = vdwg.mxu0
    %7511 = vmatprep.subr.bf16.mxu0 %v7409
    %7512 = vmatpush1.bf16.msra.mxu0 %v7408
    %7513 = vmatprep.subr.bf16.mxu0 %v7413
    %7514 = vmatpush1.bf16.msra.mxu0 %v7412
    %7515 = vmatprep.subr.bf16.mxu0 %v7417
    %7516 = vmatpush1.bf16.msra.mxu0 %v7416
    %7517 = vmatprep.subr.bf16.mxu0 %v7421
    %7518 = vmatpush1.bf16.msra.mxu0 %v7420
    %7519 = vmatprep.subr.bf16.mxu0 %v7425
    %7520 = vmatpush1.bf16.msra.mxu0 %v7424
    %7521 = vmatprep.subr.bf16.mxu0 %v7429
    %7522 = vmatpush1.bf16.msra.mxu0 %v7428
    %7523 = vmatprep.subr.bf16.mxu0 %v7433
    %7524 = vmatpush1.bf16.msra.mxu0 %v7432
    %7525 = vmatprep.subr.bf16.mxu0 %v7437
    %7526 = vmatpush1.bf16.msra.mxu0 %v7436
    %7527 = vmatprep.subr.bf16.mxu0 0
    %7528 = vmatpush1.bf16.msra.mxu0 0
    %7529 = vmatprep.subr.bf16.mxu0 0
    %7530 = vmatpush1.bf16.msra.mxu0 0
    %7531 = vmatprep.subr.bf16.mxu0 0
    %7532 = vmatpush1.bf16.msra.mxu0 0
    %7533 = vmatprep.subr.bf16.mxu0 0
    %7534 = vmatpush1.bf16.msra.mxu0 0
    %7535 = vmatprep.subr.bf16.mxu0 0
    %7536 = vmatpush1.bf16.msra.mxu0 0
    %7537 = vmatprep.subr.bf16.mxu0 0
    %7538 = vmatpush1.bf16.msra.mxu0 0
    %7539 = vmatprep.subr.bf16.mxu0 0
    %7540 = vmatpush1.bf16.msra.mxu0 0
    %7541 = vmatprep.subr.bf16.mxu0 0
    %7542 = vmatpush1.bf16.msra.mxu0 0
    %7543 = vmatprep.mubr.bf16.mxu0 0
    %7544 = vmatmul.mubr.bf16.gmra.mrb[0].mxu0 %v7277
    %v7545 = vpop.f32.mrb[0].mxu0
    %v7546 = vadd.f32 %v7271, %v7545
    %v7547 = vpop.f32.mrb[0].mxu0
    %v7548 = vadd.f32 %v7273, %v7547
    %v7549 = vpop.f32.mrb[0].mxu0
    %v7550 = vpop.f32.mrb[0].mxu0
    %7551 = vdwg.mxu0
    %v7552 = vld [vmem:[%s6] sm:$0xf]
    %v7554 = vlaneseq
    %v7555 = vshrl.u32 %v7554, 7
    %v7556 = vsub.s32 0, %v7555
    %v7557 = vrot.slane %v7552, %v7556
    %v7558 = vlaneseq
    %v7559 = vshrl.u32 %v7558, 7
    %v7560 = vsub.s32 1, %v7559
    %v7561 = vrot.slane %v7552, %v7560
    %v7562 = vlaneseq
    %v7563 = vshrl.u32 %v7562, 7
    %v7564 = vsub.s32 2, %v7563
    %v7565 = vrot.slane %v7552, %v7564
    %v7566 = vlaneseq
    %v7567 = vshrl.u32 %v7566, 7
    %v7568 = vsub.s32 3, %v7567
    %v7569 = vrot.slane %v7552, %v7568
    %v7574 = vadd.f32 %v7505, %v7557
    %v7575 = vadd.f32 %v7507, %v7561
    %v7576 = vadd.f32 %v7546, %v7565
    %v7577 = vadd.f32 %v7548, %v7569
    %v7578 = vxor.u32 %v7574, 2147483648
    %v7579 = vxor.u32 %v7575, 2147483648
    %v7580 = vxor.u32 %v7576, 2147483648
    %v7581 = vmul.f32 %v7578, 1.442695
    %v7582 = vpow.pop %v7581
    %v7583 = vmul.f32 %v7579, 1.442695
    %v7584 = vpow.pop %v7583
    %v7585 = vmul.f32 %v7580, 1.442695
    %v7586 = vpow.pop %v7585
    %v7587 = vadd.f32 %v7582, 1.0
    %v7588 = vadd.f32 %v7584, 1.0
    %v7589 = vadd.f32 %v7586, 1.0
    %v7590 = vrcp.pop %v7587
    %v7591 = vmul.f32 1.0, %v7590
    %v7592 = vrcp.pop %v7588
    %v7593 = vmul.f32 1.0, %v7592
    %v7594 = vrcp.pop %v7589
    %v7595 = vmul.f32 1.0, %v7594
    %v7596 = vtanh.pop %v7577
    %v7597 = vmul.f32 %v7593, %v6690
    %v7598 = vmul.f32 %v7591, %v7596
    %v7599 = vadd.f32 %v7597, %v7598
    %v7600 = vtanh.pop %v7599
    %v7601 = vmul.f32 %v7595, %v7600
    %s7602 = scalar_lea.vmem %s7, 56
    %7603 = vst [vmem:[%s7602] sm:$0xff] %v7601
    %7604 = vst [vmem:[%s8] sm:$0xff] %v7001
    %s7605 = scalar_lea.vmem %s8, 8
    %7606 = vst [vmem:[%s7605] sm:$0xff] %v7601
    // Predicated region
    $region42: #{encoder_forward.1} parent=1 // pred_check
      _
    $region43: #{encoder_forward.1} parent=1 // pred_check_branch
      %7608 = sbr.rel (0) target = $region45
    $region44: #{encoder_forward.1} parent=1 // pred_region
      _
    $region45: #{encoder_forward.1} parent=1 // pred_fallthru
      _
    // Predicated region
    $region46: #{encoder_forward.1} parent=1 // pred_check
      _
    $region47: #{encoder_forward.1} parent=1 // pred_check_branch
      %7610 = sbr.rel (0) target = $region49
    $region48: #{encoder_forward.1} parent=1 // pred_region
      _
    $region49: #{encoder_forward.1} parent=1 // pred_fallthru
      _
    // Predicated region
    $region50: #{encoder_forward.1} parent=1 // pred_check
      _
    $region51: #{encoder_forward.1} parent=1 // pred_check_branch
      %7612 = sbr.rel (0) target = $region53
    $region52: #{encoder_forward.1} parent=1 // pred_region
      _
    $region53: #{encoder_forward.1} parent=1 // pred_fallthru
      _
    // Predicated region
    $region54: #{encoder_forward.1} parent=1 // pred_check
      _
    $region55: #{encoder_forward.1} parent=1 // pred_check_branch
      %7614 = sbr.rel (0) target = $region57
    $region56: #{encoder_forward.1} parent=1 // pred_region
      _
    $region57: #{encoder_forward.1} parent=1 // pred_fallthru
      _
    %7615 = vsyncpa [#allocation4], 1
    %7616 = vsyncpa [#allocation6], 1

</llo_original>
